<compile_context>
chip_gen: v7x
topology: tpu7x:2x2x1
jax: 0.10.0
libtpu: 0.0.40
codegen_flags: <defaults>
</compile_context>

<pallas_src>
import math

import jax
import jax.numpy as jnp
from jax import lax
from jax.experimental import pallas as pl
from jax.experimental.pallas import tpu as pltpu

# ----------------------------------------------------------------- config ---
B        = 2                                  # batch (== GAT batch_size)
C_IN0    = 4                                  # original c_in given to gcn3
SUPPORTS = 3                                  # support_len
ORDER    = 2
ALPHA    = 0.2                                # LeakyReLU slope
C        = (ORDER * SUPPORTS + 1) * C_IN0     # expanded c_in = GAT feature dim (28)
C_OUT    = 32                                 # mlp output channels
N_NODES  = 16                                 # graph nodes
T_STEPS  = 8                                  # time steps
TN       = T_STEPS * N_NODES                  # 128 -> lane-dense token axis
L_ATT    = SUPPORTS * ORDER                   # total GAT applications (6)
P_CAT    = 1 + L_ATT                          # pieces concatenated before mlp
NEG_INF  = -9.0e15                            # torch's zero_vec constant

assert TN == 128, "token axis chosen lane-dense (T*N == 128)"
assert N_NODES % 8 == 0, "keeps the (TN,C)<->(T,N,C) reshape layout-friendly"


# ----------------------------------------------------------------- kernel ---
def _gcn3_kernel(x_ref, adj_ref, w_ref, a_ref, mw_ref, mb_ref, o_ref):
    """One grid step == one batch element through the full gcn3 forward."""
    h0 = x_ref[0]                                     # (TN, C), token-major

    def gat(h_tok, li, si, extra_relu):
        """GraphAttentionLayer(h, adj) with concat=True (ELU), eval mode."""
        W   = w_ref[0, li]                            # (C, C)
        aa  = a_ref[0, li]                            # (2, C) = (a1, a2)
        a1  = aa[0:1, :].reshape(1, 1, C)
        a2  = aa[1:2, :].reshape(1, 1, C)
        adj = adj_ref[0, si]                          # (N, N)

        # Wh = einsum('bfnt,bfc->bcnt')  (token-major here)
        Wh  = jnp.dot(h_tok, W, preferred_element_type=jnp.float32)   # (TN, C)
        Wh3 = Wh.reshape(T_STEPS, N_NODES, C)                         # (T, N, C)

        # e[t,n,m] = LeakyReLU( a1 . Wh[:,n,t]  +  a2 . Wh[:,m,t] )
        e_src = jnp.sum(Wh3 * a1, axis=-1, keepdims=True)             # (T, N, 1)
        e_dst = jnp.sum(Wh3 * a2, axis=-1)                            # (T, N)
        e = e_src + e_dst[:, None, :]                                 # (T, N, N)
        e = jnp.where(e > 0, e, ALPHA * e)

        # adjacency mask + softmax over the neighbour axis m (lane dim)
        att = jnp.where(adj[None, :, :] > 0, e, NEG_INF)
        att = att - jnp.max(att, axis=-1, keepdims=True)
        att = jnp.exp(att)
        att = att / jnp.sum(att, axis=-1, keepdims=True)
        # attention dropout: inference -> identity

        # h' = einsum('bnmt,bcmt->bcnt')
        hp = jnp.einsum('tnm,tmc->tnc', att, Wh3,
                        preferred_element_type=jnp.float32)           # (T, N, C)
        hp = hp.reshape(TN, C)
        hp = jnp.where(hp > 0, hp, jnp.exp(hp) - 1.0)                 # ELU (concat=True)
        if extra_relu:                       # F.relu wrapping attentionsK hops
            hp = jnp.maximum(hp, 0.0)
        return hp

    # gcn3.forward: out = [x]; per support: attentions[s], then order-1 hops
    pieces = [h0]
    li = 0
    for si in range(SUPPORTS):
        x1 = gat(h0, li, si, extra_relu=False); li += 1
        pieces.append(x1)
        for _ in range(2, ORDER + 1):
            x2 = gat(x1, li, si, extra_relu=True); li += 1
            pieces.append(x2)
            x1 = x2

    # mlp (1x1 conv) over the channel concat, computed transposed so the HBM
    # store is lane-dense: out[c_out, t*N + n].  Split-accumulate over the
    # concat pieces avoids materializing the concat.
    acc = jnp.zeros((C_OUT, TN), jnp.float32)
    for p, piece in enumerate(pieces):
        acc = acc + lax.dot_general(
            mw_ref[p], piece,                         # (C_OUT,C) x (TN,C)^T
            dimension_numbers=(((1,), (1,)), ((), ())),
            preferred_element_type=jnp.float32)
    o_ref[0] = acc + mb_ref[...]                      # bias broadcast over lanes
    # output dropout: inference -> identity


# ---------------------------------------------------------------- wrapper ---
def gcn3_forward(x, supports, params):
    """x: (B, C, N, T); supports: (B, SUPPORTS, N, N); -> (B, C_OUT, N, T)."""
    # token-major layout (flat token = t*N + n); cheap one-time XLA transpose
    x_tok = jnp.transpose(x, (0, 3, 2, 1)).reshape(B, TN, C)

    out_tok = pl.pallas_call(
        _gcn3_kernel,
        out_shape=jax.ShapeDtypeStruct((B, C_OUT, TN), jnp.float32),
        grid=(B,),
        in_specs=[
            pl.BlockSpec((1, TN, C),                      lambda b: (b, 0, 0)),
            pl.BlockSpec((1, SUPPORTS, N_NODES, N_NODES), lambda b: (b, 0, 0, 0)),
            pl.BlockSpec((1, L_ATT, C, C),                lambda b: (b, 0, 0, 0)),
            pl.BlockSpec((1, L_ATT, 2, C),                lambda b: (b, 0, 0, 0)),
            pl.BlockSpec((P_CAT, C_OUT, C),               lambda b: (0, 0, 0)),
            pl.BlockSpec((C_OUT, 1),                      lambda b: (0, 0)),
        ],
        out_specs=pl.BlockSpec((1, C_OUT, TN),            lambda b: (b, 0, 0)),
        compiler_params=pltpu.CompilerParams(
            dimension_semantics=("parallel",)),
    )(x_tok, supports, params['W_att'], params['a_att'],
      params['mlp_W'], params['mlp_b'])

    # (B, C_OUT, T*N) -> (B, C_OUT, N, T)  (NCHW like the reference)
    return jnp.transpose(out_tok.reshape(B, C_OUT, T_STEPS, N_NODES),
                         (0, 1, 3, 2))


# ----------------------------------------------------------------- params ---
def _xavier_uniform(key, shape, gain=1.414):
    fan_in, fan_out = shape[-2], shape[-1]
    lim = gain * math.sqrt(6.0 / (fan_in + fan_out))
    return jax.random.uniform(key, shape, jnp.float32, -lim, lim)


def init_params(key):
    kw, ka, km, kb = jax.random.split(key, 4)
    # GAT weights stacked in usage order: [att_0, attK_0, att_1, attK_1, ...]
    W_att = _xavier_uniform(kw, (B, L_ATT, C, C))       # per-layer W: (B, C, C)
    a_att = _xavier_uniform(ka, (B, L_ATT, 2, C))       # per-layer a split (a1, a2)
    # mlp 1x1 conv weight, pre-split per concat piece: (P_CAT, C_OUT, C)
    mlp_W = 0.1 * jax.random.normal(km, (P_CAT, C_OUT, C), jnp.float32)
    mlp_b = 0.1 * jax.random.normal(kb, (C_OUT, 1), jnp.float32)
    return dict(W_att=W_att, a_att=a_att, mlp_W=mlp_W, mlp_b=mlp_b)


# ------------------------------------------------------------------- main ---
if __name__ == "__main__":
    key = jax.random.PRNGKey(0)
    kx, ks, kp = jax.random.split(key, 3)

    params = init_params(kp)
    x = jax.random.normal(kx, (B, C, N_NODES, T_STEPS), jnp.float32)
    # sparse-ish weighted adjacency supports (zeros exercise the -9e15 mask)
    u = jax.random.uniform(ks, (B, SUPPORTS, N_NODES, N_NODES), jnp.float32)
    supports = jnp.where(u > 0.4, u, 0.0)

    fwd = jax.jit(gcn3_forward)
    out = jax.block_until_ready(fwd(x, supports, params))

    assert out.shape == (B, C_OUT, N_NODES, T_STEPS), out.shape
    assert bool(jnp.all(jnp.isfinite(out)))
    print("KERNEL_OK")
</pallas_src>

<mosaic_0001>
module attributes {stable_mosaic.version = 11 : i64} {
  func.func @_gcn3_kernel(%arg0: i32, %arg1: memref<1x128x28xf32, #tpu.memory_space<vmem>>, %arg2: memref<1x3x16x16xf32, #tpu.memory_space<vmem>>, %arg3: memref<1x6x28x28xf32, #tpu.memory_space<vmem>>, %arg4: memref<1x6x2x28xf32, #tpu.memory_space<vmem>>, %arg5: memref<7x32x28xf32, #tpu.memory_space<vmem>>, %arg6: memref<32x1xf32, #tpu.memory_space<vmem>>, %arg7: memref<1x32x128xf32, #tpu.memory_space<vmem>>) attributes {dimension_semantics = [#tpu.dimension_semantics<parallel>], iteration_bounds = array<i64: 2>, scalar_prefetch = 0 : i64, scratch_operands = 0 : i64, tpu.core_type = #tpu.core_type<tc>, window_params = [{transform_indices = @transform_0, window_bounds = array<i64: 1, 128, 28>}, {transform_indices = @transform_1, window_bounds = array<i64: 1, 3, 16, 16>}, {transform_indices = @transform_2, window_bounds = array<i64: 1, 6, 28, 28>}, {transform_indices = @transform_3, window_bounds = array<i64: 1, 6, 2, 28>}, {pipeline_mode = #tpu.pipeline_mode<synchronous>, transform_indices = @transform_4, window_bounds = array<i64: 7, 32, 28>}, {pipeline_mode = #tpu.pipeline_mode<synchronous>, transform_indices = @transform_5, window_bounds = array<i64: 32, 1>}, {transform_indices = @transform_6, window_bounds = array<i64: 1, 32, 128>}]} {
    %c0 = arith.constant 0 : index
    %c0_0 = arith.constant 0 : index
    %c0_1 = arith.constant 0 : index
    %0 = vector.load %arg1[%c0, %c0_0, %c0_1] : memref<1x128x28xf32, #tpu.memory_space<vmem>>, vector<1x128x28xf32>
    %1 = vector.shape_cast %0 : vector<1x128x28xf32> to vector<128x28xf32>
    %c0_2 = arith.constant 0 : index
    %c0_3 = arith.constant 0 : index
    %c0_4 = arith.constant 0 : index
    %c0_5 = arith.constant 0 : index
    %2 = vector.load %arg3[%c0_2, %c0_3, %c0_4, %c0_5] : memref<1x6x28x28xf32, #tpu.memory_space<vmem>>, vector<1x1x28x28xf32>
    %3 = vector.shape_cast %2 : vector<1x1x28x28xf32> to vector<28x28xf32>
    %c0_6 = arith.constant 0 : index
    %c0_7 = arith.constant 0 : index
    %c0_8 = arith.constant 0 : index
    %c0_9 = arith.constant 0 : index
    %4 = vector.load %arg4[%c0_6, %c0_7, %c0_8, %c0_9] : memref<1x6x2x28xf32, #tpu.memory_space<vmem>>, vector<1x1x2x28xf32>
    %5 = vector.shape_cast %4 : vector<1x1x2x28xf32> to vector<2x28xf32>
    %6 = vector.extract_strided_slice %5 {offsets = [0, 0], sizes = [1, 28], strides = [1, 1]} : vector<2x28xf32> to vector<1x28xf32>
    %7 = vector.shape_cast %6 : vector<1x28xf32> to vector<1x1x28xf32>
    %8 = vector.extract_strided_slice %5 {offsets = [1, 0], sizes = [1, 28], strides = [1, 1]} : vector<2x28xf32> to vector<1x28xf32>
    %9 = vector.shape_cast %8 : vector<1x28xf32> to vector<1x1x28xf32>
    %c0_10 = arith.constant 0 : index
    %c0_11 = arith.constant 0 : index
    %c0_12 = arith.constant 0 : index
    %c0_13 = arith.constant 0 : index
    %10 = vector.load %arg2[%c0_10, %c0_11, %c0_12, %c0_13] : memref<1x3x16x16xf32, #tpu.memory_space<vmem>>, vector<1x1x16x16xf32>
    %11 = vector.shape_cast %10 : vector<1x1x16x16xf32> to vector<16x16xf32>
    %cst = arith.constant dense<0.000000e+00> : vector<128x28xf32>
    %12 = tpu.matmul %1, %3, %cst {dimension_numbers = #tpu.dot_dimension_numbers<[1], [0], [0], [1], [0, 0, 1, 1], [], []>} : vector<128x28xf32>, vector<28x28xf32>, vector<128x28xf32> -> vector<128x28xf32>
    %13 = vector.shape_cast %12 : vector<128x28xf32> to vector<8x16x28xf32>
    %14 = vector.broadcast %7 : vector<1x1x28xf32> to vector<8x16x28xf32>
    %15 = arith.mulf %13, %14 : vector<8x16x28xf32>
    %cst_14 = arith.constant dense<0.000000e+00> : vector<8x16xf32>
    %16 = vector.multi_reduction <add>, %15, %cst_14 [2] : vector<8x16x28xf32> to vector<8x16xf32>
    %17 = vector.shape_cast %16 : vector<8x16xf32> to vector<8x16x1xf32>
    %18 = vector.broadcast %9 : vector<1x1x28xf32> to vector<8x16x28xf32>
    %19 = arith.mulf %13, %18 : vector<8x16x28xf32>
    %cst_15 = arith.constant dense<0.000000e+00> : vector<8x16xf32>
    %20 = vector.multi_reduction <add>, %19, %cst_15 [2] : vector<8x16x28xf32> to vector<8x16xf32>
    %21 = vector.shape_cast %20 : vector<8x16xf32> to vector<8x1x16xf32>
    %22 = vector.broadcast %17 : vector<8x16x1xf32> to vector<8x16x16xf32>
    %23 = vector.broadcast %21 : vector<8x1x16xf32> to vector<8x16x16xf32>
    %24 = arith.addf %22, %23 : vector<8x16x16xf32>
    %cst_16 = arith.constant 0.000000e+00 : f32
    %25 = vector.broadcast %cst_16 : f32 to vector<8x16x16xf32>
    %26 = arith.cmpf ogt, %24, %25 : vector<8x16x16xf32>
    %cst_17 = arith.constant 2.000000e-01 : f32
    %27 = vector.broadcast %cst_17 : f32 to vector<8x16x16xf32>
    %28 = arith.mulf %27, %24 : vector<8x16x16xf32>
    %29 = arith.select %26, %24, %28 : vector<8x16x16xi1>, vector<8x16x16xf32>
    %30 = vector.shape_cast %11 : vector<16x16xf32> to vector<1x16x16xf32>
    %cst_18 = arith.constant 0.000000e+00 : f32
    %31 = vector.broadcast %cst_18 : f32 to vector<1x16x16xf32>
    %32 = arith.cmpf ogt, %30, %31 : vector<1x16x16xf32>
    %cst_19 = arith.constant -9.000000e+15 : f32
    %33 = vector.shape_cast %32 : vector<1x16x16xi1> to vector<1x16x16xi1>
    %34 = vector.broadcast %33 : vector<1x16x16xi1> to vector<8x16x16xi1>
    %35 = vector.broadcast %cst_19 : f32 to vector<8x16x16xf32>
    %36 = arith.select %34, %29, %35 : vector<8x16x16xi1>, vector<8x16x16xf32>
    %cst_20 = arith.constant dense<0xFF800000> : vector<8x16xf32>
    %37 = vector.multi_reduction <maximumf>, %36, %cst_20 [2] : vector<8x16x16xf32> to vector<8x16xf32>
    %38 = vector.shape_cast %37 : vector<8x16xf32> to vector<8x16x1xf32>
    %39 = vector.broadcast %38 : vector<8x16x1xf32> to vector<8x16x16xf32>
    %40 = arith.subf %36, %39 : vector<8x16x16xf32>
    %41 = math.exp %40 : vector<8x16x16xf32>
    %cst_21 = arith.constant dense<0.000000e+00> : vector<8x16xf32>
    %42 = vector.multi_reduction <add>, %41, %cst_21 [2] : vector<8x16x16xf32> to vector<8x16xf32>
    %43 = vector.shape_cast %42 : vector<8x16xf32> to vector<8x16x1xf32>
    %44 = vector.broadcast %43 : vector<8x16x1xf32> to vector<8x16x16xf32>
    %45 = arith.divf %41, %44 : vector<8x16x16xf32>
    "tpu.trace_start"() <{level = 10 : i32, message = "tnm,tmc->tnc"}> : () -> ()
    %cst_22 = arith.constant dense<0.000000e+00> : vector<8x16x28xf32>
    %46 = tpu.matmul %45, %13, %cst_22 {dimension_numbers = #tpu.dot_dimension_numbers<[2], [1], [1], [2], [0, 0, 0, 1, 1, 2], [0], [0]>} : vector<8x16x16xf32>, vector<8x16x28xf32>, vector<8x16x28xf32> -> vector<8x16x28xf32>
    "tpu.trace_stop"() : () -> ()
    %47 = vector.shape_cast %46 : vector<8x16x28xf32> to vector<128x28xf32>
    %cst_23 = arith.constant 0.000000e+00 : f32
    %48 = vector.broadcast %cst_23 : f32 to vector<128x28xf32>
    %49 = arith.cmpf ogt, %47, %48 : vector<128x28xf32>
    %50 = math.exp %47 : vector<128x28xf32>
    %cst_24 = arith.constant 1.000000e+00 : f32
    %51 = vector.broadcast %cst_24 : f32 to vector<128x28xf32>
    %52 = arith.subf %50, %51 : vector<128x28xf32>
    %53 = arith.select %49, %47, %52 : vector<128x28xi1>, vector<128x28xf32>
    %c0_25 = arith.constant 0 : index
    %c1 = arith.constant 1 : index
    %c0_26 = arith.constant 0 : index
    %c0_27 = arith.constant 0 : index
    %54 = vector.load %arg3[%c0_25, %c1, %c0_26, %c0_27] : memref<1x6x28x28xf32, #tpu.memory_space<vmem>>, vector<1x1x28x28xf32>
    %55 = vector.shape_cast %54 : vector<1x1x28x28xf32> to vector<28x28xf32>
    %c0_28 = arith.constant 0 : index
    %c1_29 = arith.constant 1 : index
    %c0_30 = arith.constant 0 : index
    %c0_31 = arith.constant 0 : index
    %56 = vector.load %arg4[%c0_28, %c1_29, %c0_30, %c0_31] : memref<1x6x2x28xf32, #tpu.memory_space<vmem>>, vector<1x1x2x28xf32>
    %57 = vector.shape_cast %56 : vector<1x1x2x28xf32> to vector<2x28xf32>
    %58 = vector.extract_strided_slice %57 {offsets = [0, 0], sizes = [1, 28], strides = [1, 1]} : vector<2x28xf32> to vector<1x28xf32>
    %59 = vector.shape_cast %58 : vector<1x28xf32> to vector<1x1x28xf32>
    %60 = vector.extract_strided_slice %57 {offsets = [1, 0], sizes = [1, 28], strides = [1, 1]} : vector<2x28xf32> to vector<1x28xf32>
    %61 = vector.shape_cast %60 : vector<1x28xf32> to vector<1x1x28xf32>
    %c0_32 = arith.constant 0 : index
    %c0_33 = arith.constant 0 : index
    %c0_34 = arith.constant 0 : index
    %c0_35 = arith.constant 0 : index
    %62 = vector.load %arg2[%c0_32, %c0_33, %c0_34, %c0_35] : memref<1x3x16x16xf32, #tpu.memory_space<vmem>>, vector<1x1x16x16xf32>
    %63 = vector.shape_cast %62 : vector<1x1x16x16xf32> to vector<16x16xf32>
    %cst_36 = arith.constant dense<0.000000e+00> : vector<128x28xf32>
    %64 = tpu.matmul %53, %55, %cst_36 {dimension_numbers = #tpu.dot_dimension_numbers<[1], [0], [0], [1], [0, 0, 1, 1], [], []>} : vector<128x28xf32>, vector<28x28xf32>, vector<128x28xf32> -> vector<128x28xf32>
    %65 = vector.shape_cast %64 : vector<128x28xf32> to vector<8x16x28xf32>
    %66 = vector.broadcast %59 : vector<1x1x28xf32> to vector<8x16x28xf32>
    %67 = arith.mulf %65, %66 : vector<8x16x28xf32>
    %cst_37 = arith.constant dense<0.000000e+00> : vector<8x16xf32>
    %68 = vector.multi_reduction <add>, %67, %cst_37 [2] : vector<8x16x28xf32> to vector<8x16xf32>
    %69 = vector.shape_cast %68 : vector<8x16xf32> to vector<8x16x1xf32>
    %70 = vector.broadcast %61 : vector<1x1x28xf32> to vector<8x16x28xf32>
    %71 = arith.mulf %65, %70 : vector<8x16x28xf32>
    %cst_38 = arith.constant dense<0.000000e+00> : vector<8x16xf32>
    %72 = vector.multi_reduction <add>, %71, %cst_38 [2] : vector<8x16x28xf32> to vector<8x16xf32>
    %73 = vector.shape_cast %72 : vector<8x16xf32> to vector<8x1x16xf32>
    %74 = vector.broadcast %69 : vector<8x16x1xf32> to vector<8x16x16xf32>
    %75 = vector.broadcast %73 : vector<8x1x16xf32> to vector<8x16x16xf32>
    %76 = arith.addf %74, %75 : vector<8x16x16xf32>
    %cst_39 = arith.constant 0.000000e+00 : f32
    %77 = vector.broadcast %cst_39 : f32 to vector<8x16x16xf32>
    %78 = arith.cmpf ogt, %76, %77 : vector<8x16x16xf32>
    %cst_40 = arith.constant 2.000000e-01 : f32
    %79 = vector.broadcast %cst_40 : f32 to vector<8x16x16xf32>
    %80 = arith.mulf %79, %76 : vector<8x16x16xf32>
    %81 = arith.select %78, %76, %80 : vector<8x16x16xi1>, vector<8x16x16xf32>
    %82 = vector.shape_cast %63 : vector<16x16xf32> to vector<1x16x16xf32>
    %cst_41 = arith.constant 0.000000e+00 : f32
    %83 = vector.broadcast %cst_41 : f32 to vector<1x16x16xf32>
    %84 = arith.cmpf ogt, %82, %83 : vector<1x16x16xf32>
    %cst_42 = arith.constant -9.000000e+15 : f32
    %85 = vector.shape_cast %84 : vector<1x16x16xi1> to vector<1x16x16xi1>
    %86 = vector.broadcast %85 : vector<1x16x16xi1> to vector<8x16x16xi1>
    %87 = vector.broadcast %cst_42 : f32 to vector<8x16x16xf32>
    %88 = arith.select %86, %81, %87 : vector<8x16x16xi1>, vector<8x16x16xf32>
    %cst_43 = arith.constant dense<0xFF800000> : vector<8x16xf32>
    %89 = vector.multi_reduction <maximumf>, %88, %cst_43 [2] : vector<8x16x16xf32> to vector<8x16xf32>
    %90 = vector.shape_cast %89 : vector<8x16xf32> to vector<8x16x1xf32>
    %91 = vector.broadcast %90 : vector<8x16x1xf32> to vector<8x16x16xf32>
    %92 = arith.subf %88, %91 : vector<8x16x16xf32>
    %93 = math.exp %92 : vector<8x16x16xf32>
    %cst_44 = arith.constant dense<0.000000e+00> : vector<8x16xf32>
    %94 = vector.multi_reduction <add>, %93, %cst_44 [2] : vector<8x16x16xf32> to vector<8x16xf32>
    %95 = vector.shape_cast %94 : vector<8x16xf32> to vector<8x16x1xf32>
    %96 = vector.broadcast %95 : vector<8x16x1xf32> to vector<8x16x16xf32>
    %97 = arith.divf %93, %96 : vector<8x16x16xf32>
    "tpu.trace_start"() <{level = 10 : i32, message = "tnm,tmc->tnc"}> : () -> ()
    %cst_45 = arith.constant dense<0.000000e+00> : vector<8x16x28xf32>
    %98 = tpu.matmul %97, %65, %cst_45 {dimension_numbers = #tpu.dot_dimension_numbers<[2], [1], [1], [2], [0, 0, 0, 1, 1, 2], [0], [0]>} : vector<8x16x16xf32>, vector<8x16x28xf32>, vector<8x16x28xf32> -> vector<8x16x28xf32>
    "tpu.trace_stop"() : () -> ()
    %99 = vector.shape_cast %98 : vector<8x16x28xf32> to vector<128x28xf32>
    %cst_46 = arith.constant 0.000000e+00 : f32
    %100 = vector.broadcast %cst_46 : f32 to vector<128x28xf32>
    %101 = arith.cmpf ogt, %99, %100 : vector<128x28xf32>
    %102 = math.exp %99 : vector<128x28xf32>
    %cst_47 = arith.constant 1.000000e+00 : f32
    %103 = vector.broadcast %cst_47 : f32 to vector<128x28xf32>
    %104 = arith.subf %102, %103 : vector<128x28xf32>
    %105 = arith.select %101, %99, %104 : vector<128x28xi1>, vector<128x28xf32>
    %cst_48 = arith.constant 0.000000e+00 : f32
    %106 = vector.broadcast %cst_48 : f32 to vector<128x28xf32>
    %107 = arith.maximumf %105, %106 : vector<128x28xf32>
    %c0_49 = arith.constant 0 : index
    %c2 = arith.constant 2 : index
    %c0_50 = arith.constant 0 : index
    %c0_51 = arith.constant 0 : index
    %108 = vector.load %arg3[%c0_49, %c2, %c0_50, %c0_51] : memref<1x6x28x28xf32, #tpu.memory_space<vmem>>, vector<1x1x28x28xf32>
    %109 = vector.shape_cast %108 : vector<1x1x28x28xf32> to vector<28x28xf32>
    %c0_52 = arith.constant 0 : index
    %c2_53 = arith.constant 2 : index
    %c0_54 = arith.constant 0 : index
    %c0_55 = arith.constant 0 : index
    %110 = vector.load %arg4[%c0_52, %c2_53, %c0_54, %c0_55] : memref<1x6x2x28xf32, #tpu.memory_space<vmem>>, vector<1x1x2x28xf32>
    %111 = vector.shape_cast %110 : vector<1x1x2x28xf32> to vector<2x28xf32>
    %112 = vector.extract_strided_slice %111 {offsets = [0, 0], sizes = [1, 28], strides = [1, 1]} : vector<2x28xf32> to vector<1x28xf32>
    %113 = vector.shape_cast %112 : vector<1x28xf32> to vector<1x1x28xf32>
    %114 = vector.extract_strided_slice %111 {offsets = [1, 0], sizes = [1, 28], strides = [1, 1]} : vector<2x28xf32> to vector<1x28xf32>
    %115 = vector.shape_cast %114 : vector<1x28xf32> to vector<1x1x28xf32>
    %c0_56 = arith.constant 0 : index
    %c1_57 = arith.constant 1 : index
    %c0_58 = arith.constant 0 : index
    %c0_59 = arith.constant 0 : index
    %116 = vector.load %arg2[%c0_56, %c1_57, %c0_58, %c0_59] : memref<1x3x16x16xf32, #tpu.memory_space<vmem>>, vector<1x1x16x16xf32>
    %117 = vector.shape_cast %116 : vector<1x1x16x16xf32> to vector<16x16xf32>
    %cst_60 = arith.constant dense<0.000000e+00> : vector<128x28xf32>
    %118 = tpu.matmul %1, %109, %cst_60 {dimension_numbers = #tpu.dot_dimension_numbers<[1], [0], [0], [1], [0, 0, 1, 1], [], []>} : vector<128x28xf32>, vector<28x28xf32>, vector<128x28xf32> -> vector<128x28xf32>
    %119 = vector.shape_cast %118 : vector<128x28xf32> to vector<8x16x28xf32>
    %120 = vector.broadcast %113 : vector<1x1x28xf32> to vector<8x16x28xf32>
    %121 = arith.mulf %119, %120 : vector<8x16x28xf32>
    %cst_61 = arith.constant dense<0.000000e+00> : vector<8x16xf32>
    %122 = vector.multi_reduction <add>, %121, %cst_61 [2] : vector<8x16x28xf32> to vector<8x16xf32>
    %123 = vector.shape_cast %122 : vector<8x16xf32> to vector<8x16x1xf32>
    %124 = vector.broadcast %115 : vector<1x1x28xf32> to vector<8x16x28xf32>
    %125 = arith.mulf %119, %124 : vector<8x16x28xf32>
    %cst_62 = arith.constant dense<0.000000e+00> : vector<8x16xf32>
    %126 = vector.multi_reduction <add>, %125, %cst_62 [2] : vector<8x16x28xf32> to vector<8x16xf32>
    %127 = vector.shape_cast %126 : vector<8x16xf32> to vector<8x1x16xf32>
    %128 = vector.broadcast %123 : vector<8x16x1xf32> to vector<8x16x16xf32>
    %129 = vector.broadcast %127 : vector<8x1x16xf32> to vector<8x16x16xf32>
    %130 = arith.addf %128, %129 : vector<8x16x16xf32>
    %cst_63 = arith.constant 0.000000e+00 : f32
    %131 = vector.broadcast %cst_63 : f32 to vector<8x16x16xf32>
    %132 = arith.cmpf ogt, %130, %131 : vector<8x16x16xf32>
    %cst_64 = arith.constant 2.000000e-01 : f32
    %133 = vector.broadcast %cst_64 : f32 to vector<8x16x16xf32>
    %134 = arith.mulf %133, %130 : vector<8x16x16xf32>
    %135 = arith.select %132, %130, %134 : vector<8x16x16xi1>, vector<8x16x16xf32>
    %136 = vector.shape_cast %117 : vector<16x16xf32> to vector<1x16x16xf32>
    %cst_65 = arith.constant 0.000000e+00 : f32
    %137 = vector.broadcast %cst_65 : f32 to vector<1x16x16xf32>
    %138 = arith.cmpf ogt, %136, %137 : vector<1x16x16xf32>
    %cst_66 = arith.constant -9.000000e+15 : f32
    %139 = vector.shape_cast %138 : vector<1x16x16xi1> to vector<1x16x16xi1>
    %140 = vector.broadcast %139 : vector<1x16x16xi1> to vector<8x16x16xi1>
    %141 = vector.broadcast %cst_66 : f32 to vector<8x16x16xf32>
    %142 = arith.select %140, %135, %141 : vector<8x16x16xi1>, vector<8x16x16xf32>
    %cst_67 = arith.constant dense<0xFF800000> : vector<8x16xf32>
    %143 = vector.multi_reduction <maximumf>, %142, %cst_67 [2] : vector<8x16x16xf32> to vector<8x16xf32>
    %144 = vector.shape_cast %143 : vector<8x16xf32> to vector<8x16x1xf32>
    %145 = vector.broadcast %144 : vector<8x16x1xf32> to vector<8x16x16xf32>
    %146 = arith.subf %142, %145 : vector<8x16x16xf32>
    %147 = math.exp %146 : vector<8x16x16xf32>
    %cst_68 = arith.constant dense<0.000000e+00> : vector<8x16xf32>
    %148 = vector.multi_reduction <add>, %147, %cst_68 [2] : vector<8x16x16xf32> to vector<8x16xf32>
    %149 = vector.shape_cast %148 : vector<8x16xf32> to vector<8x16x1xf32>
    %150 = vector.broadcast %149 : vector<8x16x1xf32> to vector<8x16x16xf32>
    %151 = arith.divf %147, %150 : vector<8x16x16xf32>
    "tpu.trace_start"() <{level = 10 : i32, message = "tnm,tmc->tnc"}> : () -> ()
    %cst_69 = arith.constant dense<0.000000e+00> : vector<8x16x28xf32>
    %152 = tpu.matmul %151, %119, %cst_69 {dimension_numbers = #tpu.dot_dimension_numbers<[2], [1], [1], [2], [0, 0, 0, 1, 1, 2], [0], [0]>} : vector<8x16x16xf32>, vector<8x16x28xf32>, vector<8x16x28xf32> -> vector<8x16x28xf32>
    "tpu.trace_stop"() : () -> ()
    %153 = vector.shape_cast %152 : vector<8x16x28xf32> to vector<128x28xf32>
    %cst_70 = arith.constant 0.000000e+00 : f32
    %154 = vector.broadcast %cst_70 : f32 to vector<128x28xf32>
    %155 = arith.cmpf ogt, %153, %154 : vector<128x28xf32>
    %156 = math.exp %153 : vector<128x28xf32>
    %cst_71 = arith.constant 1.000000e+00 : f32
    %157 = vector.broadcast %cst_71 : f32 to vector<128x28xf32>
    %158 = arith.subf %156, %157 : vector<128x28xf32>
    %159 = arith.select %155, %153, %158 : vector<128x28xi1>, vector<128x28xf32>
    %c0_72 = arith.constant 0 : index
    %c3 = arith.constant 3 : index
    %c0_73 = arith.constant 0 : index
    %c0_74 = arith.constant 0 : index
    %160 = vector.load %arg3[%c0_72, %c3, %c0_73, %c0_74] : memref<1x6x28x28xf32, #tpu.memory_space<vmem>>, vector<1x1x28x28xf32>
    %161 = vector.shape_cast %160 : vector<1x1x28x28xf32> to vector<28x28xf32>
    %c0_75 = arith.constant 0 : index
    %c3_76 = arith.constant 3 : index
    %c0_77 = arith.constant 0 : index
    %c0_78 = arith.constant 0 : index
    %162 = vector.load %arg4[%c0_75, %c3_76, %c0_77, %c0_78] : memref<1x6x2x28xf32, #tpu.memory_space<vmem>>, vector<1x1x2x28xf32>
    %163 = vector.shape_cast %162 : vector<1x1x2x28xf32> to vector<2x28xf32>
    %164 = vector.extract_strided_slice %163 {offsets = [0, 0], sizes = [1, 28], strides = [1, 1]} : vector<2x28xf32> to vector<1x28xf32>
    %165 = vector.shape_cast %164 : vector<1x28xf32> to vector<1x1x28xf32>
    %166 = vector.extract_strided_slice %163 {offsets = [1, 0], sizes = [1, 28], strides = [1, 1]} : vector<2x28xf32> to vector<1x28xf32>
    %167 = vector.shape_cast %166 : vector<1x28xf32> to vector<1x1x28xf32>
    %c0_79 = arith.constant 0 : index
    %c1_80 = arith.constant 1 : index
    %c0_81 = arith.constant 0 : index
    %c0_82 = arith.constant 0 : index
    %168 = vector.load %arg2[%c0_79, %c1_80, %c0_81, %c0_82] : memref<1x3x16x16xf32, #tpu.memory_space<vmem>>, vector<1x1x16x16xf32>
    %169 = vector.shape_cast %168 : vector<1x1x16x16xf32> to vector<16x16xf32>
    %cst_83 = arith.constant dense<0.000000e+00> : vector<128x28xf32>
    %170 = tpu.matmul %159, %161, %cst_83 {dimension_numbers = #tpu.dot_dimension_numbers<[1], [0], [0], [1], [0, 0, 1, 1], [], []>} : vector<128x28xf32>, vector<28x28xf32>, vector<128x28xf32> -> vector<128x28xf32>
    %171 = vector.shape_cast %170 : vector<128x28xf32> to vector<8x16x28xf32>
    %172 = vector.broadcast %165 : vector<1x1x28xf32> to vector<8x16x28xf32>
    %173 = arith.mulf %171, %172 : vector<8x16x28xf32>
    %cst_84 = arith.constant dense<0.000000e+00> : vector<8x16xf32>
    %174 = vector.multi_reduction <add>, %173, %cst_84 [2] : vector<8x16x28xf32> to vector<8x16xf32>
    %175 = vector.shape_cast %174 : vector<8x16xf32> to vector<8x16x1xf32>
    %176 = vector.broadcast %167 : vector<1x1x28xf32> to vector<8x16x28xf32>
    %177 = arith.mulf %171, %176 : vector<8x16x28xf32>
    %cst_85 = arith.constant dense<0.000000e+00> : vector<8x16xf32>
    %178 = vector.multi_reduction <add>, %177, %cst_85 [2] : vector<8x16x28xf32> to vector<8x16xf32>
    %179 = vector.shape_cast %178 : vector<8x16xf32> to vector<8x1x16xf32>
    %180 = vector.broadcast %175 : vector<8x16x1xf32> to vector<8x16x16xf32>
    %181 = vector.broadcast %179 : vector<8x1x16xf32> to vector<8x16x16xf32>
    %182 = arith.addf %180, %181 : vector<8x16x16xf32>
    %cst_86 = arith.constant 0.000000e+00 : f32
    %183 = vector.broadcast %cst_86 : f32 to vector<8x16x16xf32>
    %184 = arith.cmpf ogt, %182, %183 : vector<8x16x16xf32>
    %cst_87 = arith.constant 2.000000e-01 : f32
    %185 = vector.broadcast %cst_87 : f32 to vector<8x16x16xf32>
    %186 = arith.mulf %185, %182 : vector<8x16x16xf32>
    %187 = arith.select %184, %182, %186 : vector<8x16x16xi1>, vector<8x16x16xf32>
    %188 = vector.shape_cast %169 : vector<16x16xf32> to vector<1x16x16xf32>
    %cst_88 = arith.constant 0.000000e+00 : f32
    %189 = vector.broadcast %cst_88 : f32 to vector<1x16x16xf32>
    %190 = arith.cmpf ogt, %188, %189 : vector<1x16x16xf32>
    %cst_89 = arith.constant -9.000000e+15 : f32
    %191 = vector.shape_cast %190 : vector<1x16x16xi1> to vector<1x16x16xi1>
    %192 = vector.broadcast %191 : vector<1x16x16xi1> to vector<8x16x16xi1>
    %193 = vector.broadcast %cst_89 : f32 to vector<8x16x16xf32>
    %194 = arith.select %192, %187, %193 : vector<8x16x16xi1>, vector<8x16x16xf32>
    %cst_90 = arith.constant dense<0xFF800000> : vector<8x16xf32>
    %195 = vector.multi_reduction <maximumf>, %194, %cst_90 [2] : vector<8x16x16xf32> to vector<8x16xf32>
    %196 = vector.shape_cast %195 : vector<8x16xf32> to vector<8x16x1xf32>
    %197 = vector.broadcast %196 : vector<8x16x1xf32> to vector<8x16x16xf32>
    %198 = arith.subf %194, %197 : vector<8x16x16xf32>
    %199 = math.exp %198 : vector<8x16x16xf32>
    %cst_91 = arith.constant dense<0.000000e+00> : vector<8x16xf32>
    %200 = vector.multi_reduction <add>, %199, %cst_91 [2] : vector<8x16x16xf32> to vector<8x16xf32>
    %201 = vector.shape_cast %200 : vector<8x16xf32> to vector<8x16x1xf32>
    %202 = vector.broadcast %201 : vector<8x16x1xf32> to vector<8x16x16xf32>
    %203 = arith.divf %199, %202 : vector<8x16x16xf32>
    "tpu.trace_start"() <{level = 10 : i32, message = "tnm,tmc->tnc"}> : () -> ()
    %cst_92 = arith.constant dense<0.000000e+00> : vector<8x16x28xf32>
    %204 = tpu.matmul %203, %171, %cst_92 {dimension_numbers = #tpu.dot_dimension_numbers<[2], [1], [1], [2], [0, 0, 0, 1, 1, 2], [0], [0]>} : vector<8x16x16xf32>, vector<8x16x28xf32>, vector<8x16x28xf32> -> vector<8x16x28xf32>
    "tpu.trace_stop"() : () -> ()
    %205 = vector.shape_cast %204 : vector<8x16x28xf32> to vector<128x28xf32>
    %cst_93 = arith.constant 0.000000e+00 : f32
    %206 = vector.broadcast %cst_93 : f32 to vector<128x28xf32>
    %207 = arith.cmpf ogt, %205, %206 : vector<128x28xf32>
    %208 = math.exp %205 : vector<128x28xf32>
    %cst_94 = arith.constant 1.000000e+00 : f32
    %209 = vector.broadcast %cst_94 : f32 to vector<128x28xf32>
    %210 = arith.subf %208, %209 : vector<128x28xf32>
    %211 = arith.select %207, %205, %210 : vector<128x28xi1>, vector<128x28xf32>
    %cst_95 = arith.constant 0.000000e+00 : f32
    %212 = vector.broadcast %cst_95 : f32 to vector<128x28xf32>
    %213 = arith.maximumf %211, %212 : vector<128x28xf32>
    %c0_96 = arith.constant 0 : index
    %c4 = arith.constant 4 : index
    %c0_97 = arith.constant 0 : index
    %c0_98 = arith.constant 0 : index
    %214 = vector.load %arg3[%c0_96, %c4, %c0_97, %c0_98] : memref<1x6x28x28xf32, #tpu.memory_space<vmem>>, vector<1x1x28x28xf32>
    %215 = vector.shape_cast %214 : vector<1x1x28x28xf32> to vector<28x28xf32>
    %c0_99 = arith.constant 0 : index
    %c4_100 = arith.constant 4 : index
    %c0_101 = arith.constant 0 : index
    %c0_102 = arith.constant 0 : index
    %216 = vector.load %arg4[%c0_99, %c4_100, %c0_101, %c0_102] : memref<1x6x2x28xf32, #tpu.memory_space<vmem>>, vector<1x1x2x28xf32>
    %217 = vector.shape_cast %216 : vector<1x1x2x28xf32> to vector<2x28xf32>
    %218 = vector.extract_strided_slice %217 {offsets = [0, 0], sizes = [1, 28], strides = [1, 1]} : vector<2x28xf32> to vector<1x28xf32>
    %219 = vector.shape_cast %218 : vector<1x28xf32> to vector<1x1x28xf32>
    %220 = vector.extract_strided_slice %217 {offsets = [1, 0], sizes = [1, 28], strides = [1, 1]} : vector<2x28xf32> to vector<1x28xf32>
    %221 = vector.shape_cast %220 : vector<1x28xf32> to vector<1x1x28xf32>
    %c0_103 = arith.constant 0 : index
    %c2_104 = arith.constant 2 : index
    %c0_105 = arith.constant 0 : index
    %c0_106 = arith.constant 0 : index
    %222 = vector.load %arg2[%c0_103, %c2_104, %c0_105, %c0_106] : memref<1x3x16x16xf32, #tpu.memory_space<vmem>>, vector<1x1x16x16xf32>
    %223 = vector.shape_cast %222 : vector<1x1x16x16xf32> to vector<16x16xf32>
    %cst_107 = arith.constant dense<0.000000e+00> : vector<128x28xf32>
    %224 = tpu.matmul %1, %215, %cst_107 {dimension_numbers = #tpu.dot_dimension_numbers<[1], [0], [0], [1], [0, 0, 1, 1], [], []>} : vector<128x28xf32>, vector<28x28xf32>, vector<128x28xf32> -> vector<128x28xf32>
    %225 = vector.shape_cast %224 : vector<128x28xf32> to vector<8x16x28xf32>
    %226 = vector.broadcast %219 : vector<1x1x28xf32> to vector<8x16x28xf32>
    %227 = arith.mulf %225, %226 : vector<8x16x28xf32>
    %cst_108 = arith.constant dense<0.000000e+00> : vector<8x16xf32>
    %228 = vector.multi_reduction <add>, %227, %cst_108 [2] : vector<8x16x28xf32> to vector<8x16xf32>
    %229 = vector.shape_cast %228 : vector<8x16xf32> to vector<8x16x1xf32>
    %230 = vector.broadcast %221 : vector<1x1x28xf32> to vector<8x16x28xf32>
    %231 = arith.mulf %225, %230 : vector<8x16x28xf32>
    %cst_109 = arith.constant dense<0.000000e+00> : vector<8x16xf32>
    %232 = vector.multi_reduction <add>, %231, %cst_109 [2] : vector<8x16x28xf32> to vector<8x16xf32>
    %233 = vector.shape_cast %232 : vector<8x16xf32> to vector<8x1x16xf32>
    %234 = vector.broadcast %229 : vector<8x16x1xf32> to vector<8x16x16xf32>
    %235 = vector.broadcast %233 : vector<8x1x16xf32> to vector<8x16x16xf32>
    %236 = arith.addf %234, %235 : vector<8x16x16xf32>
    %cst_110 = arith.constant 0.000000e+00 : f32
    %237 = vector.broadcast %cst_110 : f32 to vector<8x16x16xf32>
    %238 = arith.cmpf ogt, %236, %237 : vector<8x16x16xf32>
    %cst_111 = arith.constant 2.000000e-01 : f32
    %239 = vector.broadcast %cst_111 : f32 to vector<8x16x16xf32>
    %240 = arith.mulf %239, %236 : vector<8x16x16xf32>
    %241 = arith.select %238, %236, %240 : vector<8x16x16xi1>, vector<8x16x16xf32>
    %242 = vector.shape_cast %223 : vector<16x16xf32> to vector<1x16x16xf32>
    %cst_112 = arith.constant 0.000000e+00 : f32
    %243 = vector.broadcast %cst_112 : f32 to vector<1x16x16xf32>
    %244 = arith.cmpf ogt, %242, %243 : vector<1x16x16xf32>
    %cst_113 = arith.constant -9.000000e+15 : f32
    %245 = vector.shape_cast %244 : vector<1x16x16xi1> to vector<1x16x16xi1>
    %246 = vector.broadcast %245 : vector<1x16x16xi1> to vector<8x16x16xi1>
    %247 = vector.broadcast %cst_113 : f32 to vector<8x16x16xf32>
    %248 = arith.select %246, %241, %247 : vector<8x16x16xi1>, vector<8x16x16xf32>
    %cst_114 = arith.constant dense<0xFF800000> : vector<8x16xf32>
    %249 = vector.multi_reduction <maximumf>, %248, %cst_114 [2] : vector<8x16x16xf32> to vector<8x16xf32>
    %250 = vector.shape_cast %249 : vector<8x16xf32> to vector<8x16x1xf32>
    %251 = vector.broadcast %250 : vector<8x16x1xf32> to vector<8x16x16xf32>
    %252 = arith.subf %248, %251 : vector<8x16x16xf32>
    %253 = math.exp %252 : vector<8x16x16xf32>
    %cst_115 = arith.constant dense<0.000000e+00> : vector<8x16xf32>
    %254 = vector.multi_reduction <add>, %253, %cst_115 [2] : vector<8x16x16xf32> to vector<8x16xf32>
    %255 = vector.shape_cast %254 : vector<8x16xf32> to vector<8x16x1xf32>
    %256 = vector.broadcast %255 : vector<8x16x1xf32> to vector<8x16x16xf32>
    %257 = arith.divf %253, %256 : vector<8x16x16xf32>
    "tpu.trace_start"() <{level = 10 : i32, message = "tnm,tmc->tnc"}> : () -> ()
    %cst_116 = arith.constant dense<0.000000e+00> : vector<8x16x28xf32>
    %258 = tpu.matmul %257, %225, %cst_116 {dimension_numbers = #tpu.dot_dimension_numbers<[2], [1], [1], [2], [0, 0, 0, 1, 1, 2], [0], [0]>} : vector<8x16x16xf32>, vector<8x16x28xf32>, vector<8x16x28xf32> -> vector<8x16x28xf32>
    "tpu.trace_stop"() : () -> ()
    %259 = vector.shape_cast %258 : vector<8x16x28xf32> to vector<128x28xf32>
    %cst_117 = arith.constant 0.000000e+00 : f32
    %260 = vector.broadcast %cst_117 : f32 to vector<128x28xf32>
    %261 = arith.cmpf ogt, %259, %260 : vector<128x28xf32>
    %262 = math.exp %259 : vector<128x28xf32>
    %cst_118 = arith.constant 1.000000e+00 : f32
    %263 = vector.broadcast %cst_118 : f32 to vector<128x28xf32>
    %264 = arith.subf %262, %263 : vector<128x28xf32>
    %265 = arith.select %261, %259, %264 : vector<128x28xi1>, vector<128x28xf32>
    %c0_119 = arith.constant 0 : index
    %c5 = arith.constant 5 : index
    %c0_120 = arith.constant 0 : index
    %c0_121 = arith.constant 0 : index
    %266 = vector.load %arg3[%c0_119, %c5, %c0_120, %c0_121] : memref<1x6x28x28xf32, #tpu.memory_space<vmem>>, vector<1x1x28x28xf32>
    %267 = vector.shape_cast %266 : vector<1x1x28x28xf32> to vector<28x28xf32>
    %c0_122 = arith.constant 0 : index
    %c5_123 = arith.constant 5 : index
    %c0_124 = arith.constant 0 : index
    %c0_125 = arith.constant 0 : index
    %268 = vector.load %arg4[%c0_122, %c5_123, %c0_124, %c0_125] : memref<1x6x2x28xf32, #tpu.memory_space<vmem>>, vector<1x1x2x28xf32>
    %269 = vector.shape_cast %268 : vector<1x1x2x28xf32> to vector<2x28xf32>
    %270 = vector.extract_strided_slice %269 {offsets = [0, 0], sizes = [1, 28], strides = [1, 1]} : vector<2x28xf32> to vector<1x28xf32>
    %271 = vector.shape_cast %270 : vector<1x28xf32> to vector<1x1x28xf32>
    %272 = vector.extract_strided_slice %269 {offsets = [1, 0], sizes = [1, 28], strides = [1, 1]} : vector<2x28xf32> to vector<1x28xf32>
    %273 = vector.shape_cast %272 : vector<1x28xf32> to vector<1x1x28xf32>
    %c0_126 = arith.constant 0 : index
    %c2_127 = arith.constant 2 : index
    %c0_128 = arith.constant 0 : index
    %c0_129 = arith.constant 0 : index
    %274 = vector.load %arg2[%c0_126, %c2_127, %c0_128, %c0_129] : memref<1x3x16x16xf32, #tpu.memory_space<vmem>>, vector<1x1x16x16xf32>
    %275 = vector.shape_cast %274 : vector<1x1x16x16xf32> to vector<16x16xf32>
    %cst_130 = arith.constant dense<0.000000e+00> : vector<128x28xf32>
    %276 = tpu.matmul %265, %267, %cst_130 {dimension_numbers = #tpu.dot_dimension_numbers<[1], [0], [0], [1], [0, 0, 1, 1], [], []>} : vector<128x28xf32>, vector<28x28xf32>, vector<128x28xf32> -> vector<128x28xf32>
    %277 = vector.shape_cast %276 : vector<128x28xf32> to vector<8x16x28xf32>
    %278 = vector.broadcast %271 : vector<1x1x28xf32> to vector<8x16x28xf32>
    %279 = arith.mulf %277, %278 : vector<8x16x28xf32>
    %cst_131 = arith.constant dense<0.000000e+00> : vector<8x16xf32>
    %280 = vector.multi_reduction <add>, %279, %cst_131 [2] : vector<8x16x28xf32> to vector<8x16xf32>
    %281 = vector.shape_cast %280 : vector<8x16xf32> to vector<8x16x1xf32>
    %282 = vector.broadcast %273 : vector<1x1x28xf32> to vector<8x16x28xf32>
    %283 = arith.mulf %277, %282 : vector<8x16x28xf32>
    %cst_132 = arith.constant dense<0.000000e+00> : vector<8x16xf32>
    %284 = vector.multi_reduction <add>, %283, %cst_132 [2] : vector<8x16x28xf32> to vector<8x16xf32>
    %285 = vector.shape_cast %284 : vector<8x16xf32> to vector<8x1x16xf32>
    %286 = vector.broadcast %281 : vector<8x16x1xf32> to vector<8x16x16xf32>
    %287 = vector.broadcast %285 : vector<8x1x16xf32> to vector<8x16x16xf32>
    %288 = arith.addf %286, %287 : vector<8x16x16xf32>
    %cst_133 = arith.constant 0.000000e+00 : f32
    %289 = vector.broadcast %cst_133 : f32 to vector<8x16x16xf32>
    %290 = arith.cmpf ogt, %288, %289 : vector<8x16x16xf32>
    %cst_134 = arith.constant 2.000000e-01 : f32
    %291 = vector.broadcast %cst_134 : f32 to vector<8x16x16xf32>
    %292 = arith.mulf %291, %288 : vector<8x16x16xf32>
    %293 = arith.select %290, %288, %292 : vector<8x16x16xi1>, vector<8x16x16xf32>
    %294 = vector.shape_cast %275 : vector<16x16xf32> to vector<1x16x16xf32>
    %cst_135 = arith.constant 0.000000e+00 : f32
    %295 = vector.broadcast %cst_135 : f32 to vector<1x16x16xf32>
    %296 = arith.cmpf ogt, %294, %295 : vector<1x16x16xf32>
    %cst_136 = arith.constant -9.000000e+15 : f32
    %297 = vector.shape_cast %296 : vector<1x16x16xi1> to vector<1x16x16xi1>
    %298 = vector.broadcast %297 : vector<1x16x16xi1> to vector<8x16x16xi1>
    %299 = vector.broadcast %cst_136 : f32 to vector<8x16x16xf32>
    %300 = arith.select %298, %293, %299 : vector<8x16x16xi1>, vector<8x16x16xf32>
    %cst_137 = arith.constant dense<0xFF800000> : vector<8x16xf32>
    %301 = vector.multi_reduction <maximumf>, %300, %cst_137 [2] : vector<8x16x16xf32> to vector<8x16xf32>
    %302 = vector.shape_cast %301 : vector<8x16xf32> to vector<8x16x1xf32>
    %303 = vector.broadcast %302 : vector<8x16x1xf32> to vector<8x16x16xf32>
    %304 = arith.subf %300, %303 : vector<8x16x16xf32>
    %305 = math.exp %304 : vector<8x16x16xf32>
    %cst_138 = arith.constant dense<0.000000e+00> : vector<8x16xf32>
    %306 = vector.multi_reduction <add>, %305, %cst_138 [2] : vector<8x16x16xf32> to vector<8x16xf32>
    %307 = vector.shape_cast %306 : vector<8x16xf32> to vector<8x16x1xf32>
    %308 = vector.broadcast %307 : vector<8x16x1xf32> to vector<8x16x16xf32>
    %309 = arith.divf %305, %308 : vector<8x16x16xf32>
    "tpu.trace_start"() <{level = 10 : i32, message = "tnm,tmc->tnc"}> : () -> ()
    %cst_139 = arith.constant dense<0.000000e+00> : vector<8x16x28xf32>
    %310 = tpu.matmul %309, %277, %cst_139 {dimension_numbers = #tpu.dot_dimension_numbers<[2], [1], [1], [2], [0, 0, 0, 1, 1, 2], [0], [0]>} : vector<8x16x16xf32>, vector<8x16x28xf32>, vector<8x16x28xf32> -> vector<8x16x28xf32>
    "tpu.trace_stop"() : () -> ()
    %311 = vector.shape_cast %310 : vector<8x16x28xf32> to vector<128x28xf32>
    %cst_140 = arith.constant 0.000000e+00 : f32
    %312 = vector.broadcast %cst_140 : f32 to vector<128x28xf32>
    %313 = arith.cmpf ogt, %311, %312 : vector<128x28xf32>
    %314 = math.exp %311 : vector<128x28xf32>
    %cst_141 = arith.constant 1.000000e+00 : f32
    %315 = vector.broadcast %cst_141 : f32 to vector<128x28xf32>
    %316 = arith.subf %314, %315 : vector<128x28xf32>
    %317 = arith.select %313, %311, %316 : vector<128x28xi1>, vector<128x28xf32>
    %cst_142 = arith.constant 0.000000e+00 : f32
    %318 = vector.broadcast %cst_142 : f32 to vector<128x28xf32>
    %319 = arith.maximumf %317, %318 : vector<128x28xf32>
    %cst_143 = arith.constant 0.000000e+00 : f32
    %320 = vector.broadcast %cst_143 : f32 to vector<32x128xf32>
    %c0_144 = arith.constant 0 : index
    %c0_145 = arith.constant 0 : index
    %c0_146 = arith.constant 0 : index
    %321 = vector.load %arg5[%c0_144, %c0_145, %c0_146] : memref<7x32x28xf32, #tpu.memory_space<vmem>>, vector<1x32x28xf32>
    %322 = vector.shape_cast %321 : vector<1x32x28xf32> to vector<32x28xf32>
    %cst_147 = arith.constant dense<0.000000e+00> : vector<32x128xf32>
    %323 = tpu.matmul %322, %1, %cst_147 {dimension_numbers = #tpu.dot_dimension_numbers<[1], [1], [0], [0], [0, 0, 1, 0], [], []>} : vector<32x28xf32>, vector<128x28xf32>, vector<32x128xf32> -> vector<32x128xf32>
    %324 = arith.addf %320, %323 : vector<32x128xf32>
    %c1_148 = arith.constant 1 : index
    %c0_149 = arith.constant 0 : index
    %c0_150 = arith.constant 0 : index
    %325 = vector.load %arg5[%c1_148, %c0_149, %c0_150] : memref<7x32x28xf32, #tpu.memory_space<vmem>>, vector<1x32x28xf32>
    %326 = vector.shape_cast %325 : vector<1x32x28xf32> to vector<32x28xf32>
    %cst_151 = arith.constant dense<0.000000e+00> : vector<32x128xf32>
    %327 = tpu.matmul %326, %53, %cst_151 {dimension_numbers = #tpu.dot_dimension_numbers<[1], [1], [0], [0], [0, 0, 1, 0], [], []>} : vector<32x28xf32>, vector<128x28xf32>, vector<32x128xf32> -> vector<32x128xf32>
    %328 = arith.addf %324, %327 : vector<32x128xf32>
    %c2_152 = arith.constant 2 : index
    %c0_153 = arith.constant 0 : index
    %c0_154 = arith.constant 0 : index
    %329 = vector.load %arg5[%c2_152, %c0_153, %c0_154] : memref<7x32x28xf32, #tpu.memory_space<vmem>>, vector<1x32x28xf32>
    %330 = vector.shape_cast %329 : vector<1x32x28xf32> to vector<32x28xf32>
    %cst_155 = arith.constant dense<0.000000e+00> : vector<32x128xf32>
    %331 = tpu.matmul %330, %107, %cst_155 {dimension_numbers = #tpu.dot_dimension_numbers<[1], [1], [0], [0], [0, 0, 1, 0], [], []>} : vector<32x28xf32>, vector<128x28xf32>, vector<32x128xf32> -> vector<32x128xf32>
    %332 = arith.addf %328, %331 : vector<32x128xf32>
    %c3_156 = arith.constant 3 : index
    %c0_157 = arith.constant 0 : index
    %c0_158 = arith.constant 0 : index
    %333 = vector.load %arg5[%c3_156, %c0_157, %c0_158] : memref<7x32x28xf32, #tpu.memory_space<vmem>>, vector<1x32x28xf32>
    %334 = vector.shape_cast %333 : vector<1x32x28xf32> to vector<32x28xf32>
    %cst_159 = arith.constant dense<0.000000e+00> : vector<32x128xf32>
    %335 = tpu.matmul %334, %159, %cst_159 {dimension_numbers = #tpu.dot_dimension_numbers<[1], [1], [0], [0], [0, 0, 1, 0], [], []>} : vector<32x28xf32>, vector<128x28xf32>, vector<32x128xf32> -> vector<32x128xf32>
    %336 = arith.addf %332, %335 : vector<32x128xf32>
    %c4_160 = arith.constant 4 : index
    %c0_161 = arith.constant 0 : index
    %c0_162 = arith.constant 0 : index
    %337 = vector.load %arg5[%c4_160, %c0_161, %c0_162] : memref<7x32x28xf32, #tpu.memory_space<vmem>>, vector<1x32x28xf32>
    %338 = vector.shape_cast %337 : vector<1x32x28xf32> to vector<32x28xf32>
    %cst_163 = arith.constant dense<0.000000e+00> : vector<32x128xf32>
    %339 = tpu.matmul %338, %213, %cst_163 {dimension_numbers = #tpu.dot_dimension_numbers<[1], [1], [0], [0], [0, 0, 1, 0], [], []>} : vector<32x28xf32>, vector<128x28xf32>, vector<32x128xf32> -> vector<32x128xf32>
    %340 = arith.addf %336, %339 : vector<32x128xf32>
    %c5_164 = arith.constant 5 : index
    %c0_165 = arith.constant 0 : index
    %c0_166 = arith.constant 0 : index
    %341 = vector.load %arg5[%c5_164, %c0_165, %c0_166] : memref<7x32x28xf32, #tpu.memory_space<vmem>>, vector<1x32x28xf32>
    %342 = vector.shape_cast %341 : vector<1x32x28xf32> to vector<32x28xf32>
    %cst_167 = arith.constant dense<0.000000e+00> : vector<32x128xf32>
    %343 = tpu.matmul %342, %265, %cst_167 {dimension_numbers = #tpu.dot_dimension_numbers<[1], [1], [0], [0], [0, 0, 1, 0], [], []>} : vector<32x28xf32>, vector<128x28xf32>, vector<32x128xf32> -> vector<32x128xf32>
    %344 = arith.addf %340, %343 : vector<32x128xf32>
    %c6 = arith.constant 6 : index
    %c0_168 = arith.constant 0 : index
    %c0_169 = arith.constant 0 : index
    %345 = vector.load %arg5[%c6, %c0_168, %c0_169] : memref<7x32x28xf32, #tpu.memory_space<vmem>>, vector<1x32x28xf32>
    %346 = vector.shape_cast %345 : vector<1x32x28xf32> to vector<32x28xf32>
    %cst_170 = arith.constant dense<0.000000e+00> : vector<32x128xf32>
    %347 = tpu.matmul %346, %319, %cst_170 {dimension_numbers = #tpu.dot_dimension_numbers<[1], [1], [0], [0], [0, 0, 1, 0], [], []>} : vector<32x28xf32>, vector<128x28xf32>, vector<32x128xf32> -> vector<32x128xf32>
    %348 = arith.addf %344, %347 : vector<32x128xf32>
    %c0_171 = arith.constant 0 : index
    %c0_172 = arith.constant 0 : index
    %349 = vector.load %arg6[%c0_171, %c0_172] : memref<32x1xf32, #tpu.memory_space<vmem>>, vector<32x1xf32>
    %350 = vector.broadcast %349 : vector<32x1xf32> to vector<32x128xf32>
    %351 = arith.addf %348, %350 : vector<32x128xf32>
    %c0_173 = arith.constant 0 : index
    %c0_174 = arith.constant 0 : index
    %c0_175 = arith.constant 0 : index
    %352 = vector.load %arg7[%c0_173, %c0_174, %c0_175] : memref<1x32x128xf32, #tpu.memory_space<vmem>>, vector<1x32x128xf32>
    %353 = vector.shape_cast %352 : vector<1x32x128xf32> to vector<32x128xf32>
    %354 = vector.shape_cast %351 : vector<32x128xf32> to vector<1x32x128xf32>
    tpu.vector_store %arg7[%c0_173, %c0_174, %c0_175], %354 {strides = array<i32>} : memref<1x32x128xf32, #tpu.memory_space<vmem>>, vector<1x32x128xf32>,
    return
  }
  func.func @transform_0(%arg0: i32) -> (i32, i32, i32) {
    %c0_i32 = arith.constant 0 : i32
    %c0_i32_0 = arith.constant 0 : i32
    %c0_i32_1 = arith.constant 0 : i32
    return %arg0, %c0_i32, %c0_i32_0 : i32, i32, i32
  }
  func.func @transform_1(%arg0: i32) -> (i32, i32, i32, i32) {
    %c0_i32 = arith.constant 0 : i32
    %c0_i32_0 = arith.constant 0 : i32
    %c0_i32_1 = arith.constant 0 : i32
    %c0_i32_2 = arith.constant 0 : i32
    return %arg0, %c0_i32, %c0_i32_0, %c0_i32_1 : i32, i32, i32, i32
  }
  func.func @transform_2(%arg0: i32) -> (i32, i32, i32, i32) {
    %c0_i32 = arith.constant 0 : i32
    %c0_i32_0 = arith.constant 0 : i32
    %c0_i32_1 = arith.constant 0 : i32
    %c0_i32_2 = arith.constant 0 : i32
    return %arg0, %c0_i32, %c0_i32_0, %c0_i32_1 : i32, i32, i32, i32
  }
  func.func @transform_3(%arg0: i32) -> (i32, i32, i32, i32) {
    %c0_i32 = arith.constant 0 : i32
    %c0_i32_0 = arith.constant 0 : i32
    %c0_i32_1 = arith.constant 0 : i32
    %c0_i32_2 = arith.constant 0 : i32
    return %arg0, %c0_i32, %c0_i32_0, %c0_i32_1 : i32, i32, i32, i32
  }
  func.func @transform_4(%arg0: i32) -> (i32, i32, i32) {
    %c0_i32 = arith.constant 0 : i32
    %c0_i32_0 = arith.constant 0 : i32
    %c0_i32_1 = arith.constant 0 : i32
    %c0_i32_2 = arith.constant 0 : i32
    return %c0_i32, %c0_i32_0, %c0_i32_1 : i32, i32, i32
  }
  func.func @transform_5(%arg0: i32) -> (i32, i32) {
    %c0_i32 = arith.constant 0 : i32
    %c0_i32_0 = arith.constant 0 : i32
    %c0_i32_1 = arith.constant 0 : i32
    return %c0_i32, %c0_i32_0 : i32, i32
  }
  func.func @transform_6(%arg0: i32) -> (i32, i32, i32) {
    %c0_i32 = arith.constant 0 : i32
    %c0_i32_0 = arith.constant 0 : i32
    %c0_i32_1 = arith.constant 0 : i32
    return %arg0, %c0_i32, %c0_i32_0 : i32, i32, i32
  }
}

</mosaic_0001>

<llo_original>
// kernel: gcn3_forward.1
$region0: #{gcn3_forward.1}
  #allocation0 [shape = 'u32[]', space=smem, size = 0x4, offset = 0x4, fixed_abs, tag = 'smem constant byte address 0x4 - core index']
  #allocation1 [shape = 'u32[144,128]{1,0:T(1,128)}', space=vmem, size = 0x12000, scoped, tag = 'internal scratch']
  %s0 = inlined_call_operand.vmem [shape: f32[2,128,28], index: 0, kind: input, shape index: {}]
  %s1 = inlined_call_operand.vmem [shape: f32[2,3,16,16], index: 1, kind: input, shape index: {}]
  %s2 = inlined_call_operand.vmem [shape: f32[2,6,28,28], index: 2, kind: input, shape index: {}]
  %s3 = inlined_call_operand.vmem [shape: f32[2,6,2,28], index: 3, kind: input, shape index: {}]
  %s4 = inlined_call_operand.vmem [shape: f32[7,32,28], index: 4, kind: input, shape index: {}]
  %s5 = inlined_call_operand.vmem [shape: f32[32,1], index: 5, kind: input, shape index: {}]
  %s6 = inlined_call_operand.vmem [shape: f32[2,32,128], index: 6, kind: output, shape index: {}]
  %s7 = sld [smem:[#allocation0]]
  $region57: #{gcn3_forward.1} parent=0
    _
  %s9 = ssub.s32 1, %s7
  %s10 = scalar_select 0, %s9, %s7
  loop: start=0, step=1, limit=4
  $region2: #{gcn3_forward.1} parent=0 // loop_pre_header
    _
  $region3: #{gcn3_forward.1} parent=0 // loop_header
    %s12 = sphi 0, %s16
    %p13 = scmp.ge.s32.totalorder %s12, 4
    %s22 = sphi 0, %s24
    %s25 = sphi 0, %s22
    %s26 = sphi 0, %s25
    %s42 = sphi 0, %s26
    %s48 = sphi 0, %s50
    %s51 = sphi 0, %s48
    %s52 = sphi 0, %s51
    %s68 = sphi 0, %s52
    %s74 = sphi 0, %s76
    %s77 = sphi 0, %s74
    %s78 = sphi 0, %s77
    %s94 = sphi 0, %s78
    %s100 = sphi 0, %s102
    %s103 = sphi 0, %s100
    %s104 = sphi 0, %s103
    %s120 = sphi 0, %s104
    %s124 = sphi 0, %s124
    %s126 = sphi 0, %s124
    %s127 = sphi 0, %s126
    %s141 = sphi 0, %s127
    %s145 = sphi 0, %s145
    %s147 = sphi 0, %s145
    %s148 = sphi 0, %s147
    %s162 = sphi 0, %s148
    %s168 = sphi 0, %s170
    %s171 = sphi 0, %s168
    %s172 = sphi 0, %s171
    %s188 = sphi 0, %s172
  $region4: #{gcn3_forward.1} parent=0 // loop_header_branch
    %15 = sbr.rel (%p13) target = $region8
  $region5: #{gcn3_forward.1} parent=0 // loop_body
    %s17 = ssub.s32 %s12, 1
    %s18 = ssub.s32 %s12, 2
    %s19 = sadd.s32 %s12, 1
    %s20 = ssub.s32 %s12, %s19
    %p21 = scmp.eq.s32.totalorder %s20, 0
    %s23 = sadd.s32 %s22, 1
    %s24 = scalar_select %p21, %s22, %s23
    %p27 = pneg %p21
    %p28 = scmp.eq.s32.totalorder %s12, 1
    %p29 = por %p27, %p28
    %p30 = scmp.ne.s32.totalorder %s22, %s25
    %p31 = scmp.eq.s32.totalorder %s12, 0
    %p32 = por %p30, %p31
    %p33 = scmp.ne.s32.totalorder %s22, %s25
    %p34 = scmp.eq.s32.totalorder %s17, 1
    %p35 = por %p33, %p34
    %p36 = scmp.ne.s32.totalorder %s25, %s26
    %p37 = scmp.eq.s32.totalorder %s17, 0
    %p38 = por %p36, %p37
    %p39 = scmp.ne.s32.totalorder %s25, %s26
    %p40 = scmp.eq.s32.totalorder %s18, 1
    %p41 = por %p39, %p40
    %p43 = scmp.ne.s32.totalorder %s26, %s42
    %p44 = scmp.eq.s32.totalorder %s18, 0
    %p45 = por %p43, %p44
    %s46 = ssub.s32 %s12, %s19
    %p47 = scmp.eq.s32.totalorder %s46, 0
    %s49 = sadd.s32 %s48, 1
    %s50 = scalar_select %p47, %s48, %s49
    %p53 = pneg %p47
    %p54 = scmp.eq.s32.totalorder %s12, 1
    %p55 = por %p53, %p54
    %p56 = scmp.ne.s32.totalorder %s48, %s51
    %p57 = scmp.eq.s32.totalorder %s12, 0
    %p58 = por %p56, %p57
    %p59 = scmp.ne.s32.totalorder %s48, %s51
    %p60 = scmp.eq.s32.totalorder %s17, 1
    %p61 = por %p59, %p60
    %p62 = scmp.ne.s32.totalorder %s51, %s52
    %p63 = scmp.eq.s32.totalorder %s17, 0
    %p64 = por %p62, %p63
    %p65 = scmp.ne.s32.totalorder %s51, %s52
    %p66 = scmp.eq.s32.totalorder %s18, 1
    %p67 = por %p65, %p66
    %p69 = scmp.ne.s32.totalorder %s52, %s68
    %p70 = scmp.eq.s32.totalorder %s18, 0
    %p71 = por %p69, %p70
    %s72 = ssub.s32 %s12, %s19
    %p73 = scmp.eq.s32.totalorder %s72, 0
    %s75 = sadd.s32 %s74, 1
    %s76 = scalar_select %p73, %s74, %s75
    %p79 = pneg %p73
    %p80 = scmp.eq.s32.totalorder %s12, 1
    %p81 = por %p79, %p80
    %p82 = scmp.ne.s32.totalorder %s74, %s77
    %p83 = scmp.eq.s32.totalorder %s12, 0
    %p84 = por %p82, %p83
    %p85 = scmp.ne.s32.totalorder %s74, %s77
    %p86 = scmp.eq.s32.totalorder %s17, 1
    %p87 = por %p85, %p86
    %p88 = scmp.ne.s32.totalorder %s77, %s78
    %p89 = scmp.eq.s32.totalorder %s17, 0
    %p90 = por %p88, %p89
    %p91 = scmp.ne.s32.totalorder %s77, %s78
    %p92 = scmp.eq.s32.totalorder %s18, 1
    %p93 = por %p91, %p92
    %p95 = scmp.ne.s32.totalorder %s78, %s94
    %p96 = scmp.eq.s32.totalorder %s18, 0
    %p97 = por %p95, %p96
    %s98 = ssub.s32 %s12, %s19
    %p99 = scmp.eq.s32.totalorder %s98, 0
    %s101 = sadd.s32 %s100, 1
    %s102 = scalar_select %p99, %s100, %s101
    %p105 = pneg %p99
    %p106 = scmp.eq.s32.totalorder %s12, 1
    %p107 = por %p105, %p106
    %p108 = scmp.ne.s32.totalorder %s100, %s103
    %p109 = scmp.eq.s32.totalorder %s12, 0
    %p110 = por %p108, %p109
    %p111 = scmp.ne.s32.totalorder %s100, %s103
    %p112 = scmp.eq.s32.totalorder %s17, 1
    %p113 = por %p111, %p112
    %p114 = scmp.ne.s32.totalorder %s103, %s104
    %p115 = scmp.eq.s32.totalorder %s17, 0
    %p116 = por %p114, %p115
    %p117 = scmp.ne.s32.totalorder %s103, %s104
    %p118 = scmp.eq.s32.totalorder %s18, 1
    %p119 = por %p117, %p118
    %p121 = scmp.ne.s32.totalorder %s104, %s120
    %p122 = scmp.eq.s32.totalorder %s18, 0
    %p123 = por %p121, %p122
    %s125 = sadd.s32 %s124, 1
    %p128 = scmp.eq.s32.totalorder %s12, 1
    %p129 = scmp.ne.s32.totalorder %s124, %s126
    %p130 = scmp.eq.s32.totalorder %s12, 0
    %p131 = por %p129, %p130
    %p132 = scmp.ne.s32.totalorder %s124, %s126
    %p133 = scmp.eq.s32.totalorder %s17, 1
    %p134 = por %p132, %p133
    %p135 = scmp.ne.s32.totalorder %s126, %s127
    %p136 = scmp.eq.s32.totalorder %s17, 0
    %p137 = por %p135, %p136
    %p138 = scmp.ne.s32.totalorder %s126, %s127
    %p139 = scmp.eq.s32.totalorder %s18, 1
    %p140 = por %p138, %p139
    %p142 = scmp.ne.s32.totalorder %s127, %s141
    %p143 = scmp.eq.s32.totalorder %s18, 0
    %p144 = por %p142, %p143
    %s146 = sadd.s32 %s145, 1
    %p149 = scmp.eq.s32.totalorder %s12, 1
    %p150 = scmp.ne.s32.totalorder %s145, %s147
    %p151 = scmp.eq.s32.totalorder %s12, 0
    %p152 = por %p150, %p151
    %p153 = scmp.ne.s32.totalorder %s145, %s147
    %p154 = scmp.eq.s32.totalorder %s17, 1
    %p155 = por %p153, %p154
    %p156 = scmp.ne.s32.totalorder %s147, %s148
    %p157 = scmp.eq.s32.totalorder %s17, 0
    %p158 = por %p156, %p157
    %p159 = scmp.ne.s32.totalorder %s147, %s148
    %p160 = scmp.eq.s32.totalorder %s18, 1
    %p161 = por %p159, %p160
    %p163 = scmp.ne.s32.totalorder %s148, %s162
    %p164 = scmp.eq.s32.totalorder %s18, 0
    %p165 = por %p163, %p164
    %s166 = ssub.s32 %s12, %s19
    %p167 = scmp.eq.s32.totalorder %s166, 0
    %s169 = sadd.s32 %s168, 1
    %s170 = scalar_select %p167, %s168, %s169
    %p173 = pneg %p167
    %p174 = scmp.eq.s32.totalorder %s12, 1
    %p175 = por %p173, %p174
    %p176 = scmp.ne.s32.totalorder %s168, %s171
    %p177 = scmp.eq.s32.totalorder %s12, 0
    %p178 = por %p176, %p177
    %p179 = scmp.ne.s32.totalorder %s168, %s171
    %p180 = scmp.eq.s32.totalorder %s17, 1
    %p181 = por %p179, %p180
    %p182 = scmp.ne.s32.totalorder %s171, %s172
    %p183 = scmp.eq.s32.totalorder %s17, 0
    %p184 = por %p182, %p183
    %p185 = scmp.ne.s32.totalorder %s171, %s172
    %p186 = scmp.eq.s32.totalorder %s18, 1
    %p187 = por %p185, %p186
    %p189 = scmp.ne.s32.totalorder %s172, %s188
    %p190 = scmp.eq.s32.totalorder %s18, 0
    %p191 = por %p189, %p190
    %p192 = scmp.le.s32.totalorder 1, %s12
    %p193 = scmp.lt.s32.totalorder %s12, 3
    %p194 = pnand %p192, %p193
    %p195 = pneg %p194
    // Predicated region
    $region9: #{gcn3_forward.1} parent=5 // pred_check
      _
    $region10: #{gcn3_forward.1} parent=5 // pred_check_branch
      %197 = sbr.rel (%p194) target = $region12
    $region11: #{gcn3_forward.1} parent=5 // pred_region
      %s198 = ssub.s32 %s12, 1
      // Predicated region
      $region13: #{gcn3_forward.1} parent=11 // pred_check
        %p199 = pneg %p137
      $region14: #{gcn3_forward.1} parent=11 // pred_check_branch
        %201 = sbr.rel (%p199) target = $region16
      $region15: #{gcn3_forward.1} parent=11 // pred_region
        _
      $region16: #{gcn3_forward.1} parent=11 // pred_fallthru
        _
      // Predicated region
      $region17: #{gcn3_forward.1} parent=11 // pred_check
        %p202 = pneg %p158
      $region18: #{gcn3_forward.1} parent=11 // pred_check_branch
        %204 = sbr.rel (%p202) target = $region20
      $region19: #{gcn3_forward.1} parent=11 // pred_region
        _
      $region20: #{gcn3_forward.1} parent=11 // pred_fallthru
        _
    $region12: #{gcn3_forward.1} parent=5 // pred_fallthru
      _
    %p205 = scmp.lt.s32.totalorder %s12, 2
    // Predicated region
    $region21: #{gcn3_forward.1} parent=5 // pred_check
      %p206 = pneg %p205
    $region22: #{gcn3_forward.1} parent=5 // pred_check_branch
      %208 = sbr.rel (%p206) target = $region24
    $region23: #{gcn3_forward.1} parent=5 // pred_region
      // Predicated region
      $region25: #{gcn3_forward.1} parent=23 // pred_check
        %p209 = pneg %p32
      $region26: #{gcn3_forward.1} parent=23 // pred_check_branch
        %211 = sbr.rel (%p209) target = $region28
      $region27: #{gcn3_forward.1} parent=23 // pred_region
        %p212 = scmp.lt.s32.totalorder %s12, 1
        %s213 = scalar_select %p212, %s12, 1
        %s214 = smul.addr %s213, 16
        %s215 = smul.addr %s214, 8
        %s216 = scalar_lea.vmem %s0, %s215
      $region28: #{gcn3_forward.1} parent=23 // pred_fallthru
        _
      // Predicated region
      $region29: #{gcn3_forward.1} parent=23 // pred_check
        %p217 = pneg %p58
      $region30: #{gcn3_forward.1} parent=23 // pred_check_branch
        %219 = sbr.rel (%p217) target = $region32
      $region31: #{gcn3_forward.1} parent=23 // pred_region
        %p220 = scmp.lt.s32.totalorder %s12, 1
        %s221 = scalar_select %p220, %s12, 1
        %s222 = smul.addr %s221, 6
        %s223 = smul.addr %s222, 8
        %s224 = scalar_lea.vmem %s1, %s223
      $region32: #{gcn3_forward.1} parent=23 // pred_fallthru
        _
      // Predicated region
      $region33: #{gcn3_forward.1} parent=23 // pred_check
        %p225 = pneg %p84
      $region34: #{gcn3_forward.1} parent=23 // pred_check_branch
        %227 = sbr.rel (%p225) target = $region36
      $region35: #{gcn3_forward.1} parent=23 // pred_region
        %p228 = scmp.lt.s32.totalorder %s12, 1
        %s229 = scalar_select %p228, %s12, 1
        %s230 = smul.addr %s229, 24
        %s231 = smul.addr %s230, 8
        %s232 = scalar_lea.vmem %s2, %s231
      $region36: #{gcn3_forward.1} parent=23 // pred_fallthru
        _
      // Predicated region
      $region37: #{gcn3_forward.1} parent=23 // pred_check
        %p233 = pneg %p110
      $region38: #{gcn3_forward.1} parent=23 // pred_check_branch
        %235 = sbr.rel (%p233) target = $region40
      $region39: #{gcn3_forward.1} parent=23 // pred_region
        %p236 = scmp.lt.s32.totalorder %s12, 1
        %s237 = scalar_select %p236, %s12, 1
        %s238 = smul.addr %s237, 6
        %s239 = smul.addr %s238, 2
        %s240 = scalar_lea.vmem %s3, %s239
      $region40: #{gcn3_forward.1} parent=23 // pred_fallthru
        _
    $region24: #{gcn3_forward.1} parent=5 // pred_fallthru
      _
    %p241 = scmp.le.s32.totalorder 1, %s12
    %p242 = scmp.lt.s32.totalorder %s12, 3
    %p243 = pnand %p241, %p242
    %p244 = pneg %p243
    // Predicated region
    $region41: #{gcn3_forward.1} parent=5 // pred_check
      _
    $region42: #{gcn3_forward.1} parent=5 // pred_check_branch
      %246 = sbr.rel (%p243) target = $region44
    $region43: #{gcn3_forward.1} parent=5 // pred_region
      %s247 = ssub.s32 %s12, 1
      %p248 = scmp.lt.s32.totalorder %s17, 1
      %s249 = scalar_select %p248, %s17, 1
      %s250 = smul.addr %s249, 16
      %s251 = smul.addr %s250, 8
      %s252 = scalar_lea.vmem %s0, %s251
      %p253 = pneg %p38
      %p254 = pneg %p35
      %p255 = scmp.lt.s32.totalorder %s17, 1
      %s256 = scalar_select %p255, %s17, 1
      %s257 = smul.addr %s256, 6
      %s258 = smul.addr %s257, 8
      %s259 = scalar_lea.vmem %s1, %s258
      %p260 = pneg %p64
      %p261 = pneg %p61
      %p262 = scmp.lt.s32.totalorder %s17, 1
      %s263 = scalar_select %p262, %s17, 1
      %s264 = smul.addr %s263, 24
      %s265 = smul.addr %s264, 8
      %s266 = scalar_lea.vmem %s2, %s265
      %p267 = pneg %p90
      %p268 = pneg %p87
      %p269 = scmp.lt.s32.totalorder %s17, 1
      %s270 = scalar_select %p269, %s17, 1
      %s271 = smul.addr %s270, 6
      %s272 = smul.addr %s271, 2
      %s273 = scalar_lea.vmem %s3, %s272
      %p274 = pneg %p116
      %p275 = pneg %p113
      %p276 = pneg %p137
      %p277 = pneg %p134
      %p278 = pneg %p158
      %p279 = pneg %p155
      %p280 = pneg %p184
      %p281 = pneg %p181
      %p282 = scmp.lt.s32.totalorder %s17, 1
      %s283 = scalar_select %p282, %s17, 1
      %s284 = smul.addr %s283, 4
      %s285 = smul.addr %s284, 8
      %s286 = scalar_lea.vmem %s6, %s285
      %p287 = scmp.lt.s32.totalorder %s17, 1
      %s288 = scalar_select %p287, %s17, 1
      %s289 = smul.addr %s288, 16
      %s290 = smul.addr %s289, 8
      %s291 = scalar_lea.vmem %s0, %s290
      %p292 = scmp.lt.s32.totalorder %s17, 1
      %s293 = scalar_select %p292, %s17, 1
      %s294 = smul.addr %s293, 6
      %s295 = smul.addr %s294, 8
      %s296 = scalar_lea.vmem %s1, %s295
      %p297 = scmp.lt.s32.totalorder %s17, 1
      %s298 = scalar_select %p297, %s17, 1
      %s299 = smul.addr %s298, 24
      %s300 = smul.addr %s299, 8
      %s301 = scalar_lea.vmem %s2, %s300
      %p302 = scmp.lt.s32.totalorder %s17, 1
      %s303 = scalar_select %p302, %s17, 1
      %s304 = smul.addr %s303, 6
      %s305 = smul.addr %s304, 2
      %s306 = scalar_lea.vmem %s3, %s305
      %p307 = scmp.lt.s32.totalorder %s17, 1
      %s308 = scalar_select %p307, %s17, 1
      %s309 = smul.addr %s308, 4
      %s310 = smul.addr %s309, 8
      %s311 = scalar_lea.vmem %s6, %s310
      %v312 = vld [vmem:[%s291] sm:$0xff]
      %v313 = vld [vmem:[%s291 + $0x8] sm:$0xff]
      %v314 = vld [vmem:[%s291 + $0x10] sm:$0xff]
      %v315 = vld [vmem:[%s291 + $0x18] sm:$0xff]
      %v316 = vld [vmem:[%s291 + $0x20] sm:$0xff]
      %v317 = vld [vmem:[%s291 + $0x28] sm:$0xff]
      %v318 = vld [vmem:[%s291 + $0x30] sm:$0xff]
      %v319 = vld [vmem:[%s291 + $0x38] sm:$0xff]
      %v320 = vld [vmem:[%s291 + $0x40] sm:$0xff]
      %v321 = vld [vmem:[%s291 + $0x48] sm:$0xff]
      %v322 = vld [vmem:[%s291 + $0x50] sm:$0xff]
      %v323 = vld [vmem:[%s291 + $0x58] sm:$0xff]
      %v324 = vld [vmem:[%s291 + $0x60] sm:$0xff]
      %v325 = vld [vmem:[%s291 + $0x68] sm:$0xff]
      %v326 = vld [vmem:[%s291 + $0x70] sm:$0xff]
      %v327 = vld [vmem:[%s291 + $0x78] sm:$0xff]
      %v328 = vld [vmem:[%s301] sm:$0xff]
      %v329 = vld [vmem:[%s301 + $0x8] sm:$0xff]
      %v330 = vld [vmem:[%s301 + $0x10] sm:$0xff]
      %v331 = vld [vmem:[%s301 + $0x18] sm:$0xf]
      %v332 = vld [vmem:[%s306] sm:$0x3]
      %v333 = vld [vmem:[%s296] sm:$0xff]
      %v334 = vld [vmem:[%s296 + $0x8] sm:$0xff]
      %vm335 = vcmask 228352
      %v337 = vsel %vm335, %v312, 0
      %v340 = vsel %vm335, %v313, 0
      %v343 = vsel %vm335, %v314, 0
      %v346 = vsel %vm335, %v315, 0
      %v349 = vsel %vm335, %v316, 0
      %v352 = vsel %vm335, %v317, 0
      %v355 = vsel %vm335, %v318, 0
      %v358 = vsel %vm335, %v319, 0
      %v361 = vsel %vm335, %v320, 0
      %v364 = vsel %vm335, %v321, 0
      %v367 = vsel %vm335, %v322, 0
      %v370 = vsel %vm335, %v323, 0
      %v373 = vsel %vm335, %v324, 0
      %v376 = vsel %vm335, %v325, 0
      %v379 = vsel %vm335, %v326, 0
      %v382 = vsel %vm335, %v327, 0
      %vm384 = vcmask 1043456
      %v386 = vsel %vm384, %v331, 0
      %388 = vmatprep.subr.mxu0 0.0
      %389 = vmatpush1.msra.mxu0 %v328
      %390 = vmatprep.subr.mxu0 0.0
      %391 = vmatpush1.msra.mxu0 %v329
      %392 = vmatprep.subr.mxu0 0.0
      %393 = vmatpush1.msra.mxu0 %v330
      %394 = vmatprep.subr.mxu0 0.0
      %395 = vmatpush1.msra.mxu0 %v386
      %396 = vmatprep.subr.mxu0 0.0
      %397 = vmatpush1.msra.mxu0 0.0
      %398 = vmatprep.subr.mxu0 0.0
      %399 = vmatpush1.msra.mxu0 0.0
      %400 = vmatprep.subr.mxu0 0.0
      %401 = vmatpush1.msra.mxu0 0.0
      %402 = vmatprep.subr.mxu0 0.0
      %403 = vmatpush1.msra.mxu0 0.0
      %404 = vmatprep.subr.mxu0 0.0
      %405 = vmatpush1.msra.mxu0 0.0
      %406 = vmatprep.subr.mxu0 0.0
      %407 = vmatpush1.msra.mxu0 0.0
      %408 = vmatprep.subr.mxu0 0.0
      %409 = vmatpush1.msra.mxu0 0.0
      %410 = vmatprep.subr.mxu0 0.0
      %411 = vmatpush1.msra.mxu0 0.0
      %412 = vmatprep.subr.mxu0 0.0
      %413 = vmatpush1.msra.mxu0 0.0
      %414 = vmatprep.subr.mxu0 0.0
      %415 = vmatpush1.msra.mxu0 0.0
      %416 = vmatprep.subr.mxu0 0.0
      %417 = vmatpush1.msra.mxu0 0.0
      %418 = vmatprep.subr.mxu0 0.0
      %419 = vmatpush1.msra.mxu0 0.0
      %420 = vmatprep.subr.mxu0 0.0
      %421 = vmatpush1.msra.mxu0 0.0
      %422 = vmatprep.subr.mxu0 0.0
      %423 = vmatpush1.msra.mxu0 0.0
      %424 = vmatprep.subr.mxu0 0.0
      %425 = vmatpush1.msra.mxu0 0.0
      %426 = vmatprep.subr.mxu0 0.0
      %427 = vmatpush1.msra.mxu0 0.0
      %428 = vmatprep.subr.mxu0 0.0
      %429 = vmatpush1.msra.mxu0 0.0
      %430 = vmatprep.subr.mxu0 0.0
      %431 = vmatpush1.msra.mxu0 0.0
      %432 = vmatprep.subr.mxu0 0.0
      %433 = vmatpush1.msra.mxu0 0.0
      %434 = vmatprep.subr.mxu0 0.0
      %435 = vmatpush1.msra.mxu0 0.0
      %436 = vmatprep.subr.mxu0 0.0
      %437 = vmatpush1.msra.mxu0 0.0
      %438 = vmatprep.subr.mxu0 0.0
      %439 = vmatpush1.msra.mxu0 0.0
      %440 = vmatprep.subr.mxu0 0.0
      %441 = vmatpush1.msra.mxu0 0.0
      %442 = vmatprep.subr.mxu0 0.0
      %443 = vmatpush1.msra.mxu0 0.0
      %444 = vmatprep.subr.mxu0 0.0
      %445 = vmatpush1.msra.mxu0 0.0
      %446 = vmatprep.subr.mxu0 0.0
      %447 = vmatpush1.msra.mxu0 0.0
      %448 = vmatprep.subr.mxu0 0.0
      %449 = vmatpush1.msra.mxu0 0.0
      %450 = vmatprep.subr.mxu0 0.0
      %451 = vmatpush1.msra.mxu0 0.0
      %452 = vmatprep.mubr.f32.mxu0 0.0
      %453 = vmatmul.mubr.f32.gmra.mrb[0].mxu0 %v337
      %v454 = vpop.f32.mrb[0].mxu0
      %v455 = vadd.f32 0.0, %v454
      %v456 = vpop.f32.mrb[0].mxu0
      %457 = vmatprep.mubr.f32.mxu0 0.0
      %458 = vmatmul.mubr.f32.gmra.mrb[0].mxu0 %v340
      %v459 = vpop.f32.mrb[0].mxu0
      %v460 = vadd.f32 0.0, %v459
      %v461 = vpop.f32.mrb[0].mxu0
      %462 = vmatprep.mubr.f32.mxu0 0.0
      %463 = vmatmul.mubr.f32.gmra.mrb[0].mxu0 %v343
      %v464 = vpop.f32.mrb[0].mxu0
      %v465 = vadd.f32 0.0, %v464
      %v466 = vpop.f32.mrb[0].mxu0
      %467 = vmatprep.mubr.f32.mxu0 0.0
      %468 = vmatmul.mubr.f32.gmra.mrb[0].mxu0 %v346
      %v469 = vpop.f32.mrb[0].mxu0
      %v470 = vadd.f32 0.0, %v469
      %v471 = vpop.f32.mrb[0].mxu0
      %472 = vmatprep.mubr.f32.mxu0 0.0
      %473 = vmatmul.mubr.f32.gmra.mrb[0].mxu0 %v349
      %v474 = vpop.f32.mrb[0].mxu0
      %v475 = vadd.f32 0.0, %v474
      %v476 = vpop.f32.mrb[0].mxu0
      %477 = vmatprep.mubr.f32.mxu0 0.0
      %478 = vmatmul.mubr.f32.gmra.mrb[0].mxu0 %v352
      %v479 = vpop.f32.mrb[0].mxu0
      %v480 = vadd.f32 0.0, %v479
      %v481 = vpop.f32.mrb[0].mxu0
      %482 = vmatprep.mubr.f32.mxu0 0.0
      %483 = vmatmul.mubr.f32.gmra.mrb[0].mxu0 %v355
      %v484 = vpop.f32.mrb[0].mxu0
      %v485 = vadd.f32 0.0, %v484
      %v486 = vpop.f32.mrb[0].mxu0
      %487 = vmatprep.mubr.f32.mxu0 0.0
      %488 = vmatmul.mubr.f32.gmra.mrb[0].mxu0 %v358
      %v489 = vpop.f32.mrb[0].mxu0
      %v490 = vadd.f32 0.0, %v489
      %v491 = vpop.f32.mrb[0].mxu0
      %492 = vmatprep.mubr.f32.mxu0 0.0
      %493 = vmatmul.mubr.f32.gmra.mrb[0].mxu0 %v361
      %v494 = vpop.f32.mrb[0].mxu0
      %v495 = vadd.f32 0.0, %v494
      %v496 = vpop.f32.mrb[0].mxu0
      %497 = vmatprep.mubr.f32.mxu0 0.0
      %498 = vmatmul.mubr.f32.gmra.mrb[0].mxu0 %v364
      %v499 = vpop.f32.mrb[0].mxu0
      %v500 = vadd.f32 0.0, %v499
      %v501 = vpop.f32.mrb[0].mxu0
      %502 = vmatprep.mubr.f32.mxu0 0.0
      %503 = vmatmul.mubr.f32.gmra.mrb[0].mxu0 %v367
      %v504 = vpop.f32.mrb[0].mxu0
      %v505 = vadd.f32 0.0, %v504
      %v506 = vpop.f32.mrb[0].mxu0
      %507 = vmatprep.mubr.f32.mxu0 0.0
      %508 = vmatmul.mubr.f32.gmra.mrb[0].mxu0 %v370
      %v509 = vpop.f32.mrb[0].mxu0
      %v510 = vadd.f32 0.0, %v509
      %v511 = vpop.f32.mrb[0].mxu0
      %512 = vmatprep.mubr.f32.mxu0 0.0
      %513 = vmatmul.mubr.f32.gmra.mrb[0].mxu0 %v373
      %v514 = vpop.f32.mrb[0].mxu0
      %v515 = vadd.f32 0.0, %v514
      %v516 = vpop.f32.mrb[0].mxu0
      %517 = vmatprep.mubr.f32.mxu0 0.0
      %518 = vmatmul.mubr.f32.gmra.mrb[0].mxu0 %v376
      %v519 = vpop.f32.mrb[0].mxu0
      %v520 = vadd.f32 0.0, %v519
      %v521 = vpop.f32.mrb[0].mxu0
      %522 = vmatprep.mubr.f32.mxu0 0.0
      %523 = vmatmul.mubr.f32.gmra.mrb[0].mxu0 %v379
      %v524 = vpop.f32.mrb[0].mxu0
      %v525 = vadd.f32 0.0, %v524
      %v526 = vpop.f32.mrb[0].mxu0
      %527 = vmatprep.mubr.f32.mxu0 0.0
      %528 = vmatmul.mubr.f32.gmra.mrb[0].mxu0 %v382
      %v529 = vpop.f32.mrb[0].mxu0
      %v530 = vadd.f32 0.0, %v529
      %v531 = vpop.f32.mrb[0].mxu0
      %532 = vdwg.mxu0
      %v533 = vlaneseq
      %v534 = vshrl.u32 %v533, 7
      %v535 = vsub.s32 0, %v534
      %v536 = vrot.slane %v332, %v535
      %v537 = vmul.f32 %v455, %v536
      %v538 = vmul.f32 %v460, %v536
      %v539 = vmul.f32 %v465, %v536
      %v540 = vmul.f32 %v470, %v536
      %v541 = vmul.f32 %v475, %v536
      %v542 = vmul.f32 %v480, %v536
      %v543 = vmul.f32 %v485, %v536
      %v544 = vmul.f32 %v490, %v536
      %v545 = vmul.f32 %v495, %v536
      %v546 = vmul.f32 %v500, %v536
      %v547 = vmul.f32 %v505, %v536
      %v548 = vmul.f32 %v510, %v536
      %v549 = vmul.f32 %v515, %v536
      %v550 = vmul.f32 %v520, %v536
      %v551 = vmul.f32 %v525, %v536
      %v552 = vmul.f32 %v530, %v536
      %v553 = vsel %vm335, %v537, 0.0
      %554 = vadd.xlane.f32.xlu0 %v553
      %v555 = vpop.xlane.xlu0 %554
      %v556 = vsel %vm335, %v538, 0.0
      %557 = vadd.xlane.f32.xlu0 %v556
      %v558 = vpop.xlane.xlu0 %557
      %v559 = vsel %vm335, %v539, 0.0
      %560 = vadd.xlane.f32.xlu0 %v559
      %v561 = vpop.xlane.xlu0 %560
      %v562 = vsel %vm335, %v540, 0.0
      %563 = vadd.xlane.f32.xlu0 %v562
      %v564 = vpop.xlane.xlu0 %563
      %v565 = vsel %vm335, %v541, 0.0
      %566 = vadd.xlane.f32.xlu0 %v565
      %v567 = vpop.xlane.xlu0 %566
      %v568 = vsel %vm335, %v542, 0.0
      %569 = vadd.xlane.f32.xlu0 %v568
      %v570 = vpop.xlane.xlu0 %569
      %v571 = vsel %vm335, %v543, 0.0
      %572 = vadd.xlane.f32.xlu0 %v571
      %v573 = vpop.xlane.xlu0 %572
      %v574 = vsel %vm335, %v544, 0.0
      %575 = vadd.xlane.f32.xlu0 %v574
      %v576 = vpop.xlane.xlu0 %575
      %v577 = vsel %vm335, %v545, 0.0
      %578 = vadd.xlane.f32.xlu0 %v577
      %v579 = vpop.xlane.xlu0 %578
      %v580 = vsel %vm335, %v546, 0.0
      %581 = vadd.xlane.f32.xlu0 %v580
      %v582 = vpop.xlane.xlu0 %581
      %v583 = vsel %vm335, %v547, 0.0
      %584 = vadd.xlane.f32.xlu0 %v583
      %v585 = vpop.xlane.xlu0 %584
      %v586 = vsel %vm335, %v548, 0.0
      %587 = vadd.xlane.f32.xlu0 %v586
      %v588 = vpop.xlane.xlu0 %587
      %v589 = vsel %vm335, %v549, 0.0
      %590 = vadd.xlane.f32.xlu0 %v589
      %v591 = vpop.xlane.xlu0 %590
      %v592 = vsel %vm335, %v550, 0.0
      %593 = vadd.xlane.f32.xlu0 %v592
      %v594 = vpop.xlane.xlu0 %593
      %v595 = vsel %vm335, %v551, 0.0
      %596 = vadd.xlane.f32.xlu0 %v595
      %v597 = vpop.xlane.xlu0 %596
      %v598 = vsel %vm335, %v552, 0.0
      %599 = vadd.xlane.f32.xlu0 %v598
      %v600 = vpop.xlane.xlu0 %599
      %v601 = vlaneseq
      %v602 = vshrl.u32 %v601, 7
      %v603 = vsub.s32 1, %v602
      %v604 = vrot.slane %v332, %v603
      %v605 = vmul.f32 %v455, %v604
      %v606 = vmul.f32 %v460, %v604
      %v607 = vmul.f32 %v465, %v604
      %v608 = vmul.f32 %v470, %v604
      %v609 = vmul.f32 %v475, %v604
      %v610 = vmul.f32 %v480, %v604
      %v611 = vmul.f32 %v485, %v604
      %v612 = vmul.f32 %v490, %v604
      %v613 = vmul.f32 %v495, %v604
      %v614 = vmul.f32 %v500, %v604
      %v615 = vmul.f32 %v505, %v604
      %v616 = vmul.f32 %v510, %v604
      %v617 = vmul.f32 %v515, %v604
      %v618 = vmul.f32 %v520, %v604
      %v619 = vmul.f32 %v525, %v604
      %v620 = vmul.f32 %v530, %v604
      %v621 = vsel %vm335, %v605, 0.0
      %622 = vadd.xlane.f32.xlu0 %v621
      %v623 = vpop.xlane.xlu0 %622
      %v624 = vsel %vm335, %v606, 0.0
      %625 = vadd.xlane.f32.xlu0 %v624
      %v626 = vpop.xlane.xlu0 %625
      %v627 = vsel %vm335, %v607, 0.0
      %628 = vadd.xlane.f32.xlu0 %v627
      %v629 = vpop.xlane.xlu0 %628
      %v630 = vsel %vm335, %v608, 0.0
      %631 = vadd.xlane.f32.xlu0 %v630
      %v632 = vpop.xlane.xlu0 %631
      %v633 = vsel %vm335, %v609, 0.0
      %634 = vadd.xlane.f32.xlu0 %v633
      %v635 = vpop.xlane.xlu0 %634
      %v636 = vsel %vm335, %v610, 0.0
      %637 = vadd.xlane.f32.xlu0 %v636
      %v638 = vpop.xlane.xlu0 %637
      %v639 = vsel %vm335, %v611, 0.0
      %640 = vadd.xlane.f32.xlu0 %v639
      %v641 = vpop.xlane.xlu0 %640
      %v642 = vsel %vm335, %v612, 0.0
      %643 = vadd.xlane.f32.xlu0 %v642
      %v644 = vpop.xlane.xlu0 %643
      %v645 = vsel %vm335, %v613, 0.0
      %646 = vadd.xlane.f32.xlu0 %v645
      %v647 = vpop.xlane.xlu0 %646
      %v648 = vsel %vm335, %v614, 0.0
      %649 = vadd.xlane.f32.xlu0 %v648
      %v650 = vpop.xlane.xlu0 %649
      %v651 = vsel %vm335, %v615, 0.0
      %652 = vadd.xlane.f32.xlu0 %v651
      %v653 = vpop.xlane.xlu0 %652
      %v654 = vsel %vm335, %v616, 0.0
      %655 = vadd.xlane.f32.xlu0 %v654
      %v656 = vpop.xlane.xlu0 %655
      %v657 = vsel %vm335, %v617, 0.0
      %658 = vadd.xlane.f32.xlu0 %v657
      %v659 = vpop.xlane.xlu0 %658
      %v660 = vsel %vm335, %v618, 0.0
      %661 = vadd.xlane.f32.xlu0 %v660
      %v662 = vpop.xlane.xlu0 %661
      %v663 = vsel %vm335, %v619, 0.0
      %664 = vadd.xlane.f32.xlu0 %v663
      %v665 = vpop.xlane.xlu0 %664
      %v666 = vsel %vm335, %v620, 0.0
      %667 = vadd.xlane.f32.xlu0 %v666
      %v668 = vpop.xlane.xlu0 %667
      %v685 = vlaneseq
      %v686 = vand.u32 %v685, 127
      %v687 = vlaneseq
      %v688 = vshrl.u32 %v687, 7
      %v689 = vsub.s32 %v686, %v688
      %v690 = vrot.slane %v623, %v689
      %v691 = vadd.s32 %v686, 4294967288
      %v692 = vlaneseq
      %v693 = vshrl.u32 %v692, 7
      %v694 = vsub.s32 %v691, %v693
      %v695 = vrot.slane %v626, %v694
      %vm696 = vcmask 130112
      %v697 = vsel %vm696, %v695, %v690
      %v698 = vlaneseq
      %v699 = vshrl.u32 %v698, 7
      %v700 = vsub.s32 %v686, %v699
      %v701 = vrot.slane %v629, %v700
      %v702 = vlaneseq
      %v703 = vshrl.u32 %v702, 7
      %v704 = vsub.s32 %v691, %v703
      %v705 = vrot.slane %v632, %v704
      %v706 = vsel %vm696, %v705, %v701
      %v707 = vlaneseq
      %v708 = vshrl.u32 %v707, 7
      %v709 = vsub.s32 %v686, %v708
      %v710 = vrot.slane %v635, %v709
      %v711 = vlaneseq
      %v712 = vshrl.u32 %v711, 7
      %v713 = vsub.s32 %v691, %v712
      %v714 = vrot.slane %v638, %v713
      %v715 = vsel %vm696, %v714, %v710
      %v716 = vlaneseq
      %v717 = vshrl.u32 %v716, 7
      %v718 = vsub.s32 %v686, %v717
      %v719 = vrot.slane %v641, %v718
      %v720 = vlaneseq
      %v721 = vshrl.u32 %v720, 7
      %v722 = vsub.s32 %v691, %v721
      %v723 = vrot.slane %v644, %v722
      %v724 = vsel %vm696, %v723, %v719
      %v725 = vlaneseq
      %v726 = vshrl.u32 %v725, 7
      %v727 = vsub.s32 %v686, %v726
      %v728 = vrot.slane %v647, %v727
      %v729 = vlaneseq
      %v730 = vshrl.u32 %v729, 7
      %v731 = vsub.s32 %v691, %v730
      %v732 = vrot.slane %v650, %v731
      %v733 = vsel %vm696, %v732, %v728
      %v734 = vlaneseq
      %v735 = vshrl.u32 %v734, 7
      %v736 = vsub.s32 %v686, %v735
      %v737 = vrot.slane %v653, %v736
      %v738 = vlaneseq
      %v739 = vshrl.u32 %v738, 7
      %v740 = vsub.s32 %v691, %v739
      %v741 = vrot.slane %v656, %v740
      %v742 = vsel %vm696, %v741, %v737
      %v743 = vlaneseq
      %v744 = vshrl.u32 %v743, 7
      %v745 = vsub.s32 %v686, %v744
      %v746 = vrot.slane %v659, %v745
      %v747 = vlaneseq
      %v748 = vshrl.u32 %v747, 7
      %v749 = vsub.s32 %v691, %v748
      %v750 = vrot.slane %v662, %v749
      %v751 = vsel %vm696, %v750, %v746
      %v752 = vlaneseq
      %v753 = vshrl.u32 %v752, 7
      %v754 = vsub.s32 %v686, %v753
      %v755 = vrot.slane %v665, %v754
      %v756 = vlaneseq
      %v757 = vshrl.u32 %v756, 7
      %v758 = vsub.s32 %v691, %v757
      %v759 = vrot.slane %v668, %v758
      %v760 = vsel %vm696, %v759, %v755
      %vm761 = vcmask 1042434
      %v762 = vsel %vm761, %v697, %v697
      %vm763 = vcmask 1043459
      %v764 = vsel %vm763, %v697, %v762
      %vm765 = vcmask 1044484
      %v766 = vsel %vm765, %v697, %v764
      %vm767 = vcmask 1045509
      %v768 = vsel %vm767, %v697, %v766
      %vm769 = vcmask 1046534
      %v770 = vsel %vm769, %v697, %v768
      %vm771 = vcmask 1047559
      %v772 = vsel %vm771, %v697, %v770
      %v773 = vsel %vm761, %v706, %v706
      %v774 = vsel %vm763, %v706, %v773
      %v775 = vsel %vm765, %v706, %v774
      %v776 = vsel %vm767, %v706, %v775
      %v777 = vsel %vm769, %v706, %v776
      %v778 = vsel %vm771, %v706, %v777
      %v779 = vsel %vm761, %v715, %v715
      %v780 = vsel %vm763, %v715, %v779
      %v781 = vsel %vm765, %v715, %v780
      %v782 = vsel %vm767, %v715, %v781
      %v783 = vsel %vm769, %v715, %v782
      %v784 = vsel %vm771, %v715, %v783
      %v785 = vsel %vm761, %v724, %v724
      %v786 = vsel %vm763, %v724, %v785
      %v787 = vsel %vm765, %v724, %v786
      %v788 = vsel %vm767, %v724, %v787
      %v789 = vsel %vm769, %v724, %v788
      %v790 = vsel %vm771, %v724, %v789
      %v791 = vsel %vm761, %v733, %v733
      %v792 = vsel %vm763, %v733, %v791
      %v793 = vsel %vm765, %v733, %v792
      %v794 = vsel %vm767, %v733, %v793
      %v795 = vsel %vm769, %v733, %v794
      %v796 = vsel %vm771, %v733, %v795
      %v797 = vsel %vm761, %v742, %v742
      %v798 = vsel %vm763, %v742, %v797
      %v799 = vsel %vm765, %v742, %v798
      %v800 = vsel %vm767, %v742, %v799
      %v801 = vsel %vm769, %v742, %v800
      %v802 = vsel %vm771, %v742, %v801
      %v803 = vsel %vm761, %v751, %v751
      %v804 = vsel %vm763, %v751, %v803
      %v805 = vsel %vm765, %v751, %v804
      %v806 = vsel %vm767, %v751, %v805
      %v807 = vsel %vm769, %v751, %v806
      %v808 = vsel %vm771, %v751, %v807
      %v809 = vsel %vm761, %v760, %v760
      %v810 = vsel %vm763, %v760, %v809
      %v811 = vsel %vm765, %v760, %v810
      %v812 = vsel %vm767, %v760, %v811
      %v813 = vsel %vm769, %v760, %v812
      %v814 = vsel %vm771, %v760, %v813
      %v823 = vadd.f32 %v555, %v772
      %v824 = vadd.f32 %v558, %v772
      %v825 = vadd.f32 %v561, %v778
      %v826 = vadd.f32 %v564, %v778
      %v827 = vadd.f32 %v567, %v784
      %v828 = vadd.f32 %v570, %v784
      %v829 = vadd.f32 %v573, %v790
      %v830 = vadd.f32 %v576, %v790
      %v831 = vadd.f32 %v579, %v796
      %v832 = vadd.f32 %v582, %v796
      %v833 = vadd.f32 %v585, %v802
      %v834 = vadd.f32 %v588, %v802
      %v835 = vadd.f32 %v591, %v808
      %v836 = vadd.f32 %v594, %v808
      %v837 = vadd.f32 %v597, %v814
      %v838 = vadd.f32 %v600, %v814
      %vm839 = vcmp.gt.f32.partialorder %v823, 0.0
      %vm840 = vcmp.gt.f32.partialorder %v824, 0.0
      %vm841 = vcmp.gt.f32.partialorder %v825, 0.0
      %vm842 = vcmp.gt.f32.partialorder %v826, 0.0
      %vm843 = vcmp.gt.f32.partialorder %v827, 0.0
      %vm844 = vcmp.gt.f32.partialorder %v828, 0.0
      %vm845 = vcmp.gt.f32.partialorder %v829, 0.0
      %vm846 = vcmp.gt.f32.partialorder %v830, 0.0
      %vm847 = vcmp.gt.f32.partialorder %v831, 0.0
      %vm848 = vcmp.gt.f32.partialorder %v832, 0.0
      %vm849 = vcmp.gt.f32.partialorder %v833, 0.0
      %vm850 = vcmp.gt.f32.partialorder %v834, 0.0
      %vm851 = vcmp.gt.f32.partialorder %v835, 0.0
      %vm852 = vcmp.gt.f32.partialorder %v836, 0.0
      %vm853 = vcmp.gt.f32.partialorder %v837, 0.0
      %vm854 = vcmp.gt.f32.partialorder %v838, 0.0
      %v855 = vmul.f32 %v823, 0.2
      %v856 = vmul.f32 %v824, 0.2
      %v857 = vmul.f32 %v825, 0.2
      %v858 = vmul.f32 %v826, 0.2
      %v859 = vmul.f32 %v827, 0.2
      %v860 = vmul.f32 %v828, 0.2
      %v861 = vmul.f32 %v829, 0.2
      %v862 = vmul.f32 %v830, 0.2
      %v863 = vmul.f32 %v831, 0.2
      %v864 = vmul.f32 %v832, 0.2
      %v865 = vmul.f32 %v833, 0.2
      %v866 = vmul.f32 %v834, 0.2
      %v867 = vmul.f32 %v835, 0.2
      %v868 = vmul.f32 %v836, 0.2
      %v869 = vmul.f32 %v837, 0.2
      %v870 = vmul.f32 %v838, 0.2
      %v871 = vsel %vm839, %v823, %v855
      %v872 = vsel %vm840, %v824, %v856
      %v873 = vsel %vm841, %v825, %v857
      %v874 = vsel %vm842, %v826, %v858
      %v875 = vsel %vm843, %v827, %v859
      %v876 = vsel %vm844, %v828, %v860
      %v877 = vsel %vm845, %v829, %v861
      %v878 = vsel %vm846, %v830, %v862
      %v879 = vsel %vm847, %v831, %v863
      %v880 = vsel %vm848, %v832, %v864
      %v881 = vsel %vm849, %v833, %v865
      %v882 = vsel %vm850, %v834, %v866
      %v883 = vsel %vm851, %v835, %v867
      %v884 = vsel %vm852, %v836, %v868
      %v885 = vsel %vm853, %v837, %v869
      %v886 = vsel %vm854, %v838, %v870
      %vm887 = vcmp.gt.f32.partialorder %v333, 0.0
      %vm888 = vcmp.gt.f32.partialorder %v334, 0.0
      %v889 = vsel %vm887, 1, 0
      %v890 = vsel %vm888, 1, 0
      %vm891 = vcmp.eq.s32.totalorder %v889, 1
      %vm892 = vcmp.eq.s32.totalorder %v890, 1
      %v893 = vsel %vm891, %v871, -9e+15
      %v894 = vsel %vm892, %v872, -9e+15
      %v895 = vsel %vm891, %v873, -9e+15
      %v896 = vsel %vm892, %v874, -9e+15
      %v897 = vsel %vm891, %v875, -9e+15
      %v898 = vsel %vm892, %v876, -9e+15
      %v899 = vsel %vm891, %v877, -9e+15
      %v900 = vsel %vm892, %v878, -9e+15
      %v901 = vsel %vm891, %v879, -9e+15
      %v902 = vsel %vm892, %v880, -9e+15
      %v903 = vsel %vm891, %v881, -9e+15
      %v904 = vsel %vm892, %v882, -9e+15
      %v905 = vsel %vm891, %v883, -9e+15
      %v906 = vsel %vm892, %v884, -9e+15
      %v907 = vsel %vm891, %v885, -9e+15
      %v908 = vsel %vm892, %v886, -9e+15
      %vm909 = vcmask 130048
      %v910 = vsel %vm909, %v893, -inf
      %911 = vmax.xlane.f32.xlu0 %v910
      %v912 = vpop.xlane.xlu0 %911
      %v913 = vsel %vm909, %v894, -inf
      %914 = vmax.xlane.f32.xlu0 %v913
      %v915 = vpop.xlane.xlu0 %914
      %v916 = vsel %vm909, %v895, -inf
      %917 = vmax.xlane.f32.xlu0 %v916
      %v918 = vpop.xlane.xlu0 %917
      %v919 = vsel %vm909, %v896, -inf
      %920 = vmax.xlane.f32.xlu0 %v919
      %v921 = vpop.xlane.xlu0 %920
      %v922 = vsel %vm909, %v897, -inf
      %923 = vmax.xlane.f32.xlu0 %v922
      %v924 = vpop.xlane.xlu0 %923
      %v925 = vsel %vm909, %v898, -inf
      %926 = vmax.xlane.f32.xlu0 %v925
      %v927 = vpop.xlane.xlu0 %926
      %v928 = vsel %vm909, %v899, -inf
      %929 = vmax.xlane.f32.xlu0 %v928
      %v930 = vpop.xlane.xlu0 %929
      %v931 = vsel %vm909, %v900, -inf
      %932 = vmax.xlane.f32.xlu0 %v931
      %v933 = vpop.xlane.xlu0 %932
      %v934 = vsel %vm909, %v901, -inf
      %935 = vmax.xlane.f32.xlu0 %v934
      %v936 = vpop.xlane.xlu0 %935
      %v937 = vsel %vm909, %v902, -inf
      %938 = vmax.xlane.f32.xlu0 %v937
      %v939 = vpop.xlane.xlu0 %938
      %v940 = vsel %vm909, %v903, -inf
      %941 = vmax.xlane.f32.xlu0 %v940
      %v942 = vpop.xlane.xlu0 %941
      %v943 = vsel %vm909, %v904, -inf
      %944 = vmax.xlane.f32.xlu0 %v943
      %v945 = vpop.xlane.xlu0 %944
      %v946 = vsel %vm909, %v905, -inf
      %947 = vmax.xlane.f32.xlu0 %v946
      %v948 = vpop.xlane.xlu0 %947
      %v949 = vsel %vm909, %v906, -inf
      %950 = vmax.xlane.f32.xlu0 %v949
      %v951 = vpop.xlane.xlu0 %950
      %v952 = vsel %vm909, %v907, -inf
      %953 = vmax.xlane.f32.xlu0 %v952
      %v954 = vpop.xlane.xlu0 %953
      %v955 = vsel %vm909, %v908, -inf
      %956 = vmax.xlane.f32.xlu0 %v955
      %v957 = vpop.xlane.xlu0 %956
      %v958 = vsub.f32 %v893, %v912
      %v959 = vsub.f32 %v894, %v915
      %v960 = vsub.f32 %v895, %v918
      %v961 = vsub.f32 %v896, %v921
      %v962 = vsub.f32 %v897, %v924
      %v963 = vsub.f32 %v898, %v927
      %v964 = vsub.f32 %v899, %v930
      %v965 = vsub.f32 %v900, %v933
      %v966 = vsub.f32 %v901, %v936
      %v967 = vsub.f32 %v902, %v939
      %v968 = vsub.f32 %v903, %v942
      %v969 = vsub.f32 %v904, %v945
      %v970 = vsub.f32 %v905, %v948
      %v971 = vsub.f32 %v906, %v951
      %v972 = vsub.f32 %v907, %v954
      %v973 = vsub.f32 %v908, %v957
      %v974 = vmul.f32 %v958, 1.442695
      %v975 = vpow.pop %v974
      %v976 = vmul.f32 %v959, 1.442695
      %v977 = vpow.pop %v976
      %v978 = vmul.f32 %v960, 1.442695
      %v979 = vpow.pop %v978
      %v980 = vmul.f32 %v961, 1.442695
      %v981 = vpow.pop %v980
      %v982 = vmul.f32 %v962, 1.442695
      %v983 = vpow.pop %v982
      %v984 = vmul.f32 %v963, 1.442695
      %v985 = vpow.pop %v984
      %v986 = vmul.f32 %v964, 1.442695
      %v987 = vpow.pop %v986
      %v988 = vmul.f32 %v965, 1.442695
      %v989 = vpow.pop %v988
      %v990 = vmul.f32 %v966, 1.442695
      %v991 = vpow.pop %v990
      %v992 = vmul.f32 %v967, 1.442695
      %v993 = vpow.pop %v992
      %v994 = vmul.f32 %v968, 1.442695
      %v995 = vpow.pop %v994
      %v996 = vmul.f32 %v969, 1.442695
      %v997 = vpow.pop %v996
      %v998 = vmul.f32 %v970, 1.442695
      %v999 = vpow.pop %v998
      %v1000 = vmul.f32 %v971, 1.442695
      %v1001 = vpow.pop %v1000
      %v1002 = vmul.f32 %v972, 1.442695
      %v1003 = vpow.pop %v1002
      %v1004 = vmul.f32 %v973, 1.442695
      %v1005 = vpow.pop %v1004
      %v1006 = vsel %vm909, %v975, 0.0
      %1007 = vadd.xlane.f32.xlu0 %v1006
      %v1008 = vpop.xlane.xlu0 %1007
      %v1009 = vsel %vm909, %v977, 0.0
      %1010 = vadd.xlane.f32.xlu0 %v1009
      %v1011 = vpop.xlane.xlu0 %1010
      %v1012 = vsel %vm909, %v979, 0.0
      %1013 = vadd.xlane.f32.xlu0 %v1012
      %v1014 = vpop.xlane.xlu0 %1013
      %v1015 = vsel %vm909, %v981, 0.0
      %1016 = vadd.xlane.f32.xlu0 %v1015
      %v1017 = vpop.xlane.xlu0 %1016
      %v1018 = vsel %vm909, %v983, 0.0
      %1019 = vadd.xlane.f32.xlu0 %v1018
      %v1020 = vpop.xlane.xlu0 %1019
      %v1021 = vsel %vm909, %v985, 0.0
      %1022 = vadd.xlane.f32.xlu0 %v1021
      %v1023 = vpop.xlane.xlu0 %1022
      %v1024 = vsel %vm909, %v987, 0.0
      %1025 = vadd.xlane.f32.xlu0 %v1024
      %v1026 = vpop.xlane.xlu0 %1025
      %v1027 = vsel %vm909, %v989, 0.0
      %1028 = vadd.xlane.f32.xlu0 %v1027
      %v1029 = vpop.xlane.xlu0 %1028
      %v1030 = vsel %vm909, %v991, 0.0
      %1031 = vadd.xlane.f32.xlu0 %v1030
      %v1032 = vpop.xlane.xlu0 %1031
      %v1033 = vsel %vm909, %v993, 0.0
      %1034 = vadd.xlane.f32.xlu0 %v1033
      %v1035 = vpop.xlane.xlu0 %1034
      %v1036 = vsel %vm909, %v995, 0.0
      %1037 = vadd.xlane.f32.xlu0 %v1036
      %v1038 = vpop.xlane.xlu0 %1037
      %v1039 = vsel %vm909, %v997, 0.0
      %1040 = vadd.xlane.f32.xlu0 %v1039
      %v1041 = vpop.xlane.xlu0 %1040
      %v1042 = vsel %vm909, %v999, 0.0
      %1043 = vadd.xlane.f32.xlu0 %v1042
      %v1044 = vpop.xlane.xlu0 %1043
      %v1045 = vsel %vm909, %v1001, 0.0
      %1046 = vadd.xlane.f32.xlu0 %v1045
      %v1047 = vpop.xlane.xlu0 %1046
      %v1048 = vsel %vm909, %v1003, 0.0
      %1049 = vadd.xlane.f32.xlu0 %v1048
      %v1050 = vpop.xlane.xlu0 %1049
      %v1051 = vsel %vm909, %v1005, 0.0
      %1052 = vadd.xlane.f32.xlu0 %v1051
      %v1053 = vpop.xlane.xlu0 %1052
      %v1054 = vrcp.pop %v1008
      %v1055 = vmul.f32 %v975, %v1054
      %v1056 = vrcp.pop %v1011
      %v1057 = vmul.f32 %v977, %v1056
      %v1058 = vrcp.pop %v1014
      %v1059 = vmul.f32 %v979, %v1058
      %v1060 = vrcp.pop %v1017
      %v1061 = vmul.f32 %v981, %v1060
      %v1062 = vrcp.pop %v1020
      %v1063 = vmul.f32 %v983, %v1062
      %v1064 = vrcp.pop %v1023
      %v1065 = vmul.f32 %v985, %v1064
      %v1066 = vrcp.pop %v1026
      %v1067 = vmul.f32 %v987, %v1066
      %v1068 = vrcp.pop %v1029
      %v1069 = vmul.f32 %v989, %v1068
      %v1070 = vrcp.pop %v1032
      %v1071 = vmul.f32 %v991, %v1070
      %v1072 = vrcp.pop %v1035
      %v1073 = vmul.f32 %v993, %v1072
      %v1074 = vrcp.pop %v1038
      %v1075 = vmul.f32 %v995, %v1074
      %v1076 = vrcp.pop %v1041
      %v1077 = vmul.f32 %v997, %v1076
      %v1078 = vrcp.pop %v1044
      %v1079 = vmul.f32 %v999, %v1078
      %v1080 = vrcp.pop %v1047
      %v1081 = vmul.f32 %v1001, %v1080
      %v1082 = vrcp.pop %v1050
      %v1083 = vmul.f32 %v1003, %v1082
      %v1084 = vrcp.pop %v1053
      %v1085 = vmul.f32 %v1005, %v1084
      %v1087 = vsel %vm909, %v1055, 0
      %v1090 = vsel %vm909, %v1057, 0
      %1092 = vmatprep.subr.mxu0 0.0
      %1093 = vmatpush1.msra.mxu0 %v455
      %1094 = vmatprep.subr.mxu0 0.0
      %1095 = vmatpush1.msra.mxu0 %v460
      %1096 = vmatprep.subr.mxu0 0.0
      %1097 = vmatpush1.msra.mxu0 0.0
      %1098 = vmatprep.subr.mxu0 0.0
      %1099 = vmatpush1.msra.mxu0 0.0
      %1100 = vmatprep.subr.mxu0 0.0
      %1101 = vmatpush1.msra.mxu0 0.0
      %1102 = vmatprep.subr.mxu0 0.0
      %1103 = vmatpush1.msra.mxu0 0.0
      %1104 = vmatprep.subr.mxu0 0.0
      %1105 = vmatpush1.msra.mxu0 0.0
      %1106 = vmatprep.subr.mxu0 0.0
      %1107 = vmatpush1.msra.mxu0 0.0
      %1108 = vmatprep.subr.mxu0 0.0
      %1109 = vmatpush1.msra.mxu0 0.0
      %1110 = vmatprep.subr.mxu0 0.0
      %1111 = vmatpush1.msra.mxu0 0.0
      %1112 = vmatprep.subr.mxu0 0.0
      %1113 = vmatpush1.msra.mxu0 0.0
      %1114 = vmatprep.subr.mxu0 0.0
      %1115 = vmatpush1.msra.mxu0 0.0
      %1116 = vmatprep.subr.mxu0 0.0
      %1117 = vmatpush1.msra.mxu0 0.0
      %1118 = vmatprep.subr.mxu0 0.0
      %1119 = vmatpush1.msra.mxu0 0.0
      %1120 = vmatprep.subr.mxu0 0.0
      %1121 = vmatpush1.msra.mxu0 0.0
      %1122 = vmatprep.subr.mxu0 0.0
      %1123 = vmatpush1.msra.mxu0 0.0
      %1124 = vmatprep.subr.mxu0 0.0
      %1125 = vmatpush1.msra.mxu0 0.0
      %1126 = vmatprep.subr.mxu0 0.0
      %1127 = vmatpush1.msra.mxu0 0.0
      %1128 = vmatprep.subr.mxu0 0.0
      %1129 = vmatpush1.msra.mxu0 0.0
      %1130 = vmatprep.subr.mxu0 0.0
      %1131 = vmatpush1.msra.mxu0 0.0
      %1132 = vmatprep.subr.mxu0 0.0
      %1133 = vmatpush1.msra.mxu0 0.0
      %1134 = vmatprep.subr.mxu0 0.0
      %1135 = vmatpush1.msra.mxu0 0.0
      %1136 = vmatprep.subr.mxu0 0.0
      %1137 = vmatpush1.msra.mxu0 0.0
      %1138 = vmatprep.subr.mxu0 0.0
      %1139 = vmatpush1.msra.mxu0 0.0
      %1140 = vmatprep.subr.mxu0 0.0
      %1141 = vmatpush1.msra.mxu0 0.0
      %1142 = vmatprep.subr.mxu0 0.0
      %1143 = vmatpush1.msra.mxu0 0.0
      %1144 = vmatprep.subr.mxu0 0.0
      %1145 = vmatpush1.msra.mxu0 0.0
      %1146 = vmatprep.subr.mxu0 0.0
      %1147 = vmatpush1.msra.mxu0 0.0
      %1148 = vmatprep.subr.mxu0 0.0
      %1149 = vmatpush1.msra.mxu0 0.0
      %1150 = vmatprep.subr.mxu0 0.0
      %1151 = vmatpush1.msra.mxu0 0.0
      %1152 = vmatprep.subr.mxu0 0.0
      %1153 = vmatpush1.msra.mxu0 0.0
      %1154 = vmatprep.subr.mxu0 0.0
      %1155 = vmatpush1.msra.mxu0 0.0
      %1156 = vmatprep.mubr.f32.mxu0 0.0
      %1157 = vmatmul.mubr.f32.gmra.mrb[0].mxu0 %v1087
      %v1158 = vpop.f32.mrb[0].mxu0
      %v1159 = vadd.f32 0.0, %v1158
      %v1160 = vpop.f32.mrb[0].mxu0
      %1161 = vmatprep.mubr.f32.mxu0 0.0
      %1162 = vmatmul.mubr.f32.gmra.mrb[0].mxu0 %v1090
      %v1163 = vpop.f32.mrb[0].mxu0
      %v1164 = vadd.f32 0.0, %v1163
      %v1165 = vpop.f32.mrb[0].mxu0
      %1166 = vdwg.mxu0
      %v1168 = vsel %vm909, %v1059, 0
      %v1171 = vsel %vm909, %v1061, 0
      %1173 = vmatprep.subr.mxu0 0.0
      %1174 = vmatpush1.msra.mxu0 %v465
      %1175 = vmatprep.subr.mxu0 0.0
      %1176 = vmatpush1.msra.mxu0 %v470
      %1177 = vmatprep.subr.mxu0 0.0
      %1178 = vmatpush1.msra.mxu0 0.0
      %1179 = vmatprep.subr.mxu0 0.0
      %1180 = vmatpush1.msra.mxu0 0.0
      %1181 = vmatprep.subr.mxu0 0.0
      %1182 = vmatpush1.msra.mxu0 0.0
      %1183 = vmatprep.subr.mxu0 0.0
      %1184 = vmatpush1.msra.mxu0 0.0
      %1185 = vmatprep.subr.mxu0 0.0
      %1186 = vmatpush1.msra.mxu0 0.0
      %1187 = vmatprep.subr.mxu0 0.0
      %1188 = vmatpush1.msra.mxu0 0.0
      %1189 = vmatprep.subr.mxu0 0.0
      %1190 = vmatpush1.msra.mxu0 0.0
      %1191 = vmatprep.subr.mxu0 0.0
      %1192 = vmatpush1.msra.mxu0 0.0
      %1193 = vmatprep.subr.mxu0 0.0
      %1194 = vmatpush1.msra.mxu0 0.0
      %1195 = vmatprep.subr.mxu0 0.0
      %1196 = vmatpush1.msra.mxu0 0.0
      %1197 = vmatprep.subr.mxu0 0.0
      %1198 = vmatpush1.msra.mxu0 0.0
      %1199 = vmatprep.subr.mxu0 0.0
      %1200 = vmatpush1.msra.mxu0 0.0
      %1201 = vmatprep.subr.mxu0 0.0
      %1202 = vmatpush1.msra.mxu0 0.0
      %1203 = vmatprep.subr.mxu0 0.0
      %1204 = vmatpush1.msra.mxu0 0.0
      %1205 = vmatprep.subr.mxu0 0.0
      %1206 = vmatpush1.msra.mxu0 0.0
      %1207 = vmatprep.subr.mxu0 0.0
      %1208 = vmatpush1.msra.mxu0 0.0
      %1209 = vmatprep.subr.mxu0 0.0
      %1210 = vmatpush1.msra.mxu0 0.0
      %1211 = vmatprep.subr.mxu0 0.0
      %1212 = vmatpush1.msra.mxu0 0.0
      %1213 = vmatprep.subr.mxu0 0.0
      %1214 = vmatpush1.msra.mxu0 0.0
      %1215 = vmatprep.subr.mxu0 0.0
      %1216 = vmatpush1.msra.mxu0 0.0
      %1217 = vmatprep.subr.mxu0 0.0
      %1218 = vmatpush1.msra.mxu0 0.0
      %1219 = vmatprep.subr.mxu0 0.0
      %1220 = vmatpush1.msra.mxu0 0.0
      %1221 = vmatprep.subr.mxu0 0.0
      %1222 = vmatpush1.msra.mxu0 0.0
      %1223 = vmatprep.subr.mxu0 0.0
      %1224 = vmatpush1.msra.mxu0 0.0
      %1225 = vmatprep.subr.mxu0 0.0
      %1226 = vmatpush1.msra.mxu0 0.0
      %1227 = vmatprep.subr.mxu0 0.0
      %1228 = vmatpush1.msra.mxu0 0.0
      %1229 = vmatprep.subr.mxu0 0.0
      %1230 = vmatpush1.msra.mxu0 0.0
      %1231 = vmatprep.subr.mxu0 0.0
      %1232 = vmatpush1.msra.mxu0 0.0
      %1233 = vmatprep.subr.mxu0 0.0
      %1234 = vmatpush1.msra.mxu0 0.0
      %1235 = vmatprep.subr.mxu0 0.0
      %1236 = vmatpush1.msra.mxu0 0.0
      %1237 = vmatprep.mubr.f32.mxu0 0.0
      %1238 = vmatmul.mubr.f32.gmra.mrb[0].mxu0 %v1168
      %v1239 = vpop.f32.mrb[0].mxu0
      %v1240 = vadd.f32 0.0, %v1239
      %v1241 = vpop.f32.mrb[0].mxu0
      %1242 = vmatprep.mubr.f32.mxu0 0.0
      %1243 = vmatmul.mubr.f32.gmra.mrb[0].mxu0 %v1171
      %v1244 = vpop.f32.mrb[0].mxu0
      %v1245 = vadd.f32 0.0, %v1244
      %v1246 = vpop.f32.mrb[0].mxu0
      %1247 = vdwg.mxu0
      %v1249 = vsel %vm909, %v1063, 0
      %v1252 = vsel %vm909, %v1065, 0
      %1254 = vmatprep.subr.mxu0 0.0
      %1255 = vmatpush1.msra.mxu0 %v475
      %1256 = vmatprep.subr.mxu0 0.0
      %1257 = vmatpush1.msra.mxu0 %v480
      %1258 = vmatprep.subr.mxu0 0.0
      %1259 = vmatpush1.msra.mxu0 0.0
      %1260 = vmatprep.subr.mxu0 0.0
      %1261 = vmatpush1.msra.mxu0 0.0
      %1262 = vmatprep.subr.mxu0 0.0
      %1263 = vmatpush1.msra.mxu0 0.0
      %1264 = vmatprep.subr.mxu0 0.0
      %1265 = vmatpush1.msra.mxu0 0.0
      %1266 = vmatprep.subr.mxu0 0.0
      %1267 = vmatpush1.msra.mxu0 0.0
      %1268 = vmatprep.subr.mxu0 0.0
      %1269 = vmatpush1.msra.mxu0 0.0
      %1270 = vmatprep.subr.mxu0 0.0
      %1271 = vmatpush1.msra.mxu0 0.0
      %1272 = vmatprep.subr.mxu0 0.0
      %1273 = vmatpush1.msra.mxu0 0.0
      %1274 = vmatprep.subr.mxu0 0.0
      %1275 = vmatpush1.msra.mxu0 0.0
      %1276 = vmatprep.subr.mxu0 0.0
      %1277 = vmatpush1.msra.mxu0 0.0
      %1278 = vmatprep.subr.mxu0 0.0
      %1279 = vmatpush1.msra.mxu0 0.0
      %1280 = vmatprep.subr.mxu0 0.0
      %1281 = vmatpush1.msra.mxu0 0.0
      %1282 = vmatprep.subr.mxu0 0.0
      %1283 = vmatpush1.msra.mxu0 0.0
      %1284 = vmatprep.subr.mxu0 0.0
      %1285 = vmatpush1.msra.mxu0 0.0
      %1286 = vmatprep.subr.mxu0 0.0
      %1287 = vmatpush1.msra.mxu0 0.0
      %1288 = vmatprep.subr.mxu0 0.0
      %1289 = vmatpush1.msra.mxu0 0.0
      %1290 = vmatprep.subr.mxu0 0.0
      %1291 = vmatpush1.msra.mxu0 0.0
      %1292 = vmatprep.subr.mxu0 0.0
      %1293 = vmatpush1.msra.mxu0 0.0
      %1294 = vmatprep.subr.mxu0 0.0
      %1295 = vmatpush1.msra.mxu0 0.0
      %1296 = vmatprep.subr.mxu0 0.0
      %1297 = vmatpush1.msra.mxu0 0.0
      %1298 = vmatprep.subr.mxu0 0.0
      %1299 = vmatpush1.msra.mxu0 0.0
      %1300 = vmatprep.subr.mxu0 0.0
      %1301 = vmatpush1.msra.mxu0 0.0
      %1302 = vmatprep.subr.mxu0 0.0
      %1303 = vmatpush1.msra.mxu0 0.0
      %1304 = vmatprep.subr.mxu0 0.0
      %1305 = vmatpush1.msra.mxu0 0.0
      %1306 = vmatprep.subr.mxu0 0.0
      %1307 = vmatpush1.msra.mxu0 0.0
      %1308 = vmatprep.subr.mxu0 0.0
      %1309 = vmatpush1.msra.mxu0 0.0
      %1310 = vmatprep.subr.mxu0 0.0
      %1311 = vmatpush1.msra.mxu0 0.0
      %1312 = vmatprep.subr.mxu0 0.0
      %1313 = vmatpush1.msra.mxu0 0.0
      %1314 = vmatprep.subr.mxu0 0.0
      %1315 = vmatpush1.msra.mxu0 0.0
      %1316 = vmatprep.subr.mxu0 0.0
      %1317 = vmatpush1.msra.mxu0 0.0
      %1318 = vmatprep.mubr.f32.mxu0 0.0
      %1319 = vmatmul.mubr.f32.gmra.mrb[0].mxu0 %v1249
      %v1320 = vpop.f32.mrb[0].mxu0
      %v1321 = vadd.f32 0.0, %v1320
      %v1322 = vpop.f32.mrb[0].mxu0
      %1323 = vmatprep.mubr.f32.mxu0 0.0
      %1324 = vmatmul.mubr.f32.gmra.mrb[0].mxu0 %v1252
      %v1325 = vpop.f32.mrb[0].mxu0
      %v1326 = vadd.f32 0.0, %v1325
      %v1327 = vpop.f32.mrb[0].mxu0
      %1328 = vdwg.mxu0
      %v1330 = vsel %vm909, %v1067, 0
      %v1333 = vsel %vm909, %v1069, 0
      %1335 = vmatprep.subr.mxu0 0.0
      %1336 = vmatpush1.msra.mxu0 %v485
      %1337 = vmatprep.subr.mxu0 0.0
      %1338 = vmatpush1.msra.mxu0 %v490
      %1339 = vmatprep.subr.mxu0 0.0
      %1340 = vmatpush1.msra.mxu0 0.0
      %1341 = vmatprep.subr.mxu0 0.0
      %1342 = vmatpush1.msra.mxu0 0.0
      %1343 = vmatprep.subr.mxu0 0.0
      %1344 = vmatpush1.msra.mxu0 0.0
      %1345 = vmatprep.subr.mxu0 0.0
      %1346 = vmatpush1.msra.mxu0 0.0
      %1347 = vmatprep.subr.mxu0 0.0
      %1348 = vmatpush1.msra.mxu0 0.0
      %1349 = vmatprep.subr.mxu0 0.0
      %1350 = vmatpush1.msra.mxu0 0.0
      %1351 = vmatprep.subr.mxu0 0.0
      %1352 = vmatpush1.msra.mxu0 0.0
      %1353 = vmatprep.subr.mxu0 0.0
      %1354 = vmatpush1.msra.mxu0 0.0
      %1355 = vmatprep.subr.mxu0 0.0
      %1356 = vmatpush1.msra.mxu0 0.0
      %1357 = vmatprep.subr.mxu0 0.0
      %1358 = vmatpush1.msra.mxu0 0.0
      %1359 = vmatprep.subr.mxu0 0.0
      %1360 = vmatpush1.msra.mxu0 0.0
      %1361 = vmatprep.subr.mxu0 0.0
      %1362 = vmatpush1.msra.mxu0 0.0
      %1363 = vmatprep.subr.mxu0 0.0
      %1364 = vmatpush1.msra.mxu0 0.0
      %1365 = vmatprep.subr.mxu0 0.0
      %1366 = vmatpush1.msra.mxu0 0.0
      %1367 = vmatprep.subr.mxu0 0.0
      %1368 = vmatpush1.msra.mxu0 0.0
      %1369 = vmatprep.subr.mxu0 0.0
      %1370 = vmatpush1.msra.mxu0 0.0
      %1371 = vmatprep.subr.mxu0 0.0
      %1372 = vmatpush1.msra.mxu0 0.0
      %1373 = vmatprep.subr.mxu0 0.0
      %1374 = vmatpush1.msra.mxu0 0.0
      %1375 = vmatprep.subr.mxu0 0.0
      %1376 = vmatpush1.msra.mxu0 0.0
      %1377 = vmatprep.subr.mxu0 0.0
      %1378 = vmatpush1.msra.mxu0 0.0
      %1379 = vmatprep.subr.mxu0 0.0
      %1380 = vmatpush1.msra.mxu0 0.0
      %1381 = vmatprep.subr.mxu0 0.0
      %1382 = vmatpush1.msra.mxu0 0.0
      %1383 = vmatprep.subr.mxu0 0.0
      %1384 = vmatpush1.msra.mxu0 0.0
      %1385 = vmatprep.subr.mxu0 0.0
      %1386 = vmatpush1.msra.mxu0 0.0
      %1387 = vmatprep.subr.mxu0 0.0
      %1388 = vmatpush1.msra.mxu0 0.0
      %1389 = vmatprep.subr.mxu0 0.0
      %1390 = vmatpush1.msra.mxu0 0.0
      %1391 = vmatprep.subr.mxu0 0.0
      %1392 = vmatpush1.msra.mxu0 0.0
      %1393 = vmatprep.subr.mxu0 0.0
      %1394 = vmatpush1.msra.mxu0 0.0
      %1395 = vmatprep.subr.mxu0 0.0
      %1396 = vmatpush1.msra.mxu0 0.0
      %1397 = vmatprep.subr.mxu0 0.0
      %1398 = vmatpush1.msra.mxu0 0.0
      %1399 = vmatprep.mubr.f32.mxu0 0.0
      %1400 = vmatmul.mubr.f32.gmra.mrb[0].mxu0 %v1330
      %v1401 = vpop.f32.mrb[0].mxu0
      %v1402 = vadd.f32 0.0, %v1401
      %v1403 = vpop.f32.mrb[0].mxu0
      %1404 = vmatprep.mubr.f32.mxu0 0.0
      %1405 = vmatmul.mubr.f32.gmra.mrb[0].mxu0 %v1333
      %v1406 = vpop.f32.mrb[0].mxu0
      %v1407 = vadd.f32 0.0, %v1406
      %v1408 = vpop.f32.mrb[0].mxu0
      %1409 = vdwg.mxu0
      %v1411 = vsel %vm909, %v1071, 0
      %v1414 = vsel %vm909, %v1073, 0
      %1416 = vmatprep.subr.mxu0 0.0
      %1417 = vmatpush1.msra.mxu0 %v495
      %1418 = vmatprep.subr.mxu0 0.0
      %1419 = vmatpush1.msra.mxu0 %v500
      %1420 = vmatprep.subr.mxu0 0.0
      %1421 = vmatpush1.msra.mxu0 0.0
      %1422 = vmatprep.subr.mxu0 0.0
      %1423 = vmatpush1.msra.mxu0 0.0
      %1424 = vmatprep.subr.mxu0 0.0
      %1425 = vmatpush1.msra.mxu0 0.0
      %1426 = vmatprep.subr.mxu0 0.0
      %1427 = vmatpush1.msra.mxu0 0.0
      %1428 = vmatprep.subr.mxu0 0.0
      %1429 = vmatpush1.msra.mxu0 0.0
      %1430 = vmatprep.subr.mxu0 0.0
      %1431 = vmatpush1.msra.mxu0 0.0
      %1432 = vmatprep.subr.mxu0 0.0
      %1433 = vmatpush1.msra.mxu0 0.0
      %1434 = vmatprep.subr.mxu0 0.0
      %1435 = vmatpush1.msra.mxu0 0.0
      %1436 = vmatprep.subr.mxu0 0.0
      %1437 = vmatpush1.msra.mxu0 0.0
      %1438 = vmatprep.subr.mxu0 0.0
      %1439 = vmatpush1.msra.mxu0 0.0
      %1440 = vmatprep.subr.mxu0 0.0
      %1441 = vmatpush1.msra.mxu0 0.0
      %1442 = vmatprep.subr.mxu0 0.0
      %1443 = vmatpush1.msra.mxu0 0.0
      %1444 = vmatprep.subr.mxu0 0.0
      %1445 = vmatpush1.msra.mxu0 0.0
      %1446 = vmatprep.subr.mxu0 0.0
      %1447 = vmatpush1.msra.mxu0 0.0
      %1448 = vmatprep.subr.mxu0 0.0
      %1449 = vmatpush1.msra.mxu0 0.0
      %1450 = vmatprep.subr.mxu0 0.0
      %1451 = vmatpush1.msra.mxu0 0.0
      %1452 = vmatprep.subr.mxu0 0.0
      %1453 = vmatpush1.msra.mxu0 0.0
      %1454 = vmatprep.subr.mxu0 0.0
      %1455 = vmatpush1.msra.mxu0 0.0
      %1456 = vmatprep.subr.mxu0 0.0
      %1457 = vmatpush1.msra.mxu0 0.0
      %1458 = vmatprep.subr.mxu0 0.0
      %1459 = vmatpush1.msra.mxu0 0.0
      %1460 = vmatprep.subr.mxu0 0.0
      %1461 = vmatpush1.msra.mxu0 0.0
      %1462 = vmatprep.subr.mxu0 0.0
      %1463 = vmatpush1.msra.mxu0 0.0
      %1464 = vmatprep.subr.mxu0 0.0
      %1465 = vmatpush1.msra.mxu0 0.0
      %1466 = vmatprep.subr.mxu0 0.0
      %1467 = vmatpush1.msra.mxu0 0.0
      %1468 = vmatprep.subr.mxu0 0.0
      %1469 = vmatpush1.msra.mxu0 0.0
      %1470 = vmatprep.subr.mxu0 0.0
      %1471 = vmatpush1.msra.mxu0 0.0
      %1472 = vmatprep.subr.mxu0 0.0
      %1473 = vmatpush1.msra.mxu0 0.0
      %1474 = vmatprep.subr.mxu0 0.0
      %1475 = vmatpush1.msra.mxu0 0.0
      %1476 = vmatprep.subr.mxu0 0.0
      %1477 = vmatpush1.msra.mxu0 0.0
      %1478 = vmatprep.subr.mxu0 0.0
      %1479 = vmatpush1.msra.mxu0 0.0
      %1480 = vmatprep.mubr.f32.mxu0 0.0
      %1481 = vmatmul.mubr.f32.gmra.mrb[0].mxu0 %v1411
      %v1482 = vpop.f32.mrb[0].mxu0
      %v1483 = vadd.f32 0.0, %v1482
      %v1484 = vpop.f32.mrb[0].mxu0
      %1485 = vmatprep.mubr.f32.mxu0 0.0
      %1486 = vmatmul.mubr.f32.gmra.mrb[0].mxu0 %v1414
      %v1487 = vpop.f32.mrb[0].mxu0
      %v1488 = vadd.f32 0.0, %v1487
      %v1489 = vpop.f32.mrb[0].mxu0
      %1490 = vdwg.mxu0
      %v1492 = vsel %vm909, %v1075, 0
      %v1495 = vsel %vm909, %v1077, 0
      %1497 = vmatprep.subr.mxu0 0.0
      %1498 = vmatpush1.msra.mxu0 %v505
      %1499 = vmatprep.subr.mxu0 0.0
      %1500 = vmatpush1.msra.mxu0 %v510
      %1501 = vmatprep.subr.mxu0 0.0
      %1502 = vmatpush1.msra.mxu0 0.0
      %1503 = vmatprep.subr.mxu0 0.0
      %1504 = vmatpush1.msra.mxu0 0.0
      %1505 = vmatprep.subr.mxu0 0.0
      %1506 = vmatpush1.msra.mxu0 0.0
      %1507 = vmatprep.subr.mxu0 0.0
      %1508 = vmatpush1.msra.mxu0 0.0
      %1509 = vmatprep.subr.mxu0 0.0
      %1510 = vmatpush1.msra.mxu0 0.0
      %1511 = vmatprep.subr.mxu0 0.0
      %1512 = vmatpush1.msra.mxu0 0.0
      %1513 = vmatprep.subr.mxu0 0.0
      %1514 = vmatpush1.msra.mxu0 0.0
      %1515 = vmatprep.subr.mxu0 0.0
      %1516 = vmatpush1.msra.mxu0 0.0
      %1517 = vmatprep.subr.mxu0 0.0
      %1518 = vmatpush1.msra.mxu0 0.0
      %1519 = vmatprep.subr.mxu0 0.0
      %1520 = vmatpush1.msra.mxu0 0.0
      %1521 = vmatprep.subr.mxu0 0.0
      %1522 = vmatpush1.msra.mxu0 0.0
      %1523 = vmatprep.subr.mxu0 0.0
      %1524 = vmatpush1.msra.mxu0 0.0
      %1525 = vmatprep.subr.mxu0 0.0
      %1526 = vmatpush1.msra.mxu0 0.0
      %1527 = vmatprep.subr.mxu0 0.0
      %1528 = vmatpush1.msra.mxu0 0.0
      %1529 = vmatprep.subr.mxu0 0.0
      %1530 = vmatpush1.msra.mxu0 0.0
      %1531 = vmatprep.subr.mxu0 0.0
      %1532 = vmatpush1.msra.mxu0 0.0
      %1533 = vmatprep.subr.mxu0 0.0
      %1534 = vmatpush1.msra.mxu0 0.0
      %1535 = vmatprep.subr.mxu0 0.0
      %1536 = vmatpush1.msra.mxu0 0.0
      %1537 = vmatprep.subr.mxu0 0.0
      %1538 = vmatpush1.msra.mxu0 0.0
      %1539 = vmatprep.subr.mxu0 0.0
      %1540 = vmatpush1.msra.mxu0 0.0
      %1541 = vmatprep.subr.mxu0 0.0
      %1542 = vmatpush1.msra.mxu0 0.0
      %1543 = vmatprep.subr.mxu0 0.0
      %1544 = vmatpush1.msra.mxu0 0.0
      %1545 = vmatprep.subr.mxu0 0.0
      %1546 = vmatpush1.msra.mxu0 0.0
      %1547 = vmatprep.subr.mxu0 0.0
      %1548 = vmatpush1.msra.mxu0 0.0
      %1549 = vmatprep.subr.mxu0 0.0
      %1550 = vmatpush1.msra.mxu0 0.0
      %1551 = vmatprep.subr.mxu0 0.0
      %1552 = vmatpush1.msra.mxu0 0.0
      %1553 = vmatprep.subr.mxu0 0.0
      %1554 = vmatpush1.msra.mxu0 0.0
      %1555 = vmatprep.subr.mxu0 0.0
      %1556 = vmatpush1.msra.mxu0 0.0
      %1557 = vmatprep.subr.mxu0 0.0
      %1558 = vmatpush1.msra.mxu0 0.0
      %1559 = vmatprep.subr.mxu0 0.0
      %1560 = vmatpush1.msra.mxu0 0.0
      %1561 = vmatprep.mubr.f32.mxu0 0.0
      %1562 = vmatmul.mubr.f32.gmra.mrb[0].mxu0 %v1492
      %v1563 = vpop.f32.mrb[0].mxu0
      %v1564 = vadd.f32 0.0, %v1563
      %v1565 = vpop.f32.mrb[0].mxu0
      %1566 = vmatprep.mubr.f32.mxu0 0.0
      %1567 = vmatmul.mubr.f32.gmra.mrb[0].mxu0 %v1495
      %v1568 = vpop.f32.mrb[0].mxu0
      %v1569 = vadd.f32 0.0, %v1568
      %v1570 = vpop.f32.mrb[0].mxu0
      %1571 = vdwg.mxu0
      %v1573 = vsel %vm909, %v1079, 0
      %v1576 = vsel %vm909, %v1081, 0
      %1578 = vmatprep.subr.mxu0 0.0
      %1579 = vmatpush1.msra.mxu0 %v515
      %1580 = vmatprep.subr.mxu0 0.0
      %1581 = vmatpush1.msra.mxu0 %v520
      %1582 = vmatprep.subr.mxu0 0.0
      %1583 = vmatpush1.msra.mxu0 0.0
      %1584 = vmatprep.subr.mxu0 0.0
      %1585 = vmatpush1.msra.mxu0 0.0
      %1586 = vmatprep.subr.mxu0 0.0
      %1587 = vmatpush1.msra.mxu0 0.0
      %1588 = vmatprep.subr.mxu0 0.0
      %1589 = vmatpush1.msra.mxu0 0.0
      %1590 = vmatprep.subr.mxu0 0.0
      %1591 = vmatpush1.msra.mxu0 0.0
      %1592 = vmatprep.subr.mxu0 0.0
      %1593 = vmatpush1.msra.mxu0 0.0
      %1594 = vmatprep.subr.mxu0 0.0
      %1595 = vmatpush1.msra.mxu0 0.0
      %1596 = vmatprep.subr.mxu0 0.0
      %1597 = vmatpush1.msra.mxu0 0.0
      %1598 = vmatprep.subr.mxu0 0.0
      %1599 = vmatpush1.msra.mxu0 0.0
      %1600 = vmatprep.subr.mxu0 0.0
      %1601 = vmatpush1.msra.mxu0 0.0
      %1602 = vmatprep.subr.mxu0 0.0
      %1603 = vmatpush1.msra.mxu0 0.0
      %1604 = vmatprep.subr.mxu0 0.0
      %1605 = vmatpush1.msra.mxu0 0.0
      %1606 = vmatprep.subr.mxu0 0.0
      %1607 = vmatpush1.msra.mxu0 0.0
      %1608 = vmatprep.subr.mxu0 0.0
      %1609 = vmatpush1.msra.mxu0 0.0
      %1610 = vmatprep.subr.mxu0 0.0
      %1611 = vmatpush1.msra.mxu0 0.0
      %1612 = vmatprep.subr.mxu0 0.0
      %1613 = vmatpush1.msra.mxu0 0.0
      %1614 = vmatprep.subr.mxu0 0.0
      %1615 = vmatpush1.msra.mxu0 0.0
      %1616 = vmatprep.subr.mxu0 0.0
      %1617 = vmatpush1.msra.mxu0 0.0
      %1618 = vmatprep.subr.mxu0 0.0
      %1619 = vmatpush1.msra.mxu0 0.0
      %1620 = vmatprep.subr.mxu0 0.0
      %1621 = vmatpush1.msra.mxu0 0.0
      %1622 = vmatprep.subr.mxu0 0.0
      %1623 = vmatpush1.msra.mxu0 0.0
      %1624 = vmatprep.subr.mxu0 0.0
      %1625 = vmatpush1.msra.mxu0 0.0
      %1626 = vmatprep.subr.mxu0 0.0
      %1627 = vmatpush1.msra.mxu0 0.0
      %1628 = vmatprep.subr.mxu0 0.0
      %1629 = vmatpush1.msra.mxu0 0.0
      %1630 = vmatprep.subr.mxu0 0.0
      %1631 = vmatpush1.msra.mxu0 0.0
      %1632 = vmatprep.subr.mxu0 0.0
      %1633 = vmatpush1.msra.mxu0 0.0
      %1634 = vmatprep.subr.mxu0 0.0
      %1635 = vmatpush1.msra.mxu0 0.0
      %1636 = vmatprep.subr.mxu0 0.0
      %1637 = vmatpush1.msra.mxu0 0.0
      %1638 = vmatprep.subr.mxu0 0.0
      %1639 = vmatpush1.msra.mxu0 0.0
      %1640 = vmatprep.subr.mxu0 0.0
      %1641 = vmatpush1.msra.mxu0 0.0
      %1642 = vmatprep.mubr.f32.mxu0 0.0
      %1643 = vmatmul.mubr.f32.gmra.mrb[0].mxu0 %v1573
      %v1644 = vpop.f32.mrb[0].mxu0
      %v1645 = vadd.f32 0.0, %v1644
      %v1646 = vpop.f32.mrb[0].mxu0
      %1647 = vmatprep.mubr.f32.mxu0 0.0
      %1648 = vmatmul.mubr.f32.gmra.mrb[0].mxu0 %v1576
      %v1649 = vpop.f32.mrb[0].mxu0
      %v1650 = vadd.f32 0.0, %v1649
      %v1651 = vpop.f32.mrb[0].mxu0
      %1652 = vdwg.mxu0
      %v1654 = vsel %vm909, %v1083, 0
      %v1657 = vsel %vm909, %v1085, 0
      %1659 = vmatprep.subr.mxu0 0.0
      %1660 = vmatpush1.msra.mxu0 %v525
      %1661 = vmatprep.subr.mxu0 0.0
      %1662 = vmatpush1.msra.mxu0 %v530
      %1663 = vmatprep.subr.mxu0 0.0
      %1664 = vmatpush1.msra.mxu0 0.0
      %1665 = vmatprep.subr.mxu0 0.0
      %1666 = vmatpush1.msra.mxu0 0.0
      %1667 = vmatprep.subr.mxu0 0.0
      %1668 = vmatpush1.msra.mxu0 0.0
      %1669 = vmatprep.subr.mxu0 0.0
      %1670 = vmatpush1.msra.mxu0 0.0
      %1671 = vmatprep.subr.mxu0 0.0
      %1672 = vmatpush1.msra.mxu0 0.0
      %1673 = vmatprep.subr.mxu0 0.0
      %1674 = vmatpush1.msra.mxu0 0.0
      %1675 = vmatprep.subr.mxu0 0.0
      %1676 = vmatpush1.msra.mxu0 0.0
      %1677 = vmatprep.subr.mxu0 0.0
      %1678 = vmatpush1.msra.mxu0 0.0
      %1679 = vmatprep.subr.mxu0 0.0
      %1680 = vmatpush1.msra.mxu0 0.0
      %1681 = vmatprep.subr.mxu0 0.0
      %1682 = vmatpush1.msra.mxu0 0.0
      %1683 = vmatprep.subr.mxu0 0.0
      %1684 = vmatpush1.msra.mxu0 0.0
      %1685 = vmatprep.subr.mxu0 0.0
      %1686 = vmatpush1.msra.mxu0 0.0
      %1687 = vmatprep.subr.mxu0 0.0
      %1688 = vmatpush1.msra.mxu0 0.0
      %1689 = vmatprep.subr.mxu0 0.0
      %1690 = vmatpush1.msra.mxu0 0.0
      %1691 = vmatprep.subr.mxu0 0.0
      %1692 = vmatpush1.msra.mxu0 0.0
      %1693 = vmatprep.subr.mxu0 0.0
      %1694 = vmatpush1.msra.mxu0 0.0
      %1695 = vmatprep.subr.mxu0 0.0
      %1696 = vmatpush1.msra.mxu0 0.0
      %1697 = vmatprep.subr.mxu0 0.0
      %1698 = vmatpush1.msra.mxu0 0.0
      %1699 = vmatprep.subr.mxu0 0.0
      %1700 = vmatpush1.msra.mxu0 0.0
      %1701 = vmatprep.subr.mxu0 0.0
      %1702 = vmatpush1.msra.mxu0 0.0
      %1703 = vmatprep.subr.mxu0 0.0
      %1704 = vmatpush1.msra.mxu0 0.0
      %1705 = vmatprep.subr.mxu0 0.0
      %1706 = vmatpush1.msra.mxu0 0.0
      %1707 = vmatprep.subr.mxu0 0.0
      %1708 = vmatpush1.msra.mxu0 0.0
      %1709 = vmatprep.subr.mxu0 0.0
      %1710 = vmatpush1.msra.mxu0 0.0
      %1711 = vmatprep.subr.mxu0 0.0
      %1712 = vmatpush1.msra.mxu0 0.0
      %1713 = vmatprep.subr.mxu0 0.0
      %1714 = vmatpush1.msra.mxu0 0.0
      %1715 = vmatprep.subr.mxu0 0.0
      %1716 = vmatpush1.msra.mxu0 0.0
      %1717 = vmatprep.subr.mxu0 0.0
      %1718 = vmatpush1.msra.mxu0 0.0
      %1719 = vmatprep.subr.mxu0 0.0
      %1720 = vmatpush1.msra.mxu0 0.0
      %1721 = vmatprep.subr.mxu0 0.0
      %1722 = vmatpush1.msra.mxu0 0.0
      %1723 = vmatprep.mubr.f32.mxu0 0.0
      %1724 = vmatmul.mubr.f32.gmra.mrb[0].mxu0 %v1654
      %v1725 = vpop.f32.mrb[0].mxu0
      %v1726 = vadd.f32 0.0, %v1725
      %v1727 = vpop.f32.mrb[0].mxu0
      %1728 = vmatprep.mubr.f32.mxu0 0.0
      %1729 = vmatmul.mubr.f32.gmra.mrb[0].mxu0 %v1657
      %v1730 = vpop.f32.mrb[0].mxu0
      %v1731 = vadd.f32 0.0, %v1730
      %v1732 = vpop.f32.mrb[0].mxu0
      %1733 = vdwg.mxu0
      %vm1734 = vcmp.gt.f32.partialorder %v1159, 0.0
      %vm1735 = vcmp.gt.f32.partialorder %v1164, 0.0
      %vm1736 = vcmp.gt.f32.partialorder %v1240, 0.0
      %vm1737 = vcmp.gt.f32.partialorder %v1245, 0.0
      %vm1738 = vcmp.gt.f32.partialorder %v1321, 0.0
      %vm1739 = vcmp.gt.f32.partialorder %v1326, 0.0
      %vm1740 = vcmp.gt.f32.partialorder %v1402, 0.0
      %vm1741 = vcmp.gt.f32.partialorder %v1407, 0.0
      %vm1742 = vcmp.gt.f32.partialorder %v1483, 0.0
      %vm1743 = vcmp.gt.f32.partialorder %v1488, 0.0
      %vm1744 = vcmp.gt.f32.partialorder %v1564, 0.0
      %vm1745 = vcmp.gt.f32.partialorder %v1569, 0.0
      %vm1746 = vcmp.gt.f32.partialorder %v1645, 0.0
      %vm1747 = vcmp.gt.f32.partialorder %v1650, 0.0
      %vm1748 = vcmp.gt.f32.partialorder %v1726, 0.0
      %vm1749 = vcmp.gt.f32.partialorder %v1731, 0.0
      %v1750 = vmul.f32 %v1159, 1.442695
      %v1751 = vpow.pop %v1750
      %v1752 = vmul.f32 %v1164, 1.442695
      %v1753 = vpow.pop %v1752
      %v1754 = vmul.f32 %v1240, 1.442695
      %v1755 = vpow.pop %v1754
      %v1756 = vmul.f32 %v1245, 1.442695
      %v1757 = vpow.pop %v1756
      %v1758 = vmul.f32 %v1321, 1.442695
      %v1759 = vpow.pop %v1758
      %v1760 = vmul.f32 %v1326, 1.442695
      %v1761 = vpow.pop %v1760
      %v1762 = vmul.f32 %v1402, 1.442695
      %v1763 = vpow.pop %v1762
      %v1764 = vmul.f32 %v1407, 1.442695
      %v1765 = vpow.pop %v1764
      %v1766 = vmul.f32 %v1483, 1.442695
      %v1767 = vpow.pop %v1766
      %v1768 = vmul.f32 %v1488, 1.442695
      %v1769 = vpow.pop %v1768
      %v1770 = vmul.f32 %v1564, 1.442695
      %v1771 = vpow.pop %v1770
      %v1772 = vmul.f32 %v1569, 1.442695
      %v1773 = vpow.pop %v1772
      %v1774 = vmul.f32 %v1645, 1.442695
      %v1775 = vpow.pop %v1774
      %v1776 = vmul.f32 %v1650, 1.442695
      %v1777 = vpow.pop %v1776
      %v1778 = vmul.f32 %v1726, 1.442695
      %v1779 = vpow.pop %v1778
      %v1780 = vmul.f32 %v1731, 1.442695
      %v1781 = vpow.pop %v1780
      %v1782 = vsub.f32 %v1751, 1.0
      %v1783 = vsub.f32 %v1753, 1.0
      %v1784 = vsub.f32 %v1755, 1.0
      %v1785 = vsub.f32 %v1757, 1.0
      %v1786 = vsub.f32 %v1759, 1.0
      %v1787 = vsub.f32 %v1761, 1.0
      %v1788 = vsub.f32 %v1763, 1.0
      %v1789 = vsub.f32 %v1765, 1.0
      %v1790 = vsub.f32 %v1767, 1.0
      %v1791 = vsub.f32 %v1769, 1.0
      %v1792 = vsub.f32 %v1771, 1.0
      %v1793 = vsub.f32 %v1773, 1.0
      %v1794 = vsub.f32 %v1775, 1.0
      %v1795 = vsub.f32 %v1777, 1.0
      %v1796 = vsub.f32 %v1779, 1.0
      %v1797 = vsub.f32 %v1781, 1.0
      %v1798 = vsel %vm1734, %v1159, %v1782
      %v1799 = vsel %vm1735, %v1164, %v1783
      %v1800 = vsel %vm1736, %v1240, %v1784
      %v1801 = vsel %vm1737, %v1245, %v1785
      %v1802 = vsel %vm1738, %v1321, %v1786
      %v1803 = vsel %vm1739, %v1326, %v1787
      %v1804 = vsel %vm1740, %v1402, %v1788
      %v1805 = vsel %vm1741, %v1407, %v1789
      %v1806 = vsel %vm1742, %v1483, %v1790
      %v1807 = vsel %vm1743, %v1488, %v1791
      %v1808 = vsel %vm1744, %v1564, %v1792
      %v1809 = vsel %vm1745, %v1569, %v1793
      %v1810 = vsel %vm1746, %v1645, %v1794
      %v1811 = vsel %vm1747, %v1650, %v1795
      %v1812 = vsel %vm1748, %v1726, %v1796
      %v1813 = vsel %vm1749, %v1731, %v1797
      %s1814 = scalar_lea.vmem %s301, 32
      %v1815 = vld [vmem:[%s1814] sm:$0xff]
      %v1816 = vld [vmem:[%s1814 + $0x8] sm:$0xff]
      %v1817 = vld [vmem:[%s1814 + $0x10] sm:$0xff]
      %v1818 = vld [vmem:[%s1814 + $0x18] sm:$0xf]
      %s1819 = scalar_lea.vmem %s306, 2
      %v1820 = vld [vmem:[%s1819] sm:$0x3]
      %v1821 = vld [vmem:[%s296] sm:$0xff]
      %v1822 = vld [vmem:[%s296 + $0x8] sm:$0xff]
      %v1824 = vsel %vm335, %v1798, 0
      %v1827 = vsel %vm335, %v1799, 0
      %v1830 = vsel %vm335, %v1800, 0
      %v1833 = vsel %vm335, %v1801, 0
      %v1836 = vsel %vm335, %v1802, 0
      %v1839 = vsel %vm335, %v1803, 0
      %v1842 = vsel %vm335, %v1804, 0
      %v1845 = vsel %vm335, %v1805, 0
      %v1848 = vsel %vm335, %v1806, 0
      %v1851 = vsel %vm335, %v1807, 0
      %v1854 = vsel %vm335, %v1808, 0
      %v1857 = vsel %vm335, %v1809, 0
      %v1860 = vsel %vm335, %v1810, 0
      %v1863 = vsel %vm335, %v1811, 0
      %v1866 = vsel %vm335, %v1812, 0
      %v1869 = vsel %vm335, %v1813, 0
      %v1872 = vsel %vm384, %v1818, 0
      %1874 = vmatprep.subr.mxu0 0.0
      %1875 = vmatpush1.msra.mxu0 %v1815
      %1876 = vmatprep.subr.mxu0 0.0
      %1877 = vmatpush1.msra.mxu0 %v1816
      %1878 = vmatprep.subr.mxu0 0.0
      %1879 = vmatpush1.msra.mxu0 %v1817
      %1880 = vmatprep.subr.mxu0 0.0
      %1881 = vmatpush1.msra.mxu0 %v1872
      %1882 = vmatprep.subr.mxu0 0.0
      %1883 = vmatpush1.msra.mxu0 0.0
      %1884 = vmatprep.subr.mxu0 0.0
      %1885 = vmatpush1.msra.mxu0 0.0
      %1886 = vmatprep.subr.mxu0 0.0
      %1887 = vmatpush1.msra.mxu0 0.0
      %1888 = vmatprep.subr.mxu0 0.0
      %1889 = vmatpush1.msra.mxu0 0.0
      %1890 = vmatprep.subr.mxu0 0.0
      %1891 = vmatpush1.msra.mxu0 0.0
      %1892 = vmatprep.subr.mxu0 0.0
      %1893 = vmatpush1.msra.mxu0 0.0
      %1894 = vmatprep.subr.mxu0 0.0
      %1895 = vmatpush1.msra.mxu0 0.0
      %1896 = vmatprep.subr.mxu0 0.0
      %1897 = vmatpush1.msra.mxu0 0.0
      %1898 = vmatprep.subr.mxu0 0.0
      %1899 = vmatpush1.msra.mxu0 0.0
      %1900 = vmatprep.subr.mxu0 0.0
      %1901 = vmatpush1.msra.mxu0 0.0
      %1902 = vmatprep.subr.mxu0 0.0
      %1903 = vmatpush1.msra.mxu0 0.0
      %1904 = vmatprep.subr.mxu0 0.0
      %1905 = vmatpush1.msra.mxu0 0.0
      %1906 = vmatprep.subr.mxu0 0.0
      %1907 = vmatpush1.msra.mxu0 0.0
      %1908 = vmatprep.subr.mxu0 0.0
      %1909 = vmatpush1.msra.mxu0 0.0
      %1910 = vmatprep.subr.mxu0 0.0
      %1911 = vmatpush1.msra.mxu0 0.0
      %1912 = vmatprep.subr.mxu0 0.0
      %1913 = vmatpush1.msra.mxu0 0.0
      %1914 = vmatprep.subr.mxu0 0.0
      %1915 = vmatpush1.msra.mxu0 0.0
      %1916 = vmatprep.subr.mxu0 0.0
      %1917 = vmatpush1.msra.mxu0 0.0
      %1918 = vmatprep.subr.mxu0 0.0
      %1919 = vmatpush1.msra.mxu0 0.0
      %1920 = vmatprep.subr.mxu0 0.0
      %1921 = vmatpush1.msra.mxu0 0.0
      %1922 = vmatprep.subr.mxu0 0.0
      %1923 = vmatpush1.msra.mxu0 0.0
      %1924 = vmatprep.subr.mxu0 0.0
      %1925 = vmatpush1.msra.mxu0 0.0
      %1926 = vmatprep.subr.mxu0 0.0
      %1927 = vmatpush1.msra.mxu0 0.0
      %1928 = vmatprep.subr.mxu0 0.0
      %1929 = vmatpush1.msra.mxu0 0.0
      %1930 = vmatprep.subr.mxu0 0.0
      %1931 = vmatpush1.msra.mxu0 0.0
      %1932 = vmatprep.subr.mxu0 0.0
      %1933 = vmatpush1.msra.mxu0 0.0
      %1934 = vmatprep.subr.mxu0 0.0
      %1935 = vmatpush1.msra.mxu0 0.0
      %1936 = vmatprep.subr.mxu0 0.0
      %1937 = vmatpush1.msra.mxu0 0.0
      %1938 = vmatprep.mubr.f32.mxu0 0.0
      %1939 = vmatmul.mubr.f32.gmra.mrb[0].mxu0 %v1824
      %v1940 = vpop.f32.mrb[0].mxu0
      %v1941 = vadd.f32 0.0, %v1940
      %v1942 = vpop.f32.mrb[0].mxu0
      %1943 = vmatprep.mubr.f32.mxu0 0.0
      %1944 = vmatmul.mubr.f32.gmra.mrb[0].mxu0 %v1827
      %v1945 = vpop.f32.mrb[0].mxu0
      %v1946 = vadd.f32 0.0, %v1945
      %v1947 = vpop.f32.mrb[0].mxu0
      %1948 = vmatprep.mubr.f32.mxu0 0.0
      %1949 = vmatmul.mubr.f32.gmra.mrb[0].mxu0 %v1830
      %v1950 = vpop.f32.mrb[0].mxu0
      %v1951 = vadd.f32 0.0, %v1950
      %v1952 = vpop.f32.mrb[0].mxu0
      %1953 = vmatprep.mubr.f32.mxu0 0.0
      %1954 = vmatmul.mubr.f32.gmra.mrb[0].mxu0 %v1833
      %v1955 = vpop.f32.mrb[0].mxu0
      %v1956 = vadd.f32 0.0, %v1955
      %v1957 = vpop.f32.mrb[0].mxu0
      %1958 = vmatprep.mubr.f32.mxu0 0.0
      %1959 = vmatmul.mubr.f32.gmra.mrb[0].mxu0 %v1836
      %v1960 = vpop.f32.mrb[0].mxu0
      %v1961 = vadd.f32 0.0, %v1960
      %v1962 = vpop.f32.mrb[0].mxu0
      %1963 = vmatprep.mubr.f32.mxu0 0.0
      %1964 = vmatmul.mubr.f32.gmra.mrb[0].mxu0 %v1839
      %v1965 = vpop.f32.mrb[0].mxu0
      %v1966 = vadd.f32 0.0, %v1965
      %v1967 = vpop.f32.mrb[0].mxu0
      %1968 = vmatprep.mubr.f32.mxu0 0.0
      %1969 = vmatmul.mubr.f32.gmra.mrb[0].mxu0 %v1842
      %v1970 = vpop.f32.mrb[0].mxu0
      %v1971 = vadd.f32 0.0, %v1970
      %v1972 = vpop.f32.mrb[0].mxu0
      %1973 = vmatprep.mubr.f32.mxu0 0.0
      %1974 = vmatmul.mubr.f32.gmra.mrb[0].mxu0 %v1845
      %v1975 = vpop.f32.mrb[0].mxu0
      %v1976 = vadd.f32 0.0, %v1975
      %v1977 = vpop.f32.mrb[0].mxu0
      %1978 = vmatprep.mubr.f32.mxu0 0.0
      %1979 = vmatmul.mubr.f32.gmra.mrb[0].mxu0 %v1848
      %v1980 = vpop.f32.mrb[0].mxu0
      %v1981 = vadd.f32 0.0, %v1980
      %v1982 = vpop.f32.mrb[0].mxu0
      %1983 = vmatprep.mubr.f32.mxu0 0.0
      %1984 = vmatmul.mubr.f32.gmra.mrb[0].mxu0 %v1851
      %v1985 = vpop.f32.mrb[0].mxu0
      %v1986 = vadd.f32 0.0, %v1985
      %v1987 = vpop.f32.mrb[0].mxu0
      %1988 = vmatprep.mubr.f32.mxu0 0.0
      %1989 = vmatmul.mubr.f32.gmra.mrb[0].mxu0 %v1854
      %v1990 = vpop.f32.mrb[0].mxu0
      %v1991 = vadd.f32 0.0, %v1990
      %v1992 = vpop.f32.mrb[0].mxu0
      %1993 = vmatprep.mubr.f32.mxu0 0.0
      %1994 = vmatmul.mubr.f32.gmra.mrb[0].mxu0 %v1857
      %v1995 = vpop.f32.mrb[0].mxu0
      %v1996 = vadd.f32 0.0, %v1995
      %v1997 = vpop.f32.mrb[0].mxu0
      %1998 = vmatprep.mubr.f32.mxu0 0.0
      %1999 = vmatmul.mubr.f32.gmra.mrb[0].mxu0 %v1860
      %v2000 = vpop.f32.mrb[0].mxu0
      %v2001 = vadd.f32 0.0, %v2000
      %v2002 = vpop.f32.mrb[0].mxu0
      %2003 = vmatprep.mubr.f32.mxu0 0.0
      %2004 = vmatmul.mubr.f32.gmra.mrb[0].mxu0 %v1863
      %v2005 = vpop.f32.mrb[0].mxu0
      %v2006 = vadd.f32 0.0, %v2005
      %v2007 = vpop.f32.mrb[0].mxu0
      %2008 = vmatprep.mubr.f32.mxu0 0.0
      %2009 = vmatmul.mubr.f32.gmra.mrb[0].mxu0 %v1866
      %v2010 = vpop.f32.mrb[0].mxu0
      %v2011 = vadd.f32 0.0, %v2010
      %v2012 = vpop.f32.mrb[0].mxu0
      %2013 = vmatprep.mubr.f32.mxu0 0.0
      %2014 = vmatmul.mubr.f32.gmra.mrb[0].mxu0 %v1869
      %v2015 = vpop.f32.mrb[0].mxu0
      %v2016 = vadd.f32 0.0, %v2015
      %v2017 = vpop.f32.mrb[0].mxu0
      %2018 = vdwg.mxu0
      %v2019 = vlaneseq
      %v2020 = vshrl.u32 %v2019, 7
      %v2021 = vsub.s32 0, %v2020
      %v2022 = vrot.slane %v1820, %v2021
      %v2023 = vmul.f32 %v1941, %v2022
      %v2024 = vmul.f32 %v1946, %v2022
      %v2025 = vmul.f32 %v1951, %v2022
      %v2026 = vmul.f32 %v1956, %v2022
      %v2027 = vmul.f32 %v1961, %v2022
      %v2028 = vmul.f32 %v1966, %v2022
      %v2029 = vmul.f32 %v1971, %v2022
      %v2030 = vmul.f32 %v1976, %v2022
      %v2031 = vmul.f32 %v1981, %v2022
      %v2032 = vmul.f32 %v1986, %v2022
      %v2033 = vmul.f32 %v1991, %v2022
      %v2034 = vmul.f32 %v1996, %v2022
      %v2035 = vmul.f32 %v2001, %v2022
      %v2036 = vmul.f32 %v2006, %v2022
      %v2037 = vmul.f32 %v2011, %v2022
      %v2038 = vmul.f32 %v2016, %v2022
      %v2039 = vsel %vm335, %v2023, 0.0
      %2040 = vadd.xlane.f32.xlu0 %v2039
      %v2041 = vpop.xlane.xlu0 %2040
      %v2042 = vsel %vm335, %v2024, 0.0
      %2043 = vadd.xlane.f32.xlu0 %v2042
      %v2044 = vpop.xlane.xlu0 %2043
      %v2045 = vsel %vm335, %v2025, 0.0
      %2046 = vadd.xlane.f32.xlu0 %v2045
      %v2047 = vpop.xlane.xlu0 %2046
      %v2048 = vsel %vm335, %v2026, 0.0
      %2049 = vadd.xlane.f32.xlu0 %v2048
      %v2050 = vpop.xlane.xlu0 %2049
      %v2051 = vsel %vm335, %v2027, 0.0
      %2052 = vadd.xlane.f32.xlu0 %v2051
      %v2053 = vpop.xlane.xlu0 %2052
      %v2054 = vsel %vm335, %v2028, 0.0
      %2055 = vadd.xlane.f32.xlu0 %v2054
      %v2056 = vpop.xlane.xlu0 %2055
      %v2057 = vsel %vm335, %v2029, 0.0
      %2058 = vadd.xlane.f32.xlu0 %v2057
      %v2059 = vpop.xlane.xlu0 %2058
      %v2060 = vsel %vm335, %v2030, 0.0
      %2061 = vadd.xlane.f32.xlu0 %v2060
      %v2062 = vpop.xlane.xlu0 %2061
      %v2063 = vsel %vm335, %v2031, 0.0
      %2064 = vadd.xlane.f32.xlu0 %v2063
      %v2065 = vpop.xlane.xlu0 %2064
      %v2066 = vsel %vm335, %v2032, 0.0
      %2067 = vadd.xlane.f32.xlu0 %v2066
      %v2068 = vpop.xlane.xlu0 %2067
      %v2069 = vsel %vm335, %v2033, 0.0
      %2070 = vadd.xlane.f32.xlu0 %v2069
      %v2071 = vpop.xlane.xlu0 %2070
      %v2072 = vsel %vm335, %v2034, 0.0
      %2073 = vadd.xlane.f32.xlu0 %v2072
      %v2074 = vpop.xlane.xlu0 %2073
      %v2075 = vsel %vm335, %v2035, 0.0
      %2076 = vadd.xlane.f32.xlu0 %v2075
      %v2077 = vpop.xlane.xlu0 %2076
      %v2078 = vsel %vm335, %v2036, 0.0
      %2079 = vadd.xlane.f32.xlu0 %v2078
      %v2080 = vpop.xlane.xlu0 %2079
      %v2081 = vsel %vm335, %v2037, 0.0
      %2082 = vadd.xlane.f32.xlu0 %v2081
      %v2083 = vpop.xlane.xlu0 %2082
      %v2084 = vsel %vm335, %v2038, 0.0
      %2085 = vadd.xlane.f32.xlu0 %v2084
      %v2086 = vpop.xlane.xlu0 %2085
      %v2087 = vlaneseq
      %v2088 = vshrl.u32 %v2087, 7
      %v2089 = vsub.s32 1, %v2088
      %v2090 = vrot.slane %v1820, %v2089
      %v2091 = vmul.f32 %v1941, %v2090
      %v2092 = vmul.f32 %v1946, %v2090
      %v2093 = vmul.f32 %v1951, %v2090
      %v2094 = vmul.f32 %v1956, %v2090
      %v2095 = vmul.f32 %v1961, %v2090
      %v2096 = vmul.f32 %v1966, %v2090
      %v2097 = vmul.f32 %v1971, %v2090
      %v2098 = vmul.f32 %v1976, %v2090
      %v2099 = vmul.f32 %v1981, %v2090
      %v2100 = vmul.f32 %v1986, %v2090
      %v2101 = vmul.f32 %v1991, %v2090
      %v2102 = vmul.f32 %v1996, %v2090
      %v2103 = vmul.f32 %v2001, %v2090
      %v2104 = vmul.f32 %v2006, %v2090
      %v2105 = vmul.f32 %v2011, %v2090
      %v2106 = vmul.f32 %v2016, %v2090
      %v2107 = vsel %vm335, %v2091, 0.0
      %2108 = vadd.xlane.f32.xlu0 %v2107
      %v2109 = vpop.xlane.xlu0 %2108
      %v2110 = vsel %vm335, %v2092, 0.0
      %2111 = vadd.xlane.f32.xlu0 %v2110
      %v2112 = vpop.xlane.xlu0 %2111
      %v2113 = vsel %vm335, %v2093, 0.0
      %2114 = vadd.xlane.f32.xlu0 %v2113
      %v2115 = vpop.xlane.xlu0 %2114
      %v2116 = vsel %vm335, %v2094, 0.0
      %2117 = vadd.xlane.f32.xlu0 %v2116
      %v2118 = vpop.xlane.xlu0 %2117
      %v2119 = vsel %vm335, %v2095, 0.0
      %2120 = vadd.xlane.f32.xlu0 %v2119
      %v2121 = vpop.xlane.xlu0 %2120
      %v2122 = vsel %vm335, %v2096, 0.0
      %2123 = vadd.xlane.f32.xlu0 %v2122
      %v2124 = vpop.xlane.xlu0 %2123
      %v2125 = vsel %vm335, %v2097, 0.0
      %2126 = vadd.xlane.f32.xlu0 %v2125
      %v2127 = vpop.xlane.xlu0 %2126
      %v2128 = vsel %vm335, %v2098, 0.0
      %2129 = vadd.xlane.f32.xlu0 %v2128
      %v2130 = vpop.xlane.xlu0 %2129
      %v2131 = vsel %vm335, %v2099, 0.0
      %2132 = vadd.xlane.f32.xlu0 %v2131
      %v2133 = vpop.xlane.xlu0 %2132
      %v2134 = vsel %vm335, %v2100, 0.0
      %2135 = vadd.xlane.f32.xlu0 %v2134
      %v2136 = vpop.xlane.xlu0 %2135
      %v2137 = vsel %vm335, %v2101, 0.0
      %2138 = vadd.xlane.f32.xlu0 %v2137
      %v2139 = vpop.xlane.xlu0 %2138
      %v2140 = vsel %vm335, %v2102, 0.0
      %2141 = vadd.xlane.f32.xlu0 %v2140
      %v2142 = vpop.xlane.xlu0 %2141
      %v2143 = vsel %vm335, %v2103, 0.0
      %2144 = vadd.xlane.f32.xlu0 %v2143
      %v2145 = vpop.xlane.xlu0 %2144
      %v2146 = vsel %vm335, %v2104, 0.0
      %2147 = vadd.xlane.f32.xlu0 %v2146
      %v2148 = vpop.xlane.xlu0 %2147
      %v2149 = vsel %vm335, %v2105, 0.0
      %2150 = vadd.xlane.f32.xlu0 %v2149
      %v2151 = vpop.xlane.xlu0 %2150
      %v2152 = vsel %vm335, %v2106, 0.0
      %2153 = vadd.xlane.f32.xlu0 %v2152
      %v2154 = vpop.xlane.xlu0 %2153
      %v2171 = vlaneseq
      %v2172 = vshrl.u32 %v2171, 7
      %v2173 = vsub.s32 %v686, %v2172
      %v2174 = vrot.slane %v2109, %v2173
      %v2175 = vlaneseq
      %v2176 = vshrl.u32 %v2175, 7
      %v2177 = vsub.s32 %v691, %v2176
      %v2178 = vrot.slane %v2112, %v2177
      %v2179 = vsel %vm696, %v2178, %v2174
      %v2180 = vlaneseq
      %v2181 = vshrl.u32 %v2180, 7
      %v2182 = vsub.s32 %v686, %v2181
      %v2183 = vrot.slane %v2115, %v2182
      %v2184 = vlaneseq
      %v2185 = vshrl.u32 %v2184, 7
      %v2186 = vsub.s32 %v691, %v2185
      %v2187 = vrot.slane %v2118, %v2186
      %v2188 = vsel %vm696, %v2187, %v2183
      %v2189 = vlaneseq
      %v2190 = vshrl.u32 %v2189, 7
      %v2191 = vsub.s32 %v686, %v2190
      %v2192 = vrot.slane %v2121, %v2191
      %v2193 = vlaneseq
      %v2194 = vshrl.u32 %v2193, 7
      %v2195 = vsub.s32 %v691, %v2194
      %v2196 = vrot.slane %v2124, %v2195
      %v2197 = vsel %vm696, %v2196, %v2192
      %v2198 = vlaneseq
      %v2199 = vshrl.u32 %v2198, 7
      %v2200 = vsub.s32 %v686, %v2199
      %v2201 = vrot.slane %v2127, %v2200
      %v2202 = vlaneseq
      %v2203 = vshrl.u32 %v2202, 7
      %v2204 = vsub.s32 %v691, %v2203
      %v2205 = vrot.slane %v2130, %v2204
      %v2206 = vsel %vm696, %v2205, %v2201
      %v2207 = vlaneseq
      %v2208 = vshrl.u32 %v2207, 7
      %v2209 = vsub.s32 %v686, %v2208
      %v2210 = vrot.slane %v2133, %v2209
      %v2211 = vlaneseq
      %v2212 = vshrl.u32 %v2211, 7
      %v2213 = vsub.s32 %v691, %v2212
      %v2214 = vrot.slane %v2136, %v2213
      %v2215 = vsel %vm696, %v2214, %v2210
      %v2216 = vlaneseq
      %v2217 = vshrl.u32 %v2216, 7
      %v2218 = vsub.s32 %v686, %v2217
      %v2219 = vrot.slane %v2139, %v2218
      %v2220 = vlaneseq
      %v2221 = vshrl.u32 %v2220, 7
      %v2222 = vsub.s32 %v691, %v2221
      %v2223 = vrot.slane %v2142, %v2222
      %v2224 = vsel %vm696, %v2223, %v2219
      %v2225 = vlaneseq
      %v2226 = vshrl.u32 %v2225, 7
      %v2227 = vsub.s32 %v686, %v2226
      %v2228 = vrot.slane %v2145, %v2227
      %v2229 = vlaneseq
      %v2230 = vshrl.u32 %v2229, 7
      %v2231 = vsub.s32 %v691, %v2230
      %v2232 = vrot.slane %v2148, %v2231
      %v2233 = vsel %vm696, %v2232, %v2228
      %v2234 = vlaneseq
      %v2235 = vshrl.u32 %v2234, 7
      %v2236 = vsub.s32 %v686, %v2235
      %v2237 = vrot.slane %v2151, %v2236
      %v2238 = vlaneseq
      %v2239 = vshrl.u32 %v2238, 7
      %v2240 = vsub.s32 %v691, %v2239
      %v2241 = vrot.slane %v2154, %v2240
      %v2242 = vsel %vm696, %v2241, %v2237
      %v2243 = vsel %vm761, %v2179, %v2179
      %v2244 = vsel %vm763, %v2179, %v2243
      %v2245 = vsel %vm765, %v2179, %v2244
      %v2246 = vsel %vm767, %v2179, %v2245
      %v2247 = vsel %vm769, %v2179, %v2246
      %v2248 = vsel %vm771, %v2179, %v2247
      %v2249 = vsel %vm761, %v2188, %v2188
      %v2250 = vsel %vm763, %v2188, %v2249
      %v2251 = vsel %vm765, %v2188, %v2250
      %v2252 = vsel %vm767, %v2188, %v2251
      %v2253 = vsel %vm769, %v2188, %v2252
      %v2254 = vsel %vm771, %v2188, %v2253
      %v2255 = vsel %vm761, %v2197, %v2197
      %v2256 = vsel %vm763, %v2197, %v2255
      %v2257 = vsel %vm765, %v2197, %v2256
      %v2258 = vsel %vm767, %v2197, %v2257
      %v2259 = vsel %vm769, %v2197, %v2258
      %v2260 = vsel %vm771, %v2197, %v2259
      %v2261 = vsel %vm761, %v2206, %v2206
      %v2262 = vsel %vm763, %v2206, %v2261
      %v2263 = vsel %vm765, %v2206, %v2262
      %v2264 = vsel %vm767, %v2206, %v2263
      %v2265 = vsel %vm769, %v2206, %v2264
      %v2266 = vsel %vm771, %v2206, %v2265
      %v2267 = vsel %vm761, %v2215, %v2215
      %v2268 = vsel %vm763, %v2215, %v2267
      %v2269 = vsel %vm765, %v2215, %v2268
      %v2270 = vsel %vm767, %v2215, %v2269
      %v2271 = vsel %vm769, %v2215, %v2270
      %v2272 = vsel %vm771, %v2215, %v2271
      %v2273 = vsel %vm761, %v2224, %v2224
      %v2274 = vsel %vm763, %v2224, %v2273
      %v2275 = vsel %vm765, %v2224, %v2274
      %v2276 = vsel %vm767, %v2224, %v2275
      %v2277 = vsel %vm769, %v2224, %v2276
      %v2278 = vsel %vm771, %v2224, %v2277
      %v2279 = vsel %vm761, %v2233, %v2233
      %v2280 = vsel %vm763, %v2233, %v2279
      %v2281 = vsel %vm765, %v2233, %v2280
      %v2282 = vsel %vm767, %v2233, %v2281
      %v2283 = vsel %vm769, %v2233, %v2282
      %v2284 = vsel %vm771, %v2233, %v2283
      %v2285 = vsel %vm761, %v2242, %v2242
      %v2286 = vsel %vm763, %v2242, %v2285
      %v2287 = vsel %vm765, %v2242, %v2286
      %v2288 = vsel %vm767, %v2242, %v2287
      %v2289 = vsel %vm769, %v2242, %v2288
      %v2290 = vsel %vm771, %v2242, %v2289
      %v2299 = vadd.f32 %v2041, %v2248
      %v2300 = vadd.f32 %v2044, %v2248
      %v2301 = vadd.f32 %v2047, %v2254
      %v2302 = vadd.f32 %v2050, %v2254
      %v2303 = vadd.f32 %v2053, %v2260
      %v2304 = vadd.f32 %v2056, %v2260
      %v2305 = vadd.f32 %v2059, %v2266
      %v2306 = vadd.f32 %v2062, %v2266
      %v2307 = vadd.f32 %v2065, %v2272
      %v2308 = vadd.f32 %v2068, %v2272
      %v2309 = vadd.f32 %v2071, %v2278
      %v2310 = vadd.f32 %v2074, %v2278
      %v2311 = vadd.f32 %v2077, %v2284
      %v2312 = vadd.f32 %v2080, %v2284
      %v2313 = vadd.f32 %v2083, %v2290
      %v2314 = vadd.f32 %v2086, %v2290
      %vm2315 = vcmp.gt.f32.partialorder %v2299, 0.0
      %vm2316 = vcmp.gt.f32.partialorder %v2300, 0.0
      %vm2317 = vcmp.gt.f32.partialorder %v2301, 0.0
      %vm2318 = vcmp.gt.f32.partialorder %v2302, 0.0
      %vm2319 = vcmp.gt.f32.partialorder %v2303, 0.0
      %vm2320 = vcmp.gt.f32.partialorder %v2304, 0.0
      %vm2321 = vcmp.gt.f32.partialorder %v2305, 0.0
      %vm2322 = vcmp.gt.f32.partialorder %v2306, 0.0
      %vm2323 = vcmp.gt.f32.partialorder %v2307, 0.0
      %vm2324 = vcmp.gt.f32.partialorder %v2308, 0.0
      %vm2325 = vcmp.gt.f32.partialorder %v2309, 0.0
      %vm2326 = vcmp.gt.f32.partialorder %v2310, 0.0
      %vm2327 = vcmp.gt.f32.partialorder %v2311, 0.0
      %vm2328 = vcmp.gt.f32.partialorder %v2312, 0.0
      %vm2329 = vcmp.gt.f32.partialorder %v2313, 0.0
      %vm2330 = vcmp.gt.f32.partialorder %v2314, 0.0
      %v2331 = vmul.f32 %v2299, 0.2
      %v2332 = vmul.f32 %v2300, 0.2
      %v2333 = vmul.f32 %v2301, 0.2
      %v2334 = vmul.f32 %v2302, 0.2
      %v2335 = vmul.f32 %v2303, 0.2
      %v2336 = vmul.f32 %v2304, 0.2
      %v2337 = vmul.f32 %v2305, 0.2
      %v2338 = vmul.f32 %v2306, 0.2
      %v2339 = vmul.f32 %v2307, 0.2
      %v2340 = vmul.f32 %v2308, 0.2
      %v2341 = vmul.f32 %v2309, 0.2
      %v2342 = vmul.f32 %v2310, 0.2
      %v2343 = vmul.f32 %v2311, 0.2
      %v2344 = vmul.f32 %v2312, 0.2
      %v2345 = vmul.f32 %v2313, 0.2
      %v2346 = vmul.f32 %v2314, 0.2
      %v2347 = vsel %vm2315, %v2299, %v2331
      %v2348 = vsel %vm2316, %v2300, %v2332
      %v2349 = vsel %vm2317, %v2301, %v2333
      %v2350 = vsel %vm2318, %v2302, %v2334
      %v2351 = vsel %vm2319, %v2303, %v2335
      %v2352 = vsel %vm2320, %v2304, %v2336
      %v2353 = vsel %vm2321, %v2305, %v2337
      %v2354 = vsel %vm2322, %v2306, %v2338
      %v2355 = vsel %vm2323, %v2307, %v2339
      %v2356 = vsel %vm2324, %v2308, %v2340
      %v2357 = vsel %vm2325, %v2309, %v2341
      %v2358 = vsel %vm2326, %v2310, %v2342
      %v2359 = vsel %vm2327, %v2311, %v2343
      %v2360 = vsel %vm2328, %v2312, %v2344
      %v2361 = vsel %vm2329, %v2313, %v2345
      %v2362 = vsel %vm2330, %v2314, %v2346
      %vm2363 = vcmp.gt.f32.partialorder %v1821, 0.0
      %vm2364 = vcmp.gt.f32.partialorder %v1822, 0.0
      %v2365 = vsel %vm2363, 1, 0
      %v2366 = vsel %vm2364, 1, 0
      %vm2367 = vcmp.eq.s32.totalorder %v2365, 1
      %vm2368 = vcmp.eq.s32.totalorder %v2366, 1
      %v2369 = vsel %vm2367, %v2347, -9e+15
      %v2370 = vsel %vm2368, %v2348, -9e+15
      %v2371 = vsel %vm2367, %v2349, -9e+15
      %v2372 = vsel %vm2368, %v2350, -9e+15
      %v2373 = vsel %vm2367, %v2351, -9e+15
      %v2374 = vsel %vm2368, %v2352, -9e+15
      %v2375 = vsel %vm2367, %v2353, -9e+15
      %v2376 = vsel %vm2368, %v2354, -9e+15
      %v2377 = vsel %vm2367, %v2355, -9e+15
      %v2378 = vsel %vm2368, %v2356, -9e+15
      %v2379 = vsel %vm2367, %v2357, -9e+15
      %v2380 = vsel %vm2368, %v2358, -9e+15
      %v2381 = vsel %vm2367, %v2359, -9e+15
      %v2382 = vsel %vm2368, %v2360, -9e+15
      %v2383 = vsel %vm2367, %v2361, -9e+15
      %v2384 = vsel %vm2368, %v2362, -9e+15
      %v2385 = vsel %vm909, %v2369, -inf
      %2386 = vmax.xlane.f32.xlu0 %v2385
      %v2387 = vpop.xlane.xlu0 %2386
      %v2388 = vsel %vm909, %v2370, -inf
      %2389 = vmax.xlane.f32.xlu0 %v2388
      %v2390 = vpop.xlane.xlu0 %2389
      %v2391 = vsel %vm909, %v2371, -inf
      %2392 = vmax.xlane.f32.xlu0 %v2391
      %v2393 = vpop.xlane.xlu0 %2392
      %v2394 = vsel %vm909, %v2372, -inf
      %2395 = vmax.xlane.f32.xlu0 %v2394
      %v2396 = vpop.xlane.xlu0 %2395
      %v2397 = vsel %vm909, %v2373, -inf
      %2398 = vmax.xlane.f32.xlu0 %v2397
      %v2399 = vpop.xlane.xlu0 %2398
      %v2400 = vsel %vm909, %v2374, -inf
      %2401 = vmax.xlane.f32.xlu0 %v2400
      %v2402 = vpop.xlane.xlu0 %2401
      %v2403 = vsel %vm909, %v2375, -inf
      %2404 = vmax.xlane.f32.xlu0 %v2403
      %v2405 = vpop.xlane.xlu0 %2404
      %v2406 = vsel %vm909, %v2376, -inf
      %2407 = vmax.xlane.f32.xlu0 %v2406
      %v2408 = vpop.xlane.xlu0 %2407
      %v2409 = vsel %vm909, %v2377, -inf
      %2410 = vmax.xlane.f32.xlu0 %v2409
      %v2411 = vpop.xlane.xlu0 %2410
      %v2412 = vsel %vm909, %v2378, -inf
      %2413 = vmax.xlane.f32.xlu0 %v2412
      %v2414 = vpop.xlane.xlu0 %2413
      %v2415 = vsel %vm909, %v2379, -inf
      %2416 = vmax.xlane.f32.xlu0 %v2415
      %v2417 = vpop.xlane.xlu0 %2416
      %v2418 = vsel %vm909, %v2380, -inf
      %2419 = vmax.xlane.f32.xlu0 %v2418
      %v2420 = vpop.xlane.xlu0 %2419
      %v2421 = vsel %vm909, %v2381, -inf
      %2422 = vmax.xlane.f32.xlu0 %v2421
      %v2423 = vpop.xlane.xlu0 %2422
      %v2424 = vsel %vm909, %v2382, -inf
      %2425 = vmax.xlane.f32.xlu0 %v2424
      %v2426 = vpop.xlane.xlu0 %2425
      %v2427 = vsel %vm909, %v2383, -inf
      %2428 = vmax.xlane.f32.xlu0 %v2427
      %v2429 = vpop.xlane.xlu0 %2428
      %v2430 = vsel %vm909, %v2384, -inf
      %2431 = vmax.xlane.f32.xlu0 %v2430
      %v2432 = vpop.xlane.xlu0 %2431
      %v2433 = vsub.f32 %v2369, %v2387
      %v2434 = vsub.f32 %v2370, %v2390
      %v2435 = vsub.f32 %v2371, %v2393
      %v2436 = vsub.f32 %v2372, %v2396
      %v2437 = vsub.f32 %v2373, %v2399
      %v2438 = vsub.f32 %v2374, %v2402
      %v2439 = vsub.f32 %v2375, %v2405
      %v2440 = vsub.f32 %v2376, %v2408
      %v2441 = vsub.f32 %v2377, %v2411
      %v2442 = vsub.f32 %v2378, %v2414
      %v2443 = vsub.f32 %v2379, %v2417
      %v2444 = vsub.f32 %v2380, %v2420
      %v2445 = vsub.f32 %v2381, %v2423
      %v2446 = vsub.f32 %v2382, %v2426
      %v2447 = vsub.f32 %v2383, %v2429
      %v2448 = vsub.f32 %v2384, %v2432
      %v2449 = vmul.f32 %v2433, 1.442695
      %v2450 = vpow.pop %v2449
      %v2451 = vmul.f32 %v2434, 1.442695
      %v2452 = vpow.pop %v2451
      %v2453 = vmul.f32 %v2435, 1.442695
      %v2454 = vpow.pop %v2453
      %v2455 = vmul.f32 %v2436, 1.442695
      %v2456 = vpow.pop %v2455
      %v2457 = vmul.f32 %v2437, 1.442695
      %v2458 = vpow.pop %v2457
      %v2459 = vmul.f32 %v2438, 1.442695
      %v2460 = vpow.pop %v2459
      %v2461 = vmul.f32 %v2439, 1.442695
      %v2462 = vpow.pop %v2461
      %v2463 = vmul.f32 %v2440, 1.442695
      %v2464 = vpow.pop %v2463
      %v2465 = vmul.f32 %v2441, 1.442695
      %v2466 = vpow.pop %v2465
      %v2467 = vmul.f32 %v2442, 1.442695
      %v2468 = vpow.pop %v2467
      %v2469 = vmul.f32 %v2443, 1.442695
      %v2470 = vpow.pop %v2469
      %v2471 = vmul.f32 %v2444, 1.442695
      %v2472 = vpow.pop %v2471
      %v2473 = vmul.f32 %v2445, 1.442695
      %v2474 = vpow.pop %v2473
      %v2475 = vmul.f32 %v2446, 1.442695
      %v2476 = vpow.pop %v2475
      %v2477 = vmul.f32 %v2447, 1.442695
      %v2478 = vpow.pop %v2477
      %v2479 = vmul.f32 %v2448, 1.442695
      %v2480 = vpow.pop %v2479
      %v2481 = vsel %vm909, %v2450, 0.0
      %2482 = vadd.xlane.f32.xlu0 %v2481
      %v2483 = vpop.xlane.xlu0 %2482
      %v2484 = vsel %vm909, %v2452, 0.0
      %2485 = vadd.xlane.f32.xlu0 %v2484
      %v2486 = vpop.xlane.xlu0 %2485
      %v2487 = vsel %vm909, %v2454, 0.0
      %2488 = vadd.xlane.f32.xlu0 %v2487
      %v2489 = vpop.xlane.xlu0 %2488
      %v2490 = vsel %vm909, %v2456, 0.0
      %2491 = vadd.xlane.f32.xlu0 %v2490
      %v2492 = vpop.xlane.xlu0 %2491
      %v2493 = vsel %vm909, %v2458, 0.0
      %2494 = vadd.xlane.f32.xlu0 %v2493
      %v2495 = vpop.xlane.xlu0 %2494
      %v2496 = vsel %vm909, %v2460, 0.0
      %2497 = vadd.xlane.f32.xlu0 %v2496
      %v2498 = vpop.xlane.xlu0 %2497
      %v2499 = vsel %vm909, %v2462, 0.0
      %2500 = vadd.xlane.f32.xlu0 %v2499
      %v2501 = vpop.xlane.xlu0 %2500
      %v2502 = vsel %vm909, %v2464, 0.0
      %2503 = vadd.xlane.f32.xlu0 %v2502
      %v2504 = vpop.xlane.xlu0 %2503
      %v2505 = vsel %vm909, %v2466, 0.0
      %2506 = vadd.xlane.f32.xlu0 %v2505
      %v2507 = vpop.xlane.xlu0 %2506
      %v2508 = vsel %vm909, %v2468, 0.0
      %2509 = vadd.xlane.f32.xlu0 %v2508
      %v2510 = vpop.xlane.xlu0 %2509
      %v2511 = vsel %vm909, %v2470, 0.0
      %2512 = vadd.xlane.f32.xlu0 %v2511
      %v2513 = vpop.xlane.xlu0 %2512
      %v2514 = vsel %vm909, %v2472, 0.0
      %2515 = vadd.xlane.f32.xlu0 %v2514
      %v2516 = vpop.xlane.xlu0 %2515
      %v2517 = vsel %vm909, %v2474, 0.0
      %2518 = vadd.xlane.f32.xlu0 %v2517
      %v2519 = vpop.xlane.xlu0 %2518
      %v2520 = vsel %vm909, %v2476, 0.0
      %2521 = vadd.xlane.f32.xlu0 %v2520
      %v2522 = vpop.xlane.xlu0 %2521
      %v2523 = vsel %vm909, %v2478, 0.0
      %2524 = vadd.xlane.f32.xlu0 %v2523
      %v2525 = vpop.xlane.xlu0 %2524
      %v2526 = vsel %vm909, %v2480, 0.0
      %2527 = vadd.xlane.f32.xlu0 %v2526
      %v2528 = vpop.xlane.xlu0 %2527
      %v2529 = vrcp.pop %v2483
      %v2530 = vmul.f32 %v2450, %v2529
      %v2531 = vrcp.pop %v2486
      %v2532 = vmul.f32 %v2452, %v2531
      %v2533 = vrcp.pop %v2489
      %v2534 = vmul.f32 %v2454, %v2533
      %v2535 = vrcp.pop %v2492
      %v2536 = vmul.f32 %v2456, %v2535
      %v2537 = vrcp.pop %v2495
      %v2538 = vmul.f32 %v2458, %v2537
      %v2539 = vrcp.pop %v2498
      %v2540 = vmul.f32 %v2460, %v2539
      %v2541 = vrcp.pop %v2501
      %v2542 = vmul.f32 %v2462, %v2541
      %v2543 = vrcp.pop %v2504
      %v2544 = vmul.f32 %v2464, %v2543
      %v2545 = vrcp.pop %v2507
      %v2546 = vmul.f32 %v2466, %v2545
      %v2547 = vrcp.pop %v2510
      %v2548 = vmul.f32 %v2468, %v2547
      %v2549 = vrcp.pop %v2513
      %v2550 = vmul.f32 %v2470, %v2549
      %v2551 = vrcp.pop %v2516
      %v2552 = vmul.f32 %v2472, %v2551
      %v2553 = vrcp.pop %v2519
      %v2554 = vmul.f32 %v2474, %v2553
      %v2555 = vrcp.pop %v2522
      %v2556 = vmul.f32 %v2476, %v2555
      %v2557 = vrcp.pop %v2525
      %v2558 = vmul.f32 %v2478, %v2557
      %v2559 = vrcp.pop %v2528
      %v2560 = vmul.f32 %v2480, %v2559
      %v2562 = vsel %vm909, %v2530, 0
      %v2565 = vsel %vm909, %v2532, 0
      %2567 = vmatprep.subr.mxu0 0.0
      %2568 = vmatpush1.msra.mxu0 %v1941
      %2569 = vmatprep.subr.mxu0 0.0
      %2570 = vmatpush1.msra.mxu0 %v1946
      %2571 = vmatprep.subr.mxu0 0.0
      %2572 = vmatpush1.msra.mxu0 0.0
      %2573 = vmatprep.subr.mxu0 0.0
      %2574 = vmatpush1.msra.mxu0 0.0
      %2575 = vmatprep.subr.mxu0 0.0
      %2576 = vmatpush1.msra.mxu0 0.0
      %2577 = vmatprep.subr.mxu0 0.0
      %2578 = vmatpush1.msra.mxu0 0.0
      %2579 = vmatprep.subr.mxu0 0.0
      %2580 = vmatpush1.msra.mxu0 0.0
      %2581 = vmatprep.subr.mxu0 0.0
      %2582 = vmatpush1.msra.mxu0 0.0
      %2583 = vmatprep.subr.mxu0 0.0
      %2584 = vmatpush1.msra.mxu0 0.0
      %2585 = vmatprep.subr.mxu0 0.0
      %2586 = vmatpush1.msra.mxu0 0.0
      %2587 = vmatprep.subr.mxu0 0.0
      %2588 = vmatpush1.msra.mxu0 0.0
      %2589 = vmatprep.subr.mxu0 0.0
      %2590 = vmatpush1.msra.mxu0 0.0
      %2591 = vmatprep.subr.mxu0 0.0
      %2592 = vmatpush1.msra.mxu0 0.0
      %2593 = vmatprep.subr.mxu0 0.0
      %2594 = vmatpush1.msra.mxu0 0.0
      %2595 = vmatprep.subr.mxu0 0.0
      %2596 = vmatpush1.msra.mxu0 0.0
      %2597 = vmatprep.subr.mxu0 0.0
      %2598 = vmatpush1.msra.mxu0 0.0
      %2599 = vmatprep.subr.mxu0 0.0
      %2600 = vmatpush1.msra.mxu0 0.0
      %2601 = vmatprep.subr.mxu0 0.0
      %2602 = vmatpush1.msra.mxu0 0.0
      %2603 = vmatprep.subr.mxu0 0.0
      %2604 = vmatpush1.msra.mxu0 0.0
      %2605 = vmatprep.subr.mxu0 0.0
      %2606 = vmatpush1.msra.mxu0 0.0
      %2607 = vmatprep.subr.mxu0 0.0
      %2608 = vmatpush1.msra.mxu0 0.0
      %2609 = vmatprep.subr.mxu0 0.0
      %2610 = vmatpush1.msra.mxu0 0.0
      %2611 = vmatprep.subr.mxu0 0.0
      %2612 = vmatpush1.msra.mxu0 0.0
      %2613 = vmatprep.subr.mxu0 0.0
      %2614 = vmatpush1.msra.mxu0 0.0
      %2615 = vmatprep.subr.mxu0 0.0
      %2616 = vmatpush1.msra.mxu0 0.0
      %2617 = vmatprep.subr.mxu0 0.0
      %2618 = vmatpush1.msra.mxu0 0.0
      %2619 = vmatprep.subr.mxu0 0.0
      %2620 = vmatpush1.msra.mxu0 0.0
      %2621 = vmatprep.subr.mxu0 0.0
      %2622 = vmatpush1.msra.mxu0 0.0
      %2623 = vmatprep.subr.mxu0 0.0
      %2624 = vmatpush1.msra.mxu0 0.0
      %2625 = vmatprep.subr.mxu0 0.0
      %2626 = vmatpush1.msra.mxu0 0.0
      %2627 = vmatprep.subr.mxu0 0.0
      %2628 = vmatpush1.msra.mxu0 0.0
      %2629 = vmatprep.subr.mxu0 0.0
      %2630 = vmatpush1.msra.mxu0 0.0
      %2631 = vmatprep.mubr.f32.mxu0 0.0
      %2632 = vmatmul.mubr.f32.gmra.mrb[0].mxu0 %v2562
      %v2633 = vpop.f32.mrb[0].mxu0
      %v2634 = vadd.f32 0.0, %v2633
      %v2635 = vpop.f32.mrb[0].mxu0
      %2636 = vmatprep.mubr.f32.mxu0 0.0
      %2637 = vmatmul.mubr.f32.gmra.mrb[0].mxu0 %v2565
      %v2638 = vpop.f32.mrb[0].mxu0
      %v2639 = vadd.f32 0.0, %v2638
      %v2640 = vpop.f32.mrb[0].mxu0
      %2641 = vdwg.mxu0
      %v2643 = vsel %vm909, %v2534, 0
      %v2646 = vsel %vm909, %v2536, 0
      %2648 = vmatprep.subr.mxu0 0.0
      %2649 = vmatpush1.msra.mxu0 %v1951
      %2650 = vmatprep.subr.mxu0 0.0
      %2651 = vmatpush1.msra.mxu0 %v1956
      %2652 = vmatprep.subr.mxu0 0.0
      %2653 = vmatpush1.msra.mxu0 0.0
      %2654 = vmatprep.subr.mxu0 0.0
      %2655 = vmatpush1.msra.mxu0 0.0
      %2656 = vmatprep.subr.mxu0 0.0
      %2657 = vmatpush1.msra.mxu0 0.0
      %2658 = vmatprep.subr.mxu0 0.0
      %2659 = vmatpush1.msra.mxu0 0.0
      %2660 = vmatprep.subr.mxu0 0.0
      %2661 = vmatpush1.msra.mxu0 0.0
      %2662 = vmatprep.subr.mxu0 0.0
      %2663 = vmatpush1.msra.mxu0 0.0
      %2664 = vmatprep.subr.mxu0 0.0
      %2665 = vmatpush1.msra.mxu0 0.0
      %2666 = vmatprep.subr.mxu0 0.0
      %2667 = vmatpush1.msra.mxu0 0.0
      %2668 = vmatprep.subr.mxu0 0.0
      %2669 = vmatpush1.msra.mxu0 0.0
      %2670 = vmatprep.subr.mxu0 0.0
      %2671 = vmatpush1.msra.mxu0 0.0
      %2672 = vmatprep.subr.mxu0 0.0
      %2673 = vmatpush1.msra.mxu0 0.0
      %2674 = vmatprep.subr.mxu0 0.0
      %2675 = vmatpush1.msra.mxu0 0.0
      %2676 = vmatprep.subr.mxu0 0.0
      %2677 = vmatpush1.msra.mxu0 0.0
      %2678 = vmatprep.subr.mxu0 0.0
      %2679 = vmatpush1.msra.mxu0 0.0
      %2680 = vmatprep.subr.mxu0 0.0
      %2681 = vmatpush1.msra.mxu0 0.0
      %2682 = vmatprep.subr.mxu0 0.0
      %2683 = vmatpush1.msra.mxu0 0.0
      %2684 = vmatprep.subr.mxu0 0.0
      %2685 = vmatpush1.msra.mxu0 0.0
      %2686 = vmatprep.subr.mxu0 0.0
      %2687 = vmatpush1.msra.mxu0 0.0
      %2688 = vmatprep.subr.mxu0 0.0
      %2689 = vmatpush1.msra.mxu0 0.0
      %2690 = vmatprep.subr.mxu0 0.0
      %2691 = vmatpush1.msra.mxu0 0.0
      %2692 = vmatprep.subr.mxu0 0.0
      %2693 = vmatpush1.msra.mxu0 0.0
      %2694 = vmatprep.subr.mxu0 0.0
      %2695 = vmatpush1.msra.mxu0 0.0
      %2696 = vmatprep.subr.mxu0 0.0
      %2697 = vmatpush1.msra.mxu0 0.0
      %2698 = vmatprep.subr.mxu0 0.0
      %2699 = vmatpush1.msra.mxu0 0.0
      %2700 = vmatprep.subr.mxu0 0.0
      %2701 = vmatpush1.msra.mxu0 0.0
      %2702 = vmatprep.subr.mxu0 0.0
      %2703 = vmatpush1.msra.mxu0 0.0
      %2704 = vmatprep.subr.mxu0 0.0
      %2705 = vmatpush1.msra.mxu0 0.0
      %2706 = vmatprep.subr.mxu0 0.0
      %2707 = vmatpush1.msra.mxu0 0.0
      %2708 = vmatprep.subr.mxu0 0.0
      %2709 = vmatpush1.msra.mxu0 0.0
      %2710 = vmatprep.subr.mxu0 0.0
      %2711 = vmatpush1.msra.mxu0 0.0
      %2712 = vmatprep.mubr.f32.mxu0 0.0
      %2713 = vmatmul.mubr.f32.gmra.mrb[0].mxu0 %v2643
      %v2714 = vpop.f32.mrb[0].mxu0
      %v2715 = vadd.f32 0.0, %v2714
      %v2716 = vpop.f32.mrb[0].mxu0
      %2717 = vmatprep.mubr.f32.mxu0 0.0
      %2718 = vmatmul.mubr.f32.gmra.mrb[0].mxu0 %v2646
      %v2719 = vpop.f32.mrb[0].mxu0
      %v2720 = vadd.f32 0.0, %v2719
      %v2721 = vpop.f32.mrb[0].mxu0
      %2722 = vdwg.mxu0
      %v2724 = vsel %vm909, %v2538, 0
      %v2727 = vsel %vm909, %v2540, 0
      %2729 = vmatprep.subr.mxu0 0.0
      %2730 = vmatpush1.msra.mxu0 %v1961
      %2731 = vmatprep.subr.mxu0 0.0
      %2732 = vmatpush1.msra.mxu0 %v1966
      %2733 = vmatprep.subr.mxu0 0.0
      %2734 = vmatpush1.msra.mxu0 0.0
      %2735 = vmatprep.subr.mxu0 0.0
      %2736 = vmatpush1.msra.mxu0 0.0
      %2737 = vmatprep.subr.mxu0 0.0
      %2738 = vmatpush1.msra.mxu0 0.0
      %2739 = vmatprep.subr.mxu0 0.0
      %2740 = vmatpush1.msra.mxu0 0.0
      %2741 = vmatprep.subr.mxu0 0.0
      %2742 = vmatpush1.msra.mxu0 0.0
      %2743 = vmatprep.subr.mxu0 0.0
      %2744 = vmatpush1.msra.mxu0 0.0
      %2745 = vmatprep.subr.mxu0 0.0
      %2746 = vmatpush1.msra.mxu0 0.0
      %2747 = vmatprep.subr.mxu0 0.0
      %2748 = vmatpush1.msra.mxu0 0.0
      %2749 = vmatprep.subr.mxu0 0.0
      %2750 = vmatpush1.msra.mxu0 0.0
      %2751 = vmatprep.subr.mxu0 0.0
      %2752 = vmatpush1.msra.mxu0 0.0
      %2753 = vmatprep.subr.mxu0 0.0
      %2754 = vmatpush1.msra.mxu0 0.0
      %2755 = vmatprep.subr.mxu0 0.0
      %2756 = vmatpush1.msra.mxu0 0.0
      %2757 = vmatprep.subr.mxu0 0.0
      %2758 = vmatpush1.msra.mxu0 0.0
      %2759 = vmatprep.subr.mxu0 0.0
      %2760 = vmatpush1.msra.mxu0 0.0
      %2761 = vmatprep.subr.mxu0 0.0
      %2762 = vmatpush1.msra.mxu0 0.0
      %2763 = vmatprep.subr.mxu0 0.0
      %2764 = vmatpush1.msra.mxu0 0.0
      %2765 = vmatprep.subr.mxu0 0.0
      %2766 = vmatpush1.msra.mxu0 0.0
      %2767 = vmatprep.subr.mxu0 0.0
      %2768 = vmatpush1.msra.mxu0 0.0
      %2769 = vmatprep.subr.mxu0 0.0
      %2770 = vmatpush1.msra.mxu0 0.0
      %2771 = vmatprep.subr.mxu0 0.0
      %2772 = vmatpush1.msra.mxu0 0.0
      %2773 = vmatprep.subr.mxu0 0.0
      %2774 = vmatpush1.msra.mxu0 0.0
      %2775 = vmatprep.subr.mxu0 0.0
      %2776 = vmatpush1.msra.mxu0 0.0
      %2777 = vmatprep.subr.mxu0 0.0
      %2778 = vmatpush1.msra.mxu0 0.0
      %2779 = vmatprep.subr.mxu0 0.0
      %2780 = vmatpush1.msra.mxu0 0.0
      %2781 = vmatprep.subr.mxu0 0.0
      %2782 = vmatpush1.msra.mxu0 0.0
      %2783 = vmatprep.subr.mxu0 0.0
      %2784 = vmatpush1.msra.mxu0 0.0
      %2785 = vmatprep.subr.mxu0 0.0
      %2786 = vmatpush1.msra.mxu0 0.0
      %2787 = vmatprep.subr.mxu0 0.0
      %2788 = vmatpush1.msra.mxu0 0.0
      %2789 = vmatprep.subr.mxu0 0.0
      %2790 = vmatpush1.msra.mxu0 0.0
      %2791 = vmatprep.subr.mxu0 0.0
      %2792 = vmatpush1.msra.mxu0 0.0
      %2793 = vmatprep.mubr.f32.mxu0 0.0
      %2794 = vmatmul.mubr.f32.gmra.mrb[0].mxu0 %v2724
      %v2795 = vpop.f32.mrb[0].mxu0
      %v2796 = vadd.f32 0.0, %v2795
      %v2797 = vpop.f32.mrb[0].mxu0
      %2798 = vmatprep.mubr.f32.mxu0 0.0
      %2799 = vmatmul.mubr.f32.gmra.mrb[0].mxu0 %v2727
      %v2800 = vpop.f32.mrb[0].mxu0
      %v2801 = vadd.f32 0.0, %v2800
      %v2802 = vpop.f32.mrb[0].mxu0
      %2803 = vdwg.mxu0
      %v2805 = vsel %vm909, %v2542, 0
      %v2808 = vsel %vm909, %v2544, 0
      %2810 = vmatprep.subr.mxu0 0.0
      %2811 = vmatpush1.msra.mxu0 %v1971
      %2812 = vmatprep.subr.mxu0 0.0
      %2813 = vmatpush1.msra.mxu0 %v1976
      %2814 = vmatprep.subr.mxu0 0.0
      %2815 = vmatpush1.msra.mxu0 0.0
      %2816 = vmatprep.subr.mxu0 0.0
      %2817 = vmatpush1.msra.mxu0 0.0
      %2818 = vmatprep.subr.mxu0 0.0
      %2819 = vmatpush1.msra.mxu0 0.0
      %2820 = vmatprep.subr.mxu0 0.0
      %2821 = vmatpush1.msra.mxu0 0.0
      %2822 = vmatprep.subr.mxu0 0.0
      %2823 = vmatpush1.msra.mxu0 0.0
      %2824 = vmatprep.subr.mxu0 0.0
      %2825 = vmatpush1.msra.mxu0 0.0
      %2826 = vmatprep.subr.mxu0 0.0
      %2827 = vmatpush1.msra.mxu0 0.0
      %2828 = vmatprep.subr.mxu0 0.0
      %2829 = vmatpush1.msra.mxu0 0.0
      %2830 = vmatprep.subr.mxu0 0.0
      %2831 = vmatpush1.msra.mxu0 0.0
      %2832 = vmatprep.subr.mxu0 0.0
      %2833 = vmatpush1.msra.mxu0 0.0
      %2834 = vmatprep.subr.mxu0 0.0
      %2835 = vmatpush1.msra.mxu0 0.0
      %2836 = vmatprep.subr.mxu0 0.0
      %2837 = vmatpush1.msra.mxu0 0.0
      %2838 = vmatprep.subr.mxu0 0.0
      %2839 = vmatpush1.msra.mxu0 0.0
      %2840 = vmatprep.subr.mxu0 0.0
      %2841 = vmatpush1.msra.mxu0 0.0
      %2842 = vmatprep.subr.mxu0 0.0
      %2843 = vmatpush1.msra.mxu0 0.0
      %2844 = vmatprep.subr.mxu0 0.0
      %2845 = vmatpush1.msra.mxu0 0.0
      %2846 = vmatprep.subr.mxu0 0.0
      %2847 = vmatpush1.msra.mxu0 0.0
      %2848 = vmatprep.subr.mxu0 0.0
      %2849 = vmatpush1.msra.mxu0 0.0
      %2850 = vmatprep.subr.mxu0 0.0
      %2851 = vmatpush1.msra.mxu0 0.0
      %2852 = vmatprep.subr.mxu0 0.0
      %2853 = vmatpush1.msra.mxu0 0.0
      %2854 = vmatprep.subr.mxu0 0.0
      %2855 = vmatpush1.msra.mxu0 0.0
      %2856 = vmatprep.subr.mxu0 0.0
      %2857 = vmatpush1.msra.mxu0 0.0
      %2858 = vmatprep.subr.mxu0 0.0
      %2859 = vmatpush1.msra.mxu0 0.0
      %2860 = vmatprep.subr.mxu0 0.0
      %2861 = vmatpush1.msra.mxu0 0.0
      %2862 = vmatprep.subr.mxu0 0.0
      %2863 = vmatpush1.msra.mxu0 0.0
      %2864 = vmatprep.subr.mxu0 0.0
      %2865 = vmatpush1.msra.mxu0 0.0
      %2866 = vmatprep.subr.mxu0 0.0
      %2867 = vmatpush1.msra.mxu0 0.0
      %2868 = vmatprep.subr.mxu0 0.0
      %2869 = vmatpush1.msra.mxu0 0.0
      %2870 = vmatprep.subr.mxu0 0.0
      %2871 = vmatpush1.msra.mxu0 0.0
      %2872 = vmatprep.subr.mxu0 0.0
      %2873 = vmatpush1.msra.mxu0 0.0
      %2874 = vmatprep.mubr.f32.mxu0 0.0
      %2875 = vmatmul.mubr.f32.gmra.mrb[0].mxu0 %v2805
      %v2876 = vpop.f32.mrb[0].mxu0
      %v2877 = vadd.f32 0.0, %v2876
      %v2878 = vpop.f32.mrb[0].mxu0
      %2879 = vmatprep.mubr.f32.mxu0 0.0
      %2880 = vmatmul.mubr.f32.gmra.mrb[0].mxu0 %v2808
      %v2881 = vpop.f32.mrb[0].mxu0
      %v2882 = vadd.f32 0.0, %v2881
      %v2883 = vpop.f32.mrb[0].mxu0
      %2884 = vdwg.mxu0
      %v2886 = vsel %vm909, %v2546, 0
      %v2889 = vsel %vm909, %v2548, 0
      %2891 = vmatprep.subr.mxu0 0.0
      %2892 = vmatpush1.msra.mxu0 %v1981
      %2893 = vmatprep.subr.mxu0 0.0
      %2894 = vmatpush1.msra.mxu0 %v1986
      %2895 = vmatprep.subr.mxu0 0.0
      %2896 = vmatpush1.msra.mxu0 0.0
      %2897 = vmatprep.subr.mxu0 0.0
      %2898 = vmatpush1.msra.mxu0 0.0
      %2899 = vmatprep.subr.mxu0 0.0
      %2900 = vmatpush1.msra.mxu0 0.0
      %2901 = vmatprep.subr.mxu0 0.0
      %2902 = vmatpush1.msra.mxu0 0.0
      %2903 = vmatprep.subr.mxu0 0.0
      %2904 = vmatpush1.msra.mxu0 0.0
      %2905 = vmatprep.subr.mxu0 0.0
      %2906 = vmatpush1.msra.mxu0 0.0
      %2907 = vmatprep.subr.mxu0 0.0
      %2908 = vmatpush1.msra.mxu0 0.0
      %2909 = vmatprep.subr.mxu0 0.0
      %2910 = vmatpush1.msra.mxu0 0.0
      %2911 = vmatprep.subr.mxu0 0.0
      %2912 = vmatpush1.msra.mxu0 0.0
      %2913 = vmatprep.subr.mxu0 0.0
      %2914 = vmatpush1.msra.mxu0 0.0
      %2915 = vmatprep.subr.mxu0 0.0
      %2916 = vmatpush1.msra.mxu0 0.0
      %2917 = vmatprep.subr.mxu0 0.0
      %2918 = vmatpush1.msra.mxu0 0.0
      %2919 = vmatprep.subr.mxu0 0.0
      %2920 = vmatpush1.msra.mxu0 0.0
      %2921 = vmatprep.subr.mxu0 0.0
      %2922 = vmatpush1.msra.mxu0 0.0
      %2923 = vmatprep.subr.mxu0 0.0
      %2924 = vmatpush1.msra.mxu0 0.0
      %2925 = vmatprep.subr.mxu0 0.0
      %2926 = vmatpush1.msra.mxu0 0.0
      %2927 = vmatprep.subr.mxu0 0.0
      %2928 = vmatpush1.msra.mxu0 0.0
      %2929 = vmatprep.subr.mxu0 0.0
      %2930 = vmatpush1.msra.mxu0 0.0
      %2931 = vmatprep.subr.mxu0 0.0
      %2932 = vmatpush1.msra.mxu0 0.0
      %2933 = vmatprep.subr.mxu0 0.0
      %2934 = vmatpush1.msra.mxu0 0.0
      %2935 = vmatprep.subr.mxu0 0.0
      %2936 = vmatpush1.msra.mxu0 0.0
      %2937 = vmatprep.subr.mxu0 0.0
      %2938 = vmatpush1.msra.mxu0 0.0
      %2939 = vmatprep.subr.mxu0 0.0
      %2940 = vmatpush1.msra.mxu0 0.0
      %2941 = vmatprep.subr.mxu0 0.0
      %2942 = vmatpush1.msra.mxu0 0.0
      %2943 = vmatprep.subr.mxu0 0.0
      %2944 = vmatpush1.msra.mxu0 0.0
      %2945 = vmatprep.subr.mxu0 0.0
      %2946 = vmatpush1.msra.mxu0 0.0
      %2947 = vmatprep.subr.mxu0 0.0
      %2948 = vmatpush1.msra.mxu0 0.0
      %2949 = vmatprep.subr.mxu0 0.0
      %2950 = vmatpush1.msra.mxu0 0.0
      %2951 = vmatprep.subr.mxu0 0.0
      %2952 = vmatpush1.msra.mxu0 0.0
      %2953 = vmatprep.subr.mxu0 0.0
      %2954 = vmatpush1.msra.mxu0 0.0
      %2955 = vmatprep.mubr.f32.mxu0 0.0
      %2956 = vmatmul.mubr.f32.gmra.mrb[0].mxu0 %v2886
      %v2957 = vpop.f32.mrb[0].mxu0
      %v2958 = vadd.f32 0.0, %v2957
      %v2959 = vpop.f32.mrb[0].mxu0
      %2960 = vmatprep.mubr.f32.mxu0 0.0
      %2961 = vmatmul.mubr.f32.gmra.mrb[0].mxu0 %v2889
      %v2962 = vpop.f32.mrb[0].mxu0
      %v2963 = vadd.f32 0.0, %v2962
      %v2964 = vpop.f32.mrb[0].mxu0
      %2965 = vdwg.mxu0
      %v2967 = vsel %vm909, %v2550, 0
      %v2970 = vsel %vm909, %v2552, 0
      %2972 = vmatprep.subr.mxu0 0.0
      %2973 = vmatpush1.msra.mxu0 %v1991
      %2974 = vmatprep.subr.mxu0 0.0
      %2975 = vmatpush1.msra.mxu0 %v1996
      %2976 = vmatprep.subr.mxu0 0.0
      %2977 = vmatpush1.msra.mxu0 0.0
      %2978 = vmatprep.subr.mxu0 0.0
      %2979 = vmatpush1.msra.mxu0 0.0
      %2980 = vmatprep.subr.mxu0 0.0
      %2981 = vmatpush1.msra.mxu0 0.0
      %2982 = vmatprep.subr.mxu0 0.0
      %2983 = vmatpush1.msra.mxu0 0.0
      %2984 = vmatprep.subr.mxu0 0.0
      %2985 = vmatpush1.msra.mxu0 0.0
      %2986 = vmatprep.subr.mxu0 0.0
      %2987 = vmatpush1.msra.mxu0 0.0
      %2988 = vmatprep.subr.mxu0 0.0
      %2989 = vmatpush1.msra.mxu0 0.0
      %2990 = vmatprep.subr.mxu0 0.0
      %2991 = vmatpush1.msra.mxu0 0.0
      %2992 = vmatprep.subr.mxu0 0.0
      %2993 = vmatpush1.msra.mxu0 0.0
      %2994 = vmatprep.subr.mxu0 0.0
      %2995 = vmatpush1.msra.mxu0 0.0
      %2996 = vmatprep.subr.mxu0 0.0
      %2997 = vmatpush1.msra.mxu0 0.0
      %2998 = vmatprep.subr.mxu0 0.0
      %2999 = vmatpush1.msra.mxu0 0.0
      %3000 = vmatprep.subr.mxu0 0.0
      %3001 = vmatpush1.msra.mxu0 0.0
      %3002 = vmatprep.subr.mxu0 0.0
      %3003 = vmatpush1.msra.mxu0 0.0
      %3004 = vmatprep.subr.mxu0 0.0
      %3005 = vmatpush1.msra.mxu0 0.0
      %3006 = vmatprep.subr.mxu0 0.0
      %3007 = vmatpush1.msra.mxu0 0.0
      %3008 = vmatprep.subr.mxu0 0.0
      %3009 = vmatpush1.msra.mxu0 0.0
      %3010 = vmatprep.subr.mxu0 0.0
      %3011 = vmatpush1.msra.mxu0 0.0
      %3012 = vmatprep.subr.mxu0 0.0
      %3013 = vmatpush1.msra.mxu0 0.0
      %3014 = vmatprep.subr.mxu0 0.0
      %3015 = vmatpush1.msra.mxu0 0.0
      %3016 = vmatprep.subr.mxu0 0.0
      %3017 = vmatpush1.msra.mxu0 0.0
      %3018 = vmatprep.subr.mxu0 0.0
      %3019 = vmatpush1.msra.mxu0 0.0
      %3020 = vmatprep.subr.mxu0 0.0
      %3021 = vmatpush1.msra.mxu0 0.0
      %3022 = vmatprep.subr.mxu0 0.0
      %3023 = vmatpush1.msra.mxu0 0.0
      %3024 = vmatprep.subr.mxu0 0.0
      %3025 = vmatpush1.msra.mxu0 0.0
      %3026 = vmatprep.subr.mxu0 0.0
      %3027 = vmatpush1.msra.mxu0 0.0
      %3028 = vmatprep.subr.mxu0 0.0
      %3029 = vmatpush1.msra.mxu0 0.0
      %3030 = vmatprep.subr.mxu0 0.0
      %3031 = vmatpush1.msra.mxu0 0.0
      %3032 = vmatprep.subr.mxu0 0.0
      %3033 = vmatpush1.msra.mxu0 0.0
      %3034 = vmatprep.subr.mxu0 0.0
      %3035 = vmatpush1.msra.mxu0 0.0
      %3036 = vmatprep.mubr.f32.mxu0 0.0
      %3037 = vmatmul.mubr.f32.gmra.mrb[0].mxu0 %v2967
      %v3038 = vpop.f32.mrb[0].mxu0
      %v3039 = vadd.f32 0.0, %v3038
      %v3040 = vpop.f32.mrb[0].mxu0
      %3041 = vmatprep.mubr.f32.mxu0 0.0
      %3042 = vmatmul.mubr.f32.gmra.mrb[0].mxu0 %v2970
      %v3043 = vpop.f32.mrb[0].mxu0
      %v3044 = vadd.f32 0.0, %v3043
      %v3045 = vpop.f32.mrb[0].mxu0
      %3046 = vdwg.mxu0
      %v3048 = vsel %vm909, %v2554, 0
      %v3051 = vsel %vm909, %v2556, 0
      %3053 = vmatprep.subr.mxu0 0.0
      %3054 = vmatpush1.msra.mxu0 %v2001
      %3055 = vmatprep.subr.mxu0 0.0
      %3056 = vmatpush1.msra.mxu0 %v2006
      %3057 = vmatprep.subr.mxu0 0.0
      %3058 = vmatpush1.msra.mxu0 0.0
      %3059 = vmatprep.subr.mxu0 0.0
      %3060 = vmatpush1.msra.mxu0 0.0
      %3061 = vmatprep.subr.mxu0 0.0
      %3062 = vmatpush1.msra.mxu0 0.0
      %3063 = vmatprep.subr.mxu0 0.0
      %3064 = vmatpush1.msra.mxu0 0.0
      %3065 = vmatprep.subr.mxu0 0.0
      %3066 = vmatpush1.msra.mxu0 0.0
      %3067 = vmatprep.subr.mxu0 0.0
      %3068 = vmatpush1.msra.mxu0 0.0
      %3069 = vmatprep.subr.mxu0 0.0
      %3070 = vmatpush1.msra.mxu0 0.0
      %3071 = vmatprep.subr.mxu0 0.0
      %3072 = vmatpush1.msra.mxu0 0.0
      %3073 = vmatprep.subr.mxu0 0.0
      %3074 = vmatpush1.msra.mxu0 0.0
      %3075 = vmatprep.subr.mxu0 0.0
      %3076 = vmatpush1.msra.mxu0 0.0
      %3077 = vmatprep.subr.mxu0 0.0
      %3078 = vmatpush1.msra.mxu0 0.0
      %3079 = vmatprep.subr.mxu0 0.0
      %3080 = vmatpush1.msra.mxu0 0.0
      %3081 = vmatprep.subr.mxu0 0.0
      %3082 = vmatpush1.msra.mxu0 0.0
      %3083 = vmatprep.subr.mxu0 0.0
      %3084 = vmatpush1.msra.mxu0 0.0
      %3085 = vmatprep.subr.mxu0 0.0
      %3086 = vmatpush1.msra.mxu0 0.0
      %3087 = vmatprep.subr.mxu0 0.0
      %3088 = vmatpush1.msra.mxu0 0.0
      %3089 = vmatprep.subr.mxu0 0.0
      %3090 = vmatpush1.msra.mxu0 0.0
      %3091 = vmatprep.subr.mxu0 0.0
      %3092 = vmatpush1.msra.mxu0 0.0
      %3093 = vmatprep.subr.mxu0 0.0
      %3094 = vmatpush1.msra.mxu0 0.0
      %3095 = vmatprep.subr.mxu0 0.0
      %3096 = vmatpush1.msra.mxu0 0.0
      %3097 = vmatprep.subr.mxu0 0.0
      %3098 = vmatpush1.msra.mxu0 0.0
      %3099 = vmatprep.subr.mxu0 0.0
      %3100 = vmatpush1.msra.mxu0 0.0
      %3101 = vmatprep.subr.mxu0 0.0
      %3102 = vmatpush1.msra.mxu0 0.0
      %3103 = vmatprep.subr.mxu0 0.0
      %3104 = vmatpush1.msra.mxu0 0.0
      %3105 = vmatprep.subr.mxu0 0.0
      %3106 = vmatpush1.msra.mxu0 0.0
      %3107 = vmatprep.subr.mxu0 0.0
      %3108 = vmatpush1.msra.mxu0 0.0
      %3109 = vmatprep.subr.mxu0 0.0
      %3110 = vmatpush1.msra.mxu0 0.0
      %3111 = vmatprep.subr.mxu0 0.0
      %3112 = vmatpush1.msra.mxu0 0.0
      %3113 = vmatprep.subr.mxu0 0.0
      %3114 = vmatpush1.msra.mxu0 0.0
      %3115 = vmatprep.subr.mxu0 0.0
      %3116 = vmatpush1.msra.mxu0 0.0
      %3117 = vmatprep.mubr.f32.mxu0 0.0
      %3118 = vmatmul.mubr.f32.gmra.mrb[0].mxu0 %v3048
      %v3119 = vpop.f32.mrb[0].mxu0
      %v3120 = vadd.f32 0.0, %v3119
      %v3121 = vpop.f32.mrb[0].mxu0
      %3122 = vmatprep.mubr.f32.mxu0 0.0
      %3123 = vmatmul.mubr.f32.gmra.mrb[0].mxu0 %v3051
      %v3124 = vpop.f32.mrb[0].mxu0
      %v3125 = vadd.f32 0.0, %v3124
      %v3126 = vpop.f32.mrb[0].mxu0
      %3127 = vdwg.mxu0
      %v3129 = vsel %vm909, %v2558, 0
      %v3132 = vsel %vm909, %v2560, 0
      %3134 = vmatprep.subr.mxu0 0.0
      %3135 = vmatpush1.msra.mxu0 %v2011
      %3136 = vmatprep.subr.mxu0 0.0
      %3137 = vmatpush1.msra.mxu0 %v2016
      %3138 = vmatprep.subr.mxu0 0.0
      %3139 = vmatpush1.msra.mxu0 0.0
      %3140 = vmatprep.subr.mxu0 0.0
      %3141 = vmatpush1.msra.mxu0 0.0
      %3142 = vmatprep.subr.mxu0 0.0
      %3143 = vmatpush1.msra.mxu0 0.0
      %3144 = vmatprep.subr.mxu0 0.0
      %3145 = vmatpush1.msra.mxu0 0.0
      %3146 = vmatprep.subr.mxu0 0.0
      %3147 = vmatpush1.msra.mxu0 0.0
      %3148 = vmatprep.subr.mxu0 0.0
      %3149 = vmatpush1.msra.mxu0 0.0
      %3150 = vmatprep.subr.mxu0 0.0
      %3151 = vmatpush1.msra.mxu0 0.0
      %3152 = vmatprep.subr.mxu0 0.0
      %3153 = vmatpush1.msra.mxu0 0.0
      %3154 = vmatprep.subr.mxu0 0.0
      %3155 = vmatpush1.msra.mxu0 0.0
      %3156 = vmatprep.subr.mxu0 0.0
      %3157 = vmatpush1.msra.mxu0 0.0
      %3158 = vmatprep.subr.mxu0 0.0
      %3159 = vmatpush1.msra.mxu0 0.0
      %3160 = vmatprep.subr.mxu0 0.0
      %3161 = vmatpush1.msra.mxu0 0.0
      %3162 = vmatprep.subr.mxu0 0.0
      %3163 = vmatpush1.msra.mxu0 0.0
      %3164 = vmatprep.subr.mxu0 0.0
      %3165 = vmatpush1.msra.mxu0 0.0
      %3166 = vmatprep.subr.mxu0 0.0
      %3167 = vmatpush1.msra.mxu0 0.0
      %3168 = vmatprep.subr.mxu0 0.0
      %3169 = vmatpush1.msra.mxu0 0.0
      %3170 = vmatprep.subr.mxu0 0.0
      %3171 = vmatpush1.msra.mxu0 0.0
      %3172 = vmatprep.subr.mxu0 0.0
      %3173 = vmatpush1.msra.mxu0 0.0
      %3174 = vmatprep.subr.mxu0 0.0
      %3175 = vmatpush1.msra.mxu0 0.0
      %3176 = vmatprep.subr.mxu0 0.0
      %3177 = vmatpush1.msra.mxu0 0.0
      %3178 = vmatprep.subr.mxu0 0.0
      %3179 = vmatpush1.msra.mxu0 0.0
      %3180 = vmatprep.subr.mxu0 0.0
      %3181 = vmatpush1.msra.mxu0 0.0
      %3182 = vmatprep.subr.mxu0 0.0
      %3183 = vmatpush1.msra.mxu0 0.0
      %3184 = vmatprep.subr.mxu0 0.0
      %3185 = vmatpush1.msra.mxu0 0.0
      %3186 = vmatprep.subr.mxu0 0.0
      %3187 = vmatpush1.msra.mxu0 0.0
      %3188 = vmatprep.subr.mxu0 0.0
      %3189 = vmatpush1.msra.mxu0 0.0
      %3190 = vmatprep.subr.mxu0 0.0
      %3191 = vmatpush1.msra.mxu0 0.0
      %3192 = vmatprep.subr.mxu0 0.0
      %3193 = vmatpush1.msra.mxu0 0.0
      %3194 = vmatprep.subr.mxu0 0.0
      %3195 = vmatpush1.msra.mxu0 0.0
      %3196 = vmatprep.subr.mxu0 0.0
      %3197 = vmatpush1.msra.mxu0 0.0
      %3198 = vmatprep.mubr.f32.mxu0 0.0
      %3199 = vmatmul.mubr.f32.gmra.mrb[0].mxu0 %v3129
      %v3200 = vpop.f32.mrb[0].mxu0
      %v3201 = vadd.f32 0.0, %v3200
      %v3202 = vpop.f32.mrb[0].mxu0
      %3203 = vmatprep.mubr.f32.mxu0 0.0
      %3204 = vmatmul.mubr.f32.gmra.mrb[0].mxu0 %v3132
      %v3205 = vpop.f32.mrb[0].mxu0
      %v3206 = vadd.f32 0.0, %v3205
      %v3207 = vpop.f32.mrb[0].mxu0
      %3208 = vdwg.mxu0
      %vm3209 = vcmp.gt.f32.partialorder %v2634, 0.0
      %vm3210 = vcmp.gt.f32.partialorder %v2639, 0.0
      %vm3211 = vcmp.gt.f32.partialorder %v2715, 0.0
      %vm3212 = vcmp.gt.f32.partialorder %v2720, 0.0
      %vm3213 = vcmp.gt.f32.partialorder %v2796, 0.0
      %vm3214 = vcmp.gt.f32.partialorder %v2801, 0.0
      %vm3215 = vcmp.gt.f32.partialorder %v2877, 0.0
      %vm3216 = vcmp.gt.f32.partialorder %v2882, 0.0
      %vm3217 = vcmp.gt.f32.partialorder %v2958, 0.0
      %vm3218 = vcmp.gt.f32.partialorder %v2963, 0.0
      %vm3219 = vcmp.gt.f32.partialorder %v3039, 0.0
      %vm3220 = vcmp.gt.f32.partialorder %v3044, 0.0
      %vm3221 = vcmp.gt.f32.partialorder %v3120, 0.0
      %vm3222 = vcmp.gt.f32.partialorder %v3125, 0.0
      %vm3223 = vcmp.gt.f32.partialorder %v3201, 0.0
      %vm3224 = vcmp.gt.f32.partialorder %v3206, 0.0
      %v3225 = vmul.f32 %v2634, 1.442695
      %v3226 = vpow.pop %v3225
      %v3227 = vmul.f32 %v2639, 1.442695
      %v3228 = vpow.pop %v3227
      %v3229 = vmul.f32 %v2715, 1.442695
      %v3230 = vpow.pop %v3229
      %v3231 = vmul.f32 %v2720, 1.442695
      %v3232 = vpow.pop %v3231
      %v3233 = vmul.f32 %v2796, 1.442695
      %v3234 = vpow.pop %v3233
      %v3235 = vmul.f32 %v2801, 1.442695
      %v3236 = vpow.pop %v3235
      %v3237 = vmul.f32 %v2877, 1.442695
      %v3238 = vpow.pop %v3237
      %v3239 = vmul.f32 %v2882, 1.442695
      %v3240 = vpow.pop %v3239
      %v3241 = vmul.f32 %v2958, 1.442695
      %v3242 = vpow.pop %v3241
      %v3243 = vmul.f32 %v2963, 1.442695
      %v3244 = vpow.pop %v3243
      %v3245 = vmul.f32 %v3039, 1.442695
      %v3246 = vpow.pop %v3245
      %v3247 = vmul.f32 %v3044, 1.442695
      %v3248 = vpow.pop %v3247
      %v3249 = vmul.f32 %v3120, 1.442695
      %v3250 = vpow.pop %v3249
      %v3251 = vmul.f32 %v3125, 1.442695
      %v3252 = vpow.pop %v3251
      %v3253 = vmul.f32 %v3201, 1.442695
      %v3254 = vpow.pop %v3253
      %v3255 = vmul.f32 %v3206, 1.442695
      %v3256 = vpow.pop %v3255
      %v3257 = vsub.f32 %v3226, 1.0
      %v3258 = vsub.f32 %v3228, 1.0
      %v3259 = vsub.f32 %v3230, 1.0
      %v3260 = vsub.f32 %v3232, 1.0
      %v3261 = vsub.f32 %v3234, 1.0
      %v3262 = vsub.f32 %v3236, 1.0
      %v3263 = vsub.f32 %v3238, 1.0
      %v3264 = vsub.f32 %v3240, 1.0
      %v3265 = vsub.f32 %v3242, 1.0
      %v3266 = vsub.f32 %v3244, 1.0
      %v3267 = vsub.f32 %v3246, 1.0
      %v3268 = vsub.f32 %v3248, 1.0
      %v3269 = vsub.f32 %v3250, 1.0
      %v3270 = vsub.f32 %v3252, 1.0
      %v3271 = vsub.f32 %v3254, 1.0
      %v3272 = vsub.f32 %v3256, 1.0
      %v3273 = vsel %vm3209, %v2634, %v3257
      %v3274 = vsel %vm3210, %v2639, %v3258
      %v3275 = vsel %vm3211, %v2715, %v3259
      %v3276 = vsel %vm3212, %v2720, %v3260
      %v3277 = vsel %vm3213, %v2796, %v3261
      %v3278 = vsel %vm3214, %v2801, %v3262
      %v3279 = vsel %vm3215, %v2877, %v3263
      %v3280 = vsel %vm3216, %v2882, %v3264
      %v3281 = vsel %vm3217, %v2958, %v3265
      %v3282 = vsel %vm3218, %v2963, %v3266
      %v3283 = vsel %vm3219, %v3039, %v3267
      %v3284 = vsel %vm3220, %v3044, %v3268
      %v3285 = vsel %vm3221, %v3120, %v3269
      %v3286 = vsel %vm3222, %v3125, %v3270
      %v3287 = vsel %vm3223, %v3201, %v3271
      %v3288 = vsel %vm3224, %v3206, %v3272
      %v3289 = vmax.f32 %v3273, 0.0
      %v3290 = vmax.f32 %v3274, 0.0
      %v3291 = vmax.f32 %v3275, 0.0
      %v3292 = vmax.f32 %v3276, 0.0
      %v3293 = vmax.f32 %v3277, 0.0
      %v3294 = vmax.f32 %v3278, 0.0
      %v3295 = vmax.f32 %v3279, 0.0
      %v3296 = vmax.f32 %v3280, 0.0
      %v3297 = vmax.f32 %v3281, 0.0
      %v3298 = vmax.f32 %v3282, 0.0
      %v3299 = vmax.f32 %v3283, 0.0
      %v3300 = vmax.f32 %v3284, 0.0
      %v3301 = vmax.f32 %v3285, 0.0
      %v3302 = vmax.f32 %v3286, 0.0
      %v3303 = vmax.f32 %v3287, 0.0
      %v3304 = vmax.f32 %v3288, 0.0
      %s3305 = scalar_lea.vmem %s301, 64
      %v3306 = vld [vmem:[%s3305] sm:$0xff]
      %v3307 = vld [vmem:[%s3305 + $0x8] sm:$0xff]
      %v3308 = vld [vmem:[%s3305 + $0x10] sm:$0xff]
      %v3309 = vld [vmem:[%s3305 + $0x18] sm:$0xf]
      %s3310 = scalar_lea.vmem %s306, 4
      %v3311 = vld [vmem:[%s3310] sm:$0x3]
      %s3312 = scalar_lea.vmem %s296, 16
      %v3313 = vld [vmem:[%s3312] sm:$0xff]
      %v3314 = vld [vmem:[%s3312 + $0x8] sm:$0xff]
      %v3316 = vsel %vm384, %v3309, 0
      %3318 = vmatprep.subr.mxu0 0.0
      %3319 = vmatpush1.msra.mxu0 %v3306
      %3320 = vmatprep.subr.mxu0 0.0
      %3321 = vmatpush1.msra.mxu0 %v3307
      %3322 = vmatprep.subr.mxu0 0.0
      %3323 = vmatpush1.msra.mxu0 %v3308
      %3324 = vmatprep.subr.mxu0 0.0
      %3325 = vmatpush1.msra.mxu0 %v3316
      %3326 = vmatprep.subr.mxu0 0.0
      %3327 = vmatpush1.msra.mxu0 0.0
      %3328 = vmatprep.subr.mxu0 0.0
      %3329 = vmatpush1.msra.mxu0 0.0
      %3330 = vmatprep.subr.mxu0 0.0
      %3331 = vmatpush1.msra.mxu0 0.0
      %3332 = vmatprep.subr.mxu0 0.0
      %3333 = vmatpush1.msra.mxu0 0.0
      %3334 = vmatprep.subr.mxu0 0.0
      %3335 = vmatpush1.msra.mxu0 0.0
      %3336 = vmatprep.subr.mxu0 0.0
      %3337 = vmatpush1.msra.mxu0 0.0
      %3338 = vmatprep.subr.mxu0 0.0
      %3339 = vmatpush1.msra.mxu0 0.0
      %3340 = vmatprep.subr.mxu0 0.0
      %3341 = vmatpush1.msra.mxu0 0.0
      %3342 = vmatprep.subr.mxu0 0.0
      %3343 = vmatpush1.msra.mxu0 0.0
      %3344 = vmatprep.subr.mxu0 0.0
      %3345 = vmatpush1.msra.mxu0 0.0
      %3346 = vmatprep.subr.mxu0 0.0
      %3347 = vmatpush1.msra.mxu0 0.0
      %3348 = vmatprep.subr.mxu0 0.0
      %3349 = vmatpush1.msra.mxu0 0.0
      %3350 = vmatprep.subr.mxu0 0.0
      %3351 = vmatpush1.msra.mxu0 0.0
      %3352 = vmatprep.subr.mxu0 0.0
      %3353 = vmatpush1.msra.mxu0 0.0
      %3354 = vmatprep.subr.mxu0 0.0
      %3355 = vmatpush1.msra.mxu0 0.0
      %3356 = vmatprep.subr.mxu0 0.0
      %3357 = vmatpush1.msra.mxu0 0.0
      %3358 = vmatprep.subr.mxu0 0.0
      %3359 = vmatpush1.msra.mxu0 0.0
      %3360 = vmatprep.subr.mxu0 0.0
      %3361 = vmatpush1.msra.mxu0 0.0
      %3362 = vmatprep.subr.mxu0 0.0
      %3363 = vmatpush1.msra.mxu0 0.0
      %3364 = vmatprep.subr.mxu0 0.0
      %3365 = vmatpush1.msra.mxu0 0.0
      %3366 = vmatprep.subr.mxu0 0.0
      %3367 = vmatpush1.msra.mxu0 0.0
      %3368 = vmatprep.subr.mxu0 0.0
      %3369 = vmatpush1.msra.mxu0 0.0
      %3370 = vmatprep.subr.mxu0 0.0
      %3371 = vmatpush1.msra.mxu0 0.0
      %3372 = vmatprep.subr.mxu0 0.0
      %3373 = vmatpush1.msra.mxu0 0.0
      %3374 = vmatprep.subr.mxu0 0.0
      %3375 = vmatpush1.msra.mxu0 0.0
      %3376 = vmatprep.subr.mxu0 0.0
      %3377 = vmatpush1.msra.mxu0 0.0
      %3378 = vmatprep.subr.mxu0 0.0
      %3379 = vmatpush1.msra.mxu0 0.0
      %3380 = vmatprep.subr.mxu0 0.0
      %3381 = vmatpush1.msra.mxu0 0.0
      %3382 = vmatprep.mubr.f32.mxu0 0.0
      %3383 = vmatmul.mubr.f32.gmra.mrb[0].mxu0 %v337
      %v3384 = vpop.f32.mrb[0].mxu0
      %v3385 = vadd.f32 0.0, %v3384
      %v3386 = vpop.f32.mrb[0].mxu0
      %3387 = vmatprep.mubr.f32.mxu0 0.0
      %3388 = vmatmul.mubr.f32.gmra.mrb[0].mxu0 %v340
      %v3389 = vpop.f32.mrb[0].mxu0
      %v3390 = vadd.f32 0.0, %v3389
      %v3391 = vpop.f32.mrb[0].mxu0
      %3392 = vmatprep.mubr.f32.mxu0 0.0
      %3393 = vmatmul.mubr.f32.gmra.mrb[0].mxu0 %v343
      %v3394 = vpop.f32.mrb[0].mxu0
      %v3395 = vadd.f32 0.0, %v3394
      %v3396 = vpop.f32.mrb[0].mxu0
      %3397 = vmatprep.mubr.f32.mxu0 0.0
      %3398 = vmatmul.mubr.f32.gmra.mrb[0].mxu0 %v346
      %v3399 = vpop.f32.mrb[0].mxu0
      %v3400 = vadd.f32 0.0, %v3399
      %v3401 = vpop.f32.mrb[0].mxu0
      %3402 = vmatprep.mubr.f32.mxu0 0.0
      %3403 = vmatmul.mubr.f32.gmra.mrb[0].mxu0 %v349
      %v3404 = vpop.f32.mrb[0].mxu0
      %v3405 = vadd.f32 0.0, %v3404
      %v3406 = vpop.f32.mrb[0].mxu0
      %3407 = vmatprep.mubr.f32.mxu0 0.0
      %3408 = vmatmul.mubr.f32.gmra.mrb[0].mxu0 %v352
      %v3409 = vpop.f32.mrb[0].mxu0
      %v3410 = vadd.f32 0.0, %v3409
      %v3411 = vpop.f32.mrb[0].mxu0
      %3412 = vmatprep.mubr.f32.mxu0 0.0
      %3413 = vmatmul.mubr.f32.gmra.mrb[0].mxu0 %v355
      %v3414 = vpop.f32.mrb[0].mxu0
      %v3415 = vadd.f32 0.0, %v3414
      %v3416 = vpop.f32.mrb[0].mxu0
      %3417 = vmatprep.mubr.f32.mxu0 0.0
      %3418 = vmatmul.mubr.f32.gmra.mrb[0].mxu0 %v358
      %v3419 = vpop.f32.mrb[0].mxu0
      %v3420 = vadd.f32 0.0, %v3419
      %v3421 = vpop.f32.mrb[0].mxu0
      %3422 = vmatprep.mubr.f32.mxu0 0.0
      %3423 = vmatmul.mubr.f32.gmra.mrb[0].mxu0 %v361
      %v3424 = vpop.f32.mrb[0].mxu0
      %v3425 = vadd.f32 0.0, %v3424
      %v3426 = vpop.f32.mrb[0].mxu0
      %3427 = vmatprep.mubr.f32.mxu0 0.0
      %3428 = vmatmul.mubr.f32.gmra.mrb[0].mxu0 %v364
      %v3429 = vpop.f32.mrb[0].mxu0
      %v3430 = vadd.f32 0.0, %v3429
      %v3431 = vpop.f32.mrb[0].mxu0
      %3432 = vmatprep.mubr.f32.mxu0 0.0
      %3433 = vmatmul.mubr.f32.gmra.mrb[0].mxu0 %v367
      %v3434 = vpop.f32.mrb[0].mxu0
      %v3435 = vadd.f32 0.0, %v3434
      %v3436 = vpop.f32.mrb[0].mxu0
      %3437 = vmatprep.mubr.f32.mxu0 0.0
      %3438 = vmatmul.mubr.f32.gmra.mrb[0].mxu0 %v370
      %v3439 = vpop.f32.mrb[0].mxu0
      %v3440 = vadd.f32 0.0, %v3439
      %v3441 = vpop.f32.mrb[0].mxu0
      %3442 = vmatprep.mubr.f32.mxu0 0.0
      %3443 = vmatmul.mubr.f32.gmra.mrb[0].mxu0 %v373
      %v3444 = vpop.f32.mrb[0].mxu0
      %v3445 = vadd.f32 0.0, %v3444
      %v3446 = vpop.f32.mrb[0].mxu0
      %3447 = vmatprep.mubr.f32.mxu0 0.0
      %3448 = vmatmul.mubr.f32.gmra.mrb[0].mxu0 %v376
      %v3449 = vpop.f32.mrb[0].mxu0
      %v3450 = vadd.f32 0.0, %v3449
      %v3451 = vpop.f32.mrb[0].mxu0
      %3452 = vmatprep.mubr.f32.mxu0 0.0
      %3453 = vmatmul.mubr.f32.gmra.mrb[0].mxu0 %v379
      %v3454 = vpop.f32.mrb[0].mxu0
      %v3455 = vadd.f32 0.0, %v3454
      %v3456 = vpop.f32.mrb[0].mxu0
      %3457 = vmatprep.mubr.f32.mxu0 0.0
      %3458 = vmatmul.mubr.f32.gmra.mrb[0].mxu0 %v382
      %v3459 = vpop.f32.mrb[0].mxu0
      %v3460 = vadd.f32 0.0, %v3459
      %v3461 = vpop.f32.mrb[0].mxu0
      %3462 = vdwg.mxu0
      %v3463 = vlaneseq
      %v3464 = vshrl.u32 %v3463, 7
      %v3465 = vsub.s32 0, %v3464
      %v3466 = vrot.slane %v3311, %v3465
      %v3467 = vmul.f32 %v3385, %v3466
      %v3468 = vmul.f32 %v3390, %v3466
      %v3469 = vmul.f32 %v3395, %v3466
      %v3470 = vmul.f32 %v3400, %v3466
      %v3471 = vmul.f32 %v3405, %v3466
      %v3472 = vmul.f32 %v3410, %v3466
      %v3473 = vmul.f32 %v3415, %v3466
      %v3474 = vmul.f32 %v3420, %v3466
      %v3475 = vmul.f32 %v3425, %v3466
      %v3476 = vmul.f32 %v3430, %v3466
      %v3477 = vmul.f32 %v3435, %v3466
      %v3478 = vmul.f32 %v3440, %v3466
      %v3479 = vmul.f32 %v3445, %v3466
      %v3480 = vmul.f32 %v3450, %v3466
      %v3481 = vmul.f32 %v3455, %v3466
      %v3482 = vmul.f32 %v3460, %v3466
      %v3483 = vsel %vm335, %v3467, 0.0
      %3484 = vadd.xlane.f32.xlu0 %v3483
      %v3485 = vpop.xlane.xlu0 %3484
      %v3486 = vsel %vm335, %v3468, 0.0
      %3487 = vadd.xlane.f32.xlu0 %v3486
      %v3488 = vpop.xlane.xlu0 %3487
      %v3489 = vsel %vm335, %v3469, 0.0
      %3490 = vadd.xlane.f32.xlu0 %v3489
      %v3491 = vpop.xlane.xlu0 %3490
      %v3492 = vsel %vm335, %v3470, 0.0
      %3493 = vadd.xlane.f32.xlu0 %v3492
      %v3494 = vpop.xlane.xlu0 %3493
      %v3495 = vsel %vm335, %v3471, 0.0
      %3496 = vadd.xlane.f32.xlu0 %v3495
      %v3497 = vpop.xlane.xlu0 %3496
      %v3498 = vsel %vm335, %v3472, 0.0
      %3499 = vadd.xlane.f32.xlu0 %v3498
      %v3500 = vpop.xlane.xlu0 %3499
      %v3501 = vsel %vm335, %v3473, 0.0
      %3502 = vadd.xlane.f32.xlu0 %v3501
      %v3503 = vpop.xlane.xlu0 %3502
      %v3504 = vsel %vm335, %v3474, 0.0
      %3505 = vadd.xlane.f32.xlu0 %v3504
      %v3506 = vpop.xlane.xlu0 %3505
      %v3507 = vsel %vm335, %v3475, 0.0
      %3508 = vadd.xlane.f32.xlu0 %v3507
      %v3509 = vpop.xlane.xlu0 %3508
      %v3510 = vsel %vm335, %v3476, 0.0
      %3511 = vadd.xlane.f32.xlu0 %v3510
      %v3512 = vpop.xlane.xlu0 %3511
      %v3513 = vsel %vm335, %v3477, 0.0
      %3514 = vadd.xlane.f32.xlu0 %v3513
      %v3515 = vpop.xlane.xlu0 %3514
      %v3516 = vsel %vm335, %v3478, 0.0
      %3517 = vadd.xlane.f32.xlu0 %v3516
      %v3518 = vpop.xlane.xlu0 %3517
      %v3519 = vsel %vm335, %v3479, 0.0
      %3520 = vadd.xlane.f32.xlu0 %v3519
      %v3521 = vpop.xlane.xlu0 %3520
      %v3522 = vsel %vm335, %v3480, 0.0
      %3523 = vadd.xlane.f32.xlu0 %v3522
      %v3524 = vpop.xlane.xlu0 %3523
      %v3525 = vsel %vm335, %v3481, 0.0
      %3526 = vadd.xlane.f32.xlu0 %v3525
      %v3527 = vpop.xlane.xlu0 %3526
      %v3528 = vsel %vm335, %v3482, 0.0
      %3529 = vadd.xlane.f32.xlu0 %v3528
      %v3530 = vpop.xlane.xlu0 %3529
      %v3531 = vlaneseq
      %v3532 = vshrl.u32 %v3531, 7
      %v3533 = vsub.s32 1, %v3532
      %v3534 = vrot.slane %v3311, %v3533
      %v3535 = vmul.f32 %v3385, %v3534
      %v3536 = vmul.f32 %v3390, %v3534
      %v3537 = vmul.f32 %v3395, %v3534
      %v3538 = vmul.f32 %v3400, %v3534
      %v3539 = vmul.f32 %v3405, %v3534
      %v3540 = vmul.f32 %v3410, %v3534
      %v3541 = vmul.f32 %v3415, %v3534
      %v3542 = vmul.f32 %v3420, %v3534
      %v3543 = vmul.f32 %v3425, %v3534
      %v3544 = vmul.f32 %v3430, %v3534
      %v3545 = vmul.f32 %v3435, %v3534
      %v3546 = vmul.f32 %v3440, %v3534
      %v3547 = vmul.f32 %v3445, %v3534
      %v3548 = vmul.f32 %v3450, %v3534
      %v3549 = vmul.f32 %v3455, %v3534
      %v3550 = vmul.f32 %v3460, %v3534
      %v3551 = vsel %vm335, %v3535, 0.0
      %3552 = vadd.xlane.f32.xlu0 %v3551
      %v3553 = vpop.xlane.xlu0 %3552
      %v3554 = vsel %vm335, %v3536, 0.0
      %3555 = vadd.xlane.f32.xlu0 %v3554
      %v3556 = vpop.xlane.xlu0 %3555
      %v3557 = vsel %vm335, %v3537, 0.0
      %3558 = vadd.xlane.f32.xlu0 %v3557
      %v3559 = vpop.xlane.xlu0 %3558
      %v3560 = vsel %vm335, %v3538, 0.0
      %3561 = vadd.xlane.f32.xlu0 %v3560
      %v3562 = vpop.xlane.xlu0 %3561
      %v3563 = vsel %vm335, %v3539, 0.0
      %3564 = vadd.xlane.f32.xlu0 %v3563
      %v3565 = vpop.xlane.xlu0 %3564
      %v3566 = vsel %vm335, %v3540, 0.0
      %3567 = vadd.xlane.f32.xlu0 %v3566
      %v3568 = vpop.xlane.xlu0 %3567
      %v3569 = vsel %vm335, %v3541, 0.0
      %3570 = vadd.xlane.f32.xlu0 %v3569
      %v3571 = vpop.xlane.xlu0 %3570
      %v3572 = vsel %vm335, %v3542, 0.0
      %3573 = vadd.xlane.f32.xlu0 %v3572
      %v3574 = vpop.xlane.xlu0 %3573
      %v3575 = vsel %vm335, %v3543, 0.0
      %3576 = vadd.xlane.f32.xlu0 %v3575
      %v3577 = vpop.xlane.xlu0 %3576
      %v3578 = vsel %vm335, %v3544, 0.0
      %3579 = vadd.xlane.f32.xlu0 %v3578
      %v3580 = vpop.xlane.xlu0 %3579
      %v3581 = vsel %vm335, %v3545, 0.0
      %3582 = vadd.xlane.f32.xlu0 %v3581
      %v3583 = vpop.xlane.xlu0 %3582
      %v3584 = vsel %vm335, %v3546, 0.0
      %3585 = vadd.xlane.f32.xlu0 %v3584
      %v3586 = vpop.xlane.xlu0 %3585
      %v3587 = vsel %vm335, %v3547, 0.0
      %3588 = vadd.xlane.f32.xlu0 %v3587
      %v3589 = vpop.xlane.xlu0 %3588
      %v3590 = vsel %vm335, %v3548, 0.0
      %3591 = vadd.xlane.f32.xlu0 %v3590
      %v3592 = vpop.xlane.xlu0 %3591
      %v3593 = vsel %vm335, %v3549, 0.0
      %3594 = vadd.xlane.f32.xlu0 %v3593
      %v3595 = vpop.xlane.xlu0 %3594
      %v3596 = vsel %vm335, %v3550, 0.0
      %3597 = vadd.xlane.f32.xlu0 %v3596
      %v3598 = vpop.xlane.xlu0 %3597
      %v3615 = vlaneseq
      %v3616 = vshrl.u32 %v3615, 7
      %v3617 = vsub.s32 %v686, %v3616
      %v3618 = vrot.slane %v3553, %v3617
      %v3619 = vlaneseq
      %v3620 = vshrl.u32 %v3619, 7
      %v3621 = vsub.s32 %v691, %v3620
      %v3622 = vrot.slane %v3556, %v3621
      %v3623 = vsel %vm696, %v3622, %v3618
      %v3624 = vlaneseq
      %v3625 = vshrl.u32 %v3624, 7
      %v3626 = vsub.s32 %v686, %v3625
      %v3627 = vrot.slane %v3559, %v3626
      %v3628 = vlaneseq
      %v3629 = vshrl.u32 %v3628, 7
      %v3630 = vsub.s32 %v691, %v3629
      %v3631 = vrot.slane %v3562, %v3630
      %v3632 = vsel %vm696, %v3631, %v3627
      %v3633 = vlaneseq
      %v3634 = vshrl.u32 %v3633, 7
      %v3635 = vsub.s32 %v686, %v3634
      %v3636 = vrot.slane %v3565, %v3635
      %v3637 = vlaneseq
      %v3638 = vshrl.u32 %v3637, 7
      %v3639 = vsub.s32 %v691, %v3638
      %v3640 = vrot.slane %v3568, %v3639
      %v3641 = vsel %vm696, %v3640, %v3636
      %v3642 = vlaneseq
      %v3643 = vshrl.u32 %v3642, 7
      %v3644 = vsub.s32 %v686, %v3643
      %v3645 = vrot.slane %v3571, %v3644
      %v3646 = vlaneseq
      %v3647 = vshrl.u32 %v3646, 7
      %v3648 = vsub.s32 %v691, %v3647
      %v3649 = vrot.slane %v3574, %v3648
      %v3650 = vsel %vm696, %v3649, %v3645
      %v3651 = vlaneseq
      %v3652 = vshrl.u32 %v3651, 7
      %v3653 = vsub.s32 %v686, %v3652
      %v3654 = vrot.slane %v3577, %v3653
      %v3655 = vlaneseq
      %v3656 = vshrl.u32 %v3655, 7
      %v3657 = vsub.s32 %v691, %v3656
      %v3658 = vrot.slane %v3580, %v3657
      %v3659 = vsel %vm696, %v3658, %v3654
      %v3660 = vlaneseq
      %v3661 = vshrl.u32 %v3660, 7
      %v3662 = vsub.s32 %v686, %v3661
      %v3663 = vrot.slane %v3583, %v3662
      %v3664 = vlaneseq
      %v3665 = vshrl.u32 %v3664, 7
      %v3666 = vsub.s32 %v691, %v3665
      %v3667 = vrot.slane %v3586, %v3666
      %v3668 = vsel %vm696, %v3667, %v3663
      %v3669 = vlaneseq
      %v3670 = vshrl.u32 %v3669, 7
      %v3671 = vsub.s32 %v686, %v3670
      %v3672 = vrot.slane %v3589, %v3671
      %v3673 = vlaneseq
      %v3674 = vshrl.u32 %v3673, 7
      %v3675 = vsub.s32 %v691, %v3674
      %v3676 = vrot.slane %v3592, %v3675
      %v3677 = vsel %vm696, %v3676, %v3672
      %v3678 = vlaneseq
      %v3679 = vshrl.u32 %v3678, 7
      %v3680 = vsub.s32 %v686, %v3679
      %v3681 = vrot.slane %v3595, %v3680
      %v3682 = vlaneseq
      %v3683 = vshrl.u32 %v3682, 7
      %v3684 = vsub.s32 %v691, %v3683
      %v3685 = vrot.slane %v3598, %v3684
      %v3686 = vsel %vm696, %v3685, %v3681
      %v3687 = vsel %vm761, %v3623, %v3623
      %v3688 = vsel %vm763, %v3623, %v3687
      %v3689 = vsel %vm765, %v3623, %v3688
      %v3690 = vsel %vm767, %v3623, %v3689
      %v3691 = vsel %vm769, %v3623, %v3690
      %v3692 = vsel %vm771, %v3623, %v3691
      %v3693 = vsel %vm761, %v3632, %v3632
      %v3694 = vsel %vm763, %v3632, %v3693
      %v3695 = vsel %vm765, %v3632, %v3694
      %v3696 = vsel %vm767, %v3632, %v3695
      %v3697 = vsel %vm769, %v3632, %v3696
      %v3698 = vsel %vm771, %v3632, %v3697
      %v3699 = vsel %vm761, %v3641, %v3641
      %v3700 = vsel %vm763, %v3641, %v3699
      %v3701 = vsel %vm765, %v3641, %v3700
      %v3702 = vsel %vm767, %v3641, %v3701
      %v3703 = vsel %vm769, %v3641, %v3702
      %v3704 = vsel %vm771, %v3641, %v3703
      %v3705 = vsel %vm761, %v3650, %v3650
      %v3706 = vsel %vm763, %v3650, %v3705
      %v3707 = vsel %vm765, %v3650, %v3706
      %v3708 = vsel %vm767, %v3650, %v3707
      %v3709 = vsel %vm769, %v3650, %v3708
      %v3710 = vsel %vm771, %v3650, %v3709
      %v3711 = vsel %vm761, %v3659, %v3659
      %v3712 = vsel %vm763, %v3659, %v3711
      %v3713 = vsel %vm765, %v3659, %v3712
      %v3714 = vsel %vm767, %v3659, %v3713
      %v3715 = vsel %vm769, %v3659, %v3714
      %v3716 = vsel %vm771, %v3659, %v3715
      %v3717 = vsel %vm761, %v3668, %v3668
      %v3718 = vsel %vm763, %v3668, %v3717
      %v3719 = vsel %vm765, %v3668, %v3718
      %v3720 = vsel %vm767, %v3668, %v3719
      %v3721 = vsel %vm769, %v3668, %v3720
      %v3722 = vsel %vm771, %v3668, %v3721
      %v3723 = vsel %vm761, %v3677, %v3677
      %v3724 = vsel %vm763, %v3677, %v3723
      %v3725 = vsel %vm765, %v3677, %v3724
      %v3726 = vsel %vm767, %v3677, %v3725
      %v3727 = vsel %vm769, %v3677, %v3726
      %v3728 = vsel %vm771, %v3677, %v3727
      %v3729 = vsel %vm761, %v3686, %v3686
      %v3730 = vsel %vm763, %v3686, %v3729
      %v3731 = vsel %vm765, %v3686, %v3730
      %v3732 = vsel %vm767, %v3686, %v3731
      %v3733 = vsel %vm769, %v3686, %v3732
      %v3734 = vsel %vm771, %v3686, %v3733
      %v3743 = vadd.f32 %v3485, %v3692
      %v3744 = vadd.f32 %v3488, %v3692
      %v3745 = vadd.f32 %v3491, %v3698
      %v3746 = vadd.f32 %v3494, %v3698
      %v3747 = vadd.f32 %v3497, %v3704
      %v3748 = vadd.f32 %v3500, %v3704
      %v3749 = vadd.f32 %v3503, %v3710
      %v3750 = vadd.f32 %v3506, %v3710
      %v3751 = vadd.f32 %v3509, %v3716
      %v3752 = vadd.f32 %v3512, %v3716
      %v3753 = vadd.f32 %v3515, %v3722
      %v3754 = vadd.f32 %v3518, %v3722
      %v3755 = vadd.f32 %v3521, %v3728
      %v3756 = vadd.f32 %v3524, %v3728
      %v3757 = vadd.f32 %v3527, %v3734
      %v3758 = vadd.f32 %v3530, %v3734
      %vm3759 = vcmp.gt.f32.partialorder %v3743, 0.0
      %vm3760 = vcmp.gt.f32.partialorder %v3744, 0.0
      %vm3761 = vcmp.gt.f32.partialorder %v3745, 0.0
      %vm3762 = vcmp.gt.f32.partialorder %v3746, 0.0
      %vm3763 = vcmp.gt.f32.partialorder %v3747, 0.0
      %vm3764 = vcmp.gt.f32.partialorder %v3748, 0.0
      %vm3765 = vcmp.gt.f32.partialorder %v3749, 0.0
      %vm3766 = vcmp.gt.f32.partialorder %v3750, 0.0
      %vm3767 = vcmp.gt.f32.partialorder %v3751, 0.0
      %vm3768 = vcmp.gt.f32.partialorder %v3752, 0.0
      %vm3769 = vcmp.gt.f32.partialorder %v3753, 0.0
      %vm3770 = vcmp.gt.f32.partialorder %v3754, 0.0
      %vm3771 = vcmp.gt.f32.partialorder %v3755, 0.0
      %vm3772 = vcmp.gt.f32.partialorder %v3756, 0.0
      %vm3773 = vcmp.gt.f32.partialorder %v3757, 0.0
      %vm3774 = vcmp.gt.f32.partialorder %v3758, 0.0
      %v3775 = vmul.f32 %v3743, 0.2
      %v3776 = vmul.f32 %v3744, 0.2
      %v3777 = vmul.f32 %v3745, 0.2
      %v3778 = vmul.f32 %v3746, 0.2
      %v3779 = vmul.f32 %v3747, 0.2
      %v3780 = vmul.f32 %v3748, 0.2
      %v3781 = vmul.f32 %v3749, 0.2
      %v3782 = vmul.f32 %v3750, 0.2
      %v3783 = vmul.f32 %v3751, 0.2
      %v3784 = vmul.f32 %v3752, 0.2
      %v3785 = vmul.f32 %v3753, 0.2
      %v3786 = vmul.f32 %v3754, 0.2
      %v3787 = vmul.f32 %v3755, 0.2
      %v3788 = vmul.f32 %v3756, 0.2
      %v3789 = vmul.f32 %v3757, 0.2
      %v3790 = vmul.f32 %v3758, 0.2
      %v3791 = vsel %vm3759, %v3743, %v3775
      %v3792 = vsel %vm3760, %v3744, %v3776
      %v3793 = vsel %vm3761, %v3745, %v3777
      %v3794 = vsel %vm3762, %v3746, %v3778
      %v3795 = vsel %vm3763, %v3747, %v3779
      %v3796 = vsel %vm3764, %v3748, %v3780
      %v3797 = vsel %vm3765, %v3749, %v3781
      %v3798 = vsel %vm3766, %v3750, %v3782
      %v3799 = vsel %vm3767, %v3751, %v3783
      %v3800 = vsel %vm3768, %v3752, %v3784
      %v3801 = vsel %vm3769, %v3753, %v3785
      %v3802 = vsel %vm3770, %v3754, %v3786
      %v3803 = vsel %vm3771, %v3755, %v3787
      %v3804 = vsel %vm3772, %v3756, %v3788
      %v3805 = vsel %vm3773, %v3757, %v3789
      %v3806 = vsel %vm3774, %v3758, %v3790
      %vm3807 = vcmp.gt.f32.partialorder %v3313, 0.0
      %vm3808 = vcmp.gt.f32.partialorder %v3314, 0.0
      %v3809 = vsel %vm3807, 1, 0
      %v3810 = vsel %vm3808, 1, 0
      %vm3811 = vcmp.eq.s32.totalorder %v3809, 1
      %vm3812 = vcmp.eq.s32.totalorder %v3810, 1
      %v3813 = vsel %vm3811, %v3791, -9e+15
      %v3814 = vsel %vm3812, %v3792, -9e+15
      %v3815 = vsel %vm3811, %v3793, -9e+15
      %v3816 = vsel %vm3812, %v3794, -9e+15
      %v3817 = vsel %vm3811, %v3795, -9e+15
      %v3818 = vsel %vm3812, %v3796, -9e+15
      %v3819 = vsel %vm3811, %v3797, -9e+15
      %v3820 = vsel %vm3812, %v3798, -9e+15
      %v3821 = vsel %vm3811, %v3799, -9e+15
      %v3822 = vsel %vm3812, %v3800, -9e+15
      %v3823 = vsel %vm3811, %v3801, -9e+15
      %v3824 = vsel %vm3812, %v3802, -9e+15
      %v3825 = vsel %vm3811, %v3803, -9e+15
      %v3826 = vsel %vm3812, %v3804, -9e+15
      %v3827 = vsel %vm3811, %v3805, -9e+15
      %v3828 = vsel %vm3812, %v3806, -9e+15
      %v3829 = vsel %vm909, %v3813, -inf
      %3830 = vmax.xlane.f32.xlu0 %v3829
      %v3831 = vpop.xlane.xlu0 %3830
      %v3832 = vsel %vm909, %v3814, -inf
      %3833 = vmax.xlane.f32.xlu0 %v3832
      %v3834 = vpop.xlane.xlu0 %3833
      %v3835 = vsel %vm909, %v3815, -inf
      %3836 = vmax.xlane.f32.xlu0 %v3835
      %v3837 = vpop.xlane.xlu0 %3836
      %v3838 = vsel %vm909, %v3816, -inf
      %3839 = vmax.xlane.f32.xlu0 %v3838
      %v3840 = vpop.xlane.xlu0 %3839
      %v3841 = vsel %vm909, %v3817, -inf
      %3842 = vmax.xlane.f32.xlu0 %v3841
      %v3843 = vpop.xlane.xlu0 %3842
      %v3844 = vsel %vm909, %v3818, -inf
      %3845 = vmax.xlane.f32.xlu0 %v3844
      %v3846 = vpop.xlane.xlu0 %3845
      %v3847 = vsel %vm909, %v3819, -inf
      %3848 = vmax.xlane.f32.xlu0 %v3847
      %v3849 = vpop.xlane.xlu0 %3848
      %v3850 = vsel %vm909, %v3820, -inf
      %3851 = vmax.xlane.f32.xlu0 %v3850
      %v3852 = vpop.xlane.xlu0 %3851
      %v3853 = vsel %vm909, %v3821, -inf
      %3854 = vmax.xlane.f32.xlu0 %v3853
      %v3855 = vpop.xlane.xlu0 %3854
      %v3856 = vsel %vm909, %v3822, -inf
      %3857 = vmax.xlane.f32.xlu0 %v3856
      %v3858 = vpop.xlane.xlu0 %3857
      %v3859 = vsel %vm909, %v3823, -inf
      %3860 = vmax.xlane.f32.xlu0 %v3859
      %v3861 = vpop.xlane.xlu0 %3860
      %v3862 = vsel %vm909, %v3824, -inf
      %3863 = vmax.xlane.f32.xlu0 %v3862
      %v3864 = vpop.xlane.xlu0 %3863
      %v3865 = vsel %vm909, %v3825, -inf
      %3866 = vmax.xlane.f32.xlu0 %v3865
      %v3867 = vpop.xlane.xlu0 %3866
      %v3868 = vsel %vm909, %v3826, -inf
      %3869 = vmax.xlane.f32.xlu0 %v3868
      %v3870 = vpop.xlane.xlu0 %3869
      %v3871 = vsel %vm909, %v3827, -inf
      %3872 = vmax.xlane.f32.xlu0 %v3871
      %v3873 = vpop.xlane.xlu0 %3872
      %v3874 = vsel %vm909, %v3828, -inf
      %3875 = vmax.xlane.f32.xlu0 %v3874
      %v3876 = vpop.xlane.xlu0 %3875
      %v3877 = vsub.f32 %v3813, %v3831
      %v3878 = vsub.f32 %v3814, %v3834
      %v3879 = vsub.f32 %v3815, %v3837
      %v3880 = vsub.f32 %v3816, %v3840
      %v3881 = vsub.f32 %v3817, %v3843
      %v3882 = vsub.f32 %v3818, %v3846
      %v3883 = vsub.f32 %v3819, %v3849
      %v3884 = vsub.f32 %v3820, %v3852
      %v3885 = vsub.f32 %v3821, %v3855
      %v3886 = vsub.f32 %v3822, %v3858
      %v3887 = vsub.f32 %v3823, %v3861
      %v3888 = vsub.f32 %v3824, %v3864
      %v3889 = vsub.f32 %v3825, %v3867
      %v3890 = vsub.f32 %v3826, %v3870
      %v3891 = vsub.f32 %v3827, %v3873
      %v3892 = vsub.f32 %v3828, %v3876
      %v3893 = vmul.f32 %v3877, 1.442695
      %v3894 = vpow.pop %v3893
      %v3895 = vmul.f32 %v3878, 1.442695
      %v3896 = vpow.pop %v3895
      %v3897 = vmul.f32 %v3879, 1.442695
      %v3898 = vpow.pop %v3897
      %v3899 = vmul.f32 %v3880, 1.442695
      %v3900 = vpow.pop %v3899
      %v3901 = vmul.f32 %v3881, 1.442695
      %v3902 = vpow.pop %v3901
      %v3903 = vmul.f32 %v3882, 1.442695
      %v3904 = vpow.pop %v3903
      %v3905 = vmul.f32 %v3883, 1.442695
      %v3906 = vpow.pop %v3905
      %v3907 = vmul.f32 %v3884, 1.442695
      %v3908 = vpow.pop %v3907
      %v3909 = vmul.f32 %v3885, 1.442695
      %v3910 = vpow.pop %v3909
      %v3911 = vmul.f32 %v3886, 1.442695
      %v3912 = vpow.pop %v3911
      %v3913 = vmul.f32 %v3887, 1.442695
      %v3914 = vpow.pop %v3913
      %v3915 = vmul.f32 %v3888, 1.442695
      %v3916 = vpow.pop %v3915
      %v3917 = vmul.f32 %v3889, 1.442695
      %v3918 = vpow.pop %v3917
      %v3919 = vmul.f32 %v3890, 1.442695
      %v3920 = vpow.pop %v3919
      %v3921 = vmul.f32 %v3891, 1.442695
      %v3922 = vpow.pop %v3921
      %v3923 = vmul.f32 %v3892, 1.442695
      %v3924 = vpow.pop %v3923
      %v3925 = vsel %vm909, %v3894, 0.0
      %3926 = vadd.xlane.f32.xlu0 %v3925
      %v3927 = vpop.xlane.xlu0 %3926
      %v3928 = vsel %vm909, %v3896, 0.0
      %3929 = vadd.xlane.f32.xlu0 %v3928
      %v3930 = vpop.xlane.xlu0 %3929
      %v3931 = vsel %vm909, %v3898, 0.0
      %3932 = vadd.xlane.f32.xlu0 %v3931
      %v3933 = vpop.xlane.xlu0 %3932
      %v3934 = vsel %vm909, %v3900, 0.0
      %3935 = vadd.xlane.f32.xlu0 %v3934
      %v3936 = vpop.xlane.xlu0 %3935
      %v3937 = vsel %vm909, %v3902, 0.0
      %3938 = vadd.xlane.f32.xlu0 %v3937
      %v3939 = vpop.xlane.xlu0 %3938
      %v3940 = vsel %vm909, %v3904, 0.0
      %3941 = vadd.xlane.f32.xlu0 %v3940
      %v3942 = vpop.xlane.xlu0 %3941
      %v3943 = vsel %vm909, %v3906, 0.0
      %3944 = vadd.xlane.f32.xlu0 %v3943
      %v3945 = vpop.xlane.xlu0 %3944
      %v3946 = vsel %vm909, %v3908, 0.0
      %3947 = vadd.xlane.f32.xlu0 %v3946
      %v3948 = vpop.xlane.xlu0 %3947
      %v3949 = vsel %vm909, %v3910, 0.0
      %3950 = vadd.xlane.f32.xlu0 %v3949
      %v3951 = vpop.xlane.xlu0 %3950
      %v3952 = vsel %vm909, %v3912, 0.0
      %3953 = vadd.xlane.f32.xlu0 %v3952
      %v3954 = vpop.xlane.xlu0 %3953
      %v3955 = vsel %vm909, %v3914, 0.0
      %3956 = vadd.xlane.f32.xlu0 %v3955
      %v3957 = vpop.xlane.xlu0 %3956
      %v3958 = vsel %vm909, %v3916, 0.0
      %3959 = vadd.xlane.f32.xlu0 %v3958
      %v3960 = vpop.xlane.xlu0 %3959
      %v3961 = vsel %vm909, %v3918, 0.0
      %3962 = vadd.xlane.f32.xlu0 %v3961
      %v3963 = vpop.xlane.xlu0 %3962
      %v3964 = vsel %vm909, %v3920, 0.0
      %3965 = vadd.xlane.f32.xlu0 %v3964
      %v3966 = vpop.xlane.xlu0 %3965
      %v3967 = vsel %vm909, %v3922, 0.0
      %3968 = vadd.xlane.f32.xlu0 %v3967
      %v3969 = vpop.xlane.xlu0 %3968
      %v3970 = vsel %vm909, %v3924, 0.0
      %3971 = vadd.xlane.f32.xlu0 %v3970
      %v3972 = vpop.xlane.xlu0 %3971
      %v3973 = vrcp.pop %v3927
      %v3974 = vmul.f32 %v3894, %v3973
      %v3975 = vrcp.pop %v3930
      %v3976 = vmul.f32 %v3896, %v3975
      %v3977 = vrcp.pop %v3933
      %v3978 = vmul.f32 %v3898, %v3977
      %v3979 = vrcp.pop %v3936
      %v3980 = vmul.f32 %v3900, %v3979
      %v3981 = vrcp.pop %v3939
      %v3982 = vmul.f32 %v3902, %v3981
      %v3983 = vrcp.pop %v3942
      %v3984 = vmul.f32 %v3904, %v3983
      %v3985 = vrcp.pop %v3945
      %v3986 = vmul.f32 %v3906, %v3985
      %v3987 = vrcp.pop %v3948
      %v3988 = vmul.f32 %v3908, %v3987
      %v3989 = vrcp.pop %v3951
      %v3990 = vmul.f32 %v3910, %v3989
      %v3991 = vrcp.pop %v3954
      %v3992 = vmul.f32 %v3912, %v3991
      %v3993 = vrcp.pop %v3957
      %v3994 = vmul.f32 %v3914, %v3993
      %v3995 = vrcp.pop %v3960
      %v3996 = vmul.f32 %v3916, %v3995
      %v3997 = vrcp.pop %v3963
      %v3998 = vmul.f32 %v3918, %v3997
      %v3999 = vrcp.pop %v3966
      %v4000 = vmul.f32 %v3920, %v3999
      %v4001 = vrcp.pop %v3969
      %v4002 = vmul.f32 %v3922, %v4001
      %v4003 = vrcp.pop %v3972
      %v4004 = vmul.f32 %v3924, %v4003
      %v4006 = vsel %vm909, %v3974, 0
      %v4009 = vsel %vm909, %v3976, 0
      %4011 = vmatprep.subr.mxu0 0.0
      %4012 = vmatpush1.msra.mxu0 %v3385
      %4013 = vmatprep.subr.mxu0 0.0
      %4014 = vmatpush1.msra.mxu0 %v3390
      %4015 = vmatprep.subr.mxu0 0.0
      %4016 = vmatpush1.msra.mxu0 0.0
      %4017 = vmatprep.subr.mxu0 0.0
      %4018 = vmatpush1.msra.mxu0 0.0
      %4019 = vmatprep.subr.mxu0 0.0
      %4020 = vmatpush1.msra.mxu0 0.0
      %4021 = vmatprep.subr.mxu0 0.0
      %4022 = vmatpush1.msra.mxu0 0.0
      %4023 = vmatprep.subr.mxu0 0.0
      %4024 = vmatpush1.msra.mxu0 0.0
      %4025 = vmatprep.subr.mxu0 0.0
      %4026 = vmatpush1.msra.mxu0 0.0
      %4027 = vmatprep.subr.mxu0 0.0
      %4028 = vmatpush1.msra.mxu0 0.0
      %4029 = vmatprep.subr.mxu0 0.0
      %4030 = vmatpush1.msra.mxu0 0.0
      %4031 = vmatprep.subr.mxu0 0.0
      %4032 = vmatpush1.msra.mxu0 0.0
      %4033 = vmatprep.subr.mxu0 0.0
      %4034 = vmatpush1.msra.mxu0 0.0
      %4035 = vmatprep.subr.mxu0 0.0
      %4036 = vmatpush1.msra.mxu0 0.0
      %4037 = vmatprep.subr.mxu0 0.0
      %4038 = vmatpush1.msra.mxu0 0.0
      %4039 = vmatprep.subr.mxu0 0.0
      %4040 = vmatpush1.msra.mxu0 0.0
      %4041 = vmatprep.subr.mxu0 0.0
      %4042 = vmatpush1.msra.mxu0 0.0
      %4043 = vmatprep.subr.mxu0 0.0
      %4044 = vmatpush1.msra.mxu0 0.0
      %4045 = vmatprep.subr.mxu0 0.0
      %4046 = vmatpush1.msra.mxu0 0.0
      %4047 = vmatprep.subr.mxu0 0.0
      %4048 = vmatpush1.msra.mxu0 0.0
      %4049 = vmatprep.subr.mxu0 0.0
      %4050 = vmatpush1.msra.mxu0 0.0
      %4051 = vmatprep.subr.mxu0 0.0
      %4052 = vmatpush1.msra.mxu0 0.0
      %4053 = vmatprep.subr.mxu0 0.0
      %4054 = vmatpush1.msra.mxu0 0.0
      %4055 = vmatprep.subr.mxu0 0.0
      %4056 = vmatpush1.msra.mxu0 0.0
      %4057 = vmatprep.subr.mxu0 0.0
      %4058 = vmatpush1.msra.mxu0 0.0
      %4059 = vmatprep.subr.mxu0 0.0
      %4060 = vmatpush1.msra.mxu0 0.0
      %4061 = vmatprep.subr.mxu0 0.0
      %4062 = vmatpush1.msra.mxu0 0.0
      %4063 = vmatprep.subr.mxu0 0.0
      %4064 = vmatpush1.msra.mxu0 0.0
      %4065 = vmatprep.subr.mxu0 0.0
      %4066 = vmatpush1.msra.mxu0 0.0
      %4067 = vmatprep.subr.mxu0 0.0
      %4068 = vmatpush1.msra.mxu0 0.0
      %4069 = vmatprep.subr.mxu0 0.0
      %4070 = vmatpush1.msra.mxu0 0.0
      %4071 = vmatprep.subr.mxu0 0.0
      %4072 = vmatpush1.msra.mxu0 0.0
      %4073 = vmatprep.subr.mxu0 0.0
      %4074 = vmatpush1.msra.mxu0 0.0
      %4075 = vmatprep.mubr.f32.mxu0 0.0
      %4076 = vmatmul.mubr.f32.gmra.mrb[0].mxu0 %v4006
      %v4077 = vpop.f32.mrb[0].mxu0
      %v4078 = vadd.f32 0.0, %v4077
      %v4079 = vpop.f32.mrb[0].mxu0
      %4080 = vmatprep.mubr.f32.mxu0 0.0
      %4081 = vmatmul.mubr.f32.gmra.mrb[0].mxu0 %v4009
      %v4082 = vpop.f32.mrb[0].mxu0
      %v4083 = vadd.f32 0.0, %v4082
      %v4084 = vpop.f32.mrb[0].mxu0
      %4085 = vdwg.mxu0
      %v4087 = vsel %vm909, %v3978, 0
      %v4090 = vsel %vm909, %v3980, 0
      %4092 = vmatprep.subr.mxu0 0.0
      %4093 = vmatpush1.msra.mxu0 %v3395
      %4094 = vmatprep.subr.mxu0 0.0
      %4095 = vmatpush1.msra.mxu0 %v3400
      %4096 = vmatprep.subr.mxu0 0.0
      %4097 = vmatpush1.msra.mxu0 0.0
      %4098 = vmatprep.subr.mxu0 0.0
      %4099 = vmatpush1.msra.mxu0 0.0
      %4100 = vmatprep.subr.mxu0 0.0
      %4101 = vmatpush1.msra.mxu0 0.0
      %4102 = vmatprep.subr.mxu0 0.0
      %4103 = vmatpush1.msra.mxu0 0.0
      %4104 = vmatprep.subr.mxu0 0.0
      %4105 = vmatpush1.msra.mxu0 0.0
      %4106 = vmatprep.subr.mxu0 0.0
      %4107 = vmatpush1.msra.mxu0 0.0
      %4108 = vmatprep.subr.mxu0 0.0
      %4109 = vmatpush1.msra.mxu0 0.0
      %4110 = vmatprep.subr.mxu0 0.0
      %4111 = vmatpush1.msra.mxu0 0.0
      %4112 = vmatprep.subr.mxu0 0.0
      %4113 = vmatpush1.msra.mxu0 0.0
      %4114 = vmatprep.subr.mxu0 0.0
      %4115 = vmatpush1.msra.mxu0 0.0
      %4116 = vmatprep.subr.mxu0 0.0
      %4117 = vmatpush1.msra.mxu0 0.0
      %4118 = vmatprep.subr.mxu0 0.0
      %4119 = vmatpush1.msra.mxu0 0.0
      %4120 = vmatprep.subr.mxu0 0.0
      %4121 = vmatpush1.msra.mxu0 0.0
      %4122 = vmatprep.subr.mxu0 0.0
      %4123 = vmatpush1.msra.mxu0 0.0
      %4124 = vmatprep.subr.mxu0 0.0
      %4125 = vmatpush1.msra.mxu0 0.0
      %4126 = vmatprep.subr.mxu0 0.0
      %4127 = vmatpush1.msra.mxu0 0.0
      %4128 = vmatprep.subr.mxu0 0.0
      %4129 = vmatpush1.msra.mxu0 0.0
      %4130 = vmatprep.subr.mxu0 0.0
      %4131 = vmatpush1.msra.mxu0 0.0
      %4132 = vmatprep.subr.mxu0 0.0
      %4133 = vmatpush1.msra.mxu0 0.0
      %4134 = vmatprep.subr.mxu0 0.0
      %4135 = vmatpush1.msra.mxu0 0.0
      %4136 = vmatprep.subr.mxu0 0.0
      %4137 = vmatpush1.msra.mxu0 0.0
      %4138 = vmatprep.subr.mxu0 0.0
      %4139 = vmatpush1.msra.mxu0 0.0
      %4140 = vmatprep.subr.mxu0 0.0
      %4141 = vmatpush1.msra.mxu0 0.0
      %4142 = vmatprep.subr.mxu0 0.0
      %4143 = vmatpush1.msra.mxu0 0.0
      %4144 = vmatprep.subr.mxu0 0.0
      %4145 = vmatpush1.msra.mxu0 0.0
      %4146 = vmatprep.subr.mxu0 0.0
      %4147 = vmatpush1.msra.mxu0 0.0
      %4148 = vmatprep.subr.mxu0 0.0
      %4149 = vmatpush1.msra.mxu0 0.0
      %4150 = vmatprep.subr.mxu0 0.0
      %4151 = vmatpush1.msra.mxu0 0.0
      %4152 = vmatprep.subr.mxu0 0.0
      %4153 = vmatpush1.msra.mxu0 0.0
      %4154 = vmatprep.subr.mxu0 0.0
      %4155 = vmatpush1.msra.mxu0 0.0
      %4156 = vmatprep.mubr.f32.mxu0 0.0
      %4157 = vmatmul.mubr.f32.gmra.mrb[0].mxu0 %v4087
      %v4158 = vpop.f32.mrb[0].mxu0
      %v4159 = vadd.f32 0.0, %v4158
      %v4160 = vpop.f32.mrb[0].mxu0
      %4161 = vmatprep.mubr.f32.mxu0 0.0
      %4162 = vmatmul.mubr.f32.gmra.mrb[0].mxu0 %v4090
      %v4163 = vpop.f32.mrb[0].mxu0
      %v4164 = vadd.f32 0.0, %v4163
      %v4165 = vpop.f32.mrb[0].mxu0
      %4166 = vdwg.mxu0
      %v4168 = vsel %vm909, %v3982, 0
      %v4171 = vsel %vm909, %v3984, 0
      %4173 = vmatprep.subr.mxu0 0.0
      %4174 = vmatpush1.msra.mxu0 %v3405
      %4175 = vmatprep.subr.mxu0 0.0
      %4176 = vmatpush1.msra.mxu0 %v3410
      %4177 = vmatprep.subr.mxu0 0.0
      %4178 = vmatpush1.msra.mxu0 0.0
      %4179 = vmatprep.subr.mxu0 0.0
      %4180 = vmatpush1.msra.mxu0 0.0
      %4181 = vmatprep.subr.mxu0 0.0
      %4182 = vmatpush1.msra.mxu0 0.0
      %4183 = vmatprep.subr.mxu0 0.0
      %4184 = vmatpush1.msra.mxu0 0.0
      %4185 = vmatprep.subr.mxu0 0.0
      %4186 = vmatpush1.msra.mxu0 0.0
      %4187 = vmatprep.subr.mxu0 0.0
      %4188 = vmatpush1.msra.mxu0 0.0
      %4189 = vmatprep.subr.mxu0 0.0
      %4190 = vmatpush1.msra.mxu0 0.0
      %4191 = vmatprep.subr.mxu0 0.0
      %4192 = vmatpush1.msra.mxu0 0.0
      %4193 = vmatprep.subr.mxu0 0.0
      %4194 = vmatpush1.msra.mxu0 0.0
      %4195 = vmatprep.subr.mxu0 0.0
      %4196 = vmatpush1.msra.mxu0 0.0
      %4197 = vmatprep.subr.mxu0 0.0
      %4198 = vmatpush1.msra.mxu0 0.0
      %4199 = vmatprep.subr.mxu0 0.0
      %4200 = vmatpush1.msra.mxu0 0.0
      %4201 = vmatprep.subr.mxu0 0.0
      %4202 = vmatpush1.msra.mxu0 0.0
      %4203 = vmatprep.subr.mxu0 0.0
      %4204 = vmatpush1.msra.mxu0 0.0
      %4205 = vmatprep.subr.mxu0 0.0
      %4206 = vmatpush1.msra.mxu0 0.0
      %4207 = vmatprep.subr.mxu0 0.0
      %4208 = vmatpush1.msra.mxu0 0.0
      %4209 = vmatprep.subr.mxu0 0.0
      %4210 = vmatpush1.msra.mxu0 0.0
      %4211 = vmatprep.subr.mxu0 0.0
      %4212 = vmatpush1.msra.mxu0 0.0
      %4213 = vmatprep.subr.mxu0 0.0
      %4214 = vmatpush1.msra.mxu0 0.0
      %4215 = vmatprep.subr.mxu0 0.0
      %4216 = vmatpush1.msra.mxu0 0.0
      %4217 = vmatprep.subr.mxu0 0.0
      %4218 = vmatpush1.msra.mxu0 0.0
      %4219 = vmatprep.subr.mxu0 0.0
      %4220 = vmatpush1.msra.mxu0 0.0
      %4221 = vmatprep.subr.mxu0 0.0
      %4222 = vmatpush1.msra.mxu0 0.0
      %4223 = vmatprep.subr.mxu0 0.0
      %4224 = vmatpush1.msra.mxu0 0.0
      %4225 = vmatprep.subr.mxu0 0.0
      %4226 = vmatpush1.msra.mxu0 0.0
      %4227 = vmatprep.subr.mxu0 0.0
      %4228 = vmatpush1.msra.mxu0 0.0
      %4229 = vmatprep.subr.mxu0 0.0
      %4230 = vmatpush1.msra.mxu0 0.0
      %4231 = vmatprep.subr.mxu0 0.0
      %4232 = vmatpush1.msra.mxu0 0.0
      %4233 = vmatprep.subr.mxu0 0.0
      %4234 = vmatpush1.msra.mxu0 0.0
      %4235 = vmatprep.subr.mxu0 0.0
      %4236 = vmatpush1.msra.mxu0 0.0
      %4237 = vmatprep.mubr.f32.mxu0 0.0
      %4238 = vmatmul.mubr.f32.gmra.mrb[0].mxu0 %v4168
      %v4239 = vpop.f32.mrb[0].mxu0
      %v4240 = vadd.f32 0.0, %v4239
      %v4241 = vpop.f32.mrb[0].mxu0
      %4242 = vmatprep.mubr.f32.mxu0 0.0
      %4243 = vmatmul.mubr.f32.gmra.mrb[0].mxu0 %v4171
      %v4244 = vpop.f32.mrb[0].mxu0
      %v4245 = vadd.f32 0.0, %v4244
      %v4246 = vpop.f32.mrb[0].mxu0
      %4247 = vdwg.mxu0
      %v4249 = vsel %vm909, %v3986, 0
      %v4252 = vsel %vm909, %v3988, 0
      %4254 = vmatprep.subr.mxu0 0.0
      %4255 = vmatpush1.msra.mxu0 %v3415
      %4256 = vmatprep.subr.mxu0 0.0
      %4257 = vmatpush1.msra.mxu0 %v3420
      %4258 = vmatprep.subr.mxu0 0.0
      %4259 = vmatpush1.msra.mxu0 0.0
      %4260 = vmatprep.subr.mxu0 0.0
      %4261 = vmatpush1.msra.mxu0 0.0
      %4262 = vmatprep.subr.mxu0 0.0
      %4263 = vmatpush1.msra.mxu0 0.0
      %4264 = vmatprep.subr.mxu0 0.0
      %4265 = vmatpush1.msra.mxu0 0.0
      %4266 = vmatprep.subr.mxu0 0.0
      %4267 = vmatpush1.msra.mxu0 0.0
      %4268 = vmatprep.subr.mxu0 0.0
      %4269 = vmatpush1.msra.mxu0 0.0
      %4270 = vmatprep.subr.mxu0 0.0
      %4271 = vmatpush1.msra.mxu0 0.0
      %4272 = vmatprep.subr.mxu0 0.0
      %4273 = vmatpush1.msra.mxu0 0.0
      %4274 = vmatprep.subr.mxu0 0.0
      %4275 = vmatpush1.msra.mxu0 0.0
      %4276 = vmatprep.subr.mxu0 0.0
      %4277 = vmatpush1.msra.mxu0 0.0
      %4278 = vmatprep.subr.mxu0 0.0
      %4279 = vmatpush1.msra.mxu0 0.0
      %4280 = vmatprep.subr.mxu0 0.0
      %4281 = vmatpush1.msra.mxu0 0.0
      %4282 = vmatprep.subr.mxu0 0.0
      %4283 = vmatpush1.msra.mxu0 0.0
      %4284 = vmatprep.subr.mxu0 0.0
      %4285 = vmatpush1.msra.mxu0 0.0
      %4286 = vmatprep.subr.mxu0 0.0
      %4287 = vmatpush1.msra.mxu0 0.0
      %4288 = vmatprep.subr.mxu0 0.0
      %4289 = vmatpush1.msra.mxu0 0.0
      %4290 = vmatprep.subr.mxu0 0.0
      %4291 = vmatpush1.msra.mxu0 0.0
      %4292 = vmatprep.subr.mxu0 0.0
      %4293 = vmatpush1.msra.mxu0 0.0
      %4294 = vmatprep.subr.mxu0 0.0
      %4295 = vmatpush1.msra.mxu0 0.0
      %4296 = vmatprep.subr.mxu0 0.0
      %4297 = vmatpush1.msra.mxu0 0.0
      %4298 = vmatprep.subr.mxu0 0.0
      %4299 = vmatpush1.msra.mxu0 0.0
      %4300 = vmatprep.subr.mxu0 0.0
      %4301 = vmatpush1.msra.mxu0 0.0
      %4302 = vmatprep.subr.mxu0 0.0
      %4303 = vmatpush1.msra.mxu0 0.0
      %4304 = vmatprep.subr.mxu0 0.0
      %4305 = vmatpush1.msra.mxu0 0.0
      %4306 = vmatprep.subr.mxu0 0.0
      %4307 = vmatpush1.msra.mxu0 0.0
      %4308 = vmatprep.subr.mxu0 0.0
      %4309 = vmatpush1.msra.mxu0 0.0
      %4310 = vmatprep.subr.mxu0 0.0
      %4311 = vmatpush1.msra.mxu0 0.0
      %4312 = vmatprep.subr.mxu0 0.0
      %4313 = vmatpush1.msra.mxu0 0.0
      %4314 = vmatprep.subr.mxu0 0.0
      %4315 = vmatpush1.msra.mxu0 0.0
      %4316 = vmatprep.subr.mxu0 0.0
      %4317 = vmatpush1.msra.mxu0 0.0
      %4318 = vmatprep.mubr.f32.mxu0 0.0
      %4319 = vmatmul.mubr.f32.gmra.mrb[0].mxu0 %v4249
      %v4320 = vpop.f32.mrb[0].mxu0
      %v4321 = vadd.f32 0.0, %v4320
      %v4322 = vpop.f32.mrb[0].mxu0
      %4323 = vmatprep.mubr.f32.mxu0 0.0
      %4324 = vmatmul.mubr.f32.gmra.mrb[0].mxu0 %v4252
      %v4325 = vpop.f32.mrb[0].mxu0
      %v4326 = vadd.f32 0.0, %v4325
      %v4327 = vpop.f32.mrb[0].mxu0
      %4328 = vdwg.mxu0
      %v4330 = vsel %vm909, %v3990, 0
      %v4333 = vsel %vm909, %v3992, 0
      %4335 = vmatprep.subr.mxu0 0.0
      %4336 = vmatpush1.msra.mxu0 %v3425
      %4337 = vmatprep.subr.mxu0 0.0
      %4338 = vmatpush1.msra.mxu0 %v3430
      %4339 = vmatprep.subr.mxu0 0.0
      %4340 = vmatpush1.msra.mxu0 0.0
      %4341 = vmatprep.subr.mxu0 0.0
      %4342 = vmatpush1.msra.mxu0 0.0
      %4343 = vmatprep.subr.mxu0 0.0
      %4344 = vmatpush1.msra.mxu0 0.0
      %4345 = vmatprep.subr.mxu0 0.0
      %4346 = vmatpush1.msra.mxu0 0.0
      %4347 = vmatprep.subr.mxu0 0.0
      %4348 = vmatpush1.msra.mxu0 0.0
      %4349 = vmatprep.subr.mxu0 0.0
      %4350 = vmatpush1.msra.mxu0 0.0
      %4351 = vmatprep.subr.mxu0 0.0
      %4352 = vmatpush1.msra.mxu0 0.0
      %4353 = vmatprep.subr.mxu0 0.0
      %4354 = vmatpush1.msra.mxu0 0.0
      %4355 = vmatprep.subr.mxu0 0.0
      %4356 = vmatpush1.msra.mxu0 0.0
      %4357 = vmatprep.subr.mxu0 0.0
      %4358 = vmatpush1.msra.mxu0 0.0
      %4359 = vmatprep.subr.mxu0 0.0
      %4360 = vmatpush1.msra.mxu0 0.0
      %4361 = vmatprep.subr.mxu0 0.0
      %4362 = vmatpush1.msra.mxu0 0.0
      %4363 = vmatprep.subr.mxu0 0.0
      %4364 = vmatpush1.msra.mxu0 0.0
      %4365 = vmatprep.subr.mxu0 0.0
      %4366 = vmatpush1.msra.mxu0 0.0
      %4367 = vmatprep.subr.mxu0 0.0
      %4368 = vmatpush1.msra.mxu0 0.0
      %4369 = vmatprep.subr.mxu0 0.0
      %4370 = vmatpush1.msra.mxu0 0.0
      %4371 = vmatprep.subr.mxu0 0.0
      %4372 = vmatpush1.msra.mxu0 0.0
      %4373 = vmatprep.subr.mxu0 0.0
      %4374 = vmatpush1.msra.mxu0 0.0
      %4375 = vmatprep.subr.mxu0 0.0
      %4376 = vmatpush1.msra.mxu0 0.0
      %4377 = vmatprep.subr.mxu0 0.0
      %4378 = vmatpush1.msra.mxu0 0.0
      %4379 = vmatprep.subr.mxu0 0.0
      %4380 = vmatpush1.msra.mxu0 0.0
      %4381 = vmatprep.subr.mxu0 0.0
      %4382 = vmatpush1.msra.mxu0 0.0
      %4383 = vmatprep.subr.mxu0 0.0
      %4384 = vmatpush1.msra.mxu0 0.0
      %4385 = vmatprep.subr.mxu0 0.0
      %4386 = vmatpush1.msra.mxu0 0.0
      %4387 = vmatprep.subr.mxu0 0.0
      %4388 = vmatpush1.msra.mxu0 0.0
      %4389 = vmatprep.subr.mxu0 0.0
      %4390 = vmatpush1.msra.mxu0 0.0
      %4391 = vmatprep.subr.mxu0 0.0
      %4392 = vmatpush1.msra.mxu0 0.0
      %4393 = vmatprep.subr.mxu0 0.0
      %4394 = vmatpush1.msra.mxu0 0.0
      %4395 = vmatprep.subr.mxu0 0.0
      %4396 = vmatpush1.msra.mxu0 0.0
      %4397 = vmatprep.subr.mxu0 0.0
      %4398 = vmatpush1.msra.mxu0 0.0
      %4399 = vmatprep.mubr.f32.mxu0 0.0
      %4400 = vmatmul.mubr.f32.gmra.mrb[0].mxu0 %v4330
      %v4401 = vpop.f32.mrb[0].mxu0
      %v4402 = vadd.f32 0.0, %v4401
      %v4403 = vpop.f32.mrb[0].mxu0
      %4404 = vmatprep.mubr.f32.mxu0 0.0
      %4405 = vmatmul.mubr.f32.gmra.mrb[0].mxu0 %v4333
      %v4406 = vpop.f32.mrb[0].mxu0
      %v4407 = vadd.f32 0.0, %v4406
      %v4408 = vpop.f32.mrb[0].mxu0
      %4409 = vdwg.mxu0
      %v4411 = vsel %vm909, %v3994, 0
      %v4414 = vsel %vm909, %v3996, 0
      %4416 = vmatprep.subr.mxu0 0.0
      %4417 = vmatpush1.msra.mxu0 %v3435
      %4418 = vmatprep.subr.mxu0 0.0
      %4419 = vmatpush1.msra.mxu0 %v3440
      %4420 = vmatprep.subr.mxu0 0.0
      %4421 = vmatpush1.msra.mxu0 0.0
      %4422 = vmatprep.subr.mxu0 0.0
      %4423 = vmatpush1.msra.mxu0 0.0
      %4424 = vmatprep.subr.mxu0 0.0
      %4425 = vmatpush1.msra.mxu0 0.0
      %4426 = vmatprep.subr.mxu0 0.0
      %4427 = vmatpush1.msra.mxu0 0.0
      %4428 = vmatprep.subr.mxu0 0.0
      %4429 = vmatpush1.msra.mxu0 0.0
      %4430 = vmatprep.subr.mxu0 0.0
      %4431 = vmatpush1.msra.mxu0 0.0
      %4432 = vmatprep.subr.mxu0 0.0
      %4433 = vmatpush1.msra.mxu0 0.0
      %4434 = vmatprep.subr.mxu0 0.0
      %4435 = vmatpush1.msra.mxu0 0.0
      %4436 = vmatprep.subr.mxu0 0.0
      %4437 = vmatpush1.msra.mxu0 0.0
      %4438 = vmatprep.subr.mxu0 0.0
      %4439 = vmatpush1.msra.mxu0 0.0
      %4440 = vmatprep.subr.mxu0 0.0
      %4441 = vmatpush1.msra.mxu0 0.0
      %4442 = vmatprep.subr.mxu0 0.0
      %4443 = vmatpush1.msra.mxu0 0.0
      %4444 = vmatprep.subr.mxu0 0.0
      %4445 = vmatpush1.msra.mxu0 0.0
      %4446 = vmatprep.subr.mxu0 0.0
      %4447 = vmatpush1.msra.mxu0 0.0
      %4448 = vmatprep.subr.mxu0 0.0
      %4449 = vmatpush1.msra.mxu0 0.0
      %4450 = vmatprep.subr.mxu0 0.0
      %4451 = vmatpush1.msra.mxu0 0.0
      %4452 = vmatprep.subr.mxu0 0.0
      %4453 = vmatpush1.msra.mxu0 0.0
      %4454 = vmatprep.subr.mxu0 0.0
      %4455 = vmatpush1.msra.mxu0 0.0
      %4456 = vmatprep.subr.mxu0 0.0
      %4457 = vmatpush1.msra.mxu0 0.0
      %4458 = vmatprep.subr.mxu0 0.0
      %4459 = vmatpush1.msra.mxu0 0.0
      %4460 = vmatprep.subr.mxu0 0.0
      %4461 = vmatpush1.msra.mxu0 0.0
      %4462 = vmatprep.subr.mxu0 0.0
      %4463 = vmatpush1.msra.mxu0 0.0
      %4464 = vmatprep.subr.mxu0 0.0
      %4465 = vmatpush1.msra.mxu0 0.0
      %4466 = vmatprep.subr.mxu0 0.0
      %4467 = vmatpush1.msra.mxu0 0.0
      %4468 = vmatprep.subr.mxu0 0.0
      %4469 = vmatpush1.msra.mxu0 0.0
      %4470 = vmatprep.subr.mxu0 0.0
      %4471 = vmatpush1.msra.mxu0 0.0
      %4472 = vmatprep.subr.mxu0 0.0
      %4473 = vmatpush1.msra.mxu0 0.0
      %4474 = vmatprep.subr.mxu0 0.0
      %4475 = vmatpush1.msra.mxu0 0.0
      %4476 = vmatprep.subr.mxu0 0.0
      %4477 = vmatpush1.msra.mxu0 0.0
      %4478 = vmatprep.subr.mxu0 0.0
      %4479 = vmatpush1.msra.mxu0 0.0
      %4480 = vmatprep.mubr.f32.mxu0 0.0
      %4481 = vmatmul.mubr.f32.gmra.mrb[0].mxu0 %v4411
      %v4482 = vpop.f32.mrb[0].mxu0
      %v4483 = vadd.f32 0.0, %v4482
      %v4484 = vpop.f32.mrb[0].mxu0
      %4485 = vmatprep.mubr.f32.mxu0 0.0
      %4486 = vmatmul.mubr.f32.gmra.mrb[0].mxu0 %v4414
      %v4487 = vpop.f32.mrb[0].mxu0
      %v4488 = vadd.f32 0.0, %v4487
      %v4489 = vpop.f32.mrb[0].mxu0
      %4490 = vdwg.mxu0
      %v4492 = vsel %vm909, %v3998, 0
      %v4495 = vsel %vm909, %v4000, 0
      %4497 = vmatprep.subr.mxu0 0.0
      %4498 = vmatpush1.msra.mxu0 %v3445
      %4499 = vmatprep.subr.mxu0 0.0
      %4500 = vmatpush1.msra.mxu0 %v3450
      %4501 = vmatprep.subr.mxu0 0.0
      %4502 = vmatpush1.msra.mxu0 0.0
      %4503 = vmatprep.subr.mxu0 0.0
      %4504 = vmatpush1.msra.mxu0 0.0
      %4505 = vmatprep.subr.mxu0 0.0
      %4506 = vmatpush1.msra.mxu0 0.0
      %4507 = vmatprep.subr.mxu0 0.0
      %4508 = vmatpush1.msra.mxu0 0.0
      %4509 = vmatprep.subr.mxu0 0.0
      %4510 = vmatpush1.msra.mxu0 0.0
      %4511 = vmatprep.subr.mxu0 0.0
      %4512 = vmatpush1.msra.mxu0 0.0
      %4513 = vmatprep.subr.mxu0 0.0
      %4514 = vmatpush1.msra.mxu0 0.0
      %4515 = vmatprep.subr.mxu0 0.0
      %4516 = vmatpush1.msra.mxu0 0.0
      %4517 = vmatprep.subr.mxu0 0.0
      %4518 = vmatpush1.msra.mxu0 0.0
      %4519 = vmatprep.subr.mxu0 0.0
      %4520 = vmatpush1.msra.mxu0 0.0
      %4521 = vmatprep.subr.mxu0 0.0
      %4522 = vmatpush1.msra.mxu0 0.0
      %4523 = vmatprep.subr.mxu0 0.0
      %4524 = vmatpush1.msra.mxu0 0.0
      %4525 = vmatprep.subr.mxu0 0.0
      %4526 = vmatpush1.msra.mxu0 0.0
      %4527 = vmatprep.subr.mxu0 0.0
      %4528 = vmatpush1.msra.mxu0 0.0
      %4529 = vmatprep.subr.mxu0 0.0
      %4530 = vmatpush1.msra.mxu0 0.0
      %4531 = vmatprep.subr.mxu0 0.0
      %4532 = vmatpush1.msra.mxu0 0.0
      %4533 = vmatprep.subr.mxu0 0.0
      %4534 = vmatpush1.msra.mxu0 0.0
      %4535 = vmatprep.subr.mxu0 0.0
      %4536 = vmatpush1.msra.mxu0 0.0
      %4537 = vmatprep.subr.mxu0 0.0
      %4538 = vmatpush1.msra.mxu0 0.0
      %4539 = vmatprep.subr.mxu0 0.0
      %4540 = vmatpush1.msra.mxu0 0.0
      %4541 = vmatprep.subr.mxu0 0.0
      %4542 = vmatpush1.msra.mxu0 0.0
      %4543 = vmatprep.subr.mxu0 0.0
      %4544 = vmatpush1.msra.mxu0 0.0
      %4545 = vmatprep.subr.mxu0 0.0
      %4546 = vmatpush1.msra.mxu0 0.0
      %4547 = vmatprep.subr.mxu0 0.0
      %4548 = vmatpush1.msra.mxu0 0.0
      %4549 = vmatprep.subr.mxu0 0.0
      %4550 = vmatpush1.msra.mxu0 0.0
      %4551 = vmatprep.subr.mxu0 0.0
      %4552 = vmatpush1.msra.mxu0 0.0
      %4553 = vmatprep.subr.mxu0 0.0
      %4554 = vmatpush1.msra.mxu0 0.0
      %4555 = vmatprep.subr.mxu0 0.0
      %4556 = vmatpush1.msra.mxu0 0.0
      %4557 = vmatprep.subr.mxu0 0.0
      %4558 = vmatpush1.msra.mxu0 0.0
      %4559 = vmatprep.subr.mxu0 0.0
      %4560 = vmatpush1.msra.mxu0 0.0
      %4561 = vmatprep.mubr.f32.mxu0 0.0
      %4562 = vmatmul.mubr.f32.gmra.mrb[0].mxu0 %v4492
      %v4563 = vpop.f32.mrb[0].mxu0
      %v4564 = vadd.f32 0.0, %v4563
      %v4565 = vpop.f32.mrb[0].mxu0
      %4566 = vmatprep.mubr.f32.mxu0 0.0
      %4567 = vmatmul.mubr.f32.gmra.mrb[0].mxu0 %v4495
      %v4568 = vpop.f32.mrb[0].mxu0
      %v4569 = vadd.f32 0.0, %v4568
      %v4570 = vpop.f32.mrb[0].mxu0
      %4571 = vdwg.mxu0
      %v4573 = vsel %vm909, %v4002, 0
      %v4576 = vsel %vm909, %v4004, 0
      %4578 = vmatprep.subr.mxu0 0.0
      %4579 = vmatpush1.msra.mxu0 %v3455
      %4580 = vmatprep.subr.mxu0 0.0
      %4581 = vmatpush1.msra.mxu0 %v3460
      %4582 = vmatprep.subr.mxu0 0.0
      %4583 = vmatpush1.msra.mxu0 0.0
      %4584 = vmatprep.subr.mxu0 0.0
      %4585 = vmatpush1.msra.mxu0 0.0
      %4586 = vmatprep.subr.mxu0 0.0
      %4587 = vmatpush1.msra.mxu0 0.0
      %4588 = vmatprep.subr.mxu0 0.0
      %4589 = vmatpush1.msra.mxu0 0.0
      %4590 = vmatprep.subr.mxu0 0.0
      %4591 = vmatpush1.msra.mxu0 0.0
      %4592 = vmatprep.subr.mxu0 0.0
      %4593 = vmatpush1.msra.mxu0 0.0
      %4594 = vmatprep.subr.mxu0 0.0
      %4595 = vmatpush1.msra.mxu0 0.0
      %4596 = vmatprep.subr.mxu0 0.0
      %4597 = vmatpush1.msra.mxu0 0.0
      %4598 = vmatprep.subr.mxu0 0.0
      %4599 = vmatpush1.msra.mxu0 0.0
      %4600 = vmatprep.subr.mxu0 0.0
      %4601 = vmatpush1.msra.mxu0 0.0
      %4602 = vmatprep.subr.mxu0 0.0
      %4603 = vmatpush1.msra.mxu0 0.0
      %4604 = vmatprep.subr.mxu0 0.0
      %4605 = vmatpush1.msra.mxu0 0.0
      %4606 = vmatprep.subr.mxu0 0.0
      %4607 = vmatpush1.msra.mxu0 0.0
      %4608 = vmatprep.subr.mxu0 0.0
      %4609 = vmatpush1.msra.mxu0 0.0
      %4610 = vmatprep.subr.mxu0 0.0
      %4611 = vmatpush1.msra.mxu0 0.0
      %4612 = vmatprep.subr.mxu0 0.0
      %4613 = vmatpush1.msra.mxu0 0.0
      %4614 = vmatprep.subr.mxu0 0.0
      %4615 = vmatpush1.msra.mxu0 0.0
      %4616 = vmatprep.subr.mxu0 0.0
      %4617 = vmatpush1.msra.mxu0 0.0
      %4618 = vmatprep.subr.mxu0 0.0
      %4619 = vmatpush1.msra.mxu0 0.0
      %4620 = vmatprep.subr.mxu0 0.0
      %4621 = vmatpush1.msra.mxu0 0.0
      %4622 = vmatprep.subr.mxu0 0.0
      %4623 = vmatpush1.msra.mxu0 0.0
      %4624 = vmatprep.subr.mxu0 0.0
      %4625 = vmatpush1.msra.mxu0 0.0
      %4626 = vmatprep.subr.mxu0 0.0
      %4627 = vmatpush1.msra.mxu0 0.0
      %4628 = vmatprep.subr.mxu0 0.0
      %4629 = vmatpush1.msra.mxu0 0.0
      %4630 = vmatprep.subr.mxu0 0.0
      %4631 = vmatpush1.msra.mxu0 0.0
      %4632 = vmatprep.subr.mxu0 0.0
      %4633 = vmatpush1.msra.mxu0 0.0
      %4634 = vmatprep.subr.mxu0 0.0
      %4635 = vmatpush1.msra.mxu0 0.0
      %4636 = vmatprep.subr.mxu0 0.0
      %4637 = vmatpush1.msra.mxu0 0.0
      %4638 = vmatprep.subr.mxu0 0.0
      %4639 = vmatpush1.msra.mxu0 0.0
      %4640 = vmatprep.subr.mxu0 0.0
      %4641 = vmatpush1.msra.mxu0 0.0
      %4642 = vmatprep.mubr.f32.mxu0 0.0
      %4643 = vmatmul.mubr.f32.gmra.mrb[0].mxu0 %v4573
      %v4644 = vpop.f32.mrb[0].mxu0
      %v4645 = vadd.f32 0.0, %v4644
      %v4646 = vpop.f32.mrb[0].mxu0
      %4647 = vmatprep.mubr.f32.mxu0 0.0
      %4648 = vmatmul.mubr.f32.gmra.mrb[0].mxu0 %v4576
      %v4649 = vpop.f32.mrb[0].mxu0
      %v4650 = vadd.f32 0.0, %v4649
      %v4651 = vpop.f32.mrb[0].mxu0
      %4652 = vdwg.mxu0
      %vm4653 = vcmp.gt.f32.partialorder %v4078, 0.0
      %vm4654 = vcmp.gt.f32.partialorder %v4083, 0.0
      %vm4655 = vcmp.gt.f32.partialorder %v4159, 0.0
      %vm4656 = vcmp.gt.f32.partialorder %v4164, 0.0
      %vm4657 = vcmp.gt.f32.partialorder %v4240, 0.0
      %vm4658 = vcmp.gt.f32.partialorder %v4245, 0.0
      %vm4659 = vcmp.gt.f32.partialorder %v4321, 0.0
      %vm4660 = vcmp.gt.f32.partialorder %v4326, 0.0
      %vm4661 = vcmp.gt.f32.partialorder %v4402, 0.0
      %vm4662 = vcmp.gt.f32.partialorder %v4407, 0.0
      %vm4663 = vcmp.gt.f32.partialorder %v4483, 0.0
      %vm4664 = vcmp.gt.f32.partialorder %v4488, 0.0
      %vm4665 = vcmp.gt.f32.partialorder %v4564, 0.0
      %vm4666 = vcmp.gt.f32.partialorder %v4569, 0.0
      %vm4667 = vcmp.gt.f32.partialorder %v4645, 0.0
      %vm4668 = vcmp.gt.f32.partialorder %v4650, 0.0
      %v4669 = vmul.f32 %v4078, 1.442695
      %v4670 = vpow.pop %v4669
      %v4671 = vmul.f32 %v4083, 1.442695
      %v4672 = vpow.pop %v4671
      %v4673 = vmul.f32 %v4159, 1.442695
      %v4674 = vpow.pop %v4673
      %v4675 = vmul.f32 %v4164, 1.442695
      %v4676 = vpow.pop %v4675
      %v4677 = vmul.f32 %v4240, 1.442695
      %v4678 = vpow.pop %v4677
      %v4679 = vmul.f32 %v4245, 1.442695
      %v4680 = vpow.pop %v4679
      %v4681 = vmul.f32 %v4321, 1.442695
      %v4682 = vpow.pop %v4681
      %v4683 = vmul.f32 %v4326, 1.442695
      %v4684 = vpow.pop %v4683
      %v4685 = vmul.f32 %v4402, 1.442695
      %v4686 = vpow.pop %v4685
      %v4687 = vmul.f32 %v4407, 1.442695
      %v4688 = vpow.pop %v4687
      %v4689 = vmul.f32 %v4483, 1.442695
      %v4690 = vpow.pop %v4689
      %v4691 = vmul.f32 %v4488, 1.442695
      %v4692 = vpow.pop %v4691
      %v4693 = vmul.f32 %v4564, 1.442695
      %v4694 = vpow.pop %v4693
      %v4695 = vmul.f32 %v4569, 1.442695
      %v4696 = vpow.pop %v4695
      %v4697 = vmul.f32 %v4645, 1.442695
      %v4698 = vpow.pop %v4697
      %v4699 = vmul.f32 %v4650, 1.442695
      %v4700 = vpow.pop %v4699
      %v4701 = vsub.f32 %v4670, 1.0
      %v4702 = vsub.f32 %v4672, 1.0
      %v4703 = vsub.f32 %v4674, 1.0
      %v4704 = vsub.f32 %v4676, 1.0
      %v4705 = vsub.f32 %v4678, 1.0
      %v4706 = vsub.f32 %v4680, 1.0
      %v4707 = vsub.f32 %v4682, 1.0
      %v4708 = vsub.f32 %v4684, 1.0
      %v4709 = vsub.f32 %v4686, 1.0
      %v4710 = vsub.f32 %v4688, 1.0
      %v4711 = vsub.f32 %v4690, 1.0
      %v4712 = vsub.f32 %v4692, 1.0
      %v4713 = vsub.f32 %v4694, 1.0
      %v4714 = vsub.f32 %v4696, 1.0
      %v4715 = vsub.f32 %v4698, 1.0
      %v4716 = vsub.f32 %v4700, 1.0
      %v4717 = vsel %vm4653, %v4078, %v4701
      %v4718 = vsel %vm4654, %v4083, %v4702
      %v4719 = vsel %vm4655, %v4159, %v4703
      %v4720 = vsel %vm4656, %v4164, %v4704
      %v4721 = vsel %vm4657, %v4240, %v4705
      %v4722 = vsel %vm4658, %v4245, %v4706
      %v4723 = vsel %vm4659, %v4321, %v4707
      %v4724 = vsel %vm4660, %v4326, %v4708
      %v4725 = vsel %vm4661, %v4402, %v4709
      %v4726 = vsel %vm4662, %v4407, %v4710
      %v4727 = vsel %vm4663, %v4483, %v4711
      %v4728 = vsel %vm4664, %v4488, %v4712
      %v4729 = vsel %vm4665, %v4564, %v4713
      %v4730 = vsel %vm4666, %v4569, %v4714
      %v4731 = vsel %vm4667, %v4645, %v4715
      %v4732 = vsel %vm4668, %v4650, %v4716
      %s4733 = scalar_lea.vmem %s301, 96
      %v4734 = vld [vmem:[%s4733] sm:$0xff]
      %v4735 = vld [vmem:[%s4733 + $0x8] sm:$0xff]
      %v4736 = vld [vmem:[%s4733 + $0x10] sm:$0xff]
      %v4737 = vld [vmem:[%s4733 + $0x18] sm:$0xf]
      %s4738 = scalar_lea.vmem %s306, 6
      %v4739 = vld [vmem:[%s4738] sm:$0x3]
      %v4740 = vld [vmem:[%s3312] sm:$0xff]
      %v4741 = vld [vmem:[%s3312 + $0x8] sm:$0xff]
      %v4743 = vsel %vm335, %v4717, 0
      %v4746 = vsel %vm335, %v4718, 0
      %v4749 = vsel %vm335, %v4719, 0
      %v4752 = vsel %vm335, %v4720, 0
      %v4755 = vsel %vm335, %v4721, 0
      %v4758 = vsel %vm335, %v4722, 0
      %v4761 = vsel %vm335, %v4723, 0
      %v4764 = vsel %vm335, %v4724, 0
      %v4767 = vsel %vm335, %v4725, 0
      %v4770 = vsel %vm335, %v4726, 0
      %v4773 = vsel %vm335, %v4727, 0
      %v4776 = vsel %vm335, %v4728, 0
      %v4779 = vsel %vm335, %v4729, 0
      %v4782 = vsel %vm335, %v4730, 0
      %v4785 = vsel %vm335, %v4731, 0
      %v4788 = vsel %vm335, %v4732, 0
      %v4791 = vsel %vm384, %v4737, 0
      %4793 = vmatprep.subr.mxu0 0.0
      %4794 = vmatpush1.msra.mxu0 %v4734
      %4795 = vmatprep.subr.mxu0 0.0
      %4796 = vmatpush1.msra.mxu0 %v4735
      %4797 = vmatprep.subr.mxu0 0.0
      %4798 = vmatpush1.msra.mxu0 %v4736
      %4799 = vmatprep.subr.mxu0 0.0
      %4800 = vmatpush1.msra.mxu0 %v4791
      %4801 = vmatprep.subr.mxu0 0.0
      %4802 = vmatpush1.msra.mxu0 0.0
      %4803 = vmatprep.subr.mxu0 0.0
      %4804 = vmatpush1.msra.mxu0 0.0
      %4805 = vmatprep.subr.mxu0 0.0
      %4806 = vmatpush1.msra.mxu0 0.0
      %4807 = vmatprep.subr.mxu0 0.0
      %4808 = vmatpush1.msra.mxu0 0.0
      %4809 = vmatprep.subr.mxu0 0.0
      %4810 = vmatpush1.msra.mxu0 0.0
      %4811 = vmatprep.subr.mxu0 0.0
      %4812 = vmatpush1.msra.mxu0 0.0
      %4813 = vmatprep.subr.mxu0 0.0
      %4814 = vmatpush1.msra.mxu0 0.0
      %4815 = vmatprep.subr.mxu0 0.0
      %4816 = vmatpush1.msra.mxu0 0.0
      %4817 = vmatprep.subr.mxu0 0.0
      %4818 = vmatpush1.msra.mxu0 0.0
      %4819 = vmatprep.subr.mxu0 0.0
      %4820 = vmatpush1.msra.mxu0 0.0
      %4821 = vmatprep.subr.mxu0 0.0
      %4822 = vmatpush1.msra.mxu0 0.0
      %4823 = vmatprep.subr.mxu0 0.0
      %4824 = vmatpush1.msra.mxu0 0.0
      %4825 = vmatprep.subr.mxu0 0.0
      %4826 = vmatpush1.msra.mxu0 0.0
      %4827 = vmatprep.subr.mxu0 0.0
      %4828 = vmatpush1.msra.mxu0 0.0
      %4829 = vmatprep.subr.mxu0 0.0
      %4830 = vmatpush1.msra.mxu0 0.0
      %4831 = vmatprep.subr.mxu0 0.0
      %4832 = vmatpush1.msra.mxu0 0.0
      %4833 = vmatprep.subr.mxu0 0.0
      %4834 = vmatpush1.msra.mxu0 0.0
      %4835 = vmatprep.subr.mxu0 0.0
      %4836 = vmatpush1.msra.mxu0 0.0
      %4837 = vmatprep.subr.mxu0 0.0
      %4838 = vmatpush1.msra.mxu0 0.0
      %4839 = vmatprep.subr.mxu0 0.0
      %4840 = vmatpush1.msra.mxu0 0.0
      %4841 = vmatprep.subr.mxu0 0.0
      %4842 = vmatpush1.msra.mxu0 0.0
      %4843 = vmatprep.subr.mxu0 0.0
      %4844 = vmatpush1.msra.mxu0 0.0
      %4845 = vmatprep.subr.mxu0 0.0
      %4846 = vmatpush1.msra.mxu0 0.0
      %4847 = vmatprep.subr.mxu0 0.0
      %4848 = vmatpush1.msra.mxu0 0.0
      %4849 = vmatprep.subr.mxu0 0.0
      %4850 = vmatpush1.msra.mxu0 0.0
      %4851 = vmatprep.subr.mxu0 0.0
      %4852 = vmatpush1.msra.mxu0 0.0
      %4853 = vmatprep.subr.mxu0 0.0
      %4854 = vmatpush1.msra.mxu0 0.0
      %4855 = vmatprep.subr.mxu0 0.0
      %4856 = vmatpush1.msra.mxu0 0.0
      %4857 = vmatprep.mubr.f32.mxu0 0.0
      %4858 = vmatmul.mubr.f32.gmra.mrb[0].mxu0 %v4743
      %v4859 = vpop.f32.mrb[0].mxu0
      %v4860 = vadd.f32 0.0, %v4859
      %v4861 = vpop.f32.mrb[0].mxu0
      %4862 = vmatprep.mubr.f32.mxu0 0.0
      %4863 = vmatmul.mubr.f32.gmra.mrb[0].mxu0 %v4746
      %v4864 = vpop.f32.mrb[0].mxu0
      %v4865 = vadd.f32 0.0, %v4864
      %v4866 = vpop.f32.mrb[0].mxu0
      %4867 = vmatprep.mubr.f32.mxu0 0.0
      %4868 = vmatmul.mubr.f32.gmra.mrb[0].mxu0 %v4749
      %v4869 = vpop.f32.mrb[0].mxu0
      %v4870 = vadd.f32 0.0, %v4869
      %v4871 = vpop.f32.mrb[0].mxu0
      %4872 = vmatprep.mubr.f32.mxu0 0.0
      %4873 = vmatmul.mubr.f32.gmra.mrb[0].mxu0 %v4752
      %v4874 = vpop.f32.mrb[0].mxu0
      %v4875 = vadd.f32 0.0, %v4874
      %v4876 = vpop.f32.mrb[0].mxu0
      %4877 = vmatprep.mubr.f32.mxu0 0.0
      %4878 = vmatmul.mubr.f32.gmra.mrb[0].mxu0 %v4755
      %v4879 = vpop.f32.mrb[0].mxu0
      %v4880 = vadd.f32 0.0, %v4879
      %v4881 = vpop.f32.mrb[0].mxu0
      %4882 = vmatprep.mubr.f32.mxu0 0.0
      %4883 = vmatmul.mubr.f32.gmra.mrb[0].mxu0 %v4758
      %v4884 = vpop.f32.mrb[0].mxu0
      %v4885 = vadd.f32 0.0, %v4884
      %v4886 = vpop.f32.mrb[0].mxu0
      %4887 = vmatprep.mubr.f32.mxu0 0.0
      %4888 = vmatmul.mubr.f32.gmra.mrb[0].mxu0 %v4761
      %v4889 = vpop.f32.mrb[0].mxu0
      %v4890 = vadd.f32 0.0, %v4889
      %v4891 = vpop.f32.mrb[0].mxu0
      %4892 = vmatprep.mubr.f32.mxu0 0.0
      %4893 = vmatmul.mubr.f32.gmra.mrb[0].mxu0 %v4764
      %v4894 = vpop.f32.mrb[0].mxu0
      %v4895 = vadd.f32 0.0, %v4894
      %v4896 = vpop.f32.mrb[0].mxu0
      %4897 = vmatprep.mubr.f32.mxu0 0.0
      %4898 = vmatmul.mubr.f32.gmra.mrb[0].mxu0 %v4767
      %v4899 = vpop.f32.mrb[0].mxu0
      %v4900 = vadd.f32 0.0, %v4899
      %v4901 = vpop.f32.mrb[0].mxu0
      %4902 = vmatprep.mubr.f32.mxu0 0.0
      %4903 = vmatmul.mubr.f32.gmra.mrb[0].mxu0 %v4770
      %v4904 = vpop.f32.mrb[0].mxu0
      %v4905 = vadd.f32 0.0, %v4904
      %v4906 = vpop.f32.mrb[0].mxu0
      %4907 = vmatprep.mubr.f32.mxu0 0.0
      %4908 = vmatmul.mubr.f32.gmra.mrb[0].mxu0 %v4773
      %v4909 = vpop.f32.mrb[0].mxu0
      %v4910 = vadd.f32 0.0, %v4909
      %v4911 = vpop.f32.mrb[0].mxu0
      %4912 = vmatprep.mubr.f32.mxu0 0.0
      %4913 = vmatmul.mubr.f32.gmra.mrb[0].mxu0 %v4776
      %v4914 = vpop.f32.mrb[0].mxu0
      %v4915 = vadd.f32 0.0, %v4914
      %v4916 = vpop.f32.mrb[0].mxu0
      %4917 = vmatprep.mubr.f32.mxu0 0.0
      %4918 = vmatmul.mubr.f32.gmra.mrb[0].mxu0 %v4779
      %v4919 = vpop.f32.mrb[0].mxu0
      %v4920 = vadd.f32 0.0, %v4919
      %v4921 = vpop.f32.mrb[0].mxu0
      %4922 = vmatprep.mubr.f32.mxu0 0.0
      %4923 = vmatmul.mubr.f32.gmra.mrb[0].mxu0 %v4782
      %v4924 = vpop.f32.mrb[0].mxu0
      %v4925 = vadd.f32 0.0, %v4924
      %v4926 = vpop.f32.mrb[0].mxu0
      %4927 = vmatprep.mubr.f32.mxu0 0.0
      %4928 = vmatmul.mubr.f32.gmra.mrb[0].mxu0 %v4785
      %v4929 = vpop.f32.mrb[0].mxu0
      %v4930 = vadd.f32 0.0, %v4929
      %v4931 = vpop.f32.mrb[0].mxu0
      %4932 = vmatprep.mubr.f32.mxu0 0.0
      %4933 = vmatmul.mubr.f32.gmra.mrb[0].mxu0 %v4788
      %v4934 = vpop.f32.mrb[0].mxu0
      %v4935 = vadd.f32 0.0, %v4934
      %v4936 = vpop.f32.mrb[0].mxu0
      %4937 = vdwg.mxu0
      %v4938 = vlaneseq
      %v4939 = vshrl.u32 %v4938, 7
      %v4940 = vsub.s32 0, %v4939
      %v4941 = vrot.slane %v4739, %v4940
      %v4942 = vmul.f32 %v4860, %v4941
      %v4943 = vmul.f32 %v4865, %v4941
      %v4944 = vmul.f32 %v4870, %v4941
      %v4945 = vmul.f32 %v4875, %v4941
      %v4946 = vmul.f32 %v4880, %v4941
      %v4947 = vmul.f32 %v4885, %v4941
      %v4948 = vmul.f32 %v4890, %v4941
      %v4949 = vmul.f32 %v4895, %v4941
      %v4950 = vmul.f32 %v4900, %v4941
      %v4951 = vmul.f32 %v4905, %v4941
      %v4952 = vmul.f32 %v4910, %v4941
      %v4953 = vmul.f32 %v4915, %v4941
      %v4954 = vmul.f32 %v4920, %v4941
      %v4955 = vmul.f32 %v4925, %v4941
      %v4956 = vmul.f32 %v4930, %v4941
      %v4957 = vmul.f32 %v4935, %v4941
      %v4958 = vsel %vm335, %v4942, 0.0
      %4959 = vadd.xlane.f32.xlu0 %v4958
      %v4960 = vpop.xlane.xlu0 %4959
      %v4961 = vsel %vm335, %v4943, 0.0
      %4962 = vadd.xlane.f32.xlu0 %v4961
      %v4963 = vpop.xlane.xlu0 %4962
      %v4964 = vsel %vm335, %v4944, 0.0
      %4965 = vadd.xlane.f32.xlu0 %v4964
      %v4966 = vpop.xlane.xlu0 %4965
      %v4967 = vsel %vm335, %v4945, 0.0
      %4968 = vadd.xlane.f32.xlu0 %v4967
      %v4969 = vpop.xlane.xlu0 %4968
      %v4970 = vsel %vm335, %v4946, 0.0
      %4971 = vadd.xlane.f32.xlu0 %v4970
      %v4972 = vpop.xlane.xlu0 %4971
      %v4973 = vsel %vm335, %v4947, 0.0
      %4974 = vadd.xlane.f32.xlu0 %v4973
      %v4975 = vpop.xlane.xlu0 %4974
      %v4976 = vsel %vm335, %v4948, 0.0
      %4977 = vadd.xlane.f32.xlu0 %v4976
      %v4978 = vpop.xlane.xlu0 %4977
      %v4979 = vsel %vm335, %v4949, 0.0
      %4980 = vadd.xlane.f32.xlu0 %v4979
      %v4981 = vpop.xlane.xlu0 %4980
      %v4982 = vsel %vm335, %v4950, 0.0
      %4983 = vadd.xlane.f32.xlu0 %v4982
      %v4984 = vpop.xlane.xlu0 %4983
      %v4985 = vsel %vm335, %v4951, 0.0
      %4986 = vadd.xlane.f32.xlu0 %v4985
      %v4987 = vpop.xlane.xlu0 %4986
      %v4988 = vsel %vm335, %v4952, 0.0
      %4989 = vadd.xlane.f32.xlu0 %v4988
      %v4990 = vpop.xlane.xlu0 %4989
      %v4991 = vsel %vm335, %v4953, 0.0
      %4992 = vadd.xlane.f32.xlu0 %v4991
      %v4993 = vpop.xlane.xlu0 %4992
      %v4994 = vsel %vm335, %v4954, 0.0
      %4995 = vadd.xlane.f32.xlu0 %v4994
      %v4996 = vpop.xlane.xlu0 %4995
      %v4997 = vsel %vm335, %v4955, 0.0
      %4998 = vadd.xlane.f32.xlu0 %v4997
      %v4999 = vpop.xlane.xlu0 %4998
      %v5000 = vsel %vm335, %v4956, 0.0
      %5001 = vadd.xlane.f32.xlu0 %v5000
      %v5002 = vpop.xlane.xlu0 %5001
      %v5003 = vsel %vm335, %v4957, 0.0
      %5004 = vadd.xlane.f32.xlu0 %v5003
      %v5005 = vpop.xlane.xlu0 %5004
      %v5006 = vlaneseq
      %v5007 = vshrl.u32 %v5006, 7
      %v5008 = vsub.s32 1, %v5007
      %v5009 = vrot.slane %v4739, %v5008
      %v5010 = vmul.f32 %v4860, %v5009
      %v5011 = vmul.f32 %v4865, %v5009
      %v5012 = vmul.f32 %v4870, %v5009
      %v5013 = vmul.f32 %v4875, %v5009
      %v5014 = vmul.f32 %v4880, %v5009
      %v5015 = vmul.f32 %v4885, %v5009
      %v5016 = vmul.f32 %v4890, %v5009
      %v5017 = vmul.f32 %v4895, %v5009
      %v5018 = vmul.f32 %v4900, %v5009
      %v5019 = vmul.f32 %v4905, %v5009
      %v5020 = vmul.f32 %v4910, %v5009
      %v5021 = vmul.f32 %v4915, %v5009
      %v5022 = vmul.f32 %v4920, %v5009
      %v5023 = vmul.f32 %v4925, %v5009
      %v5024 = vmul.f32 %v4930, %v5009
      %v5025 = vmul.f32 %v4935, %v5009
      %v5026 = vsel %vm335, %v5010, 0.0
      %5027 = vadd.xlane.f32.xlu0 %v5026
      %v5028 = vpop.xlane.xlu0 %5027
      %v5029 = vsel %vm335, %v5011, 0.0
      %5030 = vadd.xlane.f32.xlu0 %v5029
      %v5031 = vpop.xlane.xlu0 %5030
      %v5032 = vsel %vm335, %v5012, 0.0
      %5033 = vadd.xlane.f32.xlu0 %v5032
      %v5034 = vpop.xlane.xlu0 %5033
      %v5035 = vsel %vm335, %v5013, 0.0
      %5036 = vadd.xlane.f32.xlu0 %v5035
      %v5037 = vpop.xlane.xlu0 %5036
      %v5038 = vsel %vm335, %v5014, 0.0
      %5039 = vadd.xlane.f32.xlu0 %v5038
      %v5040 = vpop.xlane.xlu0 %5039
      %v5041 = vsel %vm335, %v5015, 0.0
      %5042 = vadd.xlane.f32.xlu0 %v5041
      %v5043 = vpop.xlane.xlu0 %5042
      %v5044 = vsel %vm335, %v5016, 0.0
      %5045 = vadd.xlane.f32.xlu0 %v5044
      %v5046 = vpop.xlane.xlu0 %5045
      %v5047 = vsel %vm335, %v5017, 0.0
      %5048 = vadd.xlane.f32.xlu0 %v5047
      %v5049 = vpop.xlane.xlu0 %5048
      %v5050 = vsel %vm335, %v5018, 0.0
      %5051 = vadd.xlane.f32.xlu0 %v5050
      %v5052 = vpop.xlane.xlu0 %5051
      %v5053 = vsel %vm335, %v5019, 0.0
      %5054 = vadd.xlane.f32.xlu0 %v5053
      %v5055 = vpop.xlane.xlu0 %5054
      %v5056 = vsel %vm335, %v5020, 0.0
      %5057 = vadd.xlane.f32.xlu0 %v5056
      %v5058 = vpop.xlane.xlu0 %5057
      %v5059 = vsel %vm335, %v5021, 0.0
      %5060 = vadd.xlane.f32.xlu0 %v5059
      %v5061 = vpop.xlane.xlu0 %5060
      %v5062 = vsel %vm335, %v5022, 0.0
      %5063 = vadd.xlane.f32.xlu0 %v5062
      %v5064 = vpop.xlane.xlu0 %5063
      %v5065 = vsel %vm335, %v5023, 0.0
      %5066 = vadd.xlane.f32.xlu0 %v5065
      %v5067 = vpop.xlane.xlu0 %5066
      %v5068 = vsel %vm335, %v5024, 0.0
      %5069 = vadd.xlane.f32.xlu0 %v5068
      %v5070 = vpop.xlane.xlu0 %5069
      %v5071 = vsel %vm335, %v5025, 0.0
      %5072 = vadd.xlane.f32.xlu0 %v5071
      %v5073 = vpop.xlane.xlu0 %5072
      %v5090 = vlaneseq
      %v5091 = vshrl.u32 %v5090, 7
      %v5092 = vsub.s32 %v686, %v5091
      %v5093 = vrot.slane %v5028, %v5092
      %v5094 = vlaneseq
      %v5095 = vshrl.u32 %v5094, 7
      %v5096 = vsub.s32 %v691, %v5095
      %v5097 = vrot.slane %v5031, %v5096
      %v5098 = vsel %vm696, %v5097, %v5093
      %v5099 = vlaneseq
      %v5100 = vshrl.u32 %v5099, 7
      %v5101 = vsub.s32 %v686, %v5100
      %v5102 = vrot.slane %v5034, %v5101
      %v5103 = vlaneseq
      %v5104 = vshrl.u32 %v5103, 7
      %v5105 = vsub.s32 %v691, %v5104
      %v5106 = vrot.slane %v5037, %v5105
      %v5107 = vsel %vm696, %v5106, %v5102
      %v5108 = vlaneseq
      %v5109 = vshrl.u32 %v5108, 7
      %v5110 = vsub.s32 %v686, %v5109
      %v5111 = vrot.slane %v5040, %v5110
      %v5112 = vlaneseq
      %v5113 = vshrl.u32 %v5112, 7
      %v5114 = vsub.s32 %v691, %v5113
      %v5115 = vrot.slane %v5043, %v5114
      %v5116 = vsel %vm696, %v5115, %v5111
      %v5117 = vlaneseq
      %v5118 = vshrl.u32 %v5117, 7
      %v5119 = vsub.s32 %v686, %v5118
      %v5120 = vrot.slane %v5046, %v5119
      %v5121 = vlaneseq
      %v5122 = vshrl.u32 %v5121, 7
      %v5123 = vsub.s32 %v691, %v5122
      %v5124 = vrot.slane %v5049, %v5123
      %v5125 = vsel %vm696, %v5124, %v5120
      %v5126 = vlaneseq
      %v5127 = vshrl.u32 %v5126, 7
      %v5128 = vsub.s32 %v686, %v5127
      %v5129 = vrot.slane %v5052, %v5128
      %v5130 = vlaneseq
      %v5131 = vshrl.u32 %v5130, 7
      %v5132 = vsub.s32 %v691, %v5131
      %v5133 = vrot.slane %v5055, %v5132
      %v5134 = vsel %vm696, %v5133, %v5129
      %v5135 = vlaneseq
      %v5136 = vshrl.u32 %v5135, 7
      %v5137 = vsub.s32 %v686, %v5136
      %v5138 = vrot.slane %v5058, %v5137
      %v5139 = vlaneseq
      %v5140 = vshrl.u32 %v5139, 7
      %v5141 = vsub.s32 %v691, %v5140
      %v5142 = vrot.slane %v5061, %v5141
      %v5143 = vsel %vm696, %v5142, %v5138
      %v5144 = vlaneseq
      %v5145 = vshrl.u32 %v5144, 7
      %v5146 = vsub.s32 %v686, %v5145
      %v5147 = vrot.slane %v5064, %v5146
      %v5148 = vlaneseq
      %v5149 = vshrl.u32 %v5148, 7
      %v5150 = vsub.s32 %v691, %v5149
      %v5151 = vrot.slane %v5067, %v5150
      %v5152 = vsel %vm696, %v5151, %v5147
      %v5153 = vlaneseq
      %v5154 = vshrl.u32 %v5153, 7
      %v5155 = vsub.s32 %v686, %v5154
      %v5156 = vrot.slane %v5070, %v5155
      %v5157 = vlaneseq
      %v5158 = vshrl.u32 %v5157, 7
      %v5159 = vsub.s32 %v691, %v5158
      %v5160 = vrot.slane %v5073, %v5159
      %v5161 = vsel %vm696, %v5160, %v5156
      %v5162 = vsel %vm761, %v5098, %v5098
      %v5163 = vsel %vm763, %v5098, %v5162
      %v5164 = vsel %vm765, %v5098, %v5163
      %v5165 = vsel %vm767, %v5098, %v5164
      %v5166 = vsel %vm769, %v5098, %v5165
      %v5167 = vsel %vm771, %v5098, %v5166
      %v5168 = vsel %vm761, %v5107, %v5107
      %v5169 = vsel %vm763, %v5107, %v5168
      %v5170 = vsel %vm765, %v5107, %v5169
      %v5171 = vsel %vm767, %v5107, %v5170
      %v5172 = vsel %vm769, %v5107, %v5171
      %v5173 = vsel %vm771, %v5107, %v5172
      %v5174 = vsel %vm761, %v5116, %v5116
      %v5175 = vsel %vm763, %v5116, %v5174
      %v5176 = vsel %vm765, %v5116, %v5175
      %v5177 = vsel %vm767, %v5116, %v5176
      %v5178 = vsel %vm769, %v5116, %v5177
      %v5179 = vsel %vm771, %v5116, %v5178
      %v5180 = vsel %vm761, %v5125, %v5125
      %v5181 = vsel %vm763, %v5125, %v5180
      %v5182 = vsel %vm765, %v5125, %v5181
      %v5183 = vsel %vm767, %v5125, %v5182
      %v5184 = vsel %vm769, %v5125, %v5183
      %v5185 = vsel %vm771, %v5125, %v5184
      %v5186 = vsel %vm761, %v5134, %v5134
      %v5187 = vsel %vm763, %v5134, %v5186
      %v5188 = vsel %vm765, %v5134, %v5187
      %v5189 = vsel %vm767, %v5134, %v5188
      %v5190 = vsel %vm769, %v5134, %v5189
      %v5191 = vsel %vm771, %v5134, %v5190
      %v5192 = vsel %vm761, %v5143, %v5143
      %v5193 = vsel %vm763, %v5143, %v5192
      %v5194 = vsel %vm765, %v5143, %v5193
      %v5195 = vsel %vm767, %v5143, %v5194
      %v5196 = vsel %vm769, %v5143, %v5195
      %v5197 = vsel %vm771, %v5143, %v5196
      %v5198 = vsel %vm761, %v5152, %v5152
      %v5199 = vsel %vm763, %v5152, %v5198
      %v5200 = vsel %vm765, %v5152, %v5199
      %v5201 = vsel %vm767, %v5152, %v5200
      %v5202 = vsel %vm769, %v5152, %v5201
      %v5203 = vsel %vm771, %v5152, %v5202
      %v5204 = vsel %vm761, %v5161, %v5161
      %v5205 = vsel %vm763, %v5161, %v5204
      %v5206 = vsel %vm765, %v5161, %v5205
      %v5207 = vsel %vm767, %v5161, %v5206
      %v5208 = vsel %vm769, %v5161, %v5207
      %v5209 = vsel %vm771, %v5161, %v5208
      %v5218 = vadd.f32 %v4960, %v5167
      %v5219 = vadd.f32 %v4963, %v5167
      %v5220 = vadd.f32 %v4966, %v5173
      %v5221 = vadd.f32 %v4969, %v5173
      %v5222 = vadd.f32 %v4972, %v5179
      %v5223 = vadd.f32 %v4975, %v5179
      %v5224 = vadd.f32 %v4978, %v5185
      %v5225 = vadd.f32 %v4981, %v5185
      %v5226 = vadd.f32 %v4984, %v5191
      %v5227 = vadd.f32 %v4987, %v5191
      %v5228 = vadd.f32 %v4990, %v5197
      %v5229 = vadd.f32 %v4993, %v5197
      %v5230 = vadd.f32 %v4996, %v5203
      %v5231 = vadd.f32 %v4999, %v5203
      %v5232 = vadd.f32 %v5002, %v5209
      %v5233 = vadd.f32 %v5005, %v5209
      %vm5234 = vcmp.gt.f32.partialorder %v5218, 0.0
      %vm5235 = vcmp.gt.f32.partialorder %v5219, 0.0
      %vm5236 = vcmp.gt.f32.partialorder %v5220, 0.0
      %vm5237 = vcmp.gt.f32.partialorder %v5221, 0.0
      %vm5238 = vcmp.gt.f32.partialorder %v5222, 0.0
      %vm5239 = vcmp.gt.f32.partialorder %v5223, 0.0
      %vm5240 = vcmp.gt.f32.partialorder %v5224, 0.0
      %vm5241 = vcmp.gt.f32.partialorder %v5225, 0.0
      %vm5242 = vcmp.gt.f32.partialorder %v5226, 0.0
      %vm5243 = vcmp.gt.f32.partialorder %v5227, 0.0
      %vm5244 = vcmp.gt.f32.partialorder %v5228, 0.0
      %vm5245 = vcmp.gt.f32.partialorder %v5229, 0.0
      %vm5246 = vcmp.gt.f32.partialorder %v5230, 0.0
      %vm5247 = vcmp.gt.f32.partialorder %v5231, 0.0
      %vm5248 = vcmp.gt.f32.partialorder %v5232, 0.0
      %vm5249 = vcmp.gt.f32.partialorder %v5233, 0.0
      %v5250 = vmul.f32 %v5218, 0.2
      %v5251 = vmul.f32 %v5219, 0.2
      %v5252 = vmul.f32 %v5220, 0.2
      %v5253 = vmul.f32 %v5221, 0.2
      %v5254 = vmul.f32 %v5222, 0.2
      %v5255 = vmul.f32 %v5223, 0.2
      %v5256 = vmul.f32 %v5224, 0.2
      %v5257 = vmul.f32 %v5225, 0.2
      %v5258 = vmul.f32 %v5226, 0.2
      %v5259 = vmul.f32 %v5227, 0.2
      %v5260 = vmul.f32 %v5228, 0.2
      %v5261 = vmul.f32 %v5229, 0.2
      %v5262 = vmul.f32 %v5230, 0.2
      %v5263 = vmul.f32 %v5231, 0.2
      %v5264 = vmul.f32 %v5232, 0.2
      %v5265 = vmul.f32 %v5233, 0.2
      %v5266 = vsel %vm5234, %v5218, %v5250
      %v5267 = vsel %vm5235, %v5219, %v5251
      %v5268 = vsel %vm5236, %v5220, %v5252
      %v5269 = vsel %vm5237, %v5221, %v5253
      %v5270 = vsel %vm5238, %v5222, %v5254
      %v5271 = vsel %vm5239, %v5223, %v5255
      %v5272 = vsel %vm5240, %v5224, %v5256
      %v5273 = vsel %vm5241, %v5225, %v5257
      %v5274 = vsel %vm5242, %v5226, %v5258
      %v5275 = vsel %vm5243, %v5227, %v5259
      %v5276 = vsel %vm5244, %v5228, %v5260
      %v5277 = vsel %vm5245, %v5229, %v5261
      %v5278 = vsel %vm5246, %v5230, %v5262
      %v5279 = vsel %vm5247, %v5231, %v5263
      %v5280 = vsel %vm5248, %v5232, %v5264
      %v5281 = vsel %vm5249, %v5233, %v5265
      %vm5282 = vcmp.gt.f32.partialorder %v4740, 0.0
      %vm5283 = vcmp.gt.f32.partialorder %v4741, 0.0
      %v5284 = vsel %vm5282, 1, 0
      %v5285 = vsel %vm5283, 1, 0
      %vm5286 = vcmp.eq.s32.totalorder %v5284, 1
      %vm5287 = vcmp.eq.s32.totalorder %v5285, 1
      %v5288 = vsel %vm5286, %v5266, -9e+15
      %v5289 = vsel %vm5287, %v5267, -9e+15
      %v5290 = vsel %vm5286, %v5268, -9e+15
      %v5291 = vsel %vm5287, %v5269, -9e+15
      %v5292 = vsel %vm5286, %v5270, -9e+15
      %v5293 = vsel %vm5287, %v5271, -9e+15
      %v5294 = vsel %vm5286, %v5272, -9e+15
      %v5295 = vsel %vm5287, %v5273, -9e+15
      %v5296 = vsel %vm5286, %v5274, -9e+15
      %v5297 = vsel %vm5287, %v5275, -9e+15
      %v5298 = vsel %vm5286, %v5276, -9e+15
      %v5299 = vsel %vm5287, %v5277, -9e+15
      %v5300 = vsel %vm5286, %v5278, -9e+15
      %v5301 = vsel %vm5287, %v5279, -9e+15
      %v5302 = vsel %vm5286, %v5280, -9e+15
      %v5303 = vsel %vm5287, %v5281, -9e+15
      %v5304 = vsel %vm909, %v5288, -inf
      %5305 = vmax.xlane.f32.xlu0 %v5304
      %v5306 = vpop.xlane.xlu0 %5305
      %v5307 = vsel %vm909, %v5289, -inf
      %5308 = vmax.xlane.f32.xlu0 %v5307
      %v5309 = vpop.xlane.xlu0 %5308
      %v5310 = vsel %vm909, %v5290, -inf
      %5311 = vmax.xlane.f32.xlu0 %v5310
      %v5312 = vpop.xlane.xlu0 %5311
      %v5313 = vsel %vm909, %v5291, -inf
      %5314 = vmax.xlane.f32.xlu0 %v5313
      %v5315 = vpop.xlane.xlu0 %5314
      %v5316 = vsel %vm909, %v5292, -inf
      %5317 = vmax.xlane.f32.xlu0 %v5316
      %v5318 = vpop.xlane.xlu0 %5317
      %v5319 = vsel %vm909, %v5293, -inf
      %5320 = vmax.xlane.f32.xlu0 %v5319
      %v5321 = vpop.xlane.xlu0 %5320
      %v5322 = vsel %vm909, %v5294, -inf
      %5323 = vmax.xlane.f32.xlu0 %v5322
      %v5324 = vpop.xlane.xlu0 %5323
      %v5325 = vsel %vm909, %v5295, -inf
      %5326 = vmax.xlane.f32.xlu0 %v5325
      %v5327 = vpop.xlane.xlu0 %5326
      %v5328 = vsel %vm909, %v5296, -inf
      %5329 = vmax.xlane.f32.xlu0 %v5328
      %v5330 = vpop.xlane.xlu0 %5329
      %v5331 = vsel %vm909, %v5297, -inf
      %5332 = vmax.xlane.f32.xlu0 %v5331
      %v5333 = vpop.xlane.xlu0 %5332
      %v5334 = vsel %vm909, %v5298, -inf
      %5335 = vmax.xlane.f32.xlu0 %v5334
      %v5336 = vpop.xlane.xlu0 %5335
      %v5337 = vsel %vm909, %v5299, -inf
      %5338 = vmax.xlane.f32.xlu0 %v5337
      %v5339 = vpop.xlane.xlu0 %5338
      %v5340 = vsel %vm909, %v5300, -inf
      %5341 = vmax.xlane.f32.xlu0 %v5340
      %v5342 = vpop.xlane.xlu0 %5341
      %v5343 = vsel %vm909, %v5301, -inf
      %5344 = vmax.xlane.f32.xlu0 %v5343
      %v5345 = vpop.xlane.xlu0 %5344
      %v5346 = vsel %vm909, %v5302, -inf
      %5347 = vmax.xlane.f32.xlu0 %v5346
      %v5348 = vpop.xlane.xlu0 %5347
      %v5349 = vsel %vm909, %v5303, -inf
      %5350 = vmax.xlane.f32.xlu0 %v5349
      %v5351 = vpop.xlane.xlu0 %5350
      %v5352 = vsub.f32 %v5288, %v5306
      %v5353 = vsub.f32 %v5289, %v5309
      %v5354 = vsub.f32 %v5290, %v5312
      %v5355 = vsub.f32 %v5291, %v5315
      %v5356 = vsub.f32 %v5292, %v5318
      %v5357 = vsub.f32 %v5293, %v5321
      %v5358 = vsub.f32 %v5294, %v5324
      %v5359 = vsub.f32 %v5295, %v5327
      %v5360 = vsub.f32 %v5296, %v5330
      %v5361 = vsub.f32 %v5297, %v5333
      %v5362 = vsub.f32 %v5298, %v5336
      %v5363 = vsub.f32 %v5299, %v5339
      %v5364 = vsub.f32 %v5300, %v5342
      %v5365 = vsub.f32 %v5301, %v5345
      %v5366 = vsub.f32 %v5302, %v5348
      %v5367 = vsub.f32 %v5303, %v5351
      %v5368 = vmul.f32 %v5352, 1.442695
      %v5369 = vpow.pop %v5368
      %v5370 = vmul.f32 %v5353, 1.442695
      %v5371 = vpow.pop %v5370
      %v5372 = vmul.f32 %v5354, 1.442695
      %v5373 = vpow.pop %v5372
      %v5374 = vmul.f32 %v5355, 1.442695
      %v5375 = vpow.pop %v5374
      %v5376 = vmul.f32 %v5356, 1.442695
      %v5377 = vpow.pop %v5376
      %v5378 = vmul.f32 %v5357, 1.442695
      %v5379 = vpow.pop %v5378
      %v5380 = vmul.f32 %v5358, 1.442695
      %v5381 = vpow.pop %v5380
      %v5382 = vmul.f32 %v5359, 1.442695
      %v5383 = vpow.pop %v5382
      %v5384 = vmul.f32 %v5360, 1.442695
      %v5385 = vpow.pop %v5384
      %v5386 = vmul.f32 %v5361, 1.442695
      %v5387 = vpow.pop %v5386
      %v5388 = vmul.f32 %v5362, 1.442695
      %v5389 = vpow.pop %v5388
      %v5390 = vmul.f32 %v5363, 1.442695
      %v5391 = vpow.pop %v5390
      %v5392 = vmul.f32 %v5364, 1.442695
      %v5393 = vpow.pop %v5392
      %v5394 = vmul.f32 %v5365, 1.442695
      %v5395 = vpow.pop %v5394
      %v5396 = vmul.f32 %v5366, 1.442695
      %v5397 = vpow.pop %v5396
      %v5398 = vmul.f32 %v5367, 1.442695
      %v5399 = vpow.pop %v5398
      %v5400 = vsel %vm909, %v5369, 0.0
      %5401 = vadd.xlane.f32.xlu0 %v5400
      %v5402 = vpop.xlane.xlu0 %5401
      %v5403 = vsel %vm909, %v5371, 0.0
      %5404 = vadd.xlane.f32.xlu0 %v5403
      %v5405 = vpop.xlane.xlu0 %5404
      %v5406 = vsel %vm909, %v5373, 0.0
      %5407 = vadd.xlane.f32.xlu0 %v5406
      %v5408 = vpop.xlane.xlu0 %5407
      %v5409 = vsel %vm909, %v5375, 0.0
      %5410 = vadd.xlane.f32.xlu0 %v5409
      %v5411 = vpop.xlane.xlu0 %5410
      %v5412 = vsel %vm909, %v5377, 0.0
      %5413 = vadd.xlane.f32.xlu0 %v5412
      %v5414 = vpop.xlane.xlu0 %5413
      %v5415 = vsel %vm909, %v5379, 0.0
      %5416 = vadd.xlane.f32.xlu0 %v5415
      %v5417 = vpop.xlane.xlu0 %5416
      %v5418 = vsel %vm909, %v5381, 0.0
      %5419 = vadd.xlane.f32.xlu0 %v5418
      %v5420 = vpop.xlane.xlu0 %5419
      %v5421 = vsel %vm909, %v5383, 0.0
      %5422 = vadd.xlane.f32.xlu0 %v5421
      %v5423 = vpop.xlane.xlu0 %5422
      %v5424 = vsel %vm909, %v5385, 0.0
      %5425 = vadd.xlane.f32.xlu0 %v5424
      %v5426 = vpop.xlane.xlu0 %5425
      %v5427 = vsel %vm909, %v5387, 0.0
      %5428 = vadd.xlane.f32.xlu0 %v5427
      %v5429 = vpop.xlane.xlu0 %5428
      %v5430 = vsel %vm909, %v5389, 0.0
      %5431 = vadd.xlane.f32.xlu0 %v5430
      %v5432 = vpop.xlane.xlu0 %5431
      %v5433 = vsel %vm909, %v5391, 0.0
      %5434 = vadd.xlane.f32.xlu0 %v5433
      %v5435 = vpop.xlane.xlu0 %5434
      %v5436 = vsel %vm909, %v5393, 0.0
      %5437 = vadd.xlane.f32.xlu0 %v5436
      %v5438 = vpop.xlane.xlu0 %5437
      %v5439 = vsel %vm909, %v5395, 0.0
      %5440 = vadd.xlane.f32.xlu0 %v5439
      %v5441 = vpop.xlane.xlu0 %5440
      %v5442 = vsel %vm909, %v5397, 0.0
      %5443 = vadd.xlane.f32.xlu0 %v5442
      %v5444 = vpop.xlane.xlu0 %5443
      %v5445 = vsel %vm909, %v5399, 0.0
      %5446 = vadd.xlane.f32.xlu0 %v5445
      %v5447 = vpop.xlane.xlu0 %5446
      %v5448 = vrcp.pop %v5402
      %v5449 = vmul.f32 %v5369, %v5448
      %v5450 = vrcp.pop %v5405
      %v5451 = vmul.f32 %v5371, %v5450
      %v5452 = vrcp.pop %v5408
      %v5453 = vmul.f32 %v5373, %v5452
      %v5454 = vrcp.pop %v5411
      %v5455 = vmul.f32 %v5375, %v5454
      %v5456 = vrcp.pop %v5414
      %v5457 = vmul.f32 %v5377, %v5456
      %v5458 = vrcp.pop %v5417
      %v5459 = vmul.f32 %v5379, %v5458
      %v5460 = vrcp.pop %v5420
      %v5461 = vmul.f32 %v5381, %v5460
      %v5462 = vrcp.pop %v5423
      %v5463 = vmul.f32 %v5383, %v5462
      %v5464 = vrcp.pop %v5426
      %v5465 = vmul.f32 %v5385, %v5464
      %v5466 = vrcp.pop %v5429
      %v5467 = vmul.f32 %v5387, %v5466
      %v5468 = vrcp.pop %v5432
      %v5469 = vmul.f32 %v5389, %v5468
      %v5470 = vrcp.pop %v5435
      %v5471 = vmul.f32 %v5391, %v5470
      %v5472 = vrcp.pop %v5438
      %v5473 = vmul.f32 %v5393, %v5472
      %v5474 = vrcp.pop %v5441
      %v5475 = vmul.f32 %v5395, %v5474
      %v5476 = vrcp.pop %v5444
      %v5477 = vmul.f32 %v5397, %v5476
      %v5478 = vrcp.pop %v5447
      %v5479 = vmul.f32 %v5399, %v5478
      %v5481 = vsel %vm909, %v5449, 0
      %v5484 = vsel %vm909, %v5451, 0
      %5486 = vmatprep.subr.mxu0 0.0
      %5487 = vmatpush1.msra.mxu0 %v4860
      %5488 = vmatprep.subr.mxu0 0.0
      %5489 = vmatpush1.msra.mxu0 %v4865
      %5490 = vmatprep.subr.mxu0 0.0
      %5491 = vmatpush1.msra.mxu0 0.0
      %5492 = vmatprep.subr.mxu0 0.0
      %5493 = vmatpush1.msra.mxu0 0.0
      %5494 = vmatprep.subr.mxu0 0.0
      %5495 = vmatpush1.msra.mxu0 0.0
      %5496 = vmatprep.subr.mxu0 0.0
      %5497 = vmatpush1.msra.mxu0 0.0
      %5498 = vmatprep.subr.mxu0 0.0
      %5499 = vmatpush1.msra.mxu0 0.0
      %5500 = vmatprep.subr.mxu0 0.0
      %5501 = vmatpush1.msra.mxu0 0.0
      %5502 = vmatprep.subr.mxu0 0.0
      %5503 = vmatpush1.msra.mxu0 0.0
      %5504 = vmatprep.subr.mxu0 0.0
      %5505 = vmatpush1.msra.mxu0 0.0
      %5506 = vmatprep.subr.mxu0 0.0
      %5507 = vmatpush1.msra.mxu0 0.0
      %5508 = vmatprep.subr.mxu0 0.0
      %5509 = vmatpush1.msra.mxu0 0.0
      %5510 = vmatprep.subr.mxu0 0.0
      %5511 = vmatpush1.msra.mxu0 0.0
      %5512 = vmatprep.subr.mxu0 0.0
      %5513 = vmatpush1.msra.mxu0 0.0
      %5514 = vmatprep.subr.mxu0 0.0
      %5515 = vmatpush1.msra.mxu0 0.0
      %5516 = vmatprep.subr.mxu0 0.0
      %5517 = vmatpush1.msra.mxu0 0.0
      %5518 = vmatprep.subr.mxu0 0.0
      %5519 = vmatpush1.msra.mxu0 0.0
      %5520 = vmatprep.subr.mxu0 0.0
      %5521 = vmatpush1.msra.mxu0 0.0
      %5522 = vmatprep.subr.mxu0 0.0
      %5523 = vmatpush1.msra.mxu0 0.0
      %5524 = vmatprep.subr.mxu0 0.0
      %5525 = vmatpush1.msra.mxu0 0.0
      %5526 = vmatprep.subr.mxu0 0.0
      %5527 = vmatpush1.msra.mxu0 0.0
      %5528 = vmatprep.subr.mxu0 0.0
      %5529 = vmatpush1.msra.mxu0 0.0
      %5530 = vmatprep.subr.mxu0 0.0
      %5531 = vmatpush1.msra.mxu0 0.0
      %5532 = vmatprep.subr.mxu0 0.0
      %5533 = vmatpush1.msra.mxu0 0.0
      %5534 = vmatprep.subr.mxu0 0.0
      %5535 = vmatpush1.msra.mxu0 0.0
      %5536 = vmatprep.subr.mxu0 0.0
      %5537 = vmatpush1.msra.mxu0 0.0
      %5538 = vmatprep.subr.mxu0 0.0
      %5539 = vmatpush1.msra.mxu0 0.0
      %5540 = vmatprep.subr.mxu0 0.0
      %5541 = vmatpush1.msra.mxu0 0.0
      %5542 = vmatprep.subr.mxu0 0.0
      %5543 = vmatpush1.msra.mxu0 0.0
      %5544 = vmatprep.subr.mxu0 0.0
      %5545 = vmatpush1.msra.mxu0 0.0
      %5546 = vmatprep.subr.mxu0 0.0
      %5547 = vmatpush1.msra.mxu0 0.0
      %5548 = vmatprep.subr.mxu0 0.0
      %5549 = vmatpush1.msra.mxu0 0.0
      %5550 = vmatprep.mubr.f32.mxu0 0.0
      %5551 = vmatmul.mubr.f32.gmra.mrb[0].mxu0 %v5481
      %v5552 = vpop.f32.mrb[0].mxu0
      %v5553 = vadd.f32 0.0, %v5552
      %v5554 = vpop.f32.mrb[0].mxu0
      %5555 = vmatprep.mubr.f32.mxu0 0.0
      %5556 = vmatmul.mubr.f32.gmra.mrb[0].mxu0 %v5484
      %v5557 = vpop.f32.mrb[0].mxu0
      %v5558 = vadd.f32 0.0, %v5557
      %v5559 = vpop.f32.mrb[0].mxu0
      %5560 = vdwg.mxu0
      %v5562 = vsel %vm909, %v5453, 0
      %v5565 = vsel %vm909, %v5455, 0
      %5567 = vmatprep.subr.mxu0 0.0
      %5568 = vmatpush1.msra.mxu0 %v4870
      %5569 = vmatprep.subr.mxu0 0.0
      %5570 = vmatpush1.msra.mxu0 %v4875
      %5571 = vmatprep.subr.mxu0 0.0
      %5572 = vmatpush1.msra.mxu0 0.0
      %5573 = vmatprep.subr.mxu0 0.0
      %5574 = vmatpush1.msra.mxu0 0.0
      %5575 = vmatprep.subr.mxu0 0.0
      %5576 = vmatpush1.msra.mxu0 0.0
      %5577 = vmatprep.subr.mxu0 0.0
      %5578 = vmatpush1.msra.mxu0 0.0
      %5579 = vmatprep.subr.mxu0 0.0
      %5580 = vmatpush1.msra.mxu0 0.0
      %5581 = vmatprep.subr.mxu0 0.0
      %5582 = vmatpush1.msra.mxu0 0.0
      %5583 = vmatprep.subr.mxu0 0.0
      %5584 = vmatpush1.msra.mxu0 0.0
      %5585 = vmatprep.subr.mxu0 0.0
      %5586 = vmatpush1.msra.mxu0 0.0
      %5587 = vmatprep.subr.mxu0 0.0
      %5588 = vmatpush1.msra.mxu0 0.0
      %5589 = vmatprep.subr.mxu0 0.0
      %5590 = vmatpush1.msra.mxu0 0.0
      %5591 = vmatprep.subr.mxu0 0.0
      %5592 = vmatpush1.msra.mxu0 0.0
      %5593 = vmatprep.subr.mxu0 0.0
      %5594 = vmatpush1.msra.mxu0 0.0
      %5595 = vmatprep.subr.mxu0 0.0
      %5596 = vmatpush1.msra.mxu0 0.0
      %5597 = vmatprep.subr.mxu0 0.0
      %5598 = vmatpush1.msra.mxu0 0.0
      %5599 = vmatprep.subr.mxu0 0.0
      %5600 = vmatpush1.msra.mxu0 0.0
      %5601 = vmatprep.subr.mxu0 0.0
      %5602 = vmatpush1.msra.mxu0 0.0
      %5603 = vmatprep.subr.mxu0 0.0
      %5604 = vmatpush1.msra.mxu0 0.0
      %5605 = vmatprep.subr.mxu0 0.0
      %5606 = vmatpush1.msra.mxu0 0.0
      %5607 = vmatprep.subr.mxu0 0.0
      %5608 = vmatpush1.msra.mxu0 0.0
      %5609 = vmatprep.subr.mxu0 0.0
      %5610 = vmatpush1.msra.mxu0 0.0
      %5611 = vmatprep.subr.mxu0 0.0
      %5612 = vmatpush1.msra.mxu0 0.0
      %5613 = vmatprep.subr.mxu0 0.0
      %5614 = vmatpush1.msra.mxu0 0.0
      %5615 = vmatprep.subr.mxu0 0.0
      %5616 = vmatpush1.msra.mxu0 0.0
      %5617 = vmatprep.subr.mxu0 0.0
      %5618 = vmatpush1.msra.mxu0 0.0
      %5619 = vmatprep.subr.mxu0 0.0
      %5620 = vmatpush1.msra.mxu0 0.0
      %5621 = vmatprep.subr.mxu0 0.0
      %5622 = vmatpush1.msra.mxu0 0.0
      %5623 = vmatprep.subr.mxu0 0.0
      %5624 = vmatpush1.msra.mxu0 0.0
      %5625 = vmatprep.subr.mxu0 0.0
      %5626 = vmatpush1.msra.mxu0 0.0
      %5627 = vmatprep.subr.mxu0 0.0
      %5628 = vmatpush1.msra.mxu0 0.0
      %5629 = vmatprep.subr.mxu0 0.0
      %5630 = vmatpush1.msra.mxu0 0.0
      %5631 = vmatprep.mubr.f32.mxu0 0.0
      %5632 = vmatmul.mubr.f32.gmra.mrb[0].mxu0 %v5562
      %v5633 = vpop.f32.mrb[0].mxu0
      %v5634 = vadd.f32 0.0, %v5633
      %v5635 = vpop.f32.mrb[0].mxu0
      %5636 = vmatprep.mubr.f32.mxu0 0.0
      %5637 = vmatmul.mubr.f32.gmra.mrb[0].mxu0 %v5565
      %v5638 = vpop.f32.mrb[0].mxu0
      %v5639 = vadd.f32 0.0, %v5638
      %v5640 = vpop.f32.mrb[0].mxu0
      %5641 = vdwg.mxu0
      %v5643 = vsel %vm909, %v5457, 0
      %v5646 = vsel %vm909, %v5459, 0
      %5648 = vmatprep.subr.mxu0 0.0
      %5649 = vmatpush1.msra.mxu0 %v4880
      %5650 = vmatprep.subr.mxu0 0.0
      %5651 = vmatpush1.msra.mxu0 %v4885
      %5652 = vmatprep.subr.mxu0 0.0
      %5653 = vmatpush1.msra.mxu0 0.0
      %5654 = vmatprep.subr.mxu0 0.0
      %5655 = vmatpush1.msra.mxu0 0.0
      %5656 = vmatprep.subr.mxu0 0.0
      %5657 = vmatpush1.msra.mxu0 0.0
      %5658 = vmatprep.subr.mxu0 0.0
      %5659 = vmatpush1.msra.mxu0 0.0
      %5660 = vmatprep.subr.mxu0 0.0
      %5661 = vmatpush1.msra.mxu0 0.0
      %5662 = vmatprep.subr.mxu0 0.0
      %5663 = vmatpush1.msra.mxu0 0.0
      %5664 = vmatprep.subr.mxu0 0.0
      %5665 = vmatpush1.msra.mxu0 0.0
      %5666 = vmatprep.subr.mxu0 0.0
      %5667 = vmatpush1.msra.mxu0 0.0
      %5668 = vmatprep.subr.mxu0 0.0
      %5669 = vmatpush1.msra.mxu0 0.0
      %5670 = vmatprep.subr.mxu0 0.0
      %5671 = vmatpush1.msra.mxu0 0.0
      %5672 = vmatprep.subr.mxu0 0.0
      %5673 = vmatpush1.msra.mxu0 0.0
      %5674 = vmatprep.subr.mxu0 0.0
      %5675 = vmatpush1.msra.mxu0 0.0
      %5676 = vmatprep.subr.mxu0 0.0
      %5677 = vmatpush1.msra.mxu0 0.0
      %5678 = vmatprep.subr.mxu0 0.0
      %5679 = vmatpush1.msra.mxu0 0.0
      %5680 = vmatprep.subr.mxu0 0.0
      %5681 = vmatpush1.msra.mxu0 0.0
      %5682 = vmatprep.subr.mxu0 0.0
      %5683 = vmatpush1.msra.mxu0 0.0
      %5684 = vmatprep.subr.mxu0 0.0
      %5685 = vmatpush1.msra.mxu0 0.0
      %5686 = vmatprep.subr.mxu0 0.0
      %5687 = vmatpush1.msra.mxu0 0.0
      %5688 = vmatprep.subr.mxu0 0.0
      %5689 = vmatpush1.msra.mxu0 0.0
      %5690 = vmatprep.subr.mxu0 0.0
      %5691 = vmatpush1.msra.mxu0 0.0
      %5692 = vmatprep.subr.mxu0 0.0
      %5693 = vmatpush1.msra.mxu0 0.0
      %5694 = vmatprep.subr.mxu0 0.0
      %5695 = vmatpush1.msra.mxu0 0.0
      %5696 = vmatprep.subr.mxu0 0.0
      %5697 = vmatpush1.msra.mxu0 0.0
      %5698 = vmatprep.subr.mxu0 0.0
      %5699 = vmatpush1.msra.mxu0 0.0
      %5700 = vmatprep.subr.mxu0 0.0
      %5701 = vmatpush1.msra.mxu0 0.0
      %5702 = vmatprep.subr.mxu0 0.0
      %5703 = vmatpush1.msra.mxu0 0.0
      %5704 = vmatprep.subr.mxu0 0.0
      %5705 = vmatpush1.msra.mxu0 0.0
      %5706 = vmatprep.subr.mxu0 0.0
      %5707 = vmatpush1.msra.mxu0 0.0
      %5708 = vmatprep.subr.mxu0 0.0
      %5709 = vmatpush1.msra.mxu0 0.0
      %5710 = vmatprep.subr.mxu0 0.0
      %5711 = vmatpush1.msra.mxu0 0.0
      %5712 = vmatprep.mubr.f32.mxu0 0.0
      %5713 = vmatmul.mubr.f32.gmra.mrb[0].mxu0 %v5643
      %v5714 = vpop.f32.mrb[0].mxu0
      %v5715 = vadd.f32 0.0, %v5714
      %v5716 = vpop.f32.mrb[0].mxu0
      %5717 = vmatprep.mubr.f32.mxu0 0.0
      %5718 = vmatmul.mubr.f32.gmra.mrb[0].mxu0 %v5646
      %v5719 = vpop.f32.mrb[0].mxu0
      %v5720 = vadd.f32 0.0, %v5719
      %v5721 = vpop.f32.mrb[0].mxu0
      %5722 = vdwg.mxu0
      %v5724 = vsel %vm909, %v5461, 0
      %v5727 = vsel %vm909, %v5463, 0
      %5729 = vmatprep.subr.mxu0 0.0
      %5730 = vmatpush1.msra.mxu0 %v4890
      %5731 = vmatprep.subr.mxu0 0.0
      %5732 = vmatpush1.msra.mxu0 %v4895
      %5733 = vmatprep.subr.mxu0 0.0
      %5734 = vmatpush1.msra.mxu0 0.0
      %5735 = vmatprep.subr.mxu0 0.0
      %5736 = vmatpush1.msra.mxu0 0.0
      %5737 = vmatprep.subr.mxu0 0.0
      %5738 = vmatpush1.msra.mxu0 0.0
      %5739 = vmatprep.subr.mxu0 0.0
      %5740 = vmatpush1.msra.mxu0 0.0
      %5741 = vmatprep.subr.mxu0 0.0
      %5742 = vmatpush1.msra.mxu0 0.0
      %5743 = vmatprep.subr.mxu0 0.0
      %5744 = vmatpush1.msra.mxu0 0.0
      %5745 = vmatprep.subr.mxu0 0.0
      %5746 = vmatpush1.msra.mxu0 0.0
      %5747 = vmatprep.subr.mxu0 0.0
      %5748 = vmatpush1.msra.mxu0 0.0
      %5749 = vmatprep.subr.mxu0 0.0
      %5750 = vmatpush1.msra.mxu0 0.0
      %5751 = vmatprep.subr.mxu0 0.0
      %5752 = vmatpush1.msra.mxu0 0.0
      %5753 = vmatprep.subr.mxu0 0.0
      %5754 = vmatpush1.msra.mxu0 0.0
      %5755 = vmatprep.subr.mxu0 0.0
      %5756 = vmatpush1.msra.mxu0 0.0
      %5757 = vmatprep.subr.mxu0 0.0
      %5758 = vmatpush1.msra.mxu0 0.0
      %5759 = vmatprep.subr.mxu0 0.0
      %5760 = vmatpush1.msra.mxu0 0.0
      %5761 = vmatprep.subr.mxu0 0.0
      %5762 = vmatpush1.msra.mxu0 0.0
      %5763 = vmatprep.subr.mxu0 0.0
      %5764 = vmatpush1.msra.mxu0 0.0
      %5765 = vmatprep.subr.mxu0 0.0
      %5766 = vmatpush1.msra.mxu0 0.0
      %5767 = vmatprep.subr.mxu0 0.0
      %5768 = vmatpush1.msra.mxu0 0.0
      %5769 = vmatprep.subr.mxu0 0.0
      %5770 = vmatpush1.msra.mxu0 0.0
      %5771 = vmatprep.subr.mxu0 0.0
      %5772 = vmatpush1.msra.mxu0 0.0
      %5773 = vmatprep.subr.mxu0 0.0
      %5774 = vmatpush1.msra.mxu0 0.0
      %5775 = vmatprep.subr.mxu0 0.0
      %5776 = vmatpush1.msra.mxu0 0.0
      %5777 = vmatprep.subr.mxu0 0.0
      %5778 = vmatpush1.msra.mxu0 0.0
      %5779 = vmatprep.subr.mxu0 0.0
      %5780 = vmatpush1.msra.mxu0 0.0
      %5781 = vmatprep.subr.mxu0 0.0
      %5782 = vmatpush1.msra.mxu0 0.0
      %5783 = vmatprep.subr.mxu0 0.0
      %5784 = vmatpush1.msra.mxu0 0.0
      %5785 = vmatprep.subr.mxu0 0.0
      %5786 = vmatpush1.msra.mxu0 0.0
      %5787 = vmatprep.subr.mxu0 0.0
      %5788 = vmatpush1.msra.mxu0 0.0
      %5789 = vmatprep.subr.mxu0 0.0
      %5790 = vmatpush1.msra.mxu0 0.0
      %5791 = vmatprep.subr.mxu0 0.0
      %5792 = vmatpush1.msra.mxu0 0.0
      %5793 = vmatprep.mubr.f32.mxu0 0.0
      %5794 = vmatmul.mubr.f32.gmra.mrb[0].mxu0 %v5724
      %v5795 = vpop.f32.mrb[0].mxu0
      %v5796 = vadd.f32 0.0, %v5795
      %v5797 = vpop.f32.mrb[0].mxu0
      %5798 = vmatprep.mubr.f32.mxu0 0.0
      %5799 = vmatmul.mubr.f32.gmra.mrb[0].mxu0 %v5727
      %v5800 = vpop.f32.mrb[0].mxu0
      %v5801 = vadd.f32 0.0, %v5800
      %v5802 = vpop.f32.mrb[0].mxu0
      %5803 = vdwg.mxu0
      %v5805 = vsel %vm909, %v5465, 0
      %v5808 = vsel %vm909, %v5467, 0
      %5810 = vmatprep.subr.mxu0 0.0
      %5811 = vmatpush1.msra.mxu0 %v4900
      %5812 = vmatprep.subr.mxu0 0.0
      %5813 = vmatpush1.msra.mxu0 %v4905
      %5814 = vmatprep.subr.mxu0 0.0
      %5815 = vmatpush1.msra.mxu0 0.0
      %5816 = vmatprep.subr.mxu0 0.0
      %5817 = vmatpush1.msra.mxu0 0.0
      %5818 = vmatprep.subr.mxu0 0.0
      %5819 = vmatpush1.msra.mxu0 0.0
      %5820 = vmatprep.subr.mxu0 0.0
      %5821 = vmatpush1.msra.mxu0 0.0
      %5822 = vmatprep.subr.mxu0 0.0
      %5823 = vmatpush1.msra.mxu0 0.0
      %5824 = vmatprep.subr.mxu0 0.0
      %5825 = vmatpush1.msra.mxu0 0.0
      %5826 = vmatprep.subr.mxu0 0.0
      %5827 = vmatpush1.msra.mxu0 0.0
      %5828 = vmatprep.subr.mxu0 0.0
      %5829 = vmatpush1.msra.mxu0 0.0
      %5830 = vmatprep.subr.mxu0 0.0
      %5831 = vmatpush1.msra.mxu0 0.0
      %5832 = vmatprep.subr.mxu0 0.0
      %5833 = vmatpush1.msra.mxu0 0.0
      %5834 = vmatprep.subr.mxu0 0.0
      %5835 = vmatpush1.msra.mxu0 0.0
      %5836 = vmatprep.subr.mxu0 0.0
      %5837 = vmatpush1.msra.mxu0 0.0
      %5838 = vmatprep.subr.mxu0 0.0
      %5839 = vmatpush1.msra.mxu0 0.0
      %5840 = vmatprep.subr.mxu0 0.0
      %5841 = vmatpush1.msra.mxu0 0.0
      %5842 = vmatprep.subr.mxu0 0.0
      %5843 = vmatpush1.msra.mxu0 0.0
      %5844 = vmatprep.subr.mxu0 0.0
      %5845 = vmatpush1.msra.mxu0 0.0
      %5846 = vmatprep.subr.mxu0 0.0
      %5847 = vmatpush1.msra.mxu0 0.0
      %5848 = vmatprep.subr.mxu0 0.0
      %5849 = vmatpush1.msra.mxu0 0.0
      %5850 = vmatprep.subr.mxu0 0.0
      %5851 = vmatpush1.msra.mxu0 0.0
      %5852 = vmatprep.subr.mxu0 0.0
      %5853 = vmatpush1.msra.mxu0 0.0
      %5854 = vmatprep.subr.mxu0 0.0
      %5855 = vmatpush1.msra.mxu0 0.0
      %5856 = vmatprep.subr.mxu0 0.0
      %5857 = vmatpush1.msra.mxu0 0.0
      %5858 = vmatprep.subr.mxu0 0.0
      %5859 = vmatpush1.msra.mxu0 0.0
      %5860 = vmatprep.subr.mxu0 0.0
      %5861 = vmatpush1.msra.mxu0 0.0
      %5862 = vmatprep.subr.mxu0 0.0
      %5863 = vmatpush1.msra.mxu0 0.0
      %5864 = vmatprep.subr.mxu0 0.0
      %5865 = vmatpush1.msra.mxu0 0.0
      %5866 = vmatprep.subr.mxu0 0.0
      %5867 = vmatpush1.msra.mxu0 0.0
      %5868 = vmatprep.subr.mxu0 0.0
      %5869 = vmatpush1.msra.mxu0 0.0
      %5870 = vmatprep.subr.mxu0 0.0
      %5871 = vmatpush1.msra.mxu0 0.0
      %5872 = vmatprep.subr.mxu0 0.0
      %5873 = vmatpush1.msra.mxu0 0.0
      %5874 = vmatprep.mubr.f32.mxu0 0.0
      %5875 = vmatmul.mubr.f32.gmra.mrb[0].mxu0 %v5805
      %v5876 = vpop.f32.mrb[0].mxu0
      %v5877 = vadd.f32 0.0, %v5876
      %v5878 = vpop.f32.mrb[0].mxu0
      %5879 = vmatprep.mubr.f32.mxu0 0.0
      %5880 = vmatmul.mubr.f32.gmra.mrb[0].mxu0 %v5808
      %v5881 = vpop.f32.mrb[0].mxu0
      %v5882 = vadd.f32 0.0, %v5881
      %v5883 = vpop.f32.mrb[0].mxu0
      %5884 = vdwg.mxu0
      %v5886 = vsel %vm909, %v5469, 0
      %v5889 = vsel %vm909, %v5471, 0
      %5891 = vmatprep.subr.mxu0 0.0
      %5892 = vmatpush1.msra.mxu0 %v4910
      %5893 = vmatprep.subr.mxu0 0.0
      %5894 = vmatpush1.msra.mxu0 %v4915
      %5895 = vmatprep.subr.mxu0 0.0
      %5896 = vmatpush1.msra.mxu0 0.0
      %5897 = vmatprep.subr.mxu0 0.0
      %5898 = vmatpush1.msra.mxu0 0.0
      %5899 = vmatprep.subr.mxu0 0.0
      %5900 = vmatpush1.msra.mxu0 0.0
      %5901 = vmatprep.subr.mxu0 0.0
      %5902 = vmatpush1.msra.mxu0 0.0
      %5903 = vmatprep.subr.mxu0 0.0
      %5904 = vmatpush1.msra.mxu0 0.0
      %5905 = vmatprep.subr.mxu0 0.0
      %5906 = vmatpush1.msra.mxu0 0.0
      %5907 = vmatprep.subr.mxu0 0.0
      %5908 = vmatpush1.msra.mxu0 0.0
      %5909 = vmatprep.subr.mxu0 0.0
      %5910 = vmatpush1.msra.mxu0 0.0
      %5911 = vmatprep.subr.mxu0 0.0
      %5912 = vmatpush1.msra.mxu0 0.0
      %5913 = vmatprep.subr.mxu0 0.0
      %5914 = vmatpush1.msra.mxu0 0.0
      %5915 = vmatprep.subr.mxu0 0.0
      %5916 = vmatpush1.msra.mxu0 0.0
      %5917 = vmatprep.subr.mxu0 0.0
      %5918 = vmatpush1.msra.mxu0 0.0
      %5919 = vmatprep.subr.mxu0 0.0
      %5920 = vmatpush1.msra.mxu0 0.0
      %5921 = vmatprep.subr.mxu0 0.0
      %5922 = vmatpush1.msra.mxu0 0.0
      %5923 = vmatprep.subr.mxu0 0.0
      %5924 = vmatpush1.msra.mxu0 0.0
      %5925 = vmatprep.subr.mxu0 0.0
      %5926 = vmatpush1.msra.mxu0 0.0
      %5927 = vmatprep.subr.mxu0 0.0
      %5928 = vmatpush1.msra.mxu0 0.0
      %5929 = vmatprep.subr.mxu0 0.0
      %5930 = vmatpush1.msra.mxu0 0.0
      %5931 = vmatprep.subr.mxu0 0.0
      %5932 = vmatpush1.msra.mxu0 0.0
      %5933 = vmatprep.subr.mxu0 0.0
      %5934 = vmatpush1.msra.mxu0 0.0
      %5935 = vmatprep.subr.mxu0 0.0
      %5936 = vmatpush1.msra.mxu0 0.0
      %5937 = vmatprep.subr.mxu0 0.0
      %5938 = vmatpush1.msra.mxu0 0.0
      %5939 = vmatprep.subr.mxu0 0.0
      %5940 = vmatpush1.msra.mxu0 0.0
      %5941 = vmatprep.subr.mxu0 0.0
      %5942 = vmatpush1.msra.mxu0 0.0
      %5943 = vmatprep.subr.mxu0 0.0
      %5944 = vmatpush1.msra.mxu0 0.0
      %5945 = vmatprep.subr.mxu0 0.0
      %5946 = vmatpush1.msra.mxu0 0.0
      %5947 = vmatprep.subr.mxu0 0.0
      %5948 = vmatpush1.msra.mxu0 0.0
      %5949 = vmatprep.subr.mxu0 0.0
      %5950 = vmatpush1.msra.mxu0 0.0
      %5951 = vmatprep.subr.mxu0 0.0
      %5952 = vmatpush1.msra.mxu0 0.0
      %5953 = vmatprep.subr.mxu0 0.0
      %5954 = vmatpush1.msra.mxu0 0.0
      %5955 = vmatprep.mubr.f32.mxu0 0.0
      %5956 = vmatmul.mubr.f32.gmra.mrb[0].mxu0 %v5886
      %v5957 = vpop.f32.mrb[0].mxu0
      %v5958 = vadd.f32 0.0, %v5957
      %v5959 = vpop.f32.mrb[0].mxu0
      %5960 = vmatprep.mubr.f32.mxu0 0.0
      %5961 = vmatmul.mubr.f32.gmra.mrb[0].mxu0 %v5889
      %v5962 = vpop.f32.mrb[0].mxu0
      %v5963 = vadd.f32 0.0, %v5962
      %v5964 = vpop.f32.mrb[0].mxu0
      %5965 = vdwg.mxu0
      %v5967 = vsel %vm909, %v5473, 0
      %v5970 = vsel %vm909, %v5475, 0
      %5972 = vmatprep.subr.mxu0 0.0
      %5973 = vmatpush1.msra.mxu0 %v4920
      %5974 = vmatprep.subr.mxu0 0.0
      %5975 = vmatpush1.msra.mxu0 %v4925
      %5976 = vmatprep.subr.mxu0 0.0
      %5977 = vmatpush1.msra.mxu0 0.0
      %5978 = vmatprep.subr.mxu0 0.0
      %5979 = vmatpush1.msra.mxu0 0.0
      %5980 = vmatprep.subr.mxu0 0.0
      %5981 = vmatpush1.msra.mxu0 0.0
      %5982 = vmatprep.subr.mxu0 0.0
      %5983 = vmatpush1.msra.mxu0 0.0
      %5984 = vmatprep.subr.mxu0 0.0
      %5985 = vmatpush1.msra.mxu0 0.0
      %5986 = vmatprep.subr.mxu0 0.0
      %5987 = vmatpush1.msra.mxu0 0.0
      %5988 = vmatprep.subr.mxu0 0.0
      %5989 = vmatpush1.msra.mxu0 0.0
      %5990 = vmatprep.subr.mxu0 0.0
      %5991 = vmatpush1.msra.mxu0 0.0
      %5992 = vmatprep.subr.mxu0 0.0
      %5993 = vmatpush1.msra.mxu0 0.0
      %5994 = vmatprep.subr.mxu0 0.0
      %5995 = vmatpush1.msra.mxu0 0.0
      %5996 = vmatprep.subr.mxu0 0.0
      %5997 = vmatpush1.msra.mxu0 0.0
      %5998 = vmatprep.subr.mxu0 0.0
      %5999 = vmatpush1.msra.mxu0 0.0
      %6000 = vmatprep.subr.mxu0 0.0
      %6001 = vmatpush1.msra.mxu0 0.0
      %6002 = vmatprep.subr.mxu0 0.0
      %6003 = vmatpush1.msra.mxu0 0.0
      %6004 = vmatprep.subr.mxu0 0.0
      %6005 = vmatpush1.msra.mxu0 0.0
      %6006 = vmatprep.subr.mxu0 0.0
      %6007 = vmatpush1.msra.mxu0 0.0
      %6008 = vmatprep.subr.mxu0 0.0
      %6009 = vmatpush1.msra.mxu0 0.0
      %6010 = vmatprep.subr.mxu0 0.0
      %6011 = vmatpush1.msra.mxu0 0.0
      %6012 = vmatprep.subr.mxu0 0.0
      %6013 = vmatpush1.msra.mxu0 0.0
      %6014 = vmatprep.subr.mxu0 0.0
      %6015 = vmatpush1.msra.mxu0 0.0
      %6016 = vmatprep.subr.mxu0 0.0
      %6017 = vmatpush1.msra.mxu0 0.0
      %6018 = vmatprep.subr.mxu0 0.0
      %6019 = vmatpush1.msra.mxu0 0.0
      %6020 = vmatprep.subr.mxu0 0.0
      %6021 = vmatpush1.msra.mxu0 0.0
      %6022 = vmatprep.subr.mxu0 0.0
      %6023 = vmatpush1.msra.mxu0 0.0
      %6024 = vmatprep.subr.mxu0 0.0
      %6025 = vmatpush1.msra.mxu0 0.0
      %6026 = vmatprep.subr.mxu0 0.0
      %6027 = vmatpush1.msra.mxu0 0.0
      %6028 = vmatprep.subr.mxu0 0.0
      %6029 = vmatpush1.msra.mxu0 0.0
      %6030 = vmatprep.subr.mxu0 0.0
      %6031 = vmatpush1.msra.mxu0 0.0
      %6032 = vmatprep.subr.mxu0 0.0
      %6033 = vmatpush1.msra.mxu0 0.0
      %6034 = vmatprep.subr.mxu0 0.0
      %6035 = vmatpush1.msra.mxu0 0.0
      %6036 = vmatprep.mubr.f32.mxu0 0.0
      %6037 = vmatmul.mubr.f32.gmra.mrb[0].mxu0 %v5967
      %v6038 = vpop.f32.mrb[0].mxu0
      %v6039 = vadd.f32 0.0, %v6038
      %v6040 = vpop.f32.mrb[0].mxu0
      %6041 = vmatprep.mubr.f32.mxu0 0.0
      %6042 = vmatmul.mubr.f32.gmra.mrb[0].mxu0 %v5970
      %v6043 = vpop.f32.mrb[0].mxu0
      %v6044 = vadd.f32 0.0, %v6043
      %v6045 = vpop.f32.mrb[0].mxu0
      %6046 = vdwg.mxu0
      %v6048 = vsel %vm909, %v5477, 0
      %v6051 = vsel %vm909, %v5479, 0
      %6053 = vmatprep.subr.mxu0 0.0
      %6054 = vmatpush1.msra.mxu0 %v4930
      %6055 = vmatprep.subr.mxu0 0.0
      %6056 = vmatpush1.msra.mxu0 %v4935
      %6057 = vmatprep.subr.mxu0 0.0
      %6058 = vmatpush1.msra.mxu0 0.0
      %6059 = vmatprep.subr.mxu0 0.0
      %6060 = vmatpush1.msra.mxu0 0.0
      %6061 = vmatprep.subr.mxu0 0.0
      %6062 = vmatpush1.msra.mxu0 0.0
      %6063 = vmatprep.subr.mxu0 0.0
      %6064 = vmatpush1.msra.mxu0 0.0
      %6065 = vmatprep.subr.mxu0 0.0
      %6066 = vmatpush1.msra.mxu0 0.0
      %6067 = vmatprep.subr.mxu0 0.0
      %6068 = vmatpush1.msra.mxu0 0.0
      %6069 = vmatprep.subr.mxu0 0.0
      %6070 = vmatpush1.msra.mxu0 0.0
      %6071 = vmatprep.subr.mxu0 0.0
      %6072 = vmatpush1.msra.mxu0 0.0
      %6073 = vmatprep.subr.mxu0 0.0
      %6074 = vmatpush1.msra.mxu0 0.0
      %6075 = vmatprep.subr.mxu0 0.0
      %6076 = vmatpush1.msra.mxu0 0.0
      %6077 = vmatprep.subr.mxu0 0.0
      %6078 = vmatpush1.msra.mxu0 0.0
      %6079 = vmatprep.subr.mxu0 0.0
      %6080 = vmatpush1.msra.mxu0 0.0
      %6081 = vmatprep.subr.mxu0 0.0
      %6082 = vmatpush1.msra.mxu0 0.0
      %6083 = vmatprep.subr.mxu0 0.0
      %6084 = vmatpush1.msra.mxu0 0.0
      %6085 = vmatprep.subr.mxu0 0.0
      %6086 = vmatpush1.msra.mxu0 0.0
      %6087 = vmatprep.subr.mxu0 0.0
      %6088 = vmatpush1.msra.mxu0 0.0
      %6089 = vmatprep.subr.mxu0 0.0
      %6090 = vmatpush1.msra.mxu0 0.0
      %6091 = vmatprep.subr.mxu0 0.0
      %6092 = vmatpush1.msra.mxu0 0.0
      %6093 = vmatprep.subr.mxu0 0.0
      %6094 = vmatpush1.msra.mxu0 0.0
      %6095 = vmatprep.subr.mxu0 0.0
      %6096 = vmatpush1.msra.mxu0 0.0
      %6097 = vmatprep.subr.mxu0 0.0
      %6098 = vmatpush1.msra.mxu0 0.0
      %6099 = vmatprep.subr.mxu0 0.0
      %6100 = vmatpush1.msra.mxu0 0.0
      %6101 = vmatprep.subr.mxu0 0.0
      %6102 = vmatpush1.msra.mxu0 0.0
      %6103 = vmatprep.subr.mxu0 0.0
      %6104 = vmatpush1.msra.mxu0 0.0
      %6105 = vmatprep.subr.mxu0 0.0
      %6106 = vmatpush1.msra.mxu0 0.0
      %6107 = vmatprep.subr.mxu0 0.0
      %6108 = vmatpush1.msra.mxu0 0.0
      %6109 = vmatprep.subr.mxu0 0.0
      %6110 = vmatpush1.msra.mxu0 0.0
      %6111 = vmatprep.subr.mxu0 0.0
      %6112 = vmatpush1.msra.mxu0 0.0
      %6113 = vmatprep.subr.mxu0 0.0
      %6114 = vmatpush1.msra.mxu0 0.0
      %6115 = vmatprep.subr.mxu0 0.0
      %6116 = vmatpush1.msra.mxu0 0.0
      %6117 = vmatprep.mubr.f32.mxu0 0.0
      %6118 = vmatmul.mubr.f32.gmra.mrb[0].mxu0 %v6048
      %v6119 = vpop.f32.mrb[0].mxu0
      %v6120 = vadd.f32 0.0, %v6119
      %v6121 = vpop.f32.mrb[0].mxu0
      %6122 = vmatprep.mubr.f32.mxu0 0.0
      %6123 = vmatmul.mubr.f32.gmra.mrb[0].mxu0 %v6051
      %v6124 = vpop.f32.mrb[0].mxu0
      %v6125 = vadd.f32 0.0, %v6124
      %v6126 = vpop.f32.mrb[0].mxu0
      %6127 = vdwg.mxu0
      %vm6128 = vcmp.gt.f32.partialorder %v5553, 0.0
      %vm6129 = vcmp.gt.f32.partialorder %v5558, 0.0
      %vm6130 = vcmp.gt.f32.partialorder %v5634, 0.0
      %vm6131 = vcmp.gt.f32.partialorder %v5639, 0.0
      %vm6132 = vcmp.gt.f32.partialorder %v5715, 0.0
      %vm6133 = vcmp.gt.f32.partialorder %v5720, 0.0
      %vm6134 = vcmp.gt.f32.partialorder %v5796, 0.0
      %vm6135 = vcmp.gt.f32.partialorder %v5801, 0.0
      %vm6136 = vcmp.gt.f32.partialorder %v5877, 0.0
      %vm6137 = vcmp.gt.f32.partialorder %v5882, 0.0
      %vm6138 = vcmp.gt.f32.partialorder %v5958, 0.0
      %vm6139 = vcmp.gt.f32.partialorder %v5963, 0.0
      %vm6140 = vcmp.gt.f32.partialorder %v6039, 0.0
      %vm6141 = vcmp.gt.f32.partialorder %v6044, 0.0
      %vm6142 = vcmp.gt.f32.partialorder %v6120, 0.0
      %vm6143 = vcmp.gt.f32.partialorder %v6125, 0.0
      %v6144 = vmul.f32 %v5553, 1.442695
      %v6145 = vpow.pop %v6144
      %v6146 = vmul.f32 %v5558, 1.442695
      %v6147 = vpow.pop %v6146
      %v6148 = vmul.f32 %v5634, 1.442695
      %v6149 = vpow.pop %v6148
      %v6150 = vmul.f32 %v5639, 1.442695
      %v6151 = vpow.pop %v6150
      %v6152 = vmul.f32 %v5715, 1.442695
      %v6153 = vpow.pop %v6152
      %v6154 = vmul.f32 %v5720, 1.442695
      %v6155 = vpow.pop %v6154
      %v6156 = vmul.f32 %v5796, 1.442695
      %v6157 = vpow.pop %v6156
      %v6158 = vmul.f32 %v5801, 1.442695
      %v6159 = vpow.pop %v6158
      %v6160 = vmul.f32 %v5877, 1.442695
      %v6161 = vpow.pop %v6160
      %v6162 = vmul.f32 %v5882, 1.442695
      %v6163 = vpow.pop %v6162
      %v6164 = vmul.f32 %v5958, 1.442695
      %v6165 = vpow.pop %v6164
      %v6166 = vmul.f32 %v5963, 1.442695
      %v6167 = vpow.pop %v6166
      %v6168 = vmul.f32 %v6039, 1.442695
      %v6169 = vpow.pop %v6168
      %v6170 = vmul.f32 %v6044, 1.442695
      %v6171 = vpow.pop %v6170
      %v6172 = vmul.f32 %v6120, 1.442695
      %v6173 = vpow.pop %v6172
      %v6174 = vmul.f32 %v6125, 1.442695
      %v6175 = vpow.pop %v6174
      %v6176 = vsub.f32 %v6145, 1.0
      %v6177 = vsub.f32 %v6147, 1.0
      %v6178 = vsub.f32 %v6149, 1.0
      %v6179 = vsub.f32 %v6151, 1.0
      %v6180 = vsub.f32 %v6153, 1.0
      %v6181 = vsub.f32 %v6155, 1.0
      %v6182 = vsub.f32 %v6157, 1.0
      %v6183 = vsub.f32 %v6159, 1.0
      %v6184 = vsub.f32 %v6161, 1.0
      %v6185 = vsub.f32 %v6163, 1.0
      %v6186 = vsub.f32 %v6165, 1.0
      %v6187 = vsub.f32 %v6167, 1.0
      %v6188 = vsub.f32 %v6169, 1.0
      %v6189 = vsub.f32 %v6171, 1.0
      %v6190 = vsub.f32 %v6173, 1.0
      %v6191 = vsub.f32 %v6175, 1.0
      %v6192 = vsel %vm6128, %v5553, %v6176
      %v6193 = vsel %vm6129, %v5558, %v6177
      %v6194 = vsel %vm6130, %v5634, %v6178
      %v6195 = vsel %vm6131, %v5639, %v6179
      %v6196 = vsel %vm6132, %v5715, %v6180
      %v6197 = vsel %vm6133, %v5720, %v6181
      %v6198 = vsel %vm6134, %v5796, %v6182
      %v6199 = vsel %vm6135, %v5801, %v6183
      %v6200 = vsel %vm6136, %v5877, %v6184
      %v6201 = vsel %vm6137, %v5882, %v6185
      %v6202 = vsel %vm6138, %v5958, %v6186
      %v6203 = vsel %vm6139, %v5963, %v6187
      %v6204 = vsel %vm6140, %v6039, %v6188
      %v6205 = vsel %vm6141, %v6044, %v6189
      %v6206 = vsel %vm6142, %v6120, %v6190
      %v6207 = vsel %vm6143, %v6125, %v6191
      %v6208 = vmax.f32 %v6192, 0.0
      %v6209 = vmax.f32 %v6193, 0.0
      %v6210 = vmax.f32 %v6194, 0.0
      %v6211 = vmax.f32 %v6195, 0.0
      %v6212 = vmax.f32 %v6196, 0.0
      %v6213 = vmax.f32 %v6197, 0.0
      %v6214 = vmax.f32 %v6198, 0.0
      %v6215 = vmax.f32 %v6199, 0.0
      %v6216 = vmax.f32 %v6200, 0.0
      %v6217 = vmax.f32 %v6201, 0.0
      %v6218 = vmax.f32 %v6202, 0.0
      %v6219 = vmax.f32 %v6203, 0.0
      %v6220 = vmax.f32 %v6204, 0.0
      %v6221 = vmax.f32 %v6205, 0.0
      %v6222 = vmax.f32 %v6206, 0.0
      %v6223 = vmax.f32 %v6207, 0.0
      %s6224 = scalar_lea.vmem %s301, 128
      %v6225 = vld [vmem:[%s6224] sm:$0xff]
      %v6226 = vld [vmem:[%s6224 + $0x8] sm:$0xff]
      %v6227 = vld [vmem:[%s6224 + $0x10] sm:$0xff]
      %v6228 = vld [vmem:[%s6224 + $0x18] sm:$0xf]
      %s6229 = scalar_lea.vmem %s306, 8
      %v6230 = vld [vmem:[%s6229] sm:$0x3]
      %s6231 = scalar_lea.vmem %s296, 32
      %v6232 = vld [vmem:[%s6231] sm:$0xff]
      %v6233 = vld [vmem:[%s6231 + $0x8] sm:$0xff]
      %v6235 = vsel %vm384, %v6228, 0
      %6237 = vmatprep.subr.mxu0 0.0
      %6238 = vmatpush1.msra.mxu0 %v6225
      %6239 = vmatprep.subr.mxu0 0.0
      %6240 = vmatpush1.msra.mxu0 %v6226
      %6241 = vmatprep.subr.mxu0 0.0
      %6242 = vmatpush1.msra.mxu0 %v6227
      %6243 = vmatprep.subr.mxu0 0.0
      %6244 = vmatpush1.msra.mxu0 %v6235
      %6245 = vmatprep.subr.mxu0 0.0
      %6246 = vmatpush1.msra.mxu0 0.0
      %6247 = vmatprep.subr.mxu0 0.0
      %6248 = vmatpush1.msra.mxu0 0.0
      %6249 = vmatprep.subr.mxu0 0.0
      %6250 = vmatpush1.msra.mxu0 0.0
      %6251 = vmatprep.subr.mxu0 0.0
      %6252 = vmatpush1.msra.mxu0 0.0
      %6253 = vmatprep.subr.mxu0 0.0
      %6254 = vmatpush1.msra.mxu0 0.0
      %6255 = vmatprep.subr.mxu0 0.0
      %6256 = vmatpush1.msra.mxu0 0.0
      %6257 = vmatprep.subr.mxu0 0.0
      %6258 = vmatpush1.msra.mxu0 0.0
      %6259 = vmatprep.subr.mxu0 0.0
      %6260 = vmatpush1.msra.mxu0 0.0
      %6261 = vmatprep.subr.mxu0 0.0
      %6262 = vmatpush1.msra.mxu0 0.0
      %6263 = vmatprep.subr.mxu0 0.0
      %6264 = vmatpush1.msra.mxu0 0.0
      %6265 = vmatprep.subr.mxu0 0.0
      %6266 = vmatpush1.msra.mxu0 0.0
      %6267 = vmatprep.subr.mxu0 0.0
      %6268 = vmatpush1.msra.mxu0 0.0
      %6269 = vmatprep.subr.mxu0 0.0
      %6270 = vmatpush1.msra.mxu0 0.0
      %6271 = vmatprep.subr.mxu0 0.0
      %6272 = vmatpush1.msra.mxu0 0.0
      %6273 = vmatprep.subr.mxu0 0.0
      %6274 = vmatpush1.msra.mxu0 0.0
      %6275 = vmatprep.subr.mxu0 0.0
      %6276 = vmatpush1.msra.mxu0 0.0
      %6277 = vmatprep.subr.mxu0 0.0
      %6278 = vmatpush1.msra.mxu0 0.0
      %6279 = vmatprep.subr.mxu0 0.0
      %6280 = vmatpush1.msra.mxu0 0.0
      %6281 = vmatprep.subr.mxu0 0.0
      %6282 = vmatpush1.msra.mxu0 0.0
      %6283 = vmatprep.subr.mxu0 0.0
      %6284 = vmatpush1.msra.mxu0 0.0
      %6285 = vmatprep.subr.mxu0 0.0
      %6286 = vmatpush1.msra.mxu0 0.0
      %6287 = vmatprep.subr.mxu0 0.0
      %6288 = vmatpush1.msra.mxu0 0.0
      %6289 = vmatprep.subr.mxu0 0.0
      %6290 = vmatpush1.msra.mxu0 0.0
      %6291 = vmatprep.subr.mxu0 0.0
      %6292 = vmatpush1.msra.mxu0 0.0
      %6293 = vmatprep.subr.mxu0 0.0
      %6294 = vmatpush1.msra.mxu0 0.0
      %6295 = vmatprep.subr.mxu0 0.0
      %6296 = vmatpush1.msra.mxu0 0.0
      %6297 = vmatprep.subr.mxu0 0.0
      %6298 = vmatpush1.msra.mxu0 0.0
      %6299 = vmatprep.subr.mxu0 0.0
      %6300 = vmatpush1.msra.mxu0 0.0
      %6301 = vmatprep.mubr.f32.mxu0 0.0
      %6302 = vmatmul.mubr.f32.gmra.mrb[0].mxu0 %v337
      %v6303 = vpop.f32.mrb[0].mxu0
      %v6304 = vadd.f32 0.0, %v6303
      %v6305 = vpop.f32.mrb[0].mxu0
      %6306 = vmatprep.mubr.f32.mxu0 0.0
      %6307 = vmatmul.mubr.f32.gmra.mrb[0].mxu0 %v340
      %v6308 = vpop.f32.mrb[0].mxu0
      %v6309 = vadd.f32 0.0, %v6308
      %v6310 = vpop.f32.mrb[0].mxu0
      %6311 = vmatprep.mubr.f32.mxu0 0.0
      %6312 = vmatmul.mubr.f32.gmra.mrb[0].mxu0 %v343
      %v6313 = vpop.f32.mrb[0].mxu0
      %v6314 = vadd.f32 0.0, %v6313
      %v6315 = vpop.f32.mrb[0].mxu0
      %6316 = vmatprep.mubr.f32.mxu0 0.0
      %6317 = vmatmul.mubr.f32.gmra.mrb[0].mxu0 %v346
      %v6318 = vpop.f32.mrb[0].mxu0
      %v6319 = vadd.f32 0.0, %v6318
      %v6320 = vpop.f32.mrb[0].mxu0
      %6321 = vmatprep.mubr.f32.mxu0 0.0
      %6322 = vmatmul.mubr.f32.gmra.mrb[0].mxu0 %v349
      %v6323 = vpop.f32.mrb[0].mxu0
      %v6324 = vadd.f32 0.0, %v6323
      %v6325 = vpop.f32.mrb[0].mxu0
      %6326 = vmatprep.mubr.f32.mxu0 0.0
      %6327 = vmatmul.mubr.f32.gmra.mrb[0].mxu0 %v352
      %v6328 = vpop.f32.mrb[0].mxu0
      %v6329 = vadd.f32 0.0, %v6328
      %v6330 = vpop.f32.mrb[0].mxu0
      %6331 = vmatprep.mubr.f32.mxu0 0.0
      %6332 = vmatmul.mubr.f32.gmra.mrb[0].mxu0 %v355
      %v6333 = vpop.f32.mrb[0].mxu0
      %v6334 = vadd.f32 0.0, %v6333
      %v6335 = vpop.f32.mrb[0].mxu0
      %6336 = vmatprep.mubr.f32.mxu0 0.0
      %6337 = vmatmul.mubr.f32.gmra.mrb[0].mxu0 %v358
      %v6338 = vpop.f32.mrb[0].mxu0
      %v6339 = vadd.f32 0.0, %v6338
      %v6340 = vpop.f32.mrb[0].mxu0
      %6341 = vmatprep.mubr.f32.mxu0 0.0
      %6342 = vmatmul.mubr.f32.gmra.mrb[0].mxu0 %v361
      %v6343 = vpop.f32.mrb[0].mxu0
      %v6344 = vadd.f32 0.0, %v6343
      %v6345 = vpop.f32.mrb[0].mxu0
      %6346 = vmatprep.mubr.f32.mxu0 0.0
      %6347 = vmatmul.mubr.f32.gmra.mrb[0].mxu0 %v364
      %v6348 = vpop.f32.mrb[0].mxu0
      %v6349 = vadd.f32 0.0, %v6348
      %v6350 = vpop.f32.mrb[0].mxu0
      %6351 = vmatprep.mubr.f32.mxu0 0.0
      %6352 = vmatmul.mubr.f32.gmra.mrb[0].mxu0 %v367
      %v6353 = vpop.f32.mrb[0].mxu0
      %v6354 = vadd.f32 0.0, %v6353
      %v6355 = vpop.f32.mrb[0].mxu0
      %6356 = vmatprep.mubr.f32.mxu0 0.0
      %6357 = vmatmul.mubr.f32.gmra.mrb[0].mxu0 %v370
      %v6358 = vpop.f32.mrb[0].mxu0
      %v6359 = vadd.f32 0.0, %v6358
      %v6360 = vpop.f32.mrb[0].mxu0
      %6361 = vmatprep.mubr.f32.mxu0 0.0
      %6362 = vmatmul.mubr.f32.gmra.mrb[0].mxu0 %v373
      %v6363 = vpop.f32.mrb[0].mxu0
      %v6364 = vadd.f32 0.0, %v6363
      %v6365 = vpop.f32.mrb[0].mxu0
      %6366 = vmatprep.mubr.f32.mxu0 0.0
      %6367 = vmatmul.mubr.f32.gmra.mrb[0].mxu0 %v376
      %v6368 = vpop.f32.mrb[0].mxu0
      %v6369 = vadd.f32 0.0, %v6368
      %v6370 = vpop.f32.mrb[0].mxu0
      %6371 = vmatprep.mubr.f32.mxu0 0.0
      %6372 = vmatmul.mubr.f32.gmra.mrb[0].mxu0 %v379
      %v6373 = vpop.f32.mrb[0].mxu0
      %v6374 = vadd.f32 0.0, %v6373
      %v6375 = vpop.f32.mrb[0].mxu0
      %6376 = vmatprep.mubr.f32.mxu0 0.0
      %6377 = vmatmul.mubr.f32.gmra.mrb[0].mxu0 %v382
      %v6378 = vpop.f32.mrb[0].mxu0
      %v6379 = vadd.f32 0.0, %v6378
      %v6380 = vpop.f32.mrb[0].mxu0
      %6381 = vdwg.mxu0
      %v6382 = vlaneseq
      %v6383 = vshrl.u32 %v6382, 7
      %v6384 = vsub.s32 0, %v6383
      %v6385 = vrot.slane %v6230, %v6384
      %v6386 = vmul.f32 %v6304, %v6385
      %v6387 = vmul.f32 %v6309, %v6385
      %v6388 = vmul.f32 %v6314, %v6385
      %v6389 = vmul.f32 %v6319, %v6385
      %v6390 = vmul.f32 %v6324, %v6385
      %v6391 = vmul.f32 %v6329, %v6385
      %v6392 = vmul.f32 %v6334, %v6385
      %v6393 = vmul.f32 %v6339, %v6385
      %v6394 = vmul.f32 %v6344, %v6385
      %v6395 = vmul.f32 %v6349, %v6385
      %v6396 = vmul.f32 %v6354, %v6385
      %v6397 = vmul.f32 %v6359, %v6385
      %v6398 = vmul.f32 %v6364, %v6385
      %v6399 = vmul.f32 %v6369, %v6385
      %v6400 = vmul.f32 %v6374, %v6385
      %v6401 = vmul.f32 %v6379, %v6385
      %v6402 = vsel %vm335, %v6386, 0.0
      %6403 = vadd.xlane.f32.xlu0 %v6402
      %v6404 = vpop.xlane.xlu0 %6403
      %v6405 = vsel %vm335, %v6387, 0.0
      %6406 = vadd.xlane.f32.xlu0 %v6405
      %v6407 = vpop.xlane.xlu0 %6406
      %v6408 = vsel %vm335, %v6388, 0.0
      %6409 = vadd.xlane.f32.xlu0 %v6408
      %v6410 = vpop.xlane.xlu0 %6409
      %v6411 = vsel %vm335, %v6389, 0.0
      %6412 = vadd.xlane.f32.xlu0 %v6411
      %v6413 = vpop.xlane.xlu0 %6412
      %v6414 = vsel %vm335, %v6390, 0.0
      %6415 = vadd.xlane.f32.xlu0 %v6414
      %v6416 = vpop.xlane.xlu0 %6415
      %v6417 = vsel %vm335, %v6391, 0.0
      %6418 = vadd.xlane.f32.xlu0 %v6417
      %v6419 = vpop.xlane.xlu0 %6418
      %v6420 = vsel %vm335, %v6392, 0.0
      %6421 = vadd.xlane.f32.xlu0 %v6420
      %v6422 = vpop.xlane.xlu0 %6421
      %v6423 = vsel %vm335, %v6393, 0.0
      %6424 = vadd.xlane.f32.xlu0 %v6423
      %v6425 = vpop.xlane.xlu0 %6424
      %v6426 = vsel %vm335, %v6394, 0.0
      %6427 = vadd.xlane.f32.xlu0 %v6426
      %v6428 = vpop.xlane.xlu0 %6427
      %v6429 = vsel %vm335, %v6395, 0.0
      %6430 = vadd.xlane.f32.xlu0 %v6429
      %v6431 = vpop.xlane.xlu0 %6430
      %v6432 = vsel %vm335, %v6396, 0.0
      %6433 = vadd.xlane.f32.xlu0 %v6432
      %v6434 = vpop.xlane.xlu0 %6433
      %v6435 = vsel %vm335, %v6397, 0.0
      %6436 = vadd.xlane.f32.xlu0 %v6435
      %v6437 = vpop.xlane.xlu0 %6436
      %v6438 = vsel %vm335, %v6398, 0.0
      %6439 = vadd.xlane.f32.xlu0 %v6438
      %v6440 = vpop.xlane.xlu0 %6439
      %v6441 = vsel %vm335, %v6399, 0.0
      %6442 = vadd.xlane.f32.xlu0 %v6441
      %v6443 = vpop.xlane.xlu0 %6442
      %v6444 = vsel %vm335, %v6400, 0.0
      %6445 = vadd.xlane.f32.xlu0 %v6444
      %v6446 = vpop.xlane.xlu0 %6445
      %v6447 = vsel %vm335, %v6401, 0.0
      %6448 = vadd.xlane.f32.xlu0 %v6447
      %v6449 = vpop.xlane.xlu0 %6448
      %v6450 = vlaneseq
      %v6451 = vshrl.u32 %v6450, 7
      %v6452 = vsub.s32 1, %v6451
      %v6453 = vrot.slane %v6230, %v6452
      %v6454 = vmul.f32 %v6304, %v6453
      %v6455 = vmul.f32 %v6309, %v6453
      %v6456 = vmul.f32 %v6314, %v6453
      %v6457 = vmul.f32 %v6319, %v6453
      %v6458 = vmul.f32 %v6324, %v6453
      %v6459 = vmul.f32 %v6329, %v6453
      %v6460 = vmul.f32 %v6334, %v6453
      %v6461 = vmul.f32 %v6339, %v6453
      %v6462 = vmul.f32 %v6344, %v6453
      %v6463 = vmul.f32 %v6349, %v6453
      %v6464 = vmul.f32 %v6354, %v6453
      %v6465 = vmul.f32 %v6359, %v6453
      %v6466 = vmul.f32 %v6364, %v6453
      %v6467 = vmul.f32 %v6369, %v6453
      %v6468 = vmul.f32 %v6374, %v6453
      %v6469 = vmul.f32 %v6379, %v6453
      %v6470 = vsel %vm335, %v6454, 0.0
      %6471 = vadd.xlane.f32.xlu0 %v6470
      %v6472 = vpop.xlane.xlu0 %6471
      %v6473 = vsel %vm335, %v6455, 0.0
      %6474 = vadd.xlane.f32.xlu0 %v6473
      %v6475 = vpop.xlane.xlu0 %6474
      %v6476 = vsel %vm335, %v6456, 0.0
      %6477 = vadd.xlane.f32.xlu0 %v6476
      %v6478 = vpop.xlane.xlu0 %6477
      %v6479 = vsel %vm335, %v6457, 0.0
      %6480 = vadd.xlane.f32.xlu0 %v6479
      %v6481 = vpop.xlane.xlu0 %6480
      %v6482 = vsel %vm335, %v6458, 0.0
      %6483 = vadd.xlane.f32.xlu0 %v6482
      %v6484 = vpop.xlane.xlu0 %6483
      %v6485 = vsel %vm335, %v6459, 0.0
      %6486 = vadd.xlane.f32.xlu0 %v6485
      %v6487 = vpop.xlane.xlu0 %6486
      %v6488 = vsel %vm335, %v6460, 0.0
      %6489 = vadd.xlane.f32.xlu0 %v6488
      %v6490 = vpop.xlane.xlu0 %6489
      %v6491 = vsel %vm335, %v6461, 0.0
      %6492 = vadd.xlane.f32.xlu0 %v6491
      %v6493 = vpop.xlane.xlu0 %6492
      %v6494 = vsel %vm335, %v6462, 0.0
      %6495 = vadd.xlane.f32.xlu0 %v6494
      %v6496 = vpop.xlane.xlu0 %6495
      %v6497 = vsel %vm335, %v6463, 0.0
      %6498 = vadd.xlane.f32.xlu0 %v6497
      %v6499 = vpop.xlane.xlu0 %6498
      %v6500 = vsel %vm335, %v6464, 0.0
      %6501 = vadd.xlane.f32.xlu0 %v6500
      %v6502 = vpop.xlane.xlu0 %6501
      %v6503 = vsel %vm335, %v6465, 0.0
      %6504 = vadd.xlane.f32.xlu0 %v6503
      %v6505 = vpop.xlane.xlu0 %6504
      %v6506 = vsel %vm335, %v6466, 0.0
      %6507 = vadd.xlane.f32.xlu0 %v6506
      %v6508 = vpop.xlane.xlu0 %6507
      %v6509 = vsel %vm335, %v6467, 0.0
      %6510 = vadd.xlane.f32.xlu0 %v6509
      %v6511 = vpop.xlane.xlu0 %6510
      %v6512 = vsel %vm335, %v6468, 0.0
      %6513 = vadd.xlane.f32.xlu0 %v6512
      %v6514 = vpop.xlane.xlu0 %6513
      %v6515 = vsel %vm335, %v6469, 0.0
      %6516 = vadd.xlane.f32.xlu0 %v6515
      %v6517 = vpop.xlane.xlu0 %6516
      %v6534 = vlaneseq
      %v6535 = vshrl.u32 %v6534, 7
      %v6536 = vsub.s32 %v686, %v6535
      %v6537 = vrot.slane %v6472, %v6536
      %v6538 = vlaneseq
      %v6539 = vshrl.u32 %v6538, 7
      %v6540 = vsub.s32 %v691, %v6539
      %v6541 = vrot.slane %v6475, %v6540
      %v6542 = vsel %vm696, %v6541, %v6537
      %v6543 = vlaneseq
      %v6544 = vshrl.u32 %v6543, 7
      %v6545 = vsub.s32 %v686, %v6544
      %v6546 = vrot.slane %v6478, %v6545
      %v6547 = vlaneseq
      %v6548 = vshrl.u32 %v6547, 7
      %v6549 = vsub.s32 %v691, %v6548
      %v6550 = vrot.slane %v6481, %v6549
      %v6551 = vsel %vm696, %v6550, %v6546
      %v6552 = vlaneseq
      %v6553 = vshrl.u32 %v6552, 7
      %v6554 = vsub.s32 %v686, %v6553
      %v6555 = vrot.slane %v6484, %v6554
      %v6556 = vlaneseq
      %v6557 = vshrl.u32 %v6556, 7
      %v6558 = vsub.s32 %v691, %v6557
      %v6559 = vrot.slane %v6487, %v6558
      %v6560 = vsel %vm696, %v6559, %v6555
      %v6561 = vlaneseq
      %v6562 = vshrl.u32 %v6561, 7
      %v6563 = vsub.s32 %v686, %v6562
      %v6564 = vrot.slane %v6490, %v6563
      %v6565 = vlaneseq
      %v6566 = vshrl.u32 %v6565, 7
      %v6567 = vsub.s32 %v691, %v6566
      %v6568 = vrot.slane %v6493, %v6567
      %v6569 = vsel %vm696, %v6568, %v6564
      %v6570 = vlaneseq
      %v6571 = vshrl.u32 %v6570, 7
      %v6572 = vsub.s32 %v686, %v6571
      %v6573 = vrot.slane %v6496, %v6572
      %v6574 = vlaneseq
      %v6575 = vshrl.u32 %v6574, 7
      %v6576 = vsub.s32 %v691, %v6575
      %v6577 = vrot.slane %v6499, %v6576
      %v6578 = vsel %vm696, %v6577, %v6573
      %v6579 = vlaneseq
      %v6580 = vshrl.u32 %v6579, 7
      %v6581 = vsub.s32 %v686, %v6580
      %v6582 = vrot.slane %v6502, %v6581
      %v6583 = vlaneseq
      %v6584 = vshrl.u32 %v6583, 7
      %v6585 = vsub.s32 %v691, %v6584
      %v6586 = vrot.slane %v6505, %v6585
      %v6587 = vsel %vm696, %v6586, %v6582
      %v6588 = vlaneseq
      %v6589 = vshrl.u32 %v6588, 7
      %v6590 = vsub.s32 %v686, %v6589
      %v6591 = vrot.slane %v6508, %v6590
      %v6592 = vlaneseq
      %v6593 = vshrl.u32 %v6592, 7
      %v6594 = vsub.s32 %v691, %v6593
      %v6595 = vrot.slane %v6511, %v6594
      %v6596 = vsel %vm696, %v6595, %v6591
      %v6597 = vlaneseq
      %v6598 = vshrl.u32 %v6597, 7
      %v6599 = vsub.s32 %v686, %v6598
      %v6600 = vrot.slane %v6514, %v6599
      %v6601 = vlaneseq
      %v6602 = vshrl.u32 %v6601, 7
      %v6603 = vsub.s32 %v691, %v6602
      %v6604 = vrot.slane %v6517, %v6603
      %v6605 = vsel %vm696, %v6604, %v6600
      %v6606 = vsel %vm761, %v6542, %v6542
      %v6607 = vsel %vm763, %v6542, %v6606
      %v6608 = vsel %vm765, %v6542, %v6607
      %v6609 = vsel %vm767, %v6542, %v6608
      %v6610 = vsel %vm769, %v6542, %v6609
      %v6611 = vsel %vm771, %v6542, %v6610
      %v6612 = vsel %vm761, %v6551, %v6551
      %v6613 = vsel %vm763, %v6551, %v6612
      %v6614 = vsel %vm765, %v6551, %v6613
      %v6615 = vsel %vm767, %v6551, %v6614
      %v6616 = vsel %vm769, %v6551, %v6615
      %v6617 = vsel %vm771, %v6551, %v6616
      %v6618 = vsel %vm761, %v6560, %v6560
      %v6619 = vsel %vm763, %v6560, %v6618
      %v6620 = vsel %vm765, %v6560, %v6619
      %v6621 = vsel %vm767, %v6560, %v6620
      %v6622 = vsel %vm769, %v6560, %v6621
      %v6623 = vsel %vm771, %v6560, %v6622
      %v6624 = vsel %vm761, %v6569, %v6569
      %v6625 = vsel %vm763, %v6569, %v6624
      %v6626 = vsel %vm765, %v6569, %v6625
      %v6627 = vsel %vm767, %v6569, %v6626
      %v6628 = vsel %vm769, %v6569, %v6627
      %v6629 = vsel %vm771, %v6569, %v6628
      %v6630 = vsel %vm761, %v6578, %v6578
      %v6631 = vsel %vm763, %v6578, %v6630
      %v6632 = vsel %vm765, %v6578, %v6631
      %v6633 = vsel %vm767, %v6578, %v6632
      %v6634 = vsel %vm769, %v6578, %v6633
      %v6635 = vsel %vm771, %v6578, %v6634
      %v6636 = vsel %vm761, %v6587, %v6587
      %v6637 = vsel %vm763, %v6587, %v6636
      %v6638 = vsel %vm765, %v6587, %v6637
      %v6639 = vsel %vm767, %v6587, %v6638
      %v6640 = vsel %vm769, %v6587, %v6639
      %v6641 = vsel %vm771, %v6587, %v6640
      %v6642 = vsel %vm761, %v6596, %v6596
      %v6643 = vsel %vm763, %v6596, %v6642
      %v6644 = vsel %vm765, %v6596, %v6643
      %v6645 = vsel %vm767, %v6596, %v6644
      %v6646 = vsel %vm769, %v6596, %v6645
      %v6647 = vsel %vm771, %v6596, %v6646
      %v6648 = vsel %vm761, %v6605, %v6605
      %v6649 = vsel %vm763, %v6605, %v6648
      %v6650 = vsel %vm765, %v6605, %v6649
      %v6651 = vsel %vm767, %v6605, %v6650
      %v6652 = vsel %vm769, %v6605, %v6651
      %v6653 = vsel %vm771, %v6605, %v6652
      %v6662 = vadd.f32 %v6404, %v6611
      %v6663 = vadd.f32 %v6407, %v6611
      %v6664 = vadd.f32 %v6410, %v6617
      %v6665 = vadd.f32 %v6413, %v6617
      %v6666 = vadd.f32 %v6416, %v6623
      %v6667 = vadd.f32 %v6419, %v6623
      %v6668 = vadd.f32 %v6422, %v6629
      %v6669 = vadd.f32 %v6425, %v6629
      %v6670 = vadd.f32 %v6428, %v6635
      %v6671 = vadd.f32 %v6431, %v6635
      %v6672 = vadd.f32 %v6434, %v6641
      %v6673 = vadd.f32 %v6437, %v6641
      %v6674 = vadd.f32 %v6440, %v6647
      %v6675 = vadd.f32 %v6443, %v6647
      %v6676 = vadd.f32 %v6446, %v6653
      %v6677 = vadd.f32 %v6449, %v6653
      %vm6678 = vcmp.gt.f32.partialorder %v6662, 0.0
      %vm6679 = vcmp.gt.f32.partialorder %v6663, 0.0
      %vm6680 = vcmp.gt.f32.partialorder %v6664, 0.0
      %vm6681 = vcmp.gt.f32.partialorder %v6665, 0.0
      %vm6682 = vcmp.gt.f32.partialorder %v6666, 0.0
      %vm6683 = vcmp.gt.f32.partialorder %v6667, 0.0
      %vm6684 = vcmp.gt.f32.partialorder %v6668, 0.0
      %vm6685 = vcmp.gt.f32.partialorder %v6669, 0.0
      %vm6686 = vcmp.gt.f32.partialorder %v6670, 0.0
      %vm6687 = vcmp.gt.f32.partialorder %v6671, 0.0
      %vm6688 = vcmp.gt.f32.partialorder %v6672, 0.0
      %vm6689 = vcmp.gt.f32.partialorder %v6673, 0.0
      %vm6690 = vcmp.gt.f32.partialorder %v6674, 0.0
      %vm6691 = vcmp.gt.f32.partialorder %v6675, 0.0
      %vm6692 = vcmp.gt.f32.partialorder %v6676, 0.0
      %vm6693 = vcmp.gt.f32.partialorder %v6677, 0.0
      %v6694 = vmul.f32 %v6662, 0.2
      %v6695 = vmul.f32 %v6663, 0.2
      %v6696 = vmul.f32 %v6664, 0.2
      %v6697 = vmul.f32 %v6665, 0.2
      %v6698 = vmul.f32 %v6666, 0.2
      %v6699 = vmul.f32 %v6667, 0.2
      %v6700 = vmul.f32 %v6668, 0.2
      %v6701 = vmul.f32 %v6669, 0.2
      %v6702 = vmul.f32 %v6670, 0.2
      %v6703 = vmul.f32 %v6671, 0.2
      %v6704 = vmul.f32 %v6672, 0.2
      %v6705 = vmul.f32 %v6673, 0.2
      %v6706 = vmul.f32 %v6674, 0.2
      %v6707 = vmul.f32 %v6675, 0.2
      %v6708 = vmul.f32 %v6676, 0.2
      %v6709 = vmul.f32 %v6677, 0.2
      %v6710 = vsel %vm6678, %v6662, %v6694
      %v6711 = vsel %vm6679, %v6663, %v6695
      %v6712 = vsel %vm6680, %v6664, %v6696
      %v6713 = vsel %vm6681, %v6665, %v6697
      %v6714 = vsel %vm6682, %v6666, %v6698
      %v6715 = vsel %vm6683, %v6667, %v6699
      %v6716 = vsel %vm6684, %v6668, %v6700
      %v6717 = vsel %vm6685, %v6669, %v6701
      %v6718 = vsel %vm6686, %v6670, %v6702
      %v6719 = vsel %vm6687, %v6671, %v6703
      %v6720 = vsel %vm6688, %v6672, %v6704
      %v6721 = vsel %vm6689, %v6673, %v6705
      %v6722 = vsel %vm6690, %v6674, %v6706
      %v6723 = vsel %vm6691, %v6675, %v6707
      %v6724 = vsel %vm6692, %v6676, %v6708
      %v6725 = vsel %vm6693, %v6677, %v6709
      %vm6726 = vcmp.gt.f32.partialorder %v6232, 0.0
      %vm6727 = vcmp.gt.f32.partialorder %v6233, 0.0
      %v6728 = vsel %vm6726, 1, 0
      %v6729 = vsel %vm6727, 1, 0
      %vm6730 = vcmp.eq.s32.totalorder %v6728, 1
      %vm6731 = vcmp.eq.s32.totalorder %v6729, 1
      %v6732 = vsel %vm6730, %v6710, -9e+15
      %v6733 = vsel %vm6731, %v6711, -9e+15
      %v6734 = vsel %vm6730, %v6712, -9e+15
      %v6735 = vsel %vm6731, %v6713, -9e+15
      %v6736 = vsel %vm6730, %v6714, -9e+15
      %v6737 = vsel %vm6731, %v6715, -9e+15
      %v6738 = vsel %vm6730, %v6716, -9e+15
      %v6739 = vsel %vm6731, %v6717, -9e+15
      %v6740 = vsel %vm6730, %v6718, -9e+15
      %v6741 = vsel %vm6731, %v6719, -9e+15
      %v6742 = vsel %vm6730, %v6720, -9e+15
      %v6743 = vsel %vm6731, %v6721, -9e+15
      %v6744 = vsel %vm6730, %v6722, -9e+15
      %v6745 = vsel %vm6731, %v6723, -9e+15
      %v6746 = vsel %vm6730, %v6724, -9e+15
      %v6747 = vsel %vm6731, %v6725, -9e+15
      %v6748 = vsel %vm909, %v6732, -inf
      %6749 = vmax.xlane.f32.xlu0 %v6748
      %v6750 = vpop.xlane.xlu0 %6749
      %v6751 = vsel %vm909, %v6733, -inf
      %6752 = vmax.xlane.f32.xlu0 %v6751
      %v6753 = vpop.xlane.xlu0 %6752
      %v6754 = vsel %vm909, %v6734, -inf
      %6755 = vmax.xlane.f32.xlu0 %v6754
      %v6756 = vpop.xlane.xlu0 %6755
      %v6757 = vsel %vm909, %v6735, -inf
      %6758 = vmax.xlane.f32.xlu0 %v6757
      %v6759 = vpop.xlane.xlu0 %6758
      %v6760 = vsel %vm909, %v6736, -inf
      %6761 = vmax.xlane.f32.xlu0 %v6760
      %v6762 = vpop.xlane.xlu0 %6761
      %v6763 = vsel %vm909, %v6737, -inf
      %6764 = vmax.xlane.f32.xlu0 %v6763
      %v6765 = vpop.xlane.xlu0 %6764
      %v6766 = vsel %vm909, %v6738, -inf
      %6767 = vmax.xlane.f32.xlu0 %v6766
      %v6768 = vpop.xlane.xlu0 %6767
      %v6769 = vsel %vm909, %v6739, -inf
      %6770 = vmax.xlane.f32.xlu0 %v6769
      %v6771 = vpop.xlane.xlu0 %6770
      %v6772 = vsel %vm909, %v6740, -inf
      %6773 = vmax.xlane.f32.xlu0 %v6772
      %v6774 = vpop.xlane.xlu0 %6773
      %v6775 = vsel %vm909, %v6741, -inf
      %6776 = vmax.xlane.f32.xlu0 %v6775
      %v6777 = vpop.xlane.xlu0 %6776
      %v6778 = vsel %vm909, %v6742, -inf
      %6779 = vmax.xlane.f32.xlu0 %v6778
      %v6780 = vpop.xlane.xlu0 %6779
      %v6781 = vsel %vm909, %v6743, -inf
      %6782 = vmax.xlane.f32.xlu0 %v6781
      %v6783 = vpop.xlane.xlu0 %6782
      %v6784 = vsel %vm909, %v6744, -inf
      %6785 = vmax.xlane.f32.xlu0 %v6784
      %v6786 = vpop.xlane.xlu0 %6785
      %v6787 = vsel %vm909, %v6745, -inf
      %6788 = vmax.xlane.f32.xlu0 %v6787
      %v6789 = vpop.xlane.xlu0 %6788
      %v6790 = vsel %vm909, %v6746, -inf
      %6791 = vmax.xlane.f32.xlu0 %v6790
      %v6792 = vpop.xlane.xlu0 %6791
      %v6793 = vsel %vm909, %v6747, -inf
      %6794 = vmax.xlane.f32.xlu0 %v6793
      %v6795 = vpop.xlane.xlu0 %6794
      %v6796 = vsub.f32 %v6732, %v6750
      %v6797 = vsub.f32 %v6733, %v6753
      %v6798 = vsub.f32 %v6734, %v6756
      %v6799 = vsub.f32 %v6735, %v6759
      %v6800 = vsub.f32 %v6736, %v6762
      %v6801 = vsub.f32 %v6737, %v6765
      %v6802 = vsub.f32 %v6738, %v6768
      %v6803 = vsub.f32 %v6739, %v6771
      %v6804 = vsub.f32 %v6740, %v6774
      %v6805 = vsub.f32 %v6741, %v6777
      %v6806 = vsub.f32 %v6742, %v6780
      %v6807 = vsub.f32 %v6743, %v6783
      %v6808 = vsub.f32 %v6744, %v6786
      %v6809 = vsub.f32 %v6745, %v6789
      %v6810 = vsub.f32 %v6746, %v6792
      %v6811 = vsub.f32 %v6747, %v6795
      %v6812 = vmul.f32 %v6796, 1.442695
      %v6813 = vpow.pop %v6812
      %v6814 = vmul.f32 %v6797, 1.442695
      %v6815 = vpow.pop %v6814
      %v6816 = vmul.f32 %v6798, 1.442695
      %v6817 = vpow.pop %v6816
      %v6818 = vmul.f32 %v6799, 1.442695
      %v6819 = vpow.pop %v6818
      %v6820 = vmul.f32 %v6800, 1.442695
      %v6821 = vpow.pop %v6820
      %v6822 = vmul.f32 %v6801, 1.442695
      %v6823 = vpow.pop %v6822
      %v6824 = vmul.f32 %v6802, 1.442695
      %v6825 = vpow.pop %v6824
      %v6826 = vmul.f32 %v6803, 1.442695
      %v6827 = vpow.pop %v6826
      %v6828 = vmul.f32 %v6804, 1.442695
      %v6829 = vpow.pop %v6828
      %v6830 = vmul.f32 %v6805, 1.442695
      %v6831 = vpow.pop %v6830
      %v6832 = vmul.f32 %v6806, 1.442695
      %v6833 = vpow.pop %v6832
      %v6834 = vmul.f32 %v6807, 1.442695
      %v6835 = vpow.pop %v6834
      %v6836 = vmul.f32 %v6808, 1.442695
      %v6837 = vpow.pop %v6836
      %v6838 = vmul.f32 %v6809, 1.442695
      %v6839 = vpow.pop %v6838
      %v6840 = vmul.f32 %v6810, 1.442695
      %v6841 = vpow.pop %v6840
      %v6842 = vmul.f32 %v6811, 1.442695
      %v6843 = vpow.pop %v6842
      %v6844 = vsel %vm909, %v6813, 0.0
      %6845 = vadd.xlane.f32.xlu0 %v6844
      %v6846 = vpop.xlane.xlu0 %6845
      %v6847 = vsel %vm909, %v6815, 0.0
      %6848 = vadd.xlane.f32.xlu0 %v6847
      %v6849 = vpop.xlane.xlu0 %6848
      %v6850 = vsel %vm909, %v6817, 0.0
      %6851 = vadd.xlane.f32.xlu0 %v6850
      %v6852 = vpop.xlane.xlu0 %6851
      %v6853 = vsel %vm909, %v6819, 0.0
      %6854 = vadd.xlane.f32.xlu0 %v6853
      %v6855 = vpop.xlane.xlu0 %6854
      %v6856 = vsel %vm909, %v6821, 0.0
      %6857 = vadd.xlane.f32.xlu0 %v6856
      %v6858 = vpop.xlane.xlu0 %6857
      %v6859 = vsel %vm909, %v6823, 0.0
      %6860 = vadd.xlane.f32.xlu0 %v6859
      %v6861 = vpop.xlane.xlu0 %6860
      %v6862 = vsel %vm909, %v6825, 0.0
      %6863 = vadd.xlane.f32.xlu0 %v6862
      %v6864 = vpop.xlane.xlu0 %6863
      %v6865 = vsel %vm909, %v6827, 0.0
      %6866 = vadd.xlane.f32.xlu0 %v6865
      %v6867 = vpop.xlane.xlu0 %6866
      %v6868 = vsel %vm909, %v6829, 0.0
      %6869 = vadd.xlane.f32.xlu0 %v6868
      %v6870 = vpop.xlane.xlu0 %6869
      %v6871 = vsel %vm909, %v6831, 0.0
      %6872 = vadd.xlane.f32.xlu0 %v6871
      %v6873 = vpop.xlane.xlu0 %6872
      %v6874 = vsel %vm909, %v6833, 0.0
      %6875 = vadd.xlane.f32.xlu0 %v6874
      %v6876 = vpop.xlane.xlu0 %6875
      %v6877 = vsel %vm909, %v6835, 0.0
      %6878 = vadd.xlane.f32.xlu0 %v6877
      %v6879 = vpop.xlane.xlu0 %6878
      %v6880 = vsel %vm909, %v6837, 0.0
      %6881 = vadd.xlane.f32.xlu0 %v6880
      %v6882 = vpop.xlane.xlu0 %6881
      %v6883 = vsel %vm909, %v6839, 0.0
      %6884 = vadd.xlane.f32.xlu0 %v6883
      %v6885 = vpop.xlane.xlu0 %6884
      %v6886 = vsel %vm909, %v6841, 0.0
      %6887 = vadd.xlane.f32.xlu0 %v6886
      %v6888 = vpop.xlane.xlu0 %6887
      %v6889 = vsel %vm909, %v6843, 0.0
      %6890 = vadd.xlane.f32.xlu0 %v6889
      %v6891 = vpop.xlane.xlu0 %6890
      %v6892 = vrcp.pop %v6846
      %v6893 = vmul.f32 %v6813, %v6892
      %v6894 = vrcp.pop %v6849
      %v6895 = vmul.f32 %v6815, %v6894
      %v6896 = vrcp.pop %v6852
      %v6897 = vmul.f32 %v6817, %v6896
      %v6898 = vrcp.pop %v6855
      %v6899 = vmul.f32 %v6819, %v6898
      %v6900 = vrcp.pop %v6858
      %v6901 = vmul.f32 %v6821, %v6900
      %v6902 = vrcp.pop %v6861
      %v6903 = vmul.f32 %v6823, %v6902
      %v6904 = vrcp.pop %v6864
      %v6905 = vmul.f32 %v6825, %v6904
      %v6906 = vrcp.pop %v6867
      %v6907 = vmul.f32 %v6827, %v6906
      %v6908 = vrcp.pop %v6870
      %v6909 = vmul.f32 %v6829, %v6908
      %v6910 = vrcp.pop %v6873
      %v6911 = vmul.f32 %v6831, %v6910
      %v6912 = vrcp.pop %v6876
      %v6913 = vmul.f32 %v6833, %v6912
      %v6914 = vrcp.pop %v6879
      %v6915 = vmul.f32 %v6835, %v6914
      %v6916 = vrcp.pop %v6882
      %v6917 = vmul.f32 %v6837, %v6916
      %v6918 = vrcp.pop %v6885
      %v6919 = vmul.f32 %v6839, %v6918
      %v6920 = vrcp.pop %v6888
      %v6921 = vmul.f32 %v6841, %v6920
      %v6922 = vrcp.pop %v6891
      %v6923 = vmul.f32 %v6843, %v6922
      %v6925 = vsel %vm909, %v6893, 0
      %v6928 = vsel %vm909, %v6895, 0
      %6930 = vmatprep.subr.mxu0 0.0
      %6931 = vmatpush1.msra.mxu0 %v6304
      %6932 = vmatprep.subr.mxu0 0.0
      %6933 = vmatpush1.msra.mxu0 %v6309
      %6934 = vmatprep.subr.mxu0 0.0
      %6935 = vmatpush1.msra.mxu0 0.0
      %6936 = vmatprep.subr.mxu0 0.0
      %6937 = vmatpush1.msra.mxu0 0.0
      %6938 = vmatprep.subr.mxu0 0.0
      %6939 = vmatpush1.msra.mxu0 0.0
      %6940 = vmatprep.subr.mxu0 0.0
      %6941 = vmatpush1.msra.mxu0 0.0
      %6942 = vmatprep.subr.mxu0 0.0
      %6943 = vmatpush1.msra.mxu0 0.0
      %6944 = vmatprep.subr.mxu0 0.0
      %6945 = vmatpush1.msra.mxu0 0.0
      %6946 = vmatprep.subr.mxu0 0.0
      %6947 = vmatpush1.msra.mxu0 0.0
      %6948 = vmatprep.subr.mxu0 0.0
      %6949 = vmatpush1.msra.mxu0 0.0
      %6950 = vmatprep.subr.mxu0 0.0
      %6951 = vmatpush1.msra.mxu0 0.0
      %6952 = vmatprep.subr.mxu0 0.0
      %6953 = vmatpush1.msra.mxu0 0.0
      %6954 = vmatprep.subr.mxu0 0.0
      %6955 = vmatpush1.msra.mxu0 0.0
      %6956 = vmatprep.subr.mxu0 0.0
      %6957 = vmatpush1.msra.mxu0 0.0
      %6958 = vmatprep.subr.mxu0 0.0
      %6959 = vmatpush1.msra.mxu0 0.0
      %6960 = vmatprep.subr.mxu0 0.0
      %6961 = vmatpush1.msra.mxu0 0.0
      %6962 = vmatprep.subr.mxu0 0.0
      %6963 = vmatpush1.msra.mxu0 0.0
      %6964 = vmatprep.subr.mxu0 0.0
      %6965 = vmatpush1.msra.mxu0 0.0
      %6966 = vmatprep.subr.mxu0 0.0
      %6967 = vmatpush1.msra.mxu0 0.0
      %6968 = vmatprep.subr.mxu0 0.0
      %6969 = vmatpush1.msra.mxu0 0.0
      %6970 = vmatprep.subr.mxu0 0.0
      %6971 = vmatpush1.msra.mxu0 0.0
      %6972 = vmatprep.subr.mxu0 0.0
      %6973 = vmatpush1.msra.mxu0 0.0
      %6974 = vmatprep.subr.mxu0 0.0
      %6975 = vmatpush1.msra.mxu0 0.0
      %6976 = vmatprep.subr.mxu0 0.0
      %6977 = vmatpush1.msra.mxu0 0.0
      %6978 = vmatprep.subr.mxu0 0.0
      %6979 = vmatpush1.msra.mxu0 0.0
      %6980 = vmatprep.subr.mxu0 0.0
      %6981 = vmatpush1.msra.mxu0 0.0
      %6982 = vmatprep.subr.mxu0 0.0
      %6983 = vmatpush1.msra.mxu0 0.0
      %6984 = vmatprep.subr.mxu0 0.0
      %6985 = vmatpush1.msra.mxu0 0.0
      %6986 = vmatprep.subr.mxu0 0.0
      %6987 = vmatpush1.msra.mxu0 0.0
      %6988 = vmatprep.subr.mxu0 0.0
      %6989 = vmatpush1.msra.mxu0 0.0
      %6990 = vmatprep.subr.mxu0 0.0
      %6991 = vmatpush1.msra.mxu0 0.0
      %6992 = vmatprep.subr.mxu0 0.0
      %6993 = vmatpush1.msra.mxu0 0.0
      %6994 = vmatprep.mubr.f32.mxu0 0.0
      %6995 = vmatmul.mubr.f32.gmra.mrb[0].mxu0 %v6925
      %v6996 = vpop.f32.mrb[0].mxu0
      %v6997 = vadd.f32 0.0, %v6996
      %v6998 = vpop.f32.mrb[0].mxu0
      %6999 = vmatprep.mubr.f32.mxu0 0.0
      %7000 = vmatmul.mubr.f32.gmra.mrb[0].mxu0 %v6928
      %v7001 = vpop.f32.mrb[0].mxu0
      %v7002 = vadd.f32 0.0, %v7001
      %v7003 = vpop.f32.mrb[0].mxu0
      %7004 = vdwg.mxu0
      %v7006 = vsel %vm909, %v6897, 0
      %v7009 = vsel %vm909, %v6899, 0
      %7011 = vmatprep.subr.mxu0 0.0
      %7012 = vmatpush1.msra.mxu0 %v6314
      %7013 = vmatprep.subr.mxu0 0.0
      %7014 = vmatpush1.msra.mxu0 %v6319
      %7015 = vmatprep.subr.mxu0 0.0
      %7016 = vmatpush1.msra.mxu0 0.0
      %7017 = vmatprep.subr.mxu0 0.0
      %7018 = vmatpush1.msra.mxu0 0.0
      %7019 = vmatprep.subr.mxu0 0.0
      %7020 = vmatpush1.msra.mxu0 0.0
      %7021 = vmatprep.subr.mxu0 0.0
      %7022 = vmatpush1.msra.mxu0 0.0
      %7023 = vmatprep.subr.mxu0 0.0
      %7024 = vmatpush1.msra.mxu0 0.0
      %7025 = vmatprep.subr.mxu0 0.0
      %7026 = vmatpush1.msra.mxu0 0.0
      %7027 = vmatprep.subr.mxu0 0.0
      %7028 = vmatpush1.msra.mxu0 0.0
      %7029 = vmatprep.subr.mxu0 0.0
      %7030 = vmatpush1.msra.mxu0 0.0
      %7031 = vmatprep.subr.mxu0 0.0
      %7032 = vmatpush1.msra.mxu0 0.0
      %7033 = vmatprep.subr.mxu0 0.0
      %7034 = vmatpush1.msra.mxu0 0.0
      %7035 = vmatprep.subr.mxu0 0.0
      %7036 = vmatpush1.msra.mxu0 0.0
      %7037 = vmatprep.subr.mxu0 0.0
      %7038 = vmatpush1.msra.mxu0 0.0
      %7039 = vmatprep.subr.mxu0 0.0
      %7040 = vmatpush1.msra.mxu0 0.0
      %7041 = vmatprep.subr.mxu0 0.0
      %7042 = vmatpush1.msra.mxu0 0.0
      %7043 = vmatprep.subr.mxu0 0.0
      %7044 = vmatpush1.msra.mxu0 0.0
      %7045 = vmatprep.subr.mxu0 0.0
      %7046 = vmatpush1.msra.mxu0 0.0
      %7047 = vmatprep.subr.mxu0 0.0
      %7048 = vmatpush1.msra.mxu0 0.0
      %7049 = vmatprep.subr.mxu0 0.0
      %7050 = vmatpush1.msra.mxu0 0.0
      %7051 = vmatprep.subr.mxu0 0.0
      %7052 = vmatpush1.msra.mxu0 0.0
      %7053 = vmatprep.subr.mxu0 0.0
      %7054 = vmatpush1.msra.mxu0 0.0
      %7055 = vmatprep.subr.mxu0 0.0
      %7056 = vmatpush1.msra.mxu0 0.0
      %7057 = vmatprep.subr.mxu0 0.0
      %7058 = vmatpush1.msra.mxu0 0.0
      %7059 = vmatprep.subr.mxu0 0.0
      %7060 = vmatpush1.msra.mxu0 0.0
      %7061 = vmatprep.subr.mxu0 0.0
      %7062 = vmatpush1.msra.mxu0 0.0
      %7063 = vmatprep.subr.mxu0 0.0
      %7064 = vmatpush1.msra.mxu0 0.0
      %7065 = vmatprep.subr.mxu0 0.0
      %7066 = vmatpush1.msra.mxu0 0.0
      %7067 = vmatprep.subr.mxu0 0.0
      %7068 = vmatpush1.msra.mxu0 0.0
      %7069 = vmatprep.subr.mxu0 0.0
      %7070 = vmatpush1.msra.mxu0 0.0
      %7071 = vmatprep.subr.mxu0 0.0
      %7072 = vmatpush1.msra.mxu0 0.0
      %7073 = vmatprep.subr.mxu0 0.0
      %7074 = vmatpush1.msra.mxu0 0.0
      %7075 = vmatprep.mubr.f32.mxu0 0.0
      %7076 = vmatmul.mubr.f32.gmra.mrb[0].mxu0 %v7006
      %v7077 = vpop.f32.mrb[0].mxu0
      %v7078 = vadd.f32 0.0, %v7077
      %v7079 = vpop.f32.mrb[0].mxu0
      %7080 = vmatprep.mubr.f32.mxu0 0.0
      %7081 = vmatmul.mubr.f32.gmra.mrb[0].mxu0 %v7009
      %v7082 = vpop.f32.mrb[0].mxu0
      %v7083 = vadd.f32 0.0, %v7082
      %v7084 = vpop.f32.mrb[0].mxu0
      %7085 = vdwg.mxu0
      %v7087 = vsel %vm909, %v6901, 0
      %v7090 = vsel %vm909, %v6903, 0
      %7092 = vmatprep.subr.mxu0 0.0
      %7093 = vmatpush1.msra.mxu0 %v6324
      %7094 = vmatprep.subr.mxu0 0.0
      %7095 = vmatpush1.msra.mxu0 %v6329
      %7096 = vmatprep.subr.mxu0 0.0
      %7097 = vmatpush1.msra.mxu0 0.0
      %7098 = vmatprep.subr.mxu0 0.0
      %7099 = vmatpush1.msra.mxu0 0.0
      %7100 = vmatprep.subr.mxu0 0.0
      %7101 = vmatpush1.msra.mxu0 0.0
      %7102 = vmatprep.subr.mxu0 0.0
      %7103 = vmatpush1.msra.mxu0 0.0
      %7104 = vmatprep.subr.mxu0 0.0
      %7105 = vmatpush1.msra.mxu0 0.0
      %7106 = vmatprep.subr.mxu0 0.0
      %7107 = vmatpush1.msra.mxu0 0.0
      %7108 = vmatprep.subr.mxu0 0.0
      %7109 = vmatpush1.msra.mxu0 0.0
      %7110 = vmatprep.subr.mxu0 0.0
      %7111 = vmatpush1.msra.mxu0 0.0
      %7112 = vmatprep.subr.mxu0 0.0
      %7113 = vmatpush1.msra.mxu0 0.0
      %7114 = vmatprep.subr.mxu0 0.0
      %7115 = vmatpush1.msra.mxu0 0.0
      %7116 = vmatprep.subr.mxu0 0.0
      %7117 = vmatpush1.msra.mxu0 0.0
      %7118 = vmatprep.subr.mxu0 0.0
      %7119 = vmatpush1.msra.mxu0 0.0
      %7120 = vmatprep.subr.mxu0 0.0
      %7121 = vmatpush1.msra.mxu0 0.0
      %7122 = vmatprep.subr.mxu0 0.0
      %7123 = vmatpush1.msra.mxu0 0.0
      %7124 = vmatprep.subr.mxu0 0.0
      %7125 = vmatpush1.msra.mxu0 0.0
      %7126 = vmatprep.subr.mxu0 0.0
      %7127 = vmatpush1.msra.mxu0 0.0
      %7128 = vmatprep.subr.mxu0 0.0
      %7129 = vmatpush1.msra.mxu0 0.0
      %7130 = vmatprep.subr.mxu0 0.0
      %7131 = vmatpush1.msra.mxu0 0.0
      %7132 = vmatprep.subr.mxu0 0.0
      %7133 = vmatpush1.msra.mxu0 0.0
      %7134 = vmatprep.subr.mxu0 0.0
      %7135 = vmatpush1.msra.mxu0 0.0
      %7136 = vmatprep.subr.mxu0 0.0
      %7137 = vmatpush1.msra.mxu0 0.0
      %7138 = vmatprep.subr.mxu0 0.0
      %7139 = vmatpush1.msra.mxu0 0.0
      %7140 = vmatprep.subr.mxu0 0.0
      %7141 = vmatpush1.msra.mxu0 0.0
      %7142 = vmatprep.subr.mxu0 0.0
      %7143 = vmatpush1.msra.mxu0 0.0
      %7144 = vmatprep.subr.mxu0 0.0
      %7145 = vmatpush1.msra.mxu0 0.0
      %7146 = vmatprep.subr.mxu0 0.0
      %7147 = vmatpush1.msra.mxu0 0.0
      %7148 = vmatprep.subr.mxu0 0.0
      %7149 = vmatpush1.msra.mxu0 0.0
      %7150 = vmatprep.subr.mxu0 0.0
      %7151 = vmatpush1.msra.mxu0 0.0
      %7152 = vmatprep.subr.mxu0 0.0
      %7153 = vmatpush1.msra.mxu0 0.0
      %7154 = vmatprep.subr.mxu0 0.0
      %7155 = vmatpush1.msra.mxu0 0.0
      %7156 = vmatprep.mubr.f32.mxu0 0.0
      %7157 = vmatmul.mubr.f32.gmra.mrb[0].mxu0 %v7087
      %v7158 = vpop.f32.mrb[0].mxu0
      %v7159 = vadd.f32 0.0, %v7158
      %v7160 = vpop.f32.mrb[0].mxu0
      %7161 = vmatprep.mubr.f32.mxu0 0.0
      %7162 = vmatmul.mubr.f32.gmra.mrb[0].mxu0 %v7090
      %v7163 = vpop.f32.mrb[0].mxu0
      %v7164 = vadd.f32 0.0, %v7163
      %v7165 = vpop.f32.mrb[0].mxu0
      %7166 = vdwg.mxu0
      %v7168 = vsel %vm909, %v6905, 0
      %v7171 = vsel %vm909, %v6907, 0
      %7173 = vmatprep.subr.mxu0 0.0
      %7174 = vmatpush1.msra.mxu0 %v6334
      %7175 = vmatprep.subr.mxu0 0.0
      %7176 = vmatpush1.msra.mxu0 %v6339
      %7177 = vmatprep.subr.mxu0 0.0
      %7178 = vmatpush1.msra.mxu0 0.0
      %7179 = vmatprep.subr.mxu0 0.0
      %7180 = vmatpush1.msra.mxu0 0.0
      %7181 = vmatprep.subr.mxu0 0.0
      %7182 = vmatpush1.msra.mxu0 0.0
      %7183 = vmatprep.subr.mxu0 0.0
      %7184 = vmatpush1.msra.mxu0 0.0
      %7185 = vmatprep.subr.mxu0 0.0
      %7186 = vmatpush1.msra.mxu0 0.0
      %7187 = vmatprep.subr.mxu0 0.0
      %7188 = vmatpush1.msra.mxu0 0.0
      %7189 = vmatprep.subr.mxu0 0.0
      %7190 = vmatpush1.msra.mxu0 0.0
      %7191 = vmatprep.subr.mxu0 0.0
      %7192 = vmatpush1.msra.mxu0 0.0
      %7193 = vmatprep.subr.mxu0 0.0
      %7194 = vmatpush1.msra.mxu0 0.0
      %7195 = vmatprep.subr.mxu0 0.0
      %7196 = vmatpush1.msra.mxu0 0.0
      %7197 = vmatprep.subr.mxu0 0.0
      %7198 = vmatpush1.msra.mxu0 0.0
      %7199 = vmatprep.subr.mxu0 0.0
      %7200 = vmatpush1.msra.mxu0 0.0
      %7201 = vmatprep.subr.mxu0 0.0
      %7202 = vmatpush1.msra.mxu0 0.0
      %7203 = vmatprep.subr.mxu0 0.0
      %7204 = vmatpush1.msra.mxu0 0.0
      %7205 = vmatprep.subr.mxu0 0.0
      %7206 = vmatpush1.msra.mxu0 0.0
      %7207 = vmatprep.subr.mxu0 0.0
      %7208 = vmatpush1.msra.mxu0 0.0
      %7209 = vmatprep.subr.mxu0 0.0
      %7210 = vmatpush1.msra.mxu0 0.0
      %7211 = vmatprep.subr.mxu0 0.0
      %7212 = vmatpush1.msra.mxu0 0.0
      %7213 = vmatprep.subr.mxu0 0.0
      %7214 = vmatpush1.msra.mxu0 0.0
      %7215 = vmatprep.subr.mxu0 0.0
      %7216 = vmatpush1.msra.mxu0 0.0
      %7217 = vmatprep.subr.mxu0 0.0
      %7218 = vmatpush1.msra.mxu0 0.0
      %7219 = vmatprep.subr.mxu0 0.0
      %7220 = vmatpush1.msra.mxu0 0.0
      %7221 = vmatprep.subr.mxu0 0.0
      %7222 = vmatpush1.msra.mxu0 0.0
      %7223 = vmatprep.subr.mxu0 0.0
      %7224 = vmatpush1.msra.mxu0 0.0
      %7225 = vmatprep.subr.mxu0 0.0
      %7226 = vmatpush1.msra.mxu0 0.0
      %7227 = vmatprep.subr.mxu0 0.0
      %7228 = vmatpush1.msra.mxu0 0.0
      %7229 = vmatprep.subr.mxu0 0.0
      %7230 = vmatpush1.msra.mxu0 0.0
      %7231 = vmatprep.subr.mxu0 0.0
      %7232 = vmatpush1.msra.mxu0 0.0
      %7233 = vmatprep.subr.mxu0 0.0
      %7234 = vmatpush1.msra.mxu0 0.0
      %7235 = vmatprep.subr.mxu0 0.0
      %7236 = vmatpush1.msra.mxu0 0.0
      %7237 = vmatprep.mubr.f32.mxu0 0.0
      %7238 = vmatmul.mubr.f32.gmra.mrb[0].mxu0 %v7168
      %v7239 = vpop.f32.mrb[0].mxu0
      %v7240 = vadd.f32 0.0, %v7239
      %v7241 = vpop.f32.mrb[0].mxu0
      %7242 = vmatprep.mubr.f32.mxu0 0.0
      %7243 = vmatmul.mubr.f32.gmra.mrb[0].mxu0 %v7171
      %v7244 = vpop.f32.mrb[0].mxu0
      %v7245 = vadd.f32 0.0, %v7244
      %v7246 = vpop.f32.mrb[0].mxu0
      %7247 = vdwg.mxu0
      %v7249 = vsel %vm909, %v6909, 0
      %v7252 = vsel %vm909, %v6911, 0
      %7254 = vmatprep.subr.mxu0 0.0
      %7255 = vmatpush1.msra.mxu0 %v6344
      %7256 = vmatprep.subr.mxu0 0.0
      %7257 = vmatpush1.msra.mxu0 %v6349
      %7258 = vmatprep.subr.mxu0 0.0
      %7259 = vmatpush1.msra.mxu0 0.0
      %7260 = vmatprep.subr.mxu0 0.0
      %7261 = vmatpush1.msra.mxu0 0.0
      %7262 = vmatprep.subr.mxu0 0.0
      %7263 = vmatpush1.msra.mxu0 0.0
      %7264 = vmatprep.subr.mxu0 0.0
      %7265 = vmatpush1.msra.mxu0 0.0
      %7266 = vmatprep.subr.mxu0 0.0
      %7267 = vmatpush1.msra.mxu0 0.0
      %7268 = vmatprep.subr.mxu0 0.0
      %7269 = vmatpush1.msra.mxu0 0.0
      %7270 = vmatprep.subr.mxu0 0.0
      %7271 = vmatpush1.msra.mxu0 0.0
      %7272 = vmatprep.subr.mxu0 0.0
      %7273 = vmatpush1.msra.mxu0 0.0
      %7274 = vmatprep.subr.mxu0 0.0
      %7275 = vmatpush1.msra.mxu0 0.0
      %7276 = vmatprep.subr.mxu0 0.0
      %7277 = vmatpush1.msra.mxu0 0.0
      %7278 = vmatprep.subr.mxu0 0.0
      %7279 = vmatpush1.msra.mxu0 0.0
      %7280 = vmatprep.subr.mxu0 0.0
      %7281 = vmatpush1.msra.mxu0 0.0
      %7282 = vmatprep.subr.mxu0 0.0
      %7283 = vmatpush1.msra.mxu0 0.0
      %7284 = vmatprep.subr.mxu0 0.0
      %7285 = vmatpush1.msra.mxu0 0.0
      %7286 = vmatprep.subr.mxu0 0.0
      %7287 = vmatpush1.msra.mxu0 0.0
      %7288 = vmatprep.subr.mxu0 0.0
      %7289 = vmatpush1.msra.mxu0 0.0
      %7290 = vmatprep.subr.mxu0 0.0
      %7291 = vmatpush1.msra.mxu0 0.0
      %7292 = vmatprep.subr.mxu0 0.0
      %7293 = vmatpush1.msra.mxu0 0.0
      %7294 = vmatprep.subr.mxu0 0.0
      %7295 = vmatpush1.msra.mxu0 0.0
      %7296 = vmatprep.subr.mxu0 0.0
      %7297 = vmatpush1.msra.mxu0 0.0
      %7298 = vmatprep.subr.mxu0 0.0
      %7299 = vmatpush1.msra.mxu0 0.0
      %7300 = vmatprep.subr.mxu0 0.0
      %7301 = vmatpush1.msra.mxu0 0.0
      %7302 = vmatprep.subr.mxu0 0.0
      %7303 = vmatpush1.msra.mxu0 0.0
      %7304 = vmatprep.subr.mxu0 0.0
      %7305 = vmatpush1.msra.mxu0 0.0
      %7306 = vmatprep.subr.mxu0 0.0
      %7307 = vmatpush1.msra.mxu0 0.0
      %7308 = vmatprep.subr.mxu0 0.0
      %7309 = vmatpush1.msra.mxu0 0.0
      %7310 = vmatprep.subr.mxu0 0.0
      %7311 = vmatpush1.msra.mxu0 0.0
      %7312 = vmatprep.subr.mxu0 0.0
      %7313 = vmatpush1.msra.mxu0 0.0
      %7314 = vmatprep.subr.mxu0 0.0
      %7315 = vmatpush1.msra.mxu0 0.0
      %7316 = vmatprep.subr.mxu0 0.0
      %7317 = vmatpush1.msra.mxu0 0.0
      %7318 = vmatprep.mubr.f32.mxu0 0.0
      %7319 = vmatmul.mubr.f32.gmra.mrb[0].mxu0 %v7249
      %v7320 = vpop.f32.mrb[0].mxu0
      %v7321 = vadd.f32 0.0, %v7320
      %v7322 = vpop.f32.mrb[0].mxu0
      %7323 = vmatprep.mubr.f32.mxu0 0.0
      %7324 = vmatmul.mubr.f32.gmra.mrb[0].mxu0 %v7252
      %v7325 = vpop.f32.mrb[0].mxu0
      %v7326 = vadd.f32 0.0, %v7325
      %v7327 = vpop.f32.mrb[0].mxu0
      %7328 = vdwg.mxu0
      %v7330 = vsel %vm909, %v6913, 0
      %v7333 = vsel %vm909, %v6915, 0
      %7335 = vmatprep.subr.mxu0 0.0
      %7336 = vmatpush1.msra.mxu0 %v6354
      %7337 = vmatprep.subr.mxu0 0.0
      %7338 = vmatpush1.msra.mxu0 %v6359
      %7339 = vmatprep.subr.mxu0 0.0
      %7340 = vmatpush1.msra.mxu0 0.0
      %7341 = vmatprep.subr.mxu0 0.0
      %7342 = vmatpush1.msra.mxu0 0.0
      %7343 = vmatprep.subr.mxu0 0.0
      %7344 = vmatpush1.msra.mxu0 0.0
      %7345 = vmatprep.subr.mxu0 0.0
      %7346 = vmatpush1.msra.mxu0 0.0
      %7347 = vmatprep.subr.mxu0 0.0
      %7348 = vmatpush1.msra.mxu0 0.0
      %7349 = vmatprep.subr.mxu0 0.0
      %7350 = vmatpush1.msra.mxu0 0.0
      %7351 = vmatprep.subr.mxu0 0.0
      %7352 = vmatpush1.msra.mxu0 0.0
      %7353 = vmatprep.subr.mxu0 0.0
      %7354 = vmatpush1.msra.mxu0 0.0
      %7355 = vmatprep.subr.mxu0 0.0
      %7356 = vmatpush1.msra.mxu0 0.0
      %7357 = vmatprep.subr.mxu0 0.0
      %7358 = vmatpush1.msra.mxu0 0.0
      %7359 = vmatprep.subr.mxu0 0.0
      %7360 = vmatpush1.msra.mxu0 0.0
      %7361 = vmatprep.subr.mxu0 0.0
      %7362 = vmatpush1.msra.mxu0 0.0
      %7363 = vmatprep.subr.mxu0 0.0
      %7364 = vmatpush1.msra.mxu0 0.0
      %7365 = vmatprep.subr.mxu0 0.0
      %7366 = vmatpush1.msra.mxu0 0.0
      %7367 = vmatprep.subr.mxu0 0.0
      %7368 = vmatpush1.msra.mxu0 0.0
      %7369 = vmatprep.subr.mxu0 0.0
      %7370 = vmatpush1.msra.mxu0 0.0
      %7371 = vmatprep.subr.mxu0 0.0
      %7372 = vmatpush1.msra.mxu0 0.0
      %7373 = vmatprep.subr.mxu0 0.0
      %7374 = vmatpush1.msra.mxu0 0.0
      %7375 = vmatprep.subr.mxu0 0.0
      %7376 = vmatpush1.msra.mxu0 0.0
      %7377 = vmatprep.subr.mxu0 0.0
      %7378 = vmatpush1.msra.mxu0 0.0
      %7379 = vmatprep.subr.mxu0 0.0
      %7380 = vmatpush1.msra.mxu0 0.0
      %7381 = vmatprep.subr.mxu0 0.0
      %7382 = vmatpush1.msra.mxu0 0.0
      %7383 = vmatprep.subr.mxu0 0.0
      %7384 = vmatpush1.msra.mxu0 0.0
      %7385 = vmatprep.subr.mxu0 0.0
      %7386 = vmatpush1.msra.mxu0 0.0
      %7387 = vmatprep.subr.mxu0 0.0
      %7388 = vmatpush1.msra.mxu0 0.0
      %7389 = vmatprep.subr.mxu0 0.0
      %7390 = vmatpush1.msra.mxu0 0.0
      %7391 = vmatprep.subr.mxu0 0.0
      %7392 = vmatpush1.msra.mxu0 0.0
      %7393 = vmatprep.subr.mxu0 0.0
      %7394 = vmatpush1.msra.mxu0 0.0
      %7395 = vmatprep.subr.mxu0 0.0
      %7396 = vmatpush1.msra.mxu0 0.0
      %7397 = vmatprep.subr.mxu0 0.0
      %7398 = vmatpush1.msra.mxu0 0.0
      %7399 = vmatprep.mubr.f32.mxu0 0.0
      %7400 = vmatmul.mubr.f32.gmra.mrb[0].mxu0 %v7330
      %v7401 = vpop.f32.mrb[0].mxu0
      %v7402 = vadd.f32 0.0, %v7401
      %v7403 = vpop.f32.mrb[0].mxu0
      %7404 = vmatprep.mubr.f32.mxu0 0.0
      %7405 = vmatmul.mubr.f32.gmra.mrb[0].mxu0 %v7333
      %v7406 = vpop.f32.mrb[0].mxu0
      %v7407 = vadd.f32 0.0, %v7406
      %v7408 = vpop.f32.mrb[0].mxu0
      %7409 = vdwg.mxu0
      %v7411 = vsel %vm909, %v6917, 0
      %v7414 = vsel %vm909, %v6919, 0
      %7416 = vmatprep.subr.mxu0 0.0
      %7417 = vmatpush1.msra.mxu0 %v6364
      %7418 = vmatprep.subr.mxu0 0.0
      %7419 = vmatpush1.msra.mxu0 %v6369
      %7420 = vmatprep.subr.mxu0 0.0
      %7421 = vmatpush1.msra.mxu0 0.0
      %7422 = vmatprep.subr.mxu0 0.0
      %7423 = vmatpush1.msra.mxu0 0.0
      %7424 = vmatprep.subr.mxu0 0.0
      %7425 = vmatpush1.msra.mxu0 0.0
      %7426 = vmatprep.subr.mxu0 0.0
      %7427 = vmatpush1.msra.mxu0 0.0
      %7428 = vmatprep.subr.mxu0 0.0
      %7429 = vmatpush1.msra.mxu0 0.0
      %7430 = vmatprep.subr.mxu0 0.0
      %7431 = vmatpush1.msra.mxu0 0.0
      %7432 = vmatprep.subr.mxu0 0.0
      %7433 = vmatpush1.msra.mxu0 0.0
      %7434 = vmatprep.subr.mxu0 0.0
      %7435 = vmatpush1.msra.mxu0 0.0
      %7436 = vmatprep.subr.mxu0 0.0
      %7437 = vmatpush1.msra.mxu0 0.0
      %7438 = vmatprep.subr.mxu0 0.0
      %7439 = vmatpush1.msra.mxu0 0.0
      %7440 = vmatprep.subr.mxu0 0.0
      %7441 = vmatpush1.msra.mxu0 0.0
      %7442 = vmatprep.subr.mxu0 0.0
      %7443 = vmatpush1.msra.mxu0 0.0
      %7444 = vmatprep.subr.mxu0 0.0
      %7445 = vmatpush1.msra.mxu0 0.0
      %7446 = vmatprep.subr.mxu0 0.0
      %7447 = vmatpush1.msra.mxu0 0.0
      %7448 = vmatprep.subr.mxu0 0.0
      %7449 = vmatpush1.msra.mxu0 0.0
      %7450 = vmatprep.subr.mxu0 0.0
      %7451 = vmatpush1.msra.mxu0 0.0
      %7452 = vmatprep.subr.mxu0 0.0
      %7453 = vmatpush1.msra.mxu0 0.0
      %7454 = vmatprep.subr.mxu0 0.0
      %7455 = vmatpush1.msra.mxu0 0.0
      %7456 = vmatprep.subr.mxu0 0.0
      %7457 = vmatpush1.msra.mxu0 0.0
      %7458 = vmatprep.subr.mxu0 0.0
      %7459 = vmatpush1.msra.mxu0 0.0
      %7460 = vmatprep.subr.mxu0 0.0
      %7461 = vmatpush1.msra.mxu0 0.0
      %7462 = vmatprep.subr.mxu0 0.0
      %7463 = vmatpush1.msra.mxu0 0.0
      %7464 = vmatprep.subr.mxu0 0.0
      %7465 = vmatpush1.msra.mxu0 0.0
      %7466 = vmatprep.subr.mxu0 0.0
      %7467 = vmatpush1.msra.mxu0 0.0
      %7468 = vmatprep.subr.mxu0 0.0
      %7469 = vmatpush1.msra.mxu0 0.0
      %7470 = vmatprep.subr.mxu0 0.0
      %7471 = vmatpush1.msra.mxu0 0.0
      %7472 = vmatprep.subr.mxu0 0.0
      %7473 = vmatpush1.msra.mxu0 0.0
      %7474 = vmatprep.subr.mxu0 0.0
      %7475 = vmatpush1.msra.mxu0 0.0
      %7476 = vmatprep.subr.mxu0 0.0
      %7477 = vmatpush1.msra.mxu0 0.0
      %7478 = vmatprep.subr.mxu0 0.0
      %7479 = vmatpush1.msra.mxu0 0.0
      %7480 = vmatprep.mubr.f32.mxu0 0.0
      %7481 = vmatmul.mubr.f32.gmra.mrb[0].mxu0 %v7411
      %v7482 = vpop.f32.mrb[0].mxu0
      %v7483 = vadd.f32 0.0, %v7482
      %v7484 = vpop.f32.mrb[0].mxu0
      %7485 = vmatprep.mubr.f32.mxu0 0.0
      %7486 = vmatmul.mubr.f32.gmra.mrb[0].mxu0 %v7414
      %v7487 = vpop.f32.mrb[0].mxu0
      %v7488 = vadd.f32 0.0, %v7487
      %v7489 = vpop.f32.mrb[0].mxu0
      %7490 = vdwg.mxu0
      %v7492 = vsel %vm909, %v6921, 0
      %v7495 = vsel %vm909, %v6923, 0
      %7497 = vmatprep.subr.mxu0 0.0
      %7498 = vmatpush1.msra.mxu0 %v6374
      %7499 = vmatprep.subr.mxu0 0.0
      %7500 = vmatpush1.msra.mxu0 %v6379
      %7501 = vmatprep.subr.mxu0 0.0
      %7502 = vmatpush1.msra.mxu0 0.0
      %7503 = vmatprep.subr.mxu0 0.0
      %7504 = vmatpush1.msra.mxu0 0.0
      %7505 = vmatprep.subr.mxu0 0.0
      %7506 = vmatpush1.msra.mxu0 0.0
      %7507 = vmatprep.subr.mxu0 0.0
      %7508 = vmatpush1.msra.mxu0 0.0
      %7509 = vmatprep.subr.mxu0 0.0
      %7510 = vmatpush1.msra.mxu0 0.0
      %7511 = vmatprep.subr.mxu0 0.0
      %7512 = vmatpush1.msra.mxu0 0.0
      %7513 = vmatprep.subr.mxu0 0.0
      %7514 = vmatpush1.msra.mxu0 0.0
      %7515 = vmatprep.subr.mxu0 0.0
      %7516 = vmatpush1.msra.mxu0 0.0
      %7517 = vmatprep.subr.mxu0 0.0
      %7518 = vmatpush1.msra.mxu0 0.0
      %7519 = vmatprep.subr.mxu0 0.0
      %7520 = vmatpush1.msra.mxu0 0.0
      %7521 = vmatprep.subr.mxu0 0.0
      %7522 = vmatpush1.msra.mxu0 0.0
      %7523 = vmatprep.subr.mxu0 0.0
      %7524 = vmatpush1.msra.mxu0 0.0
      %7525 = vmatprep.subr.mxu0 0.0
      %7526 = vmatpush1.msra.mxu0 0.0
      %7527 = vmatprep.subr.mxu0 0.0
      %7528 = vmatpush1.msra.mxu0 0.0
      %7529 = vmatprep.subr.mxu0 0.0
      %7530 = vmatpush1.msra.mxu0 0.0
      %7531 = vmatprep.subr.mxu0 0.0
      %7532 = vmatpush1.msra.mxu0 0.0
      %7533 = vmatprep.subr.mxu0 0.0
      %7534 = vmatpush1.msra.mxu0 0.0
      %7535 = vmatprep.subr.mxu0 0.0
      %7536 = vmatpush1.msra.mxu0 0.0
      %7537 = vmatprep.subr.mxu0 0.0
      %7538 = vmatpush1.msra.mxu0 0.0
      %7539 = vmatprep.subr.mxu0 0.0
      %7540 = vmatpush1.msra.mxu0 0.0
      %7541 = vmatprep.subr.mxu0 0.0
      %7542 = vmatpush1.msra.mxu0 0.0
      %7543 = vmatprep.subr.mxu0 0.0
      %7544 = vmatpush1.msra.mxu0 0.0
      %7545 = vmatprep.subr.mxu0 0.0
      %7546 = vmatpush1.msra.mxu0 0.0
      %7547 = vmatprep.subr.mxu0 0.0
      %7548 = vmatpush1.msra.mxu0 0.0
      %7549 = vmatprep.subr.mxu0 0.0
      %7550 = vmatpush1.msra.mxu0 0.0
      %7551 = vmatprep.subr.mxu0 0.0
      %7552 = vmatpush1.msra.mxu0 0.0
      %7553 = vmatprep.subr.mxu0 0.0
      %7554 = vmatpush1.msra.mxu0 0.0
      %7555 = vmatprep.subr.mxu0 0.0
      %7556 = vmatpush1.msra.mxu0 0.0
      %7557 = vmatprep.subr.mxu0 0.0
      %7558 = vmatpush1.msra.mxu0 0.0
      %7559 = vmatprep.subr.mxu0 0.0
      %7560 = vmatpush1.msra.mxu0 0.0
      %7561 = vmatprep.mubr.f32.mxu0 0.0
      %7562 = vmatmul.mubr.f32.gmra.mrb[0].mxu0 %v7492
      %v7563 = vpop.f32.mrb[0].mxu0
      %v7564 = vadd.f32 0.0, %v7563
      %v7565 = vpop.f32.mrb[0].mxu0
      %7566 = vmatprep.mubr.f32.mxu0 0.0
      %7567 = vmatmul.mubr.f32.gmra.mrb[0].mxu0 %v7495
      %v7568 = vpop.f32.mrb[0].mxu0
      %v7569 = vadd.f32 0.0, %v7568
      %v7570 = vpop.f32.mrb[0].mxu0
      %7571 = vdwg.mxu0
      %vm7572 = vcmp.gt.f32.partialorder %v6997, 0.0
      %vm7573 = vcmp.gt.f32.partialorder %v7002, 0.0
      %vm7574 = vcmp.gt.f32.partialorder %v7078, 0.0
      %vm7575 = vcmp.gt.f32.partialorder %v7083, 0.0
      %vm7576 = vcmp.gt.f32.partialorder %v7159, 0.0
      %vm7577 = vcmp.gt.f32.partialorder %v7164, 0.0
      %vm7578 = vcmp.gt.f32.partialorder %v7240, 0.0
      %vm7579 = vcmp.gt.f32.partialorder %v7245, 0.0
      %vm7580 = vcmp.gt.f32.partialorder %v7321, 0.0
      %vm7581 = vcmp.gt.f32.partialorder %v7326, 0.0
      %vm7582 = vcmp.gt.f32.partialorder %v7402, 0.0
      %vm7583 = vcmp.gt.f32.partialorder %v7407, 0.0
      %vm7584 = vcmp.gt.f32.partialorder %v7483, 0.0
      %vm7585 = vcmp.gt.f32.partialorder %v7488, 0.0
      %vm7586 = vcmp.gt.f32.partialorder %v7564, 0.0
      %vm7587 = vcmp.gt.f32.partialorder %v7569, 0.0
      %v7588 = vmul.f32 %v6997, 1.442695
      %v7589 = vpow.pop %v7588
      %v7590 = vmul.f32 %v7002, 1.442695
      %v7591 = vpow.pop %v7590
      %v7592 = vmul.f32 %v7078, 1.442695
      %v7593 = vpow.pop %v7592
      %v7594 = vmul.f32 %v7083, 1.442695
      %v7595 = vpow.pop %v7594
      %v7596 = vmul.f32 %v7159, 1.442695
      %v7597 = vpow.pop %v7596
      %v7598 = vmul.f32 %v7164, 1.442695
      %v7599 = vpow.pop %v7598
      %v7600 = vmul.f32 %v7240, 1.442695
      %v7601 = vpow.pop %v7600
      %v7602 = vmul.f32 %v7245, 1.442695
      %v7603 = vpow.pop %v7602
      %v7604 = vmul.f32 %v7321, 1.442695
      %v7605 = vpow.pop %v7604
      %v7606 = vmul.f32 %v7326, 1.442695
      %v7607 = vpow.pop %v7606
      %v7608 = vmul.f32 %v7402, 1.442695
      %v7609 = vpow.pop %v7608
      %v7610 = vmul.f32 %v7407, 1.442695
      %v7611 = vpow.pop %v7610
      %v7612 = vmul.f32 %v7483, 1.442695
      %v7613 = vpow.pop %v7612
      %v7614 = vmul.f32 %v7488, 1.442695
      %v7615 = vpow.pop %v7614
      %v7616 = vmul.f32 %v7564, 1.442695
      %v7617 = vpow.pop %v7616
      %v7618 = vmul.f32 %v7569, 1.442695
      %v7619 = vpow.pop %v7618
      %v7620 = vsub.f32 %v7589, 1.0
      %v7621 = vsub.f32 %v7591, 1.0
      %v7622 = vsub.f32 %v7593, 1.0
      %v7623 = vsub.f32 %v7595, 1.0
      %v7624 = vsub.f32 %v7597, 1.0
      %v7625 = vsub.f32 %v7599, 1.0
      %v7626 = vsub.f32 %v7601, 1.0
      %v7627 = vsub.f32 %v7603, 1.0
      %v7628 = vsub.f32 %v7605, 1.0
      %v7629 = vsub.f32 %v7607, 1.0
      %v7630 = vsub.f32 %v7609, 1.0
      %v7631 = vsub.f32 %v7611, 1.0
      %v7632 = vsub.f32 %v7613, 1.0
      %v7633 = vsub.f32 %v7615, 1.0
      %v7634 = vsub.f32 %v7617, 1.0
      %v7635 = vsub.f32 %v7619, 1.0
      %v7636 = vsel %vm7572, %v6997, %v7620
      %v7637 = vsel %vm7573, %v7002, %v7621
      %v7638 = vsel %vm7574, %v7078, %v7622
      %v7639 = vsel %vm7575, %v7083, %v7623
      %v7640 = vsel %vm7576, %v7159, %v7624
      %v7641 = vsel %vm7577, %v7164, %v7625
      %v7642 = vsel %vm7578, %v7240, %v7626
      %v7643 = vsel %vm7579, %v7245, %v7627
      %v7644 = vsel %vm7580, %v7321, %v7628
      %v7645 = vsel %vm7581, %v7326, %v7629
      %v7646 = vsel %vm7582, %v7402, %v7630
      %v7647 = vsel %vm7583, %v7407, %v7631
      %v7648 = vsel %vm7584, %v7483, %v7632
      %v7649 = vsel %vm7585, %v7488, %v7633
      %v7650 = vsel %vm7586, %v7564, %v7634
      %v7651 = vsel %vm7587, %v7569, %v7635
      %s7652 = scalar_lea.vmem %s301, 160
      %v7653 = vld [vmem:[%s7652] sm:$0xff]
      %v7654 = vld [vmem:[%s7652 + $0x8] sm:$0xff]
      %v7655 = vld [vmem:[%s7652 + $0x10] sm:$0xff]
      %v7656 = vld [vmem:[%s7652 + $0x18] sm:$0xf]
      %s7657 = scalar_lea.vmem %s306, 10
      %v7658 = vld [vmem:[%s7657] sm:$0x3]
      %v7659 = vld [vmem:[%s6231] sm:$0xff]
      %v7660 = vld [vmem:[%s6231 + $0x8] sm:$0xff]
      %v7662 = vsel %vm335, %v7636, 0
      %v7665 = vsel %vm335, %v7637, 0
      %v7668 = vsel %vm335, %v7638, 0
      %v7671 = vsel %vm335, %v7639, 0
      %v7674 = vsel %vm335, %v7640, 0
      %v7677 = vsel %vm335, %v7641, 0
      %v7680 = vsel %vm335, %v7642, 0
      %v7683 = vsel %vm335, %v7643, 0
      %v7686 = vsel %vm335, %v7644, 0
      %v7689 = vsel %vm335, %v7645, 0
      %v7692 = vsel %vm335, %v7646, 0
      %v7695 = vsel %vm335, %v7647, 0
      %v7698 = vsel %vm335, %v7648, 0
      %v7701 = vsel %vm335, %v7649, 0
      %v7704 = vsel %vm335, %v7650, 0
      %v7707 = vsel %vm335, %v7651, 0
      %v7710 = vsel %vm384, %v7656, 0
      %7712 = vmatprep.subr.mxu0 0.0
      %7713 = vmatpush1.msra.mxu0 %v7653
      %7714 = vmatprep.subr.mxu0 0.0
      %7715 = vmatpush1.msra.mxu0 %v7654
      %7716 = vmatprep.subr.mxu0 0.0
      %7717 = vmatpush1.msra.mxu0 %v7655
      %7718 = vmatprep.subr.mxu0 0.0
      %7719 = vmatpush1.msra.mxu0 %v7710
      %7720 = vmatprep.subr.mxu0 0.0
      %7721 = vmatpush1.msra.mxu0 0.0
      %7722 = vmatprep.subr.mxu0 0.0
      %7723 = vmatpush1.msra.mxu0 0.0
      %7724 = vmatprep.subr.mxu0 0.0
      %7725 = vmatpush1.msra.mxu0 0.0
      %7726 = vmatprep.subr.mxu0 0.0
      %7727 = vmatpush1.msra.mxu0 0.0
      %7728 = vmatprep.subr.mxu0 0.0
      %7729 = vmatpush1.msra.mxu0 0.0
      %7730 = vmatprep.subr.mxu0 0.0
      %7731 = vmatpush1.msra.mxu0 0.0
      %7732 = vmatprep.subr.mxu0 0.0
      %7733 = vmatpush1.msra.mxu0 0.0
      %7734 = vmatprep.subr.mxu0 0.0
      %7735 = vmatpush1.msra.mxu0 0.0
      %7736 = vmatprep.subr.mxu0 0.0
      %7737 = vmatpush1.msra.mxu0 0.0
      %7738 = vmatprep.subr.mxu0 0.0
      %7739 = vmatpush1.msra.mxu0 0.0
      %7740 = vmatprep.subr.mxu0 0.0
      %7741 = vmatpush1.msra.mxu0 0.0
      %7742 = vmatprep.subr.mxu0 0.0
      %7743 = vmatpush1.msra.mxu0 0.0
      %7744 = vmatprep.subr.mxu0 0.0
      %7745 = vmatpush1.msra.mxu0 0.0
      %7746 = vmatprep.subr.mxu0 0.0
      %7747 = vmatpush1.msra.mxu0 0.0
      %7748 = vmatprep.subr.mxu0 0.0
      %7749 = vmatpush1.msra.mxu0 0.0
      %7750 = vmatprep.subr.mxu0 0.0
      %7751 = vmatpush1.msra.mxu0 0.0
      %7752 = vmatprep.subr.mxu0 0.0
      %7753 = vmatpush1.msra.mxu0 0.0
      %7754 = vmatprep.subr.mxu0 0.0
      %7755 = vmatpush1.msra.mxu0 0.0
      %7756 = vmatprep.subr.mxu0 0.0
      %7757 = vmatpush1.msra.mxu0 0.0
      %7758 = vmatprep.subr.mxu0 0.0
      %7759 = vmatpush1.msra.mxu0 0.0
      %7760 = vmatprep.subr.mxu0 0.0
      %7761 = vmatpush1.msra.mxu0 0.0
      %7762 = vmatprep.subr.mxu0 0.0
      %7763 = vmatpush1.msra.mxu0 0.0
      %7764 = vmatprep.subr.mxu0 0.0
      %7765 = vmatpush1.msra.mxu0 0.0
      %7766 = vmatprep.subr.mxu0 0.0
      %7767 = vmatpush1.msra.mxu0 0.0
      %7768 = vmatprep.subr.mxu0 0.0
      %7769 = vmatpush1.msra.mxu0 0.0
      %7770 = vmatprep.subr.mxu0 0.0
      %7771 = vmatpush1.msra.mxu0 0.0
      %7772 = vmatprep.subr.mxu0 0.0
      %7773 = vmatpush1.msra.mxu0 0.0
      %7774 = vmatprep.subr.mxu0 0.0
      %7775 = vmatpush1.msra.mxu0 0.0
      %7776 = vmatprep.mubr.f32.mxu0 0.0
      %7777 = vmatmul.mubr.f32.gmra.mrb[0].mxu0 %v7662
      %v7778 = vpop.f32.mrb[0].mxu0
      %v7779 = vadd.f32 0.0, %v7778
      %v7780 = vpop.f32.mrb[0].mxu0
      %7781 = vmatprep.mubr.f32.mxu0 0.0
      %7782 = vmatmul.mubr.f32.gmra.mrb[0].mxu0 %v7665
      %v7783 = vpop.f32.mrb[0].mxu0
      %v7784 = vadd.f32 0.0, %v7783
      %v7785 = vpop.f32.mrb[0].mxu0
      %7786 = vmatprep.mubr.f32.mxu0 0.0
      %7787 = vmatmul.mubr.f32.gmra.mrb[0].mxu0 %v7668
      %v7788 = vpop.f32.mrb[0].mxu0
      %v7789 = vadd.f32 0.0, %v7788
      %v7790 = vpop.f32.mrb[0].mxu0
      %7791 = vmatprep.mubr.f32.mxu0 0.0
      %7792 = vmatmul.mubr.f32.gmra.mrb[0].mxu0 %v7671
      %v7793 = vpop.f32.mrb[0].mxu0
      %v7794 = vadd.f32 0.0, %v7793
      %v7795 = vpop.f32.mrb[0].mxu0
      %7796 = vmatprep.mubr.f32.mxu0 0.0
      %7797 = vmatmul.mubr.f32.gmra.mrb[0].mxu0 %v7674
      %v7798 = vpop.f32.mrb[0].mxu0
      %v7799 = vadd.f32 0.0, %v7798
      %v7800 = vpop.f32.mrb[0].mxu0
      %7801 = vmatprep.mubr.f32.mxu0 0.0
      %7802 = vmatmul.mubr.f32.gmra.mrb[0].mxu0 %v7677
      %v7803 = vpop.f32.mrb[0].mxu0
      %v7804 = vadd.f32 0.0, %v7803
      %v7805 = vpop.f32.mrb[0].mxu0
      %7806 = vmatprep.mubr.f32.mxu0 0.0
      %7807 = vmatmul.mubr.f32.gmra.mrb[0].mxu0 %v7680
      %v7808 = vpop.f32.mrb[0].mxu0
      %v7809 = vadd.f32 0.0, %v7808
      %v7810 = vpop.f32.mrb[0].mxu0
      %7811 = vmatprep.mubr.f32.mxu0 0.0
      %7812 = vmatmul.mubr.f32.gmra.mrb[0].mxu0 %v7683
      %v7813 = vpop.f32.mrb[0].mxu0
      %v7814 = vadd.f32 0.0, %v7813
      %v7815 = vpop.f32.mrb[0].mxu0
      %7816 = vmatprep.mubr.f32.mxu0 0.0
      %7817 = vmatmul.mubr.f32.gmra.mrb[0].mxu0 %v7686
      %v7818 = vpop.f32.mrb[0].mxu0
      %v7819 = vadd.f32 0.0, %v7818
      %v7820 = vpop.f32.mrb[0].mxu0
      %7821 = vmatprep.mubr.f32.mxu0 0.0
      %7822 = vmatmul.mubr.f32.gmra.mrb[0].mxu0 %v7689
      %v7823 = vpop.f32.mrb[0].mxu0
      %v7824 = vadd.f32 0.0, %v7823
      %v7825 = vpop.f32.mrb[0].mxu0
      %7826 = vmatprep.mubr.f32.mxu0 0.0
      %7827 = vmatmul.mubr.f32.gmra.mrb[0].mxu0 %v7692
      %v7828 = vpop.f32.mrb[0].mxu0
      %v7829 = vadd.f32 0.0, %v7828
      %v7830 = vpop.f32.mrb[0].mxu0
      %7831 = vmatprep.mubr.f32.mxu0 0.0
      %7832 = vmatmul.mubr.f32.gmra.mrb[0].mxu0 %v7695
      %v7833 = vpop.f32.mrb[0].mxu0
      %v7834 = vadd.f32 0.0, %v7833
      %v7835 = vpop.f32.mrb[0].mxu0
      %7836 = vmatprep.mubr.f32.mxu0 0.0
      %7837 = vmatmul.mubr.f32.gmra.mrb[0].mxu0 %v7698
      %v7838 = vpop.f32.mrb[0].mxu0
      %v7839 = vadd.f32 0.0, %v7838
      %v7840 = vpop.f32.mrb[0].mxu0
      %7841 = vmatprep.mubr.f32.mxu0 0.0
      %7842 = vmatmul.mubr.f32.gmra.mrb[0].mxu0 %v7701
      %v7843 = vpop.f32.mrb[0].mxu0
      %v7844 = vadd.f32 0.0, %v7843
      %v7845 = vpop.f32.mrb[0].mxu0
      %7846 = vmatprep.mubr.f32.mxu0 0.0
      %7847 = vmatmul.mubr.f32.gmra.mrb[0].mxu0 %v7704
      %v7848 = vpop.f32.mrb[0].mxu0
      %v7849 = vadd.f32 0.0, %v7848
      %v7850 = vpop.f32.mrb[0].mxu0
      %7851 = vmatprep.mubr.f32.mxu0 0.0
      %7852 = vmatmul.mubr.f32.gmra.mrb[0].mxu0 %v7707
      %v7853 = vpop.f32.mrb[0].mxu0
      %v7854 = vadd.f32 0.0, %v7853
      %v7855 = vpop.f32.mrb[0].mxu0
      %7856 = vdwg.mxu0
      %v7857 = vlaneseq
      %v7858 = vshrl.u32 %v7857, 7
      %v7859 = vsub.s32 0, %v7858
      %v7860 = vrot.slane %v7658, %v7859
      %v7861 = vmul.f32 %v7779, %v7860
      %v7862 = vmul.f32 %v7784, %v7860
      %v7863 = vmul.f32 %v7789, %v7860
      %v7864 = vmul.f32 %v7794, %v7860
      %v7865 = vmul.f32 %v7799, %v7860
      %v7866 = vmul.f32 %v7804, %v7860
      %v7867 = vmul.f32 %v7809, %v7860
      %v7868 = vmul.f32 %v7814, %v7860
      %v7869 = vmul.f32 %v7819, %v7860
      %v7870 = vmul.f32 %v7824, %v7860
      %v7871 = vmul.f32 %v7829, %v7860
      %v7872 = vmul.f32 %v7834, %v7860
      %v7873 = vmul.f32 %v7839, %v7860
      %v7874 = vmul.f32 %v7844, %v7860
      %v7875 = vmul.f32 %v7849, %v7860
      %v7876 = vmul.f32 %v7854, %v7860
      %v7877 = vsel %vm335, %v7861, 0.0
      %7878 = vadd.xlane.f32.xlu0 %v7877
      %v7879 = vpop.xlane.xlu0 %7878
      %v7880 = vsel %vm335, %v7862, 0.0
      %7881 = vadd.xlane.f32.xlu0 %v7880
      %v7882 = vpop.xlane.xlu0 %7881
      %v7883 = vsel %vm335, %v7863, 0.0
      %7884 = vadd.xlane.f32.xlu0 %v7883
      %v7885 = vpop.xlane.xlu0 %7884
      %v7886 = vsel %vm335, %v7864, 0.0
      %7887 = vadd.xlane.f32.xlu0 %v7886
      %v7888 = vpop.xlane.xlu0 %7887
      %v7889 = vsel %vm335, %v7865, 0.0
      %7890 = vadd.xlane.f32.xlu0 %v7889
      %v7891 = vpop.xlane.xlu0 %7890
      %v7892 = vsel %vm335, %v7866, 0.0
      %7893 = vadd.xlane.f32.xlu0 %v7892
      %v7894 = vpop.xlane.xlu0 %7893
      %v7895 = vsel %vm335, %v7867, 0.0
      %7896 = vadd.xlane.f32.xlu0 %v7895
      %v7897 = vpop.xlane.xlu0 %7896
      %v7898 = vsel %vm335, %v7868, 0.0
      %7899 = vadd.xlane.f32.xlu0 %v7898
      %v7900 = vpop.xlane.xlu0 %7899
      %v7901 = vsel %vm335, %v7869, 0.0
      %7902 = vadd.xlane.f32.xlu0 %v7901
      %v7903 = vpop.xlane.xlu0 %7902
      %v7904 = vsel %vm335, %v7870, 0.0
      %7905 = vadd.xlane.f32.xlu0 %v7904
      %v7906 = vpop.xlane.xlu0 %7905
      %v7907 = vsel %vm335, %v7871, 0.0
      %7908 = vadd.xlane.f32.xlu0 %v7907
      %v7909 = vpop.xlane.xlu0 %7908
      %v7910 = vsel %vm335, %v7872, 0.0
      %7911 = vadd.xlane.f32.xlu0 %v7910
      %v7912 = vpop.xlane.xlu0 %7911
      %v7913 = vsel %vm335, %v7873, 0.0
      %7914 = vadd.xlane.f32.xlu0 %v7913
      %v7915 = vpop.xlane.xlu0 %7914
      %v7916 = vsel %vm335, %v7874, 0.0
      %7917 = vadd.xlane.f32.xlu0 %v7916
      %v7918 = vpop.xlane.xlu0 %7917
      %v7919 = vsel %vm335, %v7875, 0.0
      %7920 = vadd.xlane.f32.xlu0 %v7919
      %v7921 = vpop.xlane.xlu0 %7920
      %v7922 = vsel %vm335, %v7876, 0.0
      %7923 = vadd.xlane.f32.xlu0 %v7922
      %v7924 = vpop.xlane.xlu0 %7923
      %v7925 = vlaneseq
      %v7926 = vshrl.u32 %v7925, 7
      %v7927 = vsub.s32 1, %v7926
      %v7928 = vrot.slane %v7658, %v7927
      %v7929 = vmul.f32 %v7779, %v7928
      %v7930 = vmul.f32 %v7784, %v7928
      %v7931 = vmul.f32 %v7789, %v7928
      %v7932 = vmul.f32 %v7794, %v7928
      %v7933 = vmul.f32 %v7799, %v7928
      %v7934 = vmul.f32 %v7804, %v7928
      %v7935 = vmul.f32 %v7809, %v7928
      %v7936 = vmul.f32 %v7814, %v7928
      %v7937 = vmul.f32 %v7819, %v7928
      %v7938 = vmul.f32 %v7824, %v7928
      %v7939 = vmul.f32 %v7829, %v7928
      %v7940 = vmul.f32 %v7834, %v7928
      %v7941 = vmul.f32 %v7839, %v7928
      %v7942 = vmul.f32 %v7844, %v7928
      %v7943 = vmul.f32 %v7849, %v7928
      %v7944 = vmul.f32 %v7854, %v7928
      %v7945 = vsel %vm335, %v7929, 0.0
      %7946 = vadd.xlane.f32.xlu0 %v7945
      %v7947 = vpop.xlane.xlu0 %7946
      %v7948 = vsel %vm335, %v7930, 0.0
      %7949 = vadd.xlane.f32.xlu0 %v7948
      %v7950 = vpop.xlane.xlu0 %7949
      %v7951 = vsel %vm335, %v7931, 0.0
      %7952 = vadd.xlane.f32.xlu0 %v7951
      %v7953 = vpop.xlane.xlu0 %7952
      %v7954 = vsel %vm335, %v7932, 0.0
      %7955 = vadd.xlane.f32.xlu0 %v7954
      %v7956 = vpop.xlane.xlu0 %7955
      %v7957 = vsel %vm335, %v7933, 0.0
      %7958 = vadd.xlane.f32.xlu0 %v7957
      %v7959 = vpop.xlane.xlu0 %7958
      %v7960 = vsel %vm335, %v7934, 0.0
      %7961 = vadd.xlane.f32.xlu0 %v7960
      %v7962 = vpop.xlane.xlu0 %7961
      %v7963 = vsel %vm335, %v7935, 0.0
      %7964 = vadd.xlane.f32.xlu0 %v7963
      %v7965 = vpop.xlane.xlu0 %7964
      %v7966 = vsel %vm335, %v7936, 0.0
      %7967 = vadd.xlane.f32.xlu0 %v7966
      %v7968 = vpop.xlane.xlu0 %7967
      %v7969 = vsel %vm335, %v7937, 0.0
      %7970 = vadd.xlane.f32.xlu0 %v7969
      %v7971 = vpop.xlane.xlu0 %7970
      %v7972 = vsel %vm335, %v7938, 0.0
      %7973 = vadd.xlane.f32.xlu0 %v7972
      %v7974 = vpop.xlane.xlu0 %7973
      %v7975 = vsel %vm335, %v7939, 0.0
      %7976 = vadd.xlane.f32.xlu0 %v7975
      %v7977 = vpop.xlane.xlu0 %7976
      %v7978 = vsel %vm335, %v7940, 0.0
      %7979 = vadd.xlane.f32.xlu0 %v7978
      %v7980 = vpop.xlane.xlu0 %7979
      %v7981 = vsel %vm335, %v7941, 0.0
      %7982 = vadd.xlane.f32.xlu0 %v7981
      %v7983 = vpop.xlane.xlu0 %7982
      %v7984 = vsel %vm335, %v7942, 0.0
      %7985 = vadd.xlane.f32.xlu0 %v7984
      %v7986 = vpop.xlane.xlu0 %7985
      %v7987 = vsel %vm335, %v7943, 0.0
      %7988 = vadd.xlane.f32.xlu0 %v7987
      %v7989 = vpop.xlane.xlu0 %7988
      %v7990 = vsel %vm335, %v7944, 0.0
      %7991 = vadd.xlane.f32.xlu0 %v7990
      %v7992 = vpop.xlane.xlu0 %7991
      %v8009 = vlaneseq
      %v8010 = vshrl.u32 %v8009, 7
      %v8011 = vsub.s32 %v686, %v8010
      %v8012 = vrot.slane %v7947, %v8011
      %v8013 = vlaneseq
      %v8014 = vshrl.u32 %v8013, 7
      %v8015 = vsub.s32 %v691, %v8014
      %v8016 = vrot.slane %v7950, %v8015
      %v8017 = vsel %vm696, %v8016, %v8012
      %v8018 = vlaneseq
      %v8019 = vshrl.u32 %v8018, 7
      %v8020 = vsub.s32 %v686, %v8019
      %v8021 = vrot.slane %v7953, %v8020
      %v8022 = vlaneseq
      %v8023 = vshrl.u32 %v8022, 7
      %v8024 = vsub.s32 %v691, %v8023
      %v8025 = vrot.slane %v7956, %v8024
      %v8026 = vsel %vm696, %v8025, %v8021
      %v8027 = vlaneseq
      %v8028 = vshrl.u32 %v8027, 7
      %v8029 = vsub.s32 %v686, %v8028
      %v8030 = vrot.slane %v7959, %v8029
      %v8031 = vlaneseq
      %v8032 = vshrl.u32 %v8031, 7
      %v8033 = vsub.s32 %v691, %v8032
      %v8034 = vrot.slane %v7962, %v8033
      %v8035 = vsel %vm696, %v8034, %v8030
      %v8036 = vlaneseq
      %v8037 = vshrl.u32 %v8036, 7
      %v8038 = vsub.s32 %v686, %v8037
      %v8039 = vrot.slane %v7965, %v8038
      %v8040 = vlaneseq
      %v8041 = vshrl.u32 %v8040, 7
      %v8042 = vsub.s32 %v691, %v8041
      %v8043 = vrot.slane %v7968, %v8042
      %v8044 = vsel %vm696, %v8043, %v8039
      %v8045 = vlaneseq
      %v8046 = vshrl.u32 %v8045, 7
      %v8047 = vsub.s32 %v686, %v8046
      %v8048 = vrot.slane %v7971, %v8047
      %v8049 = vlaneseq
      %v8050 = vshrl.u32 %v8049, 7
      %v8051 = vsub.s32 %v691, %v8050
      %v8052 = vrot.slane %v7974, %v8051
      %v8053 = vsel %vm696, %v8052, %v8048
      %v8054 = vlaneseq
      %v8055 = vshrl.u32 %v8054, 7
      %v8056 = vsub.s32 %v686, %v8055
      %v8057 = vrot.slane %v7977, %v8056
      %v8058 = vlaneseq
      %v8059 = vshrl.u32 %v8058, 7
      %v8060 = vsub.s32 %v691, %v8059
      %v8061 = vrot.slane %v7980, %v8060
      %v8062 = vsel %vm696, %v8061, %v8057
      %v8063 = vlaneseq
      %v8064 = vshrl.u32 %v8063, 7
      %v8065 = vsub.s32 %v686, %v8064
      %v8066 = vrot.slane %v7983, %v8065
      %v8067 = vlaneseq
      %v8068 = vshrl.u32 %v8067, 7
      %v8069 = vsub.s32 %v691, %v8068
      %v8070 = vrot.slane %v7986, %v8069
      %v8071 = vsel %vm696, %v8070, %v8066
      %v8072 = vlaneseq
      %v8073 = vshrl.u32 %v8072, 7
      %v8074 = vsub.s32 %v686, %v8073
      %v8075 = vrot.slane %v7989, %v8074
      %v8076 = vlaneseq
      %v8077 = vshrl.u32 %v8076, 7
      %v8078 = vsub.s32 %v691, %v8077
      %v8079 = vrot.slane %v7992, %v8078
      %v8080 = vsel %vm696, %v8079, %v8075
      %v8081 = vsel %vm761, %v8017, %v8017
      %v8082 = vsel %vm763, %v8017, %v8081
      %v8083 = vsel %vm765, %v8017, %v8082
      %v8084 = vsel %vm767, %v8017, %v8083
      %v8085 = vsel %vm769, %v8017, %v8084
      %v8086 = vsel %vm771, %v8017, %v8085
      %v8087 = vsel %vm761, %v8026, %v8026
      %v8088 = vsel %vm763, %v8026, %v8087
      %v8089 = vsel %vm765, %v8026, %v8088
      %v8090 = vsel %vm767, %v8026, %v8089
      %v8091 = vsel %vm769, %v8026, %v8090
      %v8092 = vsel %vm771, %v8026, %v8091
      %v8093 = vsel %vm761, %v8035, %v8035
      %v8094 = vsel %vm763, %v8035, %v8093
      %v8095 = vsel %vm765, %v8035, %v8094
      %v8096 = vsel %vm767, %v8035, %v8095
      %v8097 = vsel %vm769, %v8035, %v8096
      %v8098 = vsel %vm771, %v8035, %v8097
      %v8099 = vsel %vm761, %v8044, %v8044
      %v8100 = vsel %vm763, %v8044, %v8099
      %v8101 = vsel %vm765, %v8044, %v8100
      %v8102 = vsel %vm767, %v8044, %v8101
      %v8103 = vsel %vm769, %v8044, %v8102
      %v8104 = vsel %vm771, %v8044, %v8103
      %v8105 = vsel %vm761, %v8053, %v8053
      %v8106 = vsel %vm763, %v8053, %v8105
      %v8107 = vsel %vm765, %v8053, %v8106
      %v8108 = vsel %vm767, %v8053, %v8107
      %v8109 = vsel %vm769, %v8053, %v8108
      %v8110 = vsel %vm771, %v8053, %v8109
      %v8111 = vsel %vm761, %v8062, %v8062
      %v8112 = vsel %vm763, %v8062, %v8111
      %v8113 = vsel %vm765, %v8062, %v8112
      %v8114 = vsel %vm767, %v8062, %v8113
      %v8115 = vsel %vm769, %v8062, %v8114
      %v8116 = vsel %vm771, %v8062, %v8115
      %v8117 = vsel %vm761, %v8071, %v8071
      %v8118 = vsel %vm763, %v8071, %v8117
      %v8119 = vsel %vm765, %v8071, %v8118
      %v8120 = vsel %vm767, %v8071, %v8119
      %v8121 = vsel %vm769, %v8071, %v8120
      %v8122 = vsel %vm771, %v8071, %v8121
      %v8123 = vsel %vm761, %v8080, %v8080
      %v8124 = vsel %vm763, %v8080, %v8123
      %v8125 = vsel %vm765, %v8080, %v8124
      %v8126 = vsel %vm767, %v8080, %v8125
      %v8127 = vsel %vm769, %v8080, %v8126
      %v8128 = vsel %vm771, %v8080, %v8127
      %v8137 = vadd.f32 %v7879, %v8086
      %v8138 = vadd.f32 %v7882, %v8086
      %v8139 = vadd.f32 %v7885, %v8092
      %v8140 = vadd.f32 %v7888, %v8092
      %v8141 = vadd.f32 %v7891, %v8098
      %v8142 = vadd.f32 %v7894, %v8098
      %v8143 = vadd.f32 %v7897, %v8104
      %v8144 = vadd.f32 %v7900, %v8104
      %v8145 = vadd.f32 %v7903, %v8110
      %v8146 = vadd.f32 %v7906, %v8110
      %v8147 = vadd.f32 %v7909, %v8116
      %v8148 = vadd.f32 %v7912, %v8116
      %v8149 = vadd.f32 %v7915, %v8122
      %v8150 = vadd.f32 %v7918, %v8122
      %v8151 = vadd.f32 %v7921, %v8128
      %v8152 = vadd.f32 %v7924, %v8128
      %vm8153 = vcmp.gt.f32.partialorder %v8137, 0.0
      %vm8154 = vcmp.gt.f32.partialorder %v8138, 0.0
      %vm8155 = vcmp.gt.f32.partialorder %v8139, 0.0
      %vm8156 = vcmp.gt.f32.partialorder %v8140, 0.0
      %vm8157 = vcmp.gt.f32.partialorder %v8141, 0.0
      %vm8158 = vcmp.gt.f32.partialorder %v8142, 0.0
      %vm8159 = vcmp.gt.f32.partialorder %v8143, 0.0
      %vm8160 = vcmp.gt.f32.partialorder %v8144, 0.0
      %vm8161 = vcmp.gt.f32.partialorder %v8145, 0.0
      %vm8162 = vcmp.gt.f32.partialorder %v8146, 0.0
      %vm8163 = vcmp.gt.f32.partialorder %v8147, 0.0
      %vm8164 = vcmp.gt.f32.partialorder %v8148, 0.0
      %vm8165 = vcmp.gt.f32.partialorder %v8149, 0.0
      %vm8166 = vcmp.gt.f32.partialorder %v8150, 0.0
      %vm8167 = vcmp.gt.f32.partialorder %v8151, 0.0
      %vm8168 = vcmp.gt.f32.partialorder %v8152, 0.0
      %v8169 = vmul.f32 %v8137, 0.2
      %v8170 = vmul.f32 %v8138, 0.2
      %v8171 = vmul.f32 %v8139, 0.2
      %v8172 = vmul.f32 %v8140, 0.2
      %v8173 = vmul.f32 %v8141, 0.2
      %v8174 = vmul.f32 %v8142, 0.2
      %v8175 = vmul.f32 %v8143, 0.2
      %v8176 = vmul.f32 %v8144, 0.2
      %v8177 = vmul.f32 %v8145, 0.2
      %v8178 = vmul.f32 %v8146, 0.2
      %v8179 = vmul.f32 %v8147, 0.2
      %v8180 = vmul.f32 %v8148, 0.2
      %v8181 = vmul.f32 %v8149, 0.2
      %v8182 = vmul.f32 %v8150, 0.2
      %v8183 = vmul.f32 %v8151, 0.2
      %v8184 = vmul.f32 %v8152, 0.2
      %v8185 = vsel %vm8153, %v8137, %v8169
      %v8186 = vsel %vm8154, %v8138, %v8170
      %v8187 = vsel %vm8155, %v8139, %v8171
      %v8188 = vsel %vm8156, %v8140, %v8172
      %v8189 = vsel %vm8157, %v8141, %v8173
      %v8190 = vsel %vm8158, %v8142, %v8174
      %v8191 = vsel %vm8159, %v8143, %v8175
      %v8192 = vsel %vm8160, %v8144, %v8176
      %v8193 = vsel %vm8161, %v8145, %v8177
      %v8194 = vsel %vm8162, %v8146, %v8178
      %v8195 = vsel %vm8163, %v8147, %v8179
      %v8196 = vsel %vm8164, %v8148, %v8180
      %v8197 = vsel %vm8165, %v8149, %v8181
      %v8198 = vsel %vm8166, %v8150, %v8182
      %v8199 = vsel %vm8167, %v8151, %v8183
      %v8200 = vsel %vm8168, %v8152, %v8184
      %vm8201 = vcmp.gt.f32.partialorder %v7659, 0.0
      %vm8202 = vcmp.gt.f32.partialorder %v7660, 0.0
      %v8203 = vsel %vm8201, 1, 0
      %v8204 = vsel %vm8202, 1, 0
      %vm8205 = vcmp.eq.s32.totalorder %v8203, 1
      %vm8206 = vcmp.eq.s32.totalorder %v8204, 1
      %v8207 = vsel %vm8205, %v8185, -9e+15
      %v8208 = vsel %vm8206, %v8186, -9e+15
      %v8209 = vsel %vm8205, %v8187, -9e+15
      %v8210 = vsel %vm8206, %v8188, -9e+15
      %v8211 = vsel %vm8205, %v8189, -9e+15
      %v8212 = vsel %vm8206, %v8190, -9e+15
      %v8213 = vsel %vm8205, %v8191, -9e+15
      %v8214 = vsel %vm8206, %v8192, -9e+15
      %v8215 = vsel %vm8205, %v8193, -9e+15
      %v8216 = vsel %vm8206, %v8194, -9e+15
      %v8217 = vsel %vm8205, %v8195, -9e+15
      %v8218 = vsel %vm8206, %v8196, -9e+15
      %v8219 = vsel %vm8205, %v8197, -9e+15
      %v8220 = vsel %vm8206, %v8198, -9e+15
      %v8221 = vsel %vm8205, %v8199, -9e+15
      %v8222 = vsel %vm8206, %v8200, -9e+15
      %v8223 = vsel %vm909, %v8207, -inf
      %8224 = vmax.xlane.f32.xlu0 %v8223
      %v8225 = vpop.xlane.xlu0 %8224
      %v8226 = vsel %vm909, %v8208, -inf
      %8227 = vmax.xlane.f32.xlu0 %v8226
      %v8228 = vpop.xlane.xlu0 %8227
      %v8229 = vsel %vm909, %v8209, -inf
      %8230 = vmax.xlane.f32.xlu0 %v8229
      %v8231 = vpop.xlane.xlu0 %8230
      %v8232 = vsel %vm909, %v8210, -inf
      %8233 = vmax.xlane.f32.xlu0 %v8232
      %v8234 = vpop.xlane.xlu0 %8233
      %v8235 = vsel %vm909, %v8211, -inf
      %8236 = vmax.xlane.f32.xlu0 %v8235
      %v8237 = vpop.xlane.xlu0 %8236
      %v8238 = vsel %vm909, %v8212, -inf
      %8239 = vmax.xlane.f32.xlu0 %v8238
      %v8240 = vpop.xlane.xlu0 %8239
      %v8241 = vsel %vm909, %v8213, -inf
      %8242 = vmax.xlane.f32.xlu0 %v8241
      %v8243 = vpop.xlane.xlu0 %8242
      %v8244 = vsel %vm909, %v8214, -inf
      %8245 = vmax.xlane.f32.xlu0 %v8244
      %v8246 = vpop.xlane.xlu0 %8245
      %v8247 = vsel %vm909, %v8215, -inf
      %8248 = vmax.xlane.f32.xlu0 %v8247
      %v8249 = vpop.xlane.xlu0 %8248
      %v8250 = vsel %vm909, %v8216, -inf
      %8251 = vmax.xlane.f32.xlu0 %v8250
      %v8252 = vpop.xlane.xlu0 %8251
      %v8253 = vsel %vm909, %v8217, -inf
      %8254 = vmax.xlane.f32.xlu0 %v8253
      %v8255 = vpop.xlane.xlu0 %8254
      %v8256 = vsel %vm909, %v8218, -inf
      %8257 = vmax.xlane.f32.xlu0 %v8256
      %v8258 = vpop.xlane.xlu0 %8257
      %v8259 = vsel %vm909, %v8219, -inf
      %8260 = vmax.xlane.f32.xlu0 %v8259
      %v8261 = vpop.xlane.xlu0 %8260
      %v8262 = vsel %vm909, %v8220, -inf
      %8263 = vmax.xlane.f32.xlu0 %v8262
      %v8264 = vpop.xlane.xlu0 %8263
      %v8265 = vsel %vm909, %v8221, -inf
      %8266 = vmax.xlane.f32.xlu0 %v8265
      %v8267 = vpop.xlane.xlu0 %8266
      %v8268 = vsel %vm909, %v8222, -inf
      %8269 = vmax.xlane.f32.xlu0 %v8268
      %v8270 = vpop.xlane.xlu0 %8269
      %v8271 = vsub.f32 %v8207, %v8225
      %v8272 = vsub.f32 %v8208, %v8228
      %v8273 = vsub.f32 %v8209, %v8231
      %v8274 = vsub.f32 %v8210, %v8234
      %v8275 = vsub.f32 %v8211, %v8237
      %v8276 = vsub.f32 %v8212, %v8240
      %v8277 = vsub.f32 %v8213, %v8243
      %v8278 = vsub.f32 %v8214, %v8246
      %v8279 = vsub.f32 %v8215, %v8249
      %v8280 = vsub.f32 %v8216, %v8252
      %v8281 = vsub.f32 %v8217, %v8255
      %v8282 = vsub.f32 %v8218, %v8258
      %v8283 = vsub.f32 %v8219, %v8261
      %v8284 = vsub.f32 %v8220, %v8264
      %v8285 = vsub.f32 %v8221, %v8267
      %v8286 = vsub.f32 %v8222, %v8270
      %v8287 = vmul.f32 %v8271, 1.442695
      %v8288 = vpow.pop %v8287
      %v8289 = vmul.f32 %v8272, 1.442695
      %v8290 = vpow.pop %v8289
      %v8291 = vmul.f32 %v8273, 1.442695
      %v8292 = vpow.pop %v8291
      %v8293 = vmul.f32 %v8274, 1.442695
      %v8294 = vpow.pop %v8293
      %v8295 = vmul.f32 %v8275, 1.442695
      %v8296 = vpow.pop %v8295
      %v8297 = vmul.f32 %v8276, 1.442695
      %v8298 = vpow.pop %v8297
      %v8299 = vmul.f32 %v8277, 1.442695
      %v8300 = vpow.pop %v8299
      %v8301 = vmul.f32 %v8278, 1.442695
      %v8302 = vpow.pop %v8301
      %v8303 = vmul.f32 %v8279, 1.442695
      %v8304 = vpow.pop %v8303
      %v8305 = vmul.f32 %v8280, 1.442695
      %v8306 = vpow.pop %v8305
      %v8307 = vmul.f32 %v8281, 1.442695
      %v8308 = vpow.pop %v8307
      %v8309 = vmul.f32 %v8282, 1.442695
      %v8310 = vpow.pop %v8309
      %v8311 = vmul.f32 %v8283, 1.442695
      %v8312 = vpow.pop %v8311
      %v8313 = vmul.f32 %v8284, 1.442695
      %v8314 = vpow.pop %v8313
      %v8315 = vmul.f32 %v8285, 1.442695
      %v8316 = vpow.pop %v8315
      %v8317 = vmul.f32 %v8286, 1.442695
      %v8318 = vpow.pop %v8317
      %v8319 = vsel %vm909, %v8288, 0.0
      %8320 = vadd.xlane.f32.xlu0 %v8319
      %v8321 = vpop.xlane.xlu0 %8320
      %v8322 = vsel %vm909, %v8290, 0.0
      %8323 = vadd.xlane.f32.xlu0 %v8322
      %v8324 = vpop.xlane.xlu0 %8323
      %v8325 = vsel %vm909, %v8292, 0.0
      %8326 = vadd.xlane.f32.xlu0 %v8325
      %v8327 = vpop.xlane.xlu0 %8326
      %v8328 = vsel %vm909, %v8294, 0.0
      %8329 = vadd.xlane.f32.xlu0 %v8328
      %v8330 = vpop.xlane.xlu0 %8329
      %v8331 = vsel %vm909, %v8296, 0.0
      %8332 = vadd.xlane.f32.xlu0 %v8331
      %v8333 = vpop.xlane.xlu0 %8332
      %v8334 = vsel %vm909, %v8298, 0.0
      %8335 = vadd.xlane.f32.xlu0 %v8334
      %v8336 = vpop.xlane.xlu0 %8335
      %v8337 = vsel %vm909, %v8300, 0.0
      %8338 = vadd.xlane.f32.xlu0 %v8337
      %v8339 = vpop.xlane.xlu0 %8338
      %v8340 = vsel %vm909, %v8302, 0.0
      %8341 = vadd.xlane.f32.xlu0 %v8340
      %v8342 = vpop.xlane.xlu0 %8341
      %v8343 = vsel %vm909, %v8304, 0.0
      %8344 = vadd.xlane.f32.xlu0 %v8343
      %v8345 = vpop.xlane.xlu0 %8344
      %v8346 = vsel %vm909, %v8306, 0.0
      %8347 = vadd.xlane.f32.xlu0 %v8346
      %v8348 = vpop.xlane.xlu0 %8347
      %v8349 = vsel %vm909, %v8308, 0.0
      %8350 = vadd.xlane.f32.xlu0 %v8349
      %v8351 = vpop.xlane.xlu0 %8350
      %v8352 = vsel %vm909, %v8310, 0.0
      %8353 = vadd.xlane.f32.xlu0 %v8352
      %v8354 = vpop.xlane.xlu0 %8353
      %v8355 = vsel %vm909, %v8312, 0.0
      %8356 = vadd.xlane.f32.xlu0 %v8355
      %v8357 = vpop.xlane.xlu0 %8356
      %v8358 = vsel %vm909, %v8314, 0.0
      %8359 = vadd.xlane.f32.xlu0 %v8358
      %v8360 = vpop.xlane.xlu0 %8359
      %v8361 = vsel %vm909, %v8316, 0.0
      %8362 = vadd.xlane.f32.xlu0 %v8361
      %v8363 = vpop.xlane.xlu0 %8362
      %v8364 = vsel %vm909, %v8318, 0.0
      %8365 = vadd.xlane.f32.xlu0 %v8364
      %v8366 = vpop.xlane.xlu0 %8365
      %v8367 = vrcp.pop %v8321
      %v8368 = vmul.f32 %v8288, %v8367
      %v8369 = vrcp.pop %v8324
      %v8370 = vmul.f32 %v8290, %v8369
      %v8371 = vrcp.pop %v8327
      %v8372 = vmul.f32 %v8292, %v8371
      %v8373 = vrcp.pop %v8330
      %v8374 = vmul.f32 %v8294, %v8373
      %v8375 = vrcp.pop %v8333
      %v8376 = vmul.f32 %v8296, %v8375
      %v8377 = vrcp.pop %v8336
      %v8378 = vmul.f32 %v8298, %v8377
      %v8379 = vrcp.pop %v8339
      %v8380 = vmul.f32 %v8300, %v8379
      %v8381 = vrcp.pop %v8342
      %v8382 = vmul.f32 %v8302, %v8381
      %v8383 = vrcp.pop %v8345
      %v8384 = vmul.f32 %v8304, %v8383
      %v8385 = vrcp.pop %v8348
      %v8386 = vmul.f32 %v8306, %v8385
      %v8387 = vrcp.pop %v8351
      %v8388 = vmul.f32 %v8308, %v8387
      %v8389 = vrcp.pop %v8354
      %v8390 = vmul.f32 %v8310, %v8389
      %v8391 = vrcp.pop %v8357
      %v8392 = vmul.f32 %v8312, %v8391
      %v8393 = vrcp.pop %v8360
      %v8394 = vmul.f32 %v8314, %v8393
      %v8395 = vrcp.pop %v8363
      %v8396 = vmul.f32 %v8316, %v8395
      %v8397 = vrcp.pop %v8366
      %v8398 = vmul.f32 %v8318, %v8397
      %v8400 = vsel %vm909, %v8368, 0
      %v8403 = vsel %vm909, %v8370, 0
      %8405 = vmatprep.subr.mxu0 0.0
      %8406 = vmatpush1.msra.mxu0 %v7779
      %8407 = vmatprep.subr.mxu0 0.0
      %8408 = vmatpush1.msra.mxu0 %v7784
      %8409 = vmatprep.subr.mxu0 0.0
      %8410 = vmatpush1.msra.mxu0 0.0
      %8411 = vmatprep.subr.mxu0 0.0
      %8412 = vmatpush1.msra.mxu0 0.0
      %8413 = vmatprep.subr.mxu0 0.0
      %8414 = vmatpush1.msra.mxu0 0.0
      %8415 = vmatprep.subr.mxu0 0.0
      %8416 = vmatpush1.msra.mxu0 0.0
      %8417 = vmatprep.subr.mxu0 0.0
      %8418 = vmatpush1.msra.mxu0 0.0
      %8419 = vmatprep.subr.mxu0 0.0
      %8420 = vmatpush1.msra.mxu0 0.0
      %8421 = vmatprep.subr.mxu0 0.0
      %8422 = vmatpush1.msra.mxu0 0.0
      %8423 = vmatprep.subr.mxu0 0.0
      %8424 = vmatpush1.msra.mxu0 0.0
      %8425 = vmatprep.subr.mxu0 0.0
      %8426 = vmatpush1.msra.mxu0 0.0
      %8427 = vmatprep.subr.mxu0 0.0
      %8428 = vmatpush1.msra.mxu0 0.0
      %8429 = vmatprep.subr.mxu0 0.0
      %8430 = vmatpush1.msra.mxu0 0.0
      %8431 = vmatprep.subr.mxu0 0.0
      %8432 = vmatpush1.msra.mxu0 0.0
      %8433 = vmatprep.subr.mxu0 0.0
      %8434 = vmatpush1.msra.mxu0 0.0
      %8435 = vmatprep.subr.mxu0 0.0
      %8436 = vmatpush1.msra.mxu0 0.0
      %8437 = vmatprep.subr.mxu0 0.0
      %8438 = vmatpush1.msra.mxu0 0.0
      %8439 = vmatprep.subr.mxu0 0.0
      %8440 = vmatpush1.msra.mxu0 0.0
      %8441 = vmatprep.subr.mxu0 0.0
      %8442 = vmatpush1.msra.mxu0 0.0
      %8443 = vmatprep.subr.mxu0 0.0
      %8444 = vmatpush1.msra.mxu0 0.0
      %8445 = vmatprep.subr.mxu0 0.0
      %8446 = vmatpush1.msra.mxu0 0.0
      %8447 = vmatprep.subr.mxu0 0.0
      %8448 = vmatpush1.msra.mxu0 0.0
      %8449 = vmatprep.subr.mxu0 0.0
      %8450 = vmatpush1.msra.mxu0 0.0
      %8451 = vmatprep.subr.mxu0 0.0
      %8452 = vmatpush1.msra.mxu0 0.0
      %8453 = vmatprep.subr.mxu0 0.0
      %8454 = vmatpush1.msra.mxu0 0.0
      %8455 = vmatprep.subr.mxu0 0.0
      %8456 = vmatpush1.msra.mxu0 0.0
      %8457 = vmatprep.subr.mxu0 0.0
      %8458 = vmatpush1.msra.mxu0 0.0
      %8459 = vmatprep.subr.mxu0 0.0
      %8460 = vmatpush1.msra.mxu0 0.0
      %8461 = vmatprep.subr.mxu0 0.0
      %8462 = vmatpush1.msra.mxu0 0.0
      %8463 = vmatprep.subr.mxu0 0.0
      %8464 = vmatpush1.msra.mxu0 0.0
      %8465 = vmatprep.subr.mxu0 0.0
      %8466 = vmatpush1.msra.mxu0 0.0
      %8467 = vmatprep.subr.mxu0 0.0
      %8468 = vmatpush1.msra.mxu0 0.0
      %8469 = vmatprep.mubr.f32.mxu0 0.0
      %8470 = vmatmul.mubr.f32.gmra.mrb[0].mxu0 %v8400
      %v8471 = vpop.f32.mrb[0].mxu0
      %v8472 = vadd.f32 0.0, %v8471
      %v8473 = vpop.f32.mrb[0].mxu0
      %8474 = vmatprep.mubr.f32.mxu0 0.0
      %8475 = vmatmul.mubr.f32.gmra.mrb[0].mxu0 %v8403
      %v8476 = vpop.f32.mrb[0].mxu0
      %v8477 = vadd.f32 0.0, %v8476
      %v8478 = vpop.f32.mrb[0].mxu0
      %8479 = vdwg.mxu0
      %v8481 = vsel %vm909, %v8372, 0
      %v8484 = vsel %vm909, %v8374, 0
      %8486 = vmatprep.subr.mxu0 0.0
      %8487 = vmatpush1.msra.mxu0 %v7789
      %8488 = vmatprep.subr.mxu0 0.0
      %8489 = vmatpush1.msra.mxu0 %v7794
      %8490 = vmatprep.subr.mxu0 0.0
      %8491 = vmatpush1.msra.mxu0 0.0
      %8492 = vmatprep.subr.mxu0 0.0
      %8493 = vmatpush1.msra.mxu0 0.0
      %8494 = vmatprep.subr.mxu0 0.0
      %8495 = vmatpush1.msra.mxu0 0.0
      %8496 = vmatprep.subr.mxu0 0.0
      %8497 = vmatpush1.msra.mxu0 0.0
      %8498 = vmatprep.subr.mxu0 0.0
      %8499 = vmatpush1.msra.mxu0 0.0
      %8500 = vmatprep.subr.mxu0 0.0
      %8501 = vmatpush1.msra.mxu0 0.0
      %8502 = vmatprep.subr.mxu0 0.0
      %8503 = vmatpush1.msra.mxu0 0.0
      %8504 = vmatprep.subr.mxu0 0.0
      %8505 = vmatpush1.msra.mxu0 0.0
      %8506 = vmatprep.subr.mxu0 0.0
      %8507 = vmatpush1.msra.mxu0 0.0
      %8508 = vmatprep.subr.mxu0 0.0
      %8509 = vmatpush1.msra.mxu0 0.0
      %8510 = vmatprep.subr.mxu0 0.0
      %8511 = vmatpush1.msra.mxu0 0.0
      %8512 = vmatprep.subr.mxu0 0.0
      %8513 = vmatpush1.msra.mxu0 0.0
      %8514 = vmatprep.subr.mxu0 0.0
      %8515 = vmatpush1.msra.mxu0 0.0
      %8516 = vmatprep.subr.mxu0 0.0
      %8517 = vmatpush1.msra.mxu0 0.0
      %8518 = vmatprep.subr.mxu0 0.0
      %8519 = vmatpush1.msra.mxu0 0.0
      %8520 = vmatprep.subr.mxu0 0.0
      %8521 = vmatpush1.msra.mxu0 0.0
      %8522 = vmatprep.subr.mxu0 0.0
      %8523 = vmatpush1.msra.mxu0 0.0
      %8524 = vmatprep.subr.mxu0 0.0
      %8525 = vmatpush1.msra.mxu0 0.0
      %8526 = vmatprep.subr.mxu0 0.0
      %8527 = vmatpush1.msra.mxu0 0.0
      %8528 = vmatprep.subr.mxu0 0.0
      %8529 = vmatpush1.msra.mxu0 0.0
      %8530 = vmatprep.subr.mxu0 0.0
      %8531 = vmatpush1.msra.mxu0 0.0
      %8532 = vmatprep.subr.mxu0 0.0
      %8533 = vmatpush1.msra.mxu0 0.0
      %8534 = vmatprep.subr.mxu0 0.0
      %8535 = vmatpush1.msra.mxu0 0.0
      %8536 = vmatprep.subr.mxu0 0.0
      %8537 = vmatpush1.msra.mxu0 0.0
      %8538 = vmatprep.subr.mxu0 0.0
      %8539 = vmatpush1.msra.mxu0 0.0
      %8540 = vmatprep.subr.mxu0 0.0
      %8541 = vmatpush1.msra.mxu0 0.0
      %8542 = vmatprep.subr.mxu0 0.0
      %8543 = vmatpush1.msra.mxu0 0.0
      %8544 = vmatprep.subr.mxu0 0.0
      %8545 = vmatpush1.msra.mxu0 0.0
      %8546 = vmatprep.subr.mxu0 0.0
      %8547 = vmatpush1.msra.mxu0 0.0
      %8548 = vmatprep.subr.mxu0 0.0
      %8549 = vmatpush1.msra.mxu0 0.0
      %8550 = vmatprep.mubr.f32.mxu0 0.0
      %8551 = vmatmul.mubr.f32.gmra.mrb[0].mxu0 %v8481
      %v8552 = vpop.f32.mrb[0].mxu0
      %v8553 = vadd.f32 0.0, %v8552
      %v8554 = vpop.f32.mrb[0].mxu0
      %8555 = vmatprep.mubr.f32.mxu0 0.0
      %8556 = vmatmul.mubr.f32.gmra.mrb[0].mxu0 %v8484
      %v8557 = vpop.f32.mrb[0].mxu0
      %v8558 = vadd.f32 0.0, %v8557
      %v8559 = vpop.f32.mrb[0].mxu0
      %8560 = vdwg.mxu0
      %v8562 = vsel %vm909, %v8376, 0
      %v8565 = vsel %vm909, %v8378, 0
      %8567 = vmatprep.subr.mxu0 0.0
      %8568 = vmatpush1.msra.mxu0 %v7799
      %8569 = vmatprep.subr.mxu0 0.0
      %8570 = vmatpush1.msra.mxu0 %v7804
      %8571 = vmatprep.subr.mxu0 0.0
      %8572 = vmatpush1.msra.mxu0 0.0
      %8573 = vmatprep.subr.mxu0 0.0
      %8574 = vmatpush1.msra.mxu0 0.0
      %8575 = vmatprep.subr.mxu0 0.0
      %8576 = vmatpush1.msra.mxu0 0.0
      %8577 = vmatprep.subr.mxu0 0.0
      %8578 = vmatpush1.msra.mxu0 0.0
      %8579 = vmatprep.subr.mxu0 0.0
      %8580 = vmatpush1.msra.mxu0 0.0
      %8581 = vmatprep.subr.mxu0 0.0
      %8582 = vmatpush1.msra.mxu0 0.0
      %8583 = vmatprep.subr.mxu0 0.0
      %8584 = vmatpush1.msra.mxu0 0.0
      %8585 = vmatprep.subr.mxu0 0.0
      %8586 = vmatpush1.msra.mxu0 0.0
      %8587 = vmatprep.subr.mxu0 0.0
      %8588 = vmatpush1.msra.mxu0 0.0
      %8589 = vmatprep.subr.mxu0 0.0
      %8590 = vmatpush1.msra.mxu0 0.0
      %8591 = vmatprep.subr.mxu0 0.0
      %8592 = vmatpush1.msra.mxu0 0.0
      %8593 = vmatprep.subr.mxu0 0.0
      %8594 = vmatpush1.msra.mxu0 0.0
      %8595 = vmatprep.subr.mxu0 0.0
      %8596 = vmatpush1.msra.mxu0 0.0
      %8597 = vmatprep.subr.mxu0 0.0
      %8598 = vmatpush1.msra.mxu0 0.0
      %8599 = vmatprep.subr.mxu0 0.0
      %8600 = vmatpush1.msra.mxu0 0.0
      %8601 = vmatprep.subr.mxu0 0.0
      %8602 = vmatpush1.msra.mxu0 0.0
      %8603 = vmatprep.subr.mxu0 0.0
      %8604 = vmatpush1.msra.mxu0 0.0
      %8605 = vmatprep.subr.mxu0 0.0
      %8606 = vmatpush1.msra.mxu0 0.0
      %8607 = vmatprep.subr.mxu0 0.0
      %8608 = vmatpush1.msra.mxu0 0.0
      %8609 = vmatprep.subr.mxu0 0.0
      %8610 = vmatpush1.msra.mxu0 0.0
      %8611 = vmatprep.subr.mxu0 0.0
      %8612 = vmatpush1.msra.mxu0 0.0
      %8613 = vmatprep.subr.mxu0 0.0
      %8614 = vmatpush1.msra.mxu0 0.0
      %8615 = vmatprep.subr.mxu0 0.0
      %8616 = vmatpush1.msra.mxu0 0.0
      %8617 = vmatprep.subr.mxu0 0.0
      %8618 = vmatpush1.msra.mxu0 0.0
      %8619 = vmatprep.subr.mxu0 0.0
      %8620 = vmatpush1.msra.mxu0 0.0
      %8621 = vmatprep.subr.mxu0 0.0
      %8622 = vmatpush1.msra.mxu0 0.0
      %8623 = vmatprep.subr.mxu0 0.0
      %8624 = vmatpush1.msra.mxu0 0.0
      %8625 = vmatprep.subr.mxu0 0.0
      %8626 = vmatpush1.msra.mxu0 0.0
      %8627 = vmatprep.subr.mxu0 0.0
      %8628 = vmatpush1.msra.mxu0 0.0
      %8629 = vmatprep.subr.mxu0 0.0
      %8630 = vmatpush1.msra.mxu0 0.0
      %8631 = vmatprep.mubr.f32.mxu0 0.0
      %8632 = vmatmul.mubr.f32.gmra.mrb[0].mxu0 %v8562
      %v8633 = vpop.f32.mrb[0].mxu0
      %v8634 = vadd.f32 0.0, %v8633
      %v8635 = vpop.f32.mrb[0].mxu0
      %8636 = vmatprep.mubr.f32.mxu0 0.0
      %8637 = vmatmul.mubr.f32.gmra.mrb[0].mxu0 %v8565
      %v8638 = vpop.f32.mrb[0].mxu0
      %v8639 = vadd.f32 0.0, %v8638
      %v8640 = vpop.f32.mrb[0].mxu0
      %8641 = vdwg.mxu0
      %v8643 = vsel %vm909, %v8380, 0
      %v8646 = vsel %vm909, %v8382, 0
      %8648 = vmatprep.subr.mxu0 0.0
      %8649 = vmatpush1.msra.mxu0 %v7809
      %8650 = vmatprep.subr.mxu0 0.0
      %8651 = vmatpush1.msra.mxu0 %v7814
      %8652 = vmatprep.subr.mxu0 0.0
      %8653 = vmatpush1.msra.mxu0 0.0
      %8654 = vmatprep.subr.mxu0 0.0
      %8655 = vmatpush1.msra.mxu0 0.0
      %8656 = vmatprep.subr.mxu0 0.0
      %8657 = vmatpush1.msra.mxu0 0.0
      %8658 = vmatprep.subr.mxu0 0.0
      %8659 = vmatpush1.msra.mxu0 0.0
      %8660 = vmatprep.subr.mxu0 0.0
      %8661 = vmatpush1.msra.mxu0 0.0
      %8662 = vmatprep.subr.mxu0 0.0
      %8663 = vmatpush1.msra.mxu0 0.0
      %8664 = vmatprep.subr.mxu0 0.0
      %8665 = vmatpush1.msra.mxu0 0.0
      %8666 = vmatprep.subr.mxu0 0.0
      %8667 = vmatpush1.msra.mxu0 0.0
      %8668 = vmatprep.subr.mxu0 0.0
      %8669 = vmatpush1.msra.mxu0 0.0
      %8670 = vmatprep.subr.mxu0 0.0
      %8671 = vmatpush1.msra.mxu0 0.0
      %8672 = vmatprep.subr.mxu0 0.0
      %8673 = vmatpush1.msra.mxu0 0.0
      %8674 = vmatprep.subr.mxu0 0.0
      %8675 = vmatpush1.msra.mxu0 0.0
      %8676 = vmatprep.subr.mxu0 0.0
      %8677 = vmatpush1.msra.mxu0 0.0
      %8678 = vmatprep.subr.mxu0 0.0
      %8679 = vmatpush1.msra.mxu0 0.0
      %8680 = vmatprep.subr.mxu0 0.0
      %8681 = vmatpush1.msra.mxu0 0.0
      %8682 = vmatprep.subr.mxu0 0.0
      %8683 = vmatpush1.msra.mxu0 0.0
      %8684 = vmatprep.subr.mxu0 0.0
      %8685 = vmatpush1.msra.mxu0 0.0
      %8686 = vmatprep.subr.mxu0 0.0
      %8687 = vmatpush1.msra.mxu0 0.0
      %8688 = vmatprep.subr.mxu0 0.0
      %8689 = vmatpush1.msra.mxu0 0.0
      %8690 = vmatprep.subr.mxu0 0.0
      %8691 = vmatpush1.msra.mxu0 0.0
      %8692 = vmatprep.subr.mxu0 0.0
      %8693 = vmatpush1.msra.mxu0 0.0
      %8694 = vmatprep.subr.mxu0 0.0
      %8695 = vmatpush1.msra.mxu0 0.0
      %8696 = vmatprep.subr.mxu0 0.0
      %8697 = vmatpush1.msra.mxu0 0.0
      %8698 = vmatprep.subr.mxu0 0.0
      %8699 = vmatpush1.msra.mxu0 0.0
      %8700 = vmatprep.subr.mxu0 0.0
      %8701 = vmatpush1.msra.mxu0 0.0
      %8702 = vmatprep.subr.mxu0 0.0
      %8703 = vmatpush1.msra.mxu0 0.0
      %8704 = vmatprep.subr.mxu0 0.0
      %8705 = vmatpush1.msra.mxu0 0.0
      %8706 = vmatprep.subr.mxu0 0.0
      %8707 = vmatpush1.msra.mxu0 0.0
      %8708 = vmatprep.subr.mxu0 0.0
      %8709 = vmatpush1.msra.mxu0 0.0
      %8710 = vmatprep.subr.mxu0 0.0
      %8711 = vmatpush1.msra.mxu0 0.0
      %8712 = vmatprep.mubr.f32.mxu0 0.0
      %8713 = vmatmul.mubr.f32.gmra.mrb[0].mxu0 %v8643
      %v8714 = vpop.f32.mrb[0].mxu0
      %v8715 = vadd.f32 0.0, %v8714
      %v8716 = vpop.f32.mrb[0].mxu0
      %8717 = vmatprep.mubr.f32.mxu0 0.0
      %8718 = vmatmul.mubr.f32.gmra.mrb[0].mxu0 %v8646
      %v8719 = vpop.f32.mrb[0].mxu0
      %v8720 = vadd.f32 0.0, %v8719
      %v8721 = vpop.f32.mrb[0].mxu0
      %8722 = vdwg.mxu0
      %v8724 = vsel %vm909, %v8384, 0
      %v8727 = vsel %vm909, %v8386, 0
      %8729 = vmatprep.subr.mxu0 0.0
      %8730 = vmatpush1.msra.mxu0 %v7819
      %8731 = vmatprep.subr.mxu0 0.0
      %8732 = vmatpush1.msra.mxu0 %v7824
      %8733 = vmatprep.subr.mxu0 0.0
      %8734 = vmatpush1.msra.mxu0 0.0
      %8735 = vmatprep.subr.mxu0 0.0
      %8736 = vmatpush1.msra.mxu0 0.0
      %8737 = vmatprep.subr.mxu0 0.0
      %8738 = vmatpush1.msra.mxu0 0.0
      %8739 = vmatprep.subr.mxu0 0.0
      %8740 = vmatpush1.msra.mxu0 0.0
      %8741 = vmatprep.subr.mxu0 0.0
      %8742 = vmatpush1.msra.mxu0 0.0
      %8743 = vmatprep.subr.mxu0 0.0
      %8744 = vmatpush1.msra.mxu0 0.0
      %8745 = vmatprep.subr.mxu0 0.0
      %8746 = vmatpush1.msra.mxu0 0.0
      %8747 = vmatprep.subr.mxu0 0.0
      %8748 = vmatpush1.msra.mxu0 0.0
      %8749 = vmatprep.subr.mxu0 0.0
      %8750 = vmatpush1.msra.mxu0 0.0
      %8751 = vmatprep.subr.mxu0 0.0
      %8752 = vmatpush1.msra.mxu0 0.0
      %8753 = vmatprep.subr.mxu0 0.0
      %8754 = vmatpush1.msra.mxu0 0.0
      %8755 = vmatprep.subr.mxu0 0.0
      %8756 = vmatpush1.msra.mxu0 0.0
      %8757 = vmatprep.subr.mxu0 0.0
      %8758 = vmatpush1.msra.mxu0 0.0
      %8759 = vmatprep.subr.mxu0 0.0
      %8760 = vmatpush1.msra.mxu0 0.0
      %8761 = vmatprep.subr.mxu0 0.0
      %8762 = vmatpush1.msra.mxu0 0.0
      %8763 = vmatprep.subr.mxu0 0.0
      %8764 = vmatpush1.msra.mxu0 0.0
      %8765 = vmatprep.subr.mxu0 0.0
      %8766 = vmatpush1.msra.mxu0 0.0
      %8767 = vmatprep.subr.mxu0 0.0
      %8768 = vmatpush1.msra.mxu0 0.0
      %8769 = vmatprep.subr.mxu0 0.0
      %8770 = vmatpush1.msra.mxu0 0.0
      %8771 = vmatprep.subr.mxu0 0.0
      %8772 = vmatpush1.msra.mxu0 0.0
      %8773 = vmatprep.subr.mxu0 0.0
      %8774 = vmatpush1.msra.mxu0 0.0
      %8775 = vmatprep.subr.mxu0 0.0
      %8776 = vmatpush1.msra.mxu0 0.0
      %8777 = vmatprep.subr.mxu0 0.0
      %8778 = vmatpush1.msra.mxu0 0.0
      %8779 = vmatprep.subr.mxu0 0.0
      %8780 = vmatpush1.msra.mxu0 0.0
      %8781 = vmatprep.subr.mxu0 0.0
      %8782 = vmatpush1.msra.mxu0 0.0
      %8783 = vmatprep.subr.mxu0 0.0
      %8784 = vmatpush1.msra.mxu0 0.0
      %8785 = vmatprep.subr.mxu0 0.0
      %8786 = vmatpush1.msra.mxu0 0.0
      %8787 = vmatprep.subr.mxu0 0.0
      %8788 = vmatpush1.msra.mxu0 0.0
      %8789 = vmatprep.subr.mxu0 0.0
      %8790 = vmatpush1.msra.mxu0 0.0
      %8791 = vmatprep.subr.mxu0 0.0
      %8792 = vmatpush1.msra.mxu0 0.0
      %8793 = vmatprep.mubr.f32.mxu0 0.0
      %8794 = vmatmul.mubr.f32.gmra.mrb[0].mxu0 %v8724
      %v8795 = vpop.f32.mrb[0].mxu0
      %v8796 = vadd.f32 0.0, %v8795
      %v8797 = vpop.f32.mrb[0].mxu0
      %8798 = vmatprep.mubr.f32.mxu0 0.0
      %8799 = vmatmul.mubr.f32.gmra.mrb[0].mxu0 %v8727
      %v8800 = vpop.f32.mrb[0].mxu0
      %v8801 = vadd.f32 0.0, %v8800
      %v8802 = vpop.f32.mrb[0].mxu0
      %8803 = vdwg.mxu0
      %v8805 = vsel %vm909, %v8388, 0
      %v8808 = vsel %vm909, %v8390, 0
      %8810 = vmatprep.subr.mxu0 0.0
      %8811 = vmatpush1.msra.mxu0 %v7829
      %8812 = vmatprep.subr.mxu0 0.0
      %8813 = vmatpush1.msra.mxu0 %v7834
      %8814 = vmatprep.subr.mxu0 0.0
      %8815 = vmatpush1.msra.mxu0 0.0
      %8816 = vmatprep.subr.mxu0 0.0
      %8817 = vmatpush1.msra.mxu0 0.0
      %8818 = vmatprep.subr.mxu0 0.0
      %8819 = vmatpush1.msra.mxu0 0.0
      %8820 = vmatprep.subr.mxu0 0.0
      %8821 = vmatpush1.msra.mxu0 0.0
      %8822 = vmatprep.subr.mxu0 0.0
      %8823 = vmatpush1.msra.mxu0 0.0
      %8824 = vmatprep.subr.mxu0 0.0
      %8825 = vmatpush1.msra.mxu0 0.0
      %8826 = vmatprep.subr.mxu0 0.0
      %8827 = vmatpush1.msra.mxu0 0.0
      %8828 = vmatprep.subr.mxu0 0.0
      %8829 = vmatpush1.msra.mxu0 0.0
      %8830 = vmatprep.subr.mxu0 0.0
      %8831 = vmatpush1.msra.mxu0 0.0
      %8832 = vmatprep.subr.mxu0 0.0
      %8833 = vmatpush1.msra.mxu0 0.0
      %8834 = vmatprep.subr.mxu0 0.0
      %8835 = vmatpush1.msra.mxu0 0.0
      %8836 = vmatprep.subr.mxu0 0.0
      %8837 = vmatpush1.msra.mxu0 0.0
      %8838 = vmatprep.subr.mxu0 0.0
      %8839 = vmatpush1.msra.mxu0 0.0
      %8840 = vmatprep.subr.mxu0 0.0
      %8841 = vmatpush1.msra.mxu0 0.0
      %8842 = vmatprep.subr.mxu0 0.0
      %8843 = vmatpush1.msra.mxu0 0.0
      %8844 = vmatprep.subr.mxu0 0.0
      %8845 = vmatpush1.msra.mxu0 0.0
      %8846 = vmatprep.subr.mxu0 0.0
      %8847 = vmatpush1.msra.mxu0 0.0
      %8848 = vmatprep.subr.mxu0 0.0
      %8849 = vmatpush1.msra.mxu0 0.0
      %8850 = vmatprep.subr.mxu0 0.0
      %8851 = vmatpush1.msra.mxu0 0.0
      %8852 = vmatprep.subr.mxu0 0.0
      %8853 = vmatpush1.msra.mxu0 0.0
      %8854 = vmatprep.subr.mxu0 0.0
      %8855 = vmatpush1.msra.mxu0 0.0
      %8856 = vmatprep.subr.mxu0 0.0
      %8857 = vmatpush1.msra.mxu0 0.0
      %8858 = vmatprep.subr.mxu0 0.0
      %8859 = vmatpush1.msra.mxu0 0.0
      %8860 = vmatprep.subr.mxu0 0.0
      %8861 = vmatpush1.msra.mxu0 0.0
      %8862 = vmatprep.subr.mxu0 0.0
      %8863 = vmatpush1.msra.mxu0 0.0
      %8864 = vmatprep.subr.mxu0 0.0
      %8865 = vmatpush1.msra.mxu0 0.0
      %8866 = vmatprep.subr.mxu0 0.0
      %8867 = vmatpush1.msra.mxu0 0.0
      %8868 = vmatprep.subr.mxu0 0.0
      %8869 = vmatpush1.msra.mxu0 0.0
      %8870 = vmatprep.subr.mxu0 0.0
      %8871 = vmatpush1.msra.mxu0 0.0
      %8872 = vmatprep.subr.mxu0 0.0
      %8873 = vmatpush1.msra.mxu0 0.0
      %8874 = vmatprep.mubr.f32.mxu0 0.0
      %8875 = vmatmul.mubr.f32.gmra.mrb[0].mxu0 %v8805
      %v8876 = vpop.f32.mrb[0].mxu0
      %v8877 = vadd.f32 0.0, %v8876
      %v8878 = vpop.f32.mrb[0].mxu0
      %8879 = vmatprep.mubr.f32.mxu0 0.0
      %8880 = vmatmul.mubr.f32.gmra.mrb[0].mxu0 %v8808
      %v8881 = vpop.f32.mrb[0].mxu0
      %v8882 = vadd.f32 0.0, %v8881
      %v8883 = vpop.f32.mrb[0].mxu0
      %8884 = vdwg.mxu0
      %v8886 = vsel %vm909, %v8392, 0
      %v8889 = vsel %vm909, %v8394, 0
      %8891 = vmatprep.subr.mxu0 0.0
      %8892 = vmatpush1.msra.mxu0 %v7839
      %8893 = vmatprep.subr.mxu0 0.0
      %8894 = vmatpush1.msra.mxu0 %v7844
      %8895 = vmatprep.subr.mxu0 0.0
      %8896 = vmatpush1.msra.mxu0 0.0
      %8897 = vmatprep.subr.mxu0 0.0
      %8898 = vmatpush1.msra.mxu0 0.0
      %8899 = vmatprep.subr.mxu0 0.0
      %8900 = vmatpush1.msra.mxu0 0.0
      %8901 = vmatprep.subr.mxu0 0.0
      %8902 = vmatpush1.msra.mxu0 0.0
      %8903 = vmatprep.subr.mxu0 0.0
      %8904 = vmatpush1.msra.mxu0 0.0
      %8905 = vmatprep.subr.mxu0 0.0
      %8906 = vmatpush1.msra.mxu0 0.0
      %8907 = vmatprep.subr.mxu0 0.0
      %8908 = vmatpush1.msra.mxu0 0.0
      %8909 = vmatprep.subr.mxu0 0.0
      %8910 = vmatpush1.msra.mxu0 0.0
      %8911 = vmatprep.subr.mxu0 0.0
      %8912 = vmatpush1.msra.mxu0 0.0
      %8913 = vmatprep.subr.mxu0 0.0
      %8914 = vmatpush1.msra.mxu0 0.0
      %8915 = vmatprep.subr.mxu0 0.0
      %8916 = vmatpush1.msra.mxu0 0.0
      %8917 = vmatprep.subr.mxu0 0.0
      %8918 = vmatpush1.msra.mxu0 0.0
      %8919 = vmatprep.subr.mxu0 0.0
      %8920 = vmatpush1.msra.mxu0 0.0
      %8921 = vmatprep.subr.mxu0 0.0
      %8922 = vmatpush1.msra.mxu0 0.0
      %8923 = vmatprep.subr.mxu0 0.0
      %8924 = vmatpush1.msra.mxu0 0.0
      %8925 = vmatprep.subr.mxu0 0.0
      %8926 = vmatpush1.msra.mxu0 0.0
      %8927 = vmatprep.subr.mxu0 0.0
      %8928 = vmatpush1.msra.mxu0 0.0
      %8929 = vmatprep.subr.mxu0 0.0
      %8930 = vmatpush1.msra.mxu0 0.0
      %8931 = vmatprep.subr.mxu0 0.0
      %8932 = vmatpush1.msra.mxu0 0.0
      %8933 = vmatprep.subr.mxu0 0.0
      %8934 = vmatpush1.msra.mxu0 0.0
      %8935 = vmatprep.subr.mxu0 0.0
      %8936 = vmatpush1.msra.mxu0 0.0
      %8937 = vmatprep.subr.mxu0 0.0
      %8938 = vmatpush1.msra.mxu0 0.0
      %8939 = vmatprep.subr.mxu0 0.0
      %8940 = vmatpush1.msra.mxu0 0.0
      %8941 = vmatprep.subr.mxu0 0.0
      %8942 = vmatpush1.msra.mxu0 0.0
      %8943 = vmatprep.subr.mxu0 0.0
      %8944 = vmatpush1.msra.mxu0 0.0
      %8945 = vmatprep.subr.mxu0 0.0
      %8946 = vmatpush1.msra.mxu0 0.0
      %8947 = vmatprep.subr.mxu0 0.0
      %8948 = vmatpush1.msra.mxu0 0.0
      %8949 = vmatprep.subr.mxu0 0.0
      %8950 = vmatpush1.msra.mxu0 0.0
      %8951 = vmatprep.subr.mxu0 0.0
      %8952 = vmatpush1.msra.mxu0 0.0
      %8953 = vmatprep.subr.mxu0 0.0
      %8954 = vmatpush1.msra.mxu0 0.0
      %8955 = vmatprep.mubr.f32.mxu0 0.0
      %8956 = vmatmul.mubr.f32.gmra.mrb[0].mxu0 %v8886
      %v8957 = vpop.f32.mrb[0].mxu0
      %v8958 = vadd.f32 0.0, %v8957
      %v8959 = vpop.f32.mrb[0].mxu0
      %8960 = vmatprep.mubr.f32.mxu0 0.0
      %8961 = vmatmul.mubr.f32.gmra.mrb[0].mxu0 %v8889
      %v8962 = vpop.f32.mrb[0].mxu0
      %v8963 = vadd.f32 0.0, %v8962
      %v8964 = vpop.f32.mrb[0].mxu0
      %8965 = vdwg.mxu0
      %v8967 = vsel %vm909, %v8396, 0
      %v8970 = vsel %vm909, %v8398, 0
      %8972 = vmatprep.subr.mxu0 0.0
      %8973 = vmatpush1.msra.mxu0 %v7849
      %8974 = vmatprep.subr.mxu0 0.0
      %8975 = vmatpush1.msra.mxu0 %v7854
      %8976 = vmatprep.subr.mxu0 0.0
      %8977 = vmatpush1.msra.mxu0 0.0
      %8978 = vmatprep.subr.mxu0 0.0
      %8979 = vmatpush1.msra.mxu0 0.0
      %8980 = vmatprep.subr.mxu0 0.0
      %8981 = vmatpush1.msra.mxu0 0.0
      %8982 = vmatprep.subr.mxu0 0.0
      %8983 = vmatpush1.msra.mxu0 0.0
      %8984 = vmatprep.subr.mxu0 0.0
      %8985 = vmatpush1.msra.mxu0 0.0
      %8986 = vmatprep.subr.mxu0 0.0
      %8987 = vmatpush1.msra.mxu0 0.0
      %8988 = vmatprep.subr.mxu0 0.0
      %8989 = vmatpush1.msra.mxu0 0.0
      %8990 = vmatprep.subr.mxu0 0.0
      %8991 = vmatpush1.msra.mxu0 0.0
      %8992 = vmatprep.subr.mxu0 0.0
      %8993 = vmatpush1.msra.mxu0 0.0
      %8994 = vmatprep.subr.mxu0 0.0
      %8995 = vmatpush1.msra.mxu0 0.0
      %8996 = vmatprep.subr.mxu0 0.0
      %8997 = vmatpush1.msra.mxu0 0.0
      %8998 = vmatprep.subr.mxu0 0.0
      %8999 = vmatpush1.msra.mxu0 0.0
      %9000 = vmatprep.subr.mxu0 0.0
      %9001 = vmatpush1.msra.mxu0 0.0
      %9002 = vmatprep.subr.mxu0 0.0
      %9003 = vmatpush1.msra.mxu0 0.0
      %9004 = vmatprep.subr.mxu0 0.0
      %9005 = vmatpush1.msra.mxu0 0.0
      %9006 = vmatprep.subr.mxu0 0.0
      %9007 = vmatpush1.msra.mxu0 0.0
      %9008 = vmatprep.subr.mxu0 0.0
      %9009 = vmatpush1.msra.mxu0 0.0
      %9010 = vmatprep.subr.mxu0 0.0
      %9011 = vmatpush1.msra.mxu0 0.0
      %9012 = vmatprep.subr.mxu0 0.0
      %9013 = vmatpush1.msra.mxu0 0.0
      %9014 = vmatprep.subr.mxu0 0.0
      %9015 = vmatpush1.msra.mxu0 0.0
      %9016 = vmatprep.subr.mxu0 0.0
      %9017 = vmatpush1.msra.mxu0 0.0
      %9018 = vmatprep.subr.mxu0 0.0
      %9019 = vmatpush1.msra.mxu0 0.0
      %9020 = vmatprep.subr.mxu0 0.0
      %9021 = vmatpush1.msra.mxu0 0.0
      %9022 = vmatprep.subr.mxu0 0.0
      %9023 = vmatpush1.msra.mxu0 0.0
      %9024 = vmatprep.subr.mxu0 0.0
      %9025 = vmatpush1.msra.mxu0 0.0
      %9026 = vmatprep.subr.mxu0 0.0
      %9027 = vmatpush1.msra.mxu0 0.0
      %9028 = vmatprep.subr.mxu0 0.0
      %9029 = vmatpush1.msra.mxu0 0.0
      %9030 = vmatprep.subr.mxu0 0.0
      %9031 = vmatpush1.msra.mxu0 0.0
      %9032 = vmatprep.subr.mxu0 0.0
      %9033 = vmatpush1.msra.mxu0 0.0
      %9034 = vmatprep.subr.mxu0 0.0
      %9035 = vmatpush1.msra.mxu0 0.0
      %9036 = vmatprep.mubr.f32.mxu0 0.0
      %9037 = vmatmul.mubr.f32.gmra.mrb[0].mxu0 %v8967
      %v9038 = vpop.f32.mrb[0].mxu0
      %v9039 = vadd.f32 0.0, %v9038
      %v9040 = vpop.f32.mrb[0].mxu0
      %9041 = vmatprep.mubr.f32.mxu0 0.0
      %9042 = vmatmul.mubr.f32.gmra.mrb[0].mxu0 %v8970
      %v9043 = vpop.f32.mrb[0].mxu0
      %v9044 = vadd.f32 0.0, %v9043
      %v9045 = vpop.f32.mrb[0].mxu0
      %9046 = vdwg.mxu0
      %vm9047 = vcmp.gt.f32.partialorder %v8472, 0.0
      %vm9048 = vcmp.gt.f32.partialorder %v8477, 0.0
      %vm9049 = vcmp.gt.f32.partialorder %v8553, 0.0
      %vm9050 = vcmp.gt.f32.partialorder %v8558, 0.0
      %vm9051 = vcmp.gt.f32.partialorder %v8634, 0.0
      %vm9052 = vcmp.gt.f32.partialorder %v8639, 0.0
      %vm9053 = vcmp.gt.f32.partialorder %v8715, 0.0
      %vm9054 = vcmp.gt.f32.partialorder %v8720, 0.0
      %vm9055 = vcmp.gt.f32.partialorder %v8796, 0.0
      %vm9056 = vcmp.gt.f32.partialorder %v8801, 0.0
      %vm9057 = vcmp.gt.f32.partialorder %v8877, 0.0
      %vm9058 = vcmp.gt.f32.partialorder %v8882, 0.0
      %vm9059 = vcmp.gt.f32.partialorder %v8958, 0.0
      %vm9060 = vcmp.gt.f32.partialorder %v8963, 0.0
      %vm9061 = vcmp.gt.f32.partialorder %v9039, 0.0
      %vm9062 = vcmp.gt.f32.partialorder %v9044, 0.0
      %v9063 = vmul.f32 %v8472, 1.442695
      %v9064 = vpow.pop %v9063
      %v9065 = vmul.f32 %v8477, 1.442695
      %v9066 = vpow.pop %v9065
      %v9067 = vmul.f32 %v8553, 1.442695
      %v9068 = vpow.pop %v9067
      %v9069 = vmul.f32 %v8558, 1.442695
      %v9070 = vpow.pop %v9069
      %v9071 = vmul.f32 %v8634, 1.442695
      %v9072 = vpow.pop %v9071
      %v9073 = vmul.f32 %v8639, 1.442695
      %v9074 = vpow.pop %v9073
      %v9075 = vmul.f32 %v8715, 1.442695
      %v9076 = vpow.pop %v9075
      %v9077 = vmul.f32 %v8720, 1.442695
      %v9078 = vpow.pop %v9077
      %v9079 = vmul.f32 %v8796, 1.442695
      %v9080 = vpow.pop %v9079
      %v9081 = vmul.f32 %v8801, 1.442695
      %v9082 = vpow.pop %v9081
      %v9083 = vmul.f32 %v8877, 1.442695
      %v9084 = vpow.pop %v9083
      %v9085 = vmul.f32 %v8882, 1.442695
      %v9086 = vpow.pop %v9085
      %v9087 = vmul.f32 %v8958, 1.442695
      %v9088 = vpow.pop %v9087
      %v9089 = vmul.f32 %v8963, 1.442695
      %v9090 = vpow.pop %v9089
      %v9091 = vmul.f32 %v9039, 1.442695
      %v9092 = vpow.pop %v9091
      %v9093 = vmul.f32 %v9044, 1.442695
      %v9094 = vpow.pop %v9093
      %v9095 = vsub.f32 %v9064, 1.0
      %v9096 = vsub.f32 %v9066, 1.0
      %v9097 = vsub.f32 %v9068, 1.0
      %v9098 = vsub.f32 %v9070, 1.0
      %v9099 = vsub.f32 %v9072, 1.0
      %v9100 = vsub.f32 %v9074, 1.0
      %v9101 = vsub.f32 %v9076, 1.0
      %v9102 = vsub.f32 %v9078, 1.0
      %v9103 = vsub.f32 %v9080, 1.0
      %v9104 = vsub.f32 %v9082, 1.0
      %v9105 = vsub.f32 %v9084, 1.0
      %v9106 = vsub.f32 %v9086, 1.0
      %v9107 = vsub.f32 %v9088, 1.0
      %v9108 = vsub.f32 %v9090, 1.0
      %v9109 = vsub.f32 %v9092, 1.0
      %v9110 = vsub.f32 %v9094, 1.0
      %v9111 = vsel %vm9047, %v8472, %v9095
      %v9112 = vsel %vm9048, %v8477, %v9096
      %v9113 = vsel %vm9049, %v8553, %v9097
      %v9114 = vsel %vm9050, %v8558, %v9098
      %v9115 = vsel %vm9051, %v8634, %v9099
      %v9116 = vsel %vm9052, %v8639, %v9100
      %v9117 = vsel %vm9053, %v8715, %v9101
      %v9118 = vsel %vm9054, %v8720, %v9102
      %v9119 = vsel %vm9055, %v8796, %v9103
      %v9120 = vsel %vm9056, %v8801, %v9104
      %v9121 = vsel %vm9057, %v8877, %v9105
      %v9122 = vsel %vm9058, %v8882, %v9106
      %v9123 = vsel %vm9059, %v8958, %v9107
      %v9124 = vsel %vm9060, %v8963, %v9108
      %v9125 = vsel %vm9061, %v9039, %v9109
      %v9126 = vsel %vm9062, %v9044, %v9110
      %v9127 = vmax.f32 %v9111, 0.0
      %v9128 = vmax.f32 %v9112, 0.0
      %v9129 = vmax.f32 %v9113, 0.0
      %v9130 = vmax.f32 %v9114, 0.0
      %v9131 = vmax.f32 %v9115, 0.0
      %v9132 = vmax.f32 %v9116, 0.0
      %v9133 = vmax.f32 %v9117, 0.0
      %v9134 = vmax.f32 %v9118, 0.0
      %v9135 = vmax.f32 %v9119, 0.0
      %v9136 = vmax.f32 %v9120, 0.0
      %v9137 = vmax.f32 %v9121, 0.0
      %v9138 = vmax.f32 %v9122, 0.0
      %v9139 = vmax.f32 %v9123, 0.0
      %v9140 = vmax.f32 %v9124, 0.0
      %v9141 = vmax.f32 %v9125, 0.0
      %v9142 = vmax.f32 %v9126, 0.0
      %v9143 = vld [vmem:[%s4] sm:$0xff]
      %v9144 = vld [vmem:[%s4 + $0x8] sm:$0xff]
      %v9145 = vld [vmem:[%s4 + $0x10] sm:$0xff]
      %v9146 = vld [vmem:[%s4 + $0x18] sm:$0xff]
      %s9147 = scalar_lea.vmem %s4, 32
      %v9148 = vld [vmem:[%s9147] sm:$0xff]
      %v9149 = vld [vmem:[%s9147 + $0x8] sm:$0xff]
      %v9150 = vld [vmem:[%s9147 + $0x10] sm:$0xff]
      %v9151 = vld [vmem:[%s9147 + $0x18] sm:$0xff]
      %v9153 = vsel %vm335, %v9148, 0
      %v9156 = vsel %vm335, %v9149, 0
      %v9159 = vsel %vm335, %v9150, 0
      %v9162 = vsel %vm335, %v9151, 0
      %9164 = vmatprep.subr.mxu0 0.0
      %9165 = vmatpush1.xpose.msra.mxu0 %v1824
      %9166 = vmatprep.subr.mxu0 0.0
      %9167 = vmatpush1.xpose.msra.mxu0 %v1827
      %9168 = vmatprep.subr.mxu0 0.0
      %9169 = vmatpush1.xpose.msra.mxu0 %v1830
      %9170 = vmatprep.subr.mxu0 0.0
      %9171 = vmatpush1.xpose.msra.mxu0 %v1833
      %9172 = vmatprep.subr.mxu0 0.0
      %9173 = vmatpush1.xpose.msra.mxu0 %v1836
      %9174 = vmatprep.subr.mxu0 0.0
      %9175 = vmatpush1.xpose.msra.mxu0 %v1839
      %9176 = vmatprep.subr.mxu0 0.0
      %9177 = vmatpush1.xpose.msra.mxu0 %v1842
      %9178 = vmatprep.subr.mxu0 0.0
      %9179 = vmatpush1.xpose.msra.mxu0 %v1845
      %9180 = vmatprep.subr.mxu0 0.0
      %9181 = vmatpush1.xpose.msra.mxu0 %v1848
      %9182 = vmatprep.subr.mxu0 0.0
      %9183 = vmatpush1.xpose.msra.mxu0 %v1851
      %9184 = vmatprep.subr.mxu0 0.0
      %9185 = vmatpush1.xpose.msra.mxu0 %v1854
      %9186 = vmatprep.subr.mxu0 0.0
      %9187 = vmatpush1.xpose.msra.mxu0 %v1857
      %9188 = vmatprep.subr.mxu0 0.0
      %9189 = vmatpush1.xpose.msra.mxu0 %v1860
      %9190 = vmatprep.subr.mxu0 0.0
      %9191 = vmatpush1.xpose.msra.mxu0 %v1863
      %9192 = vmatprep.subr.mxu0 0.0
      %9193 = vmatpush1.xpose.msra.mxu0 %v1866
      %9194 = vmatprep.subr.mxu0 0.0
      %9195 = vmatpush1.xpose.msra.mxu0 %v1869
      %9196 = vmatprep.subr.mxu0 0.0
      %9197 = vmatpush1.xpose.msra.mxu0 0.0
      %9198 = vmatprep.subr.mxu0 0.0
      %9199 = vmatpush1.xpose.msra.mxu0 0.0
      %9200 = vmatprep.subr.mxu0 0.0
      %9201 = vmatpush1.xpose.msra.mxu0 0.0
      %9202 = vmatprep.subr.mxu0 0.0
      %9203 = vmatpush1.xpose.msra.mxu0 0.0
      %9204 = vmatprep.subr.mxu0 0.0
      %9205 = vmatpush1.xpose.msra.mxu0 0.0
      %9206 = vmatprep.subr.mxu0 0.0
      %9207 = vmatpush1.xpose.msra.mxu0 0.0
      %9208 = vmatprep.subr.mxu0 0.0
      %9209 = vmatpush1.xpose.msra.mxu0 0.0
      %9210 = vmatprep.subr.mxu0 0.0
      %9211 = vmatpush1.xpose.msra.mxu0 0.0
      %9212 = vmatprep.subr.mxu0 0.0
      %9213 = vmatpush1.xpose.msra.mxu0 0.0
      %9214 = vmatprep.subr.mxu0 0.0
      %9215 = vmatpush1.xpose.msra.mxu0 0.0
      %9216 = vmatprep.subr.mxu0 0.0
      %9217 = vmatpush1.xpose.msra.mxu0 0.0
      %9218 = vmatprep.subr.mxu0 0.0
      %9219 = vmatpush1.xpose.msra.mxu0 0.0
      %9220 = vmatprep.subr.mxu0 0.0
      %9221 = vmatpush1.xpose.msra.mxu0 0.0
      %9222 = vmatprep.subr.mxu0 0.0
      %9223 = vmatpush1.xpose.msra.mxu0 0.0
      %9224 = vmatprep.subr.mxu0 0.0
      %9225 = vmatpush1.xpose.msra.mxu0 0.0
      %9226 = vmatprep.subr.mxu0 0.0
      %9227 = vmatpush1.xpose.msra.mxu0 0.0
      %9228 = vmatprep.mubr.f32.mxu0 0.0
      %9229 = vmatmul.mubr.f32.gmra.mrb[0].mxu0 %v9153
      %v9230 = vpop.f32.mrb[0].mxu0
      %v9231 = vadd.f32 0.0, %v9230
      %v9232 = vpop.f32.mrb[0].mxu0
      %9233 = vmatprep.mubr.f32.mxu0 0.0
      %9234 = vmatmul.mubr.f32.gmra.mrb[0].mxu0 %v9156
      %v9235 = vpop.f32.mrb[0].mxu0
      %v9236 = vadd.f32 0.0, %v9235
      %v9237 = vpop.f32.mrb[0].mxu0
      %9238 = vmatprep.mubr.f32.mxu0 0.0
      %9239 = vmatmul.mubr.f32.gmra.mrb[0].mxu0 %v9159
      %v9240 = vpop.f32.mrb[0].mxu0
      %v9241 = vadd.f32 0.0, %v9240
      %v9242 = vpop.f32.mrb[0].mxu0
      %9243 = vmatprep.mubr.f32.mxu0 0.0
      %9244 = vmatmul.mubr.f32.gmra.mrb[0].mxu0 %v9162
      %v9245 = vpop.f32.mrb[0].mxu0
      %v9246 = vadd.f32 0.0, %v9245
      %v9247 = vpop.f32.mrb[0].mxu0
      %9248 = vdwg.mxu0
      %v9250 = vsel %vm335, %v9143, 0
      %v9253 = vsel %vm335, %v9144, 0
      %v9256 = vsel %vm335, %v9145, 0
      %v9259 = vsel %vm335, %v9146, 0
      %9261 = vmatprep.subr.mxu0 0.0
      %9262 = vmatpush1.xpose.msra.mxu0 %v337
      %9263 = vmatprep.subr.mxu0 0.0
      %9264 = vmatpush1.xpose.msra.mxu0 %v340
      %9265 = vmatprep.subr.mxu0 0.0
      %9266 = vmatpush1.xpose.msra.mxu0 %v343
      %9267 = vmatprep.subr.mxu0 0.0
      %9268 = vmatpush1.xpose.msra.mxu0 %v346
      %9269 = vmatprep.subr.mxu0 0.0
      %9270 = vmatpush1.xpose.msra.mxu0 %v349
      %9271 = vmatprep.subr.mxu0 0.0
      %9272 = vmatpush1.xpose.msra.mxu0 %v352
      %9273 = vmatprep.subr.mxu0 0.0
      %9274 = vmatpush1.xpose.msra.mxu0 %v355
      %9275 = vmatprep.subr.mxu0 0.0
      %9276 = vmatpush1.xpose.msra.mxu0 %v358
      %9277 = vmatprep.subr.mxu0 0.0
      %9278 = vmatpush1.xpose.msra.mxu0 %v361
      %9279 = vmatprep.subr.mxu0 0.0
      %9280 = vmatpush1.xpose.msra.mxu0 %v364
      %9281 = vmatprep.subr.mxu0 0.0
      %9282 = vmatpush1.xpose.msra.mxu0 %v367
      %9283 = vmatprep.subr.mxu0 0.0
      %9284 = vmatpush1.xpose.msra.mxu0 %v370
      %9285 = vmatprep.subr.mxu0 0.0
      %9286 = vmatpush1.xpose.msra.mxu0 %v373
      %9287 = vmatprep.subr.mxu0 0.0
      %9288 = vmatpush1.xpose.msra.mxu0 %v376
      %9289 = vmatprep.subr.mxu0 0.0
      %9290 = vmatpush1.xpose.msra.mxu0 %v379
      %9291 = vmatprep.subr.mxu0 0.0
      %9292 = vmatpush1.xpose.msra.mxu0 %v382
      %9293 = vmatprep.subr.mxu0 0.0
      %9294 = vmatpush1.xpose.msra.mxu0 0.0
      %9295 = vmatprep.subr.mxu0 0.0
      %9296 = vmatpush1.xpose.msra.mxu0 0.0
      %9297 = vmatprep.subr.mxu0 0.0
      %9298 = vmatpush1.xpose.msra.mxu0 0.0
      %9299 = vmatprep.subr.mxu0 0.0
      %9300 = vmatpush1.xpose.msra.mxu0 0.0
      %9301 = vmatprep.subr.mxu0 0.0
      %9302 = vmatpush1.xpose.msra.mxu0 0.0
      %9303 = vmatprep.subr.mxu0 0.0
      %9304 = vmatpush1.xpose.msra.mxu0 0.0
      %9305 = vmatprep.subr.mxu0 0.0
      %9306 = vmatpush1.xpose.msra.mxu0 0.0
      %9307 = vmatprep.subr.mxu0 0.0
      %9308 = vmatpush1.xpose.msra.mxu0 0.0
      %9309 = vmatprep.subr.mxu0 0.0
      %9310 = vmatpush1.xpose.msra.mxu0 0.0
      %9311 = vmatprep.subr.mxu0 0.0
      %9312 = vmatpush1.xpose.msra.mxu0 0.0
      %9313 = vmatprep.subr.mxu0 0.0
      %9314 = vmatpush1.xpose.msra.mxu0 0.0
      %9315 = vmatprep.subr.mxu0 0.0
      %9316 = vmatpush1.xpose.msra.mxu0 0.0
      %9317 = vmatprep.subr.mxu0 0.0
      %9318 = vmatpush1.xpose.msra.mxu0 0.0
      %9319 = vmatprep.subr.mxu0 0.0
      %9320 = vmatpush1.xpose.msra.mxu0 0.0
      %9321 = vmatprep.subr.mxu0 0.0
      %9322 = vmatpush1.xpose.msra.mxu0 0.0
      %9323 = vmatprep.subr.mxu0 0.0
      %9324 = vmatpush1.xpose.msra.mxu0 0.0
      %9325 = vmatprep.mubr.f32.mxu0 0.0
      %9326 = vmatmul.mubr.f32.gmra.mrb[0].mxu0 %v9250
      %v9327 = vpop.f32.mrb[0].mxu0
      %v9328 = vadd.f32 %v9231, %v9327
      %v9329 = vpop.f32.mrb[0].mxu0
      %9330 = vmatprep.mubr.f32.mxu0 0.0
      %9331 = vmatmul.mubr.f32.gmra.mrb[0].mxu0 %v9253
      %v9332 = vpop.f32.mrb[0].mxu0
      %v9333 = vadd.f32 %v9236, %v9332
      %v9334 = vpop.f32.mrb[0].mxu0
      %9335 = vmatprep.mubr.f32.mxu0 0.0
      %9336 = vmatmul.mubr.f32.gmra.mrb[0].mxu0 %v9256
      %v9337 = vpop.f32.mrb[0].mxu0
      %v9338 = vadd.f32 %v9241, %v9337
      %v9339 = vpop.f32.mrb[0].mxu0
      %9340 = vmatprep.mubr.f32.mxu0 0.0
      %9341 = vmatmul.mubr.f32.gmra.mrb[0].mxu0 %v9259
      %v9342 = vpop.f32.mrb[0].mxu0
      %v9343 = vadd.f32 %v9246, %v9342
      %v9344 = vpop.f32.mrb[0].mxu0
      %9345 = vdwg.mxu0
      %s9346 = scalar_lea.vmem %s4, 64
      %v9347 = vld [vmem:[%s9346] sm:$0xff]
      %v9348 = vld [vmem:[%s9346 + $0x8] sm:$0xff]
      %v9349 = vld [vmem:[%s9346 + $0x10] sm:$0xff]
      %v9350 = vld [vmem:[%s9346 + $0x18] sm:$0xff]
      %v9352 = vsel %vm335, %v9347, 0
      %v9355 = vsel %vm335, %v9348, 0
      %v9358 = vsel %vm335, %v9349, 0
      %v9361 = vsel %vm335, %v9350, 0
      %v9364 = vsel %vm335, %v3289, 0
      %v9367 = vsel %vm335, %v3290, 0
      %v9370 = vsel %vm335, %v3291, 0
      %v9373 = vsel %vm335, %v3292, 0
      %v9376 = vsel %vm335, %v3293, 0
      %v9379 = vsel %vm335, %v3294, 0
      %v9382 = vsel %vm335, %v3295, 0
      %v9385 = vsel %vm335, %v3296, 0
      %v9388 = vsel %vm335, %v3297, 0
      %v9391 = vsel %vm335, %v3298, 0
      %v9394 = vsel %vm335, %v3299, 0
      %v9397 = vsel %vm335, %v3300, 0
      %v9400 = vsel %vm335, %v3301, 0
      %v9403 = vsel %vm335, %v3302, 0
      %v9406 = vsel %vm335, %v3303, 0
      %v9409 = vsel %vm335, %v3304, 0
      %9411 = vmatprep.subr.mxu0 0.0
      %9412 = vmatpush1.xpose.msra.mxu0 %v9364
      %9413 = vmatprep.subr.mxu0 0.0
      %9414 = vmatpush1.xpose.msra.mxu0 %v9367
      %9415 = vmatprep.subr.mxu0 0.0
      %9416 = vmatpush1.xpose.msra.mxu0 %v9370
      %9417 = vmatprep.subr.mxu0 0.0
      %9418 = vmatpush1.xpose.msra.mxu0 %v9373
      %9419 = vmatprep.subr.mxu0 0.0
      %9420 = vmatpush1.xpose.msra.mxu0 %v9376
      %9421 = vmatprep.subr.mxu0 0.0
      %9422 = vmatpush1.xpose.msra.mxu0 %v9379
      %9423 = vmatprep.subr.mxu0 0.0
      %9424 = vmatpush1.xpose.msra.mxu0 %v9382
      %9425 = vmatprep.subr.mxu0 0.0
      %9426 = vmatpush1.xpose.msra.mxu0 %v9385
      %9427 = vmatprep.subr.mxu0 0.0
      %9428 = vmatpush1.xpose.msra.mxu0 %v9388
      %9429 = vmatprep.subr.mxu0 0.0
      %9430 = vmatpush1.xpose.msra.mxu0 %v9391
      %9431 = vmatprep.subr.mxu0 0.0
      %9432 = vmatpush1.xpose.msra.mxu0 %v9394
      %9433 = vmatprep.subr.mxu0 0.0
      %9434 = vmatpush1.xpose.msra.mxu0 %v9397
      %9435 = vmatprep.subr.mxu0 0.0
      %9436 = vmatpush1.xpose.msra.mxu0 %v9400
      %9437 = vmatprep.subr.mxu0 0.0
      %9438 = vmatpush1.xpose.msra.mxu0 %v9403
      %9439 = vmatprep.subr.mxu0 0.0
      %9440 = vmatpush1.xpose.msra.mxu0 %v9406
      %9441 = vmatprep.subr.mxu0 0.0
      %9442 = vmatpush1.xpose.msra.mxu0 %v9409
      %9443 = vmatprep.subr.mxu0 0.0
      %9444 = vmatpush1.xpose.msra.mxu0 0.0
      %9445 = vmatprep.subr.mxu0 0.0
      %9446 = vmatpush1.xpose.msra.mxu0 0.0
      %9447 = vmatprep.subr.mxu0 0.0
      %9448 = vmatpush1.xpose.msra.mxu0 0.0
      %9449 = vmatprep.subr.mxu0 0.0
      %9450 = vmatpush1.xpose.msra.mxu0 0.0
      %9451 = vmatprep.subr.mxu0 0.0
      %9452 = vmatpush1.xpose.msra.mxu0 0.0
      %9453 = vmatprep.subr.mxu0 0.0
      %9454 = vmatpush1.xpose.msra.mxu0 0.0
      %9455 = vmatprep.subr.mxu0 0.0
      %9456 = vmatpush1.xpose.msra.mxu0 0.0
      %9457 = vmatprep.subr.mxu0 0.0
      %9458 = vmatpush1.xpose.msra.mxu0 0.0
      %9459 = vmatprep.subr.mxu0 0.0
      %9460 = vmatpush1.xpose.msra.mxu0 0.0
      %9461 = vmatprep.subr.mxu0 0.0
      %9462 = vmatpush1.xpose.msra.mxu0 0.0
      %9463 = vmatprep.subr.mxu0 0.0
      %9464 = vmatpush1.xpose.msra.mxu0 0.0
      %9465 = vmatprep.subr.mxu0 0.0
      %9466 = vmatpush1.xpose.msra.mxu0 0.0
      %9467 = vmatprep.subr.mxu0 0.0
      %9468 = vmatpush1.xpose.msra.mxu0 0.0
      %9469 = vmatprep.subr.mxu0 0.0
      %9470 = vmatpush1.xpose.msra.mxu0 0.0
      %9471 = vmatprep.subr.mxu0 0.0
      %9472 = vmatpush1.xpose.msra.mxu0 0.0
      %9473 = vmatprep.subr.mxu0 0.0
      %9474 = vmatpush1.xpose.msra.mxu0 0.0
      %9475 = vmatprep.mubr.f32.mxu0 0.0
      %9476 = vmatmul.mubr.f32.gmra.mrb[0].mxu0 %v9352
      %v9477 = vpop.f32.mrb[0].mxu0
      %v9478 = vadd.f32 0.0, %v9477
      %v9479 = vpop.f32.mrb[0].mxu0
      %9480 = vmatprep.mubr.f32.mxu0 0.0
      %9481 = vmatmul.mubr.f32.gmra.mrb[0].mxu0 %v9355
      %v9482 = vpop.f32.mrb[0].mxu0
      %v9483 = vadd.f32 0.0, %v9482
      %v9484 = vpop.f32.mrb[0].mxu0
      %9485 = vmatprep.mubr.f32.mxu0 0.0
      %9486 = vmatmul.mubr.f32.gmra.mrb[0].mxu0 %v9358
      %v9487 = vpop.f32.mrb[0].mxu0
      %v9488 = vadd.f32 0.0, %v9487
      %v9489 = vpop.f32.mrb[0].mxu0
      %9490 = vmatprep.mubr.f32.mxu0 0.0
      %9491 = vmatmul.mubr.f32.gmra.mrb[0].mxu0 %v9361
      %v9492 = vpop.f32.mrb[0].mxu0
      %v9493 = vadd.f32 0.0, %v9492
      %v9494 = vpop.f32.mrb[0].mxu0
      %9495 = vdwg.mxu0
      %v9496 = vadd.f32 %v9328, %v9478
      %v9497 = vadd.f32 %v9333, %v9483
      %v9498 = vadd.f32 %v9338, %v9488
      %v9499 = vadd.f32 %v9343, %v9493
      %s9500 = scalar_lea.vmem %s4, 96
      %v9501 = vld [vmem:[%s9500] sm:$0xff]
      %v9502 = vld [vmem:[%s9500 + $0x8] sm:$0xff]
      %v9503 = vld [vmem:[%s9500 + $0x10] sm:$0xff]
      %v9504 = vld [vmem:[%s9500 + $0x18] sm:$0xff]
      %v9506 = vsel %vm335, %v9501, 0
      %v9509 = vsel %vm335, %v9502, 0
      %v9512 = vsel %vm335, %v9503, 0
      %v9515 = vsel %vm335, %v9504, 0
      %9517 = vmatprep.subr.mxu0 0.0
      %9518 = vmatpush1.xpose.msra.mxu0 %v4743
      %9519 = vmatprep.subr.mxu0 0.0
      %9520 = vmatpush1.xpose.msra.mxu0 %v4746
      %9521 = vmatprep.subr.mxu0 0.0
      %9522 = vmatpush1.xpose.msra.mxu0 %v4749
      %9523 = vmatprep.subr.mxu0 0.0
      %9524 = vmatpush1.xpose.msra.mxu0 %v4752
      %9525 = vmatprep.subr.mxu0 0.0
      %9526 = vmatpush1.xpose.msra.mxu0 %v4755
      %9527 = vmatprep.subr.mxu0 0.0
      %9528 = vmatpush1.xpose.msra.mxu0 %v4758
      %9529 = vmatprep.subr.mxu0 0.0
      %9530 = vmatpush1.xpose.msra.mxu0 %v4761
      %9531 = vmatprep.subr.mxu0 0.0
      %9532 = vmatpush1.xpose.msra.mxu0 %v4764
      %9533 = vmatprep.subr.mxu0 0.0
      %9534 = vmatpush1.xpose.msra.mxu0 %v4767
      %9535 = vmatprep.subr.mxu0 0.0
      %9536 = vmatpush1.xpose.msra.mxu0 %v4770
      %9537 = vmatprep.subr.mxu0 0.0
      %9538 = vmatpush1.xpose.msra.mxu0 %v4773
      %9539 = vmatprep.subr.mxu0 0.0
      %9540 = vmatpush1.xpose.msra.mxu0 %v4776
      %9541 = vmatprep.subr.mxu0 0.0
      %9542 = vmatpush1.xpose.msra.mxu0 %v4779
      %9543 = vmatprep.subr.mxu0 0.0
      %9544 = vmatpush1.xpose.msra.mxu0 %v4782
      %9545 = vmatprep.subr.mxu0 0.0
      %9546 = vmatpush1.xpose.msra.mxu0 %v4785
      %9547 = vmatprep.subr.mxu0 0.0
      %9548 = vmatpush1.xpose.msra.mxu0 %v4788
      %9549 = vmatprep.subr.mxu0 0.0
      %9550 = vmatpush1.xpose.msra.mxu0 0.0
      %9551 = vmatprep.subr.mxu0 0.0
      %9552 = vmatpush1.xpose.msra.mxu0 0.0
      %9553 = vmatprep.subr.mxu0 0.0
      %9554 = vmatpush1.xpose.msra.mxu0 0.0
      %9555 = vmatprep.subr.mxu0 0.0
      %9556 = vmatpush1.xpose.msra.mxu0 0.0
      %9557 = vmatprep.subr.mxu0 0.0
      %9558 = vmatpush1.xpose.msra.mxu0 0.0
      %9559 = vmatprep.subr.mxu0 0.0
      %9560 = vmatpush1.xpose.msra.mxu0 0.0
      %9561 = vmatprep.subr.mxu0 0.0
      %9562 = vmatpush1.xpose.msra.mxu0 0.0
      %9563 = vmatprep.subr.mxu0 0.0
      %9564 = vmatpush1.xpose.msra.mxu0 0.0
      %9565 = vmatprep.subr.mxu0 0.0
      %9566 = vmatpush1.xpose.msra.mxu0 0.0
      %9567 = vmatprep.subr.mxu0 0.0
      %9568 = vmatpush1.xpose.msra.mxu0 0.0
      %9569 = vmatprep.subr.mxu0 0.0
      %9570 = vmatpush1.xpose.msra.mxu0 0.0
      %9571 = vmatprep.subr.mxu0 0.0
      %9572 = vmatpush1.xpose.msra.mxu0 0.0
      %9573 = vmatprep.subr.mxu0 0.0
      %9574 = vmatpush1.xpose.msra.mxu0 0.0
      %9575 = vmatprep.subr.mxu0 0.0
      %9576 = vmatpush1.xpose.msra.mxu0 0.0
      %9577 = vmatprep.subr.mxu0 0.0
      %9578 = vmatpush1.xpose.msra.mxu0 0.0
      %9579 = vmatprep.subr.mxu0 0.0
      %9580 = vmatpush1.xpose.msra.mxu0 0.0
      %9581 = vmatprep.mubr.f32.mxu0 0.0
      %9582 = vmatmul.mubr.f32.gmra.mrb[0].mxu0 %v9506
      %v9583 = vpop.f32.mrb[0].mxu0
      %v9584 = vadd.f32 0.0, %v9583
      %v9585 = vpop.f32.mrb[0].mxu0
      %9586 = vmatprep.mubr.f32.mxu0 0.0
      %9587 = vmatmul.mubr.f32.gmra.mrb[0].mxu0 %v9509
      %v9588 = vpop.f32.mrb[0].mxu0
      %v9589 = vadd.f32 0.0, %v9588
      %v9590 = vpop.f32.mrb[0].mxu0
      %9591 = vmatprep.mubr.f32.mxu0 0.0
      %9592 = vmatmul.mubr.f32.gmra.mrb[0].mxu0 %v9512
      %v9593 = vpop.f32.mrb[0].mxu0
      %v9594 = vadd.f32 0.0, %v9593
      %v9595 = vpop.f32.mrb[0].mxu0
      %9596 = vmatprep.mubr.f32.mxu0 0.0
      %9597 = vmatmul.mubr.f32.gmra.mrb[0].mxu0 %v9515
      %v9598 = vpop.f32.mrb[0].mxu0
      %v9599 = vadd.f32 0.0, %v9598
      %v9600 = vpop.f32.mrb[0].mxu0
      %9601 = vdwg.mxu0
      %v9602 = vadd.f32 %v9496, %v9584
      %v9603 = vadd.f32 %v9497, %v9589
      %v9604 = vadd.f32 %v9498, %v9594
      %v9605 = vadd.f32 %v9499, %v9599
      %s9606 = scalar_lea.vmem %s4, 128
      %v9607 = vld [vmem:[%s9606] sm:$0xff]
      %v9608 = vld [vmem:[%s9606 + $0x8] sm:$0xff]
      %v9609 = vld [vmem:[%s9606 + $0x10] sm:$0xff]
      %v9610 = vld [vmem:[%s9606 + $0x18] sm:$0xff]
      %v9612 = vsel %vm335, %v9607, 0
      %v9615 = vsel %vm335, %v9608, 0
      %v9618 = vsel %vm335, %v9609, 0
      %v9621 = vsel %vm335, %v9610, 0
      %v9624 = vsel %vm335, %v6208, 0
      %v9627 = vsel %vm335, %v6209, 0
      %v9630 = vsel %vm335, %v6210, 0
      %v9633 = vsel %vm335, %v6211, 0
      %v9636 = vsel %vm335, %v6212, 0
      %v9639 = vsel %vm335, %v6213, 0
      %v9642 = vsel %vm335, %v6214, 0
      %v9645 = vsel %vm335, %v6215, 0
      %v9648 = vsel %vm335, %v6216, 0
      %v9651 = vsel %vm335, %v6217, 0
      %v9654 = vsel %vm335, %v6218, 0
      %v9657 = vsel %vm335, %v6219, 0
      %v9660 = vsel %vm335, %v6220, 0
      %v9663 = vsel %vm335, %v6221, 0
      %v9666 = vsel %vm335, %v6222, 0
      %v9669 = vsel %vm335, %v6223, 0
      %9671 = vmatprep.subr.mxu0 0.0
      %9672 = vmatpush1.xpose.msra.mxu0 %v9624
      %9673 = vmatprep.subr.mxu0 0.0
      %9674 = vmatpush1.xpose.msra.mxu0 %v9627
      %9675 = vmatprep.subr.mxu0 0.0
      %9676 = vmatpush1.xpose.msra.mxu0 %v9630
      %9677 = vmatprep.subr.mxu0 0.0
      %9678 = vmatpush1.xpose.msra.mxu0 %v9633
      %9679 = vmatprep.subr.mxu0 0.0
      %9680 = vmatpush1.xpose.msra.mxu0 %v9636
      %9681 = vmatprep.subr.mxu0 0.0
      %9682 = vmatpush1.xpose.msra.mxu0 %v9639
      %9683 = vmatprep.subr.mxu0 0.0
      %9684 = vmatpush1.xpose.msra.mxu0 %v9642
      %9685 = vmatprep.subr.mxu0 0.0
      %9686 = vmatpush1.xpose.msra.mxu0 %v9645
      %9687 = vmatprep.subr.mxu0 0.0
      %9688 = vmatpush1.xpose.msra.mxu0 %v9648
      %9689 = vmatprep.subr.mxu0 0.0
      %9690 = vmatpush1.xpose.msra.mxu0 %v9651
      %9691 = vmatprep.subr.mxu0 0.0
      %9692 = vmatpush1.xpose.msra.mxu0 %v9654
      %9693 = vmatprep.subr.mxu0 0.0
      %9694 = vmatpush1.xpose.msra.mxu0 %v9657
      %9695 = vmatprep.subr.mxu0 0.0
      %9696 = vmatpush1.xpose.msra.mxu0 %v9660
      %9697 = vmatprep.subr.mxu0 0.0
      %9698 = vmatpush1.xpose.msra.mxu0 %v9663
      %9699 = vmatprep.subr.mxu0 0.0
      %9700 = vmatpush1.xpose.msra.mxu0 %v9666
      %9701 = vmatprep.subr.mxu0 0.0
      %9702 = vmatpush1.xpose.msra.mxu0 %v9669
      %9703 = vmatprep.subr.mxu0 0.0
      %9704 = vmatpush1.xpose.msra.mxu0 0.0
      %9705 = vmatprep.subr.mxu0 0.0
      %9706 = vmatpush1.xpose.msra.mxu0 0.0
      %9707 = vmatprep.subr.mxu0 0.0
      %9708 = vmatpush1.xpose.msra.mxu0 0.0
      %9709 = vmatprep.subr.mxu0 0.0
      %9710 = vmatpush1.xpose.msra.mxu0 0.0
      %9711 = vmatprep.subr.mxu0 0.0
      %9712 = vmatpush1.xpose.msra.mxu0 0.0
      %9713 = vmatprep.subr.mxu0 0.0
      %9714 = vmatpush1.xpose.msra.mxu0 0.0
      %9715 = vmatprep.subr.mxu0 0.0
      %9716 = vmatpush1.xpose.msra.mxu0 0.0
      %9717 = vmatprep.subr.mxu0 0.0
      %9718 = vmatpush1.xpose.msra.mxu0 0.0
      %9719 = vmatprep.subr.mxu0 0.0
      %9720 = vmatpush1.xpose.msra.mxu0 0.0
      %9721 = vmatprep.subr.mxu0 0.0
      %9722 = vmatpush1.xpose.msra.mxu0 0.0
      %9723 = vmatprep.subr.mxu0 0.0
      %9724 = vmatpush1.xpose.msra.mxu0 0.0
      %9725 = vmatprep.subr.mxu0 0.0
      %9726 = vmatpush1.xpose.msra.mxu0 0.0
      %9727 = vmatprep.subr.mxu0 0.0
      %9728 = vmatpush1.xpose.msra.mxu0 0.0
      %9729 = vmatprep.subr.mxu0 0.0
      %9730 = vmatpush1.xpose.msra.mxu0 0.0
      %9731 = vmatprep.subr.mxu0 0.0
      %9732 = vmatpush1.xpose.msra.mxu0 0.0
      %9733 = vmatprep.subr.mxu0 0.0
      %9734 = vmatpush1.xpose.msra.mxu0 0.0
      %9735 = vmatprep.mubr.f32.mxu0 0.0
      %9736 = vmatmul.mubr.f32.gmra.mrb[0].mxu0 %v9612
      %v9737 = vpop.f32.mrb[0].mxu0
      %v9738 = vadd.f32 0.0, %v9737
      %v9739 = vpop.f32.mrb[0].mxu0
      %9740 = vmatprep.mubr.f32.mxu0 0.0
      %9741 = vmatmul.mubr.f32.gmra.mrb[0].mxu0 %v9615
      %v9742 = vpop.f32.mrb[0].mxu0
      %v9743 = vadd.f32 0.0, %v9742
      %v9744 = vpop.f32.mrb[0].mxu0
      %9745 = vmatprep.mubr.f32.mxu0 0.0
      %9746 = vmatmul.mubr.f32.gmra.mrb[0].mxu0 %v9618
      %v9747 = vpop.f32.mrb[0].mxu0
      %v9748 = vadd.f32 0.0, %v9747
      %v9749 = vpop.f32.mrb[0].mxu0
      %9750 = vmatprep.mubr.f32.mxu0 0.0
      %9751 = vmatmul.mubr.f32.gmra.mrb[0].mxu0 %v9621
      %v9752 = vpop.f32.mrb[0].mxu0
      %v9753 = vadd.f32 0.0, %v9752
      %v9754 = vpop.f32.mrb[0].mxu0
      %9755 = vdwg.mxu0
      %v9756 = vadd.f32 %v9602, %v9738
      %v9757 = vadd.f32 %v9603, %v9743
      %v9758 = vadd.f32 %v9604, %v9748
      %v9759 = vadd.f32 %v9605, %v9753
      %s9760 = scalar_lea.vmem %s4, 160
      %v9761 = vld [vmem:[%s9760] sm:$0xff]
      %v9762 = vld [vmem:[%s9760 + $0x8] sm:$0xff]
      %v9763 = vld [vmem:[%s9760 + $0x10] sm:$0xff]
      %v9764 = vld [vmem:[%s9760 + $0x18] sm:$0xff]
      %v9766 = vsel %vm335, %v9761, 0
      %v9769 = vsel %vm335, %v9762, 0
      %v9772 = vsel %vm335, %v9763, 0
      %v9775 = vsel %vm335, %v9764, 0
      %9777 = vmatprep.subr.mxu0 0.0
      %9778 = vmatpush1.xpose.msra.mxu0 %v7662
      %9779 = vmatprep.subr.mxu0 0.0
      %9780 = vmatpush1.xpose.msra.mxu0 %v7665
      %9781 = vmatprep.subr.mxu0 0.0
      %9782 = vmatpush1.xpose.msra.mxu0 %v7668
      %9783 = vmatprep.subr.mxu0 0.0
      %9784 = vmatpush1.xpose.msra.mxu0 %v7671
      %9785 = vmatprep.subr.mxu0 0.0
      %9786 = vmatpush1.xpose.msra.mxu0 %v7674
      %9787 = vmatprep.subr.mxu0 0.0
      %9788 = vmatpush1.xpose.msra.mxu0 %v7677
      %9789 = vmatprep.subr.mxu0 0.0
      %9790 = vmatpush1.xpose.msra.mxu0 %v7680
      %9791 = vmatprep.subr.mxu0 0.0
      %9792 = vmatpush1.xpose.msra.mxu0 %v7683
      %9793 = vmatprep.subr.mxu0 0.0
      %9794 = vmatpush1.xpose.msra.mxu0 %v7686
      %9795 = vmatprep.subr.mxu0 0.0
      %9796 = vmatpush1.xpose.msra.mxu0 %v7689
      %9797 = vmatprep.subr.mxu0 0.0
      %9798 = vmatpush1.xpose.msra.mxu0 %v7692
      %9799 = vmatprep.subr.mxu0 0.0
      %9800 = vmatpush1.xpose.msra.mxu0 %v7695
      %9801 = vmatprep.subr.mxu0 0.0
      %9802 = vmatpush1.xpose.msra.mxu0 %v7698
      %9803 = vmatprep.subr.mxu0 0.0
      %9804 = vmatpush1.xpose.msra.mxu0 %v7701
      %9805 = vmatprep.subr.mxu0 0.0
      %9806 = vmatpush1.xpose.msra.mxu0 %v7704
      %9807 = vmatprep.subr.mxu0 0.0
      %9808 = vmatpush1.xpose.msra.mxu0 %v7707
      %9809 = vmatprep.subr.mxu0 0.0
      %9810 = vmatpush1.xpose.msra.mxu0 0.0
      %9811 = vmatprep.subr.mxu0 0.0
      %9812 = vmatpush1.xpose.msra.mxu0 0.0
      %9813 = vmatprep.subr.mxu0 0.0
      %9814 = vmatpush1.xpose.msra.mxu0 0.0
      %9815 = vmatprep.subr.mxu0 0.0
      %9816 = vmatpush1.xpose.msra.mxu0 0.0
      %9817 = vmatprep.subr.mxu0 0.0
      %9818 = vmatpush1.xpose.msra.mxu0 0.0
      %9819 = vmatprep.subr.mxu0 0.0
      %9820 = vmatpush1.xpose.msra.mxu0 0.0
      %9821 = vmatprep.subr.mxu0 0.0
      %9822 = vmatpush1.xpose.msra.mxu0 0.0
      %9823 = vmatprep.subr.mxu0 0.0
      %9824 = vmatpush1.xpose.msra.mxu0 0.0
      %9825 = vmatprep.subr.mxu0 0.0
      %9826 = vmatpush1.xpose.msra.mxu0 0.0
      %9827 = vmatprep.subr.mxu0 0.0
      %9828 = vmatpush1.xpose.msra.mxu0 0.0
      %9829 = vmatprep.subr.mxu0 0.0
      %9830 = vmatpush1.xpose.msra.mxu0 0.0
      %9831 = vmatprep.subr.mxu0 0.0
      %9832 = vmatpush1.xpose.msra.mxu0 0.0
      %9833 = vmatprep.subr.mxu0 0.0
      %9834 = vmatpush1.xpose.msra.mxu0 0.0
      %9835 = vmatprep.subr.mxu0 0.0
      %9836 = vmatpush1.xpose.msra.mxu0 0.0
      %9837 = vmatprep.subr.mxu0 0.0
      %9838 = vmatpush1.xpose.msra.mxu0 0.0
      %9839 = vmatprep.subr.mxu0 0.0
      %9840 = vmatpush1.xpose.msra.mxu0 0.0
      %9841 = vmatprep.mubr.f32.mxu0 0.0
      %9842 = vmatmul.mubr.f32.gmra.mrb[0].mxu0 %v9766
      %v9843 = vpop.f32.mrb[0].mxu0
      %v9844 = vadd.f32 0.0, %v9843
      %v9845 = vpop.f32.mrb[0].mxu0
      %9846 = vmatprep.mubr.f32.mxu0 0.0
      %9847 = vmatmul.mubr.f32.gmra.mrb[0].mxu0 %v9769
      %v9848 = vpop.f32.mrb[0].mxu0
      %v9849 = vadd.f32 0.0, %v9848
      %v9850 = vpop.f32.mrb[0].mxu0
      %9851 = vmatprep.mubr.f32.mxu0 0.0
      %9852 = vmatmul.mubr.f32.gmra.mrb[0].mxu0 %v9772
      %v9853 = vpop.f32.mrb[0].mxu0
      %v9854 = vadd.f32 0.0, %v9853
      %v9855 = vpop.f32.mrb[0].mxu0
      %9856 = vmatprep.mubr.f32.mxu0 0.0
      %9857 = vmatmul.mubr.f32.gmra.mrb[0].mxu0 %v9775
      %v9858 = vpop.f32.mrb[0].mxu0
      %v9859 = vadd.f32 0.0, %v9858
      %v9860 = vpop.f32.mrb[0].mxu0
      %9861 = vdwg.mxu0
      %v9862 = vadd.f32 %v9756, %v9844
      %v9863 = vadd.f32 %v9757, %v9849
      %v9864 = vadd.f32 %v9758, %v9854
      %v9865 = vadd.f32 %v9759, %v9859
      %s9866 = scalar_lea.vmem %s4, 192
      %v9867 = vld [vmem:[%s9866] sm:$0xff]
      %v9868 = vld [vmem:[%s9866 + $0x8] sm:$0xff]
      %v9869 = vld [vmem:[%s9866 + $0x10] sm:$0xff]
      %v9870 = vld [vmem:[%s9866 + $0x18] sm:$0xff]
      %v9872 = vsel %vm335, %v9867, 0
      %v9875 = vsel %vm335, %v9868, 0
      %v9878 = vsel %vm335, %v9869, 0
      %v9881 = vsel %vm335, %v9870, 0
      %v9884 = vsel %vm335, %v9127, 0
      %v9887 = vsel %vm335, %v9128, 0
      %v9890 = vsel %vm335, %v9129, 0
      %v9893 = vsel %vm335, %v9130, 0
      %v9896 = vsel %vm335, %v9131, 0
      %v9899 = vsel %vm335, %v9132, 0
      %v9902 = vsel %vm335, %v9133, 0
      %v9905 = vsel %vm335, %v9134, 0
      %v9908 = vsel %vm335, %v9135, 0
      %v9911 = vsel %vm335, %v9136, 0
      %v9914 = vsel %vm335, %v9137, 0
      %v9917 = vsel %vm335, %v9138, 0
      %v9920 = vsel %vm335, %v9139, 0
      %v9923 = vsel %vm335, %v9140, 0
      %v9926 = vsel %vm335, %v9141, 0
      %v9929 = vsel %vm335, %v9142, 0
      %9931 = vmatprep.subr.mxu0 0.0
      %9932 = vmatpush1.xpose.msra.mxu0 %v9884
      %9933 = vmatprep.subr.mxu0 0.0
      %9934 = vmatpush1.xpose.msra.mxu0 %v9887
      %9935 = vmatprep.subr.mxu0 0.0
      %9936 = vmatpush1.xpose.msra.mxu0 %v9890
      %9937 = vmatprep.subr.mxu0 0.0
      %9938 = vmatpush1.xpose.msra.mxu0 %v9893
      %9939 = vmatprep.subr.mxu0 0.0
      %9940 = vmatpush1.xpose.msra.mxu0 %v9896
      %9941 = vmatprep.subr.mxu0 0.0
      %9942 = vmatpush1.xpose.msra.mxu0 %v9899
      %9943 = vmatprep.subr.mxu0 0.0
      %9944 = vmatpush1.xpose.msra.mxu0 %v9902
      %9945 = vmatprep.subr.mxu0 0.0
      %9946 = vmatpush1.xpose.msra.mxu0 %v9905
      %9947 = vmatprep.subr.mxu0 0.0
      %9948 = vmatpush1.xpose.msra.mxu0 %v9908
      %9949 = vmatprep.subr.mxu0 0.0
      %9950 = vmatpush1.xpose.msra.mxu0 %v9911
      %9951 = vmatprep.subr.mxu0 0.0
      %9952 = vmatpush1.xpose.msra.mxu0 %v9914
      %9953 = vmatprep.subr.mxu0 0.0
      %9954 = vmatpush1.xpose.msra.mxu0 %v9917
      %9955 = vmatprep.subr.mxu0 0.0
      %9956 = vmatpush1.xpose.msra.mxu0 %v9920
      %9957 = vmatprep.subr.mxu0 0.0
      %9958 = vmatpush1.xpose.msra.mxu0 %v9923
      %9959 = vmatprep.subr.mxu0 0.0
      %9960 = vmatpush1.xpose.msra.mxu0 %v9926
      %9961 = vmatprep.subr.mxu0 0.0
      %9962 = vmatpush1.xpose.msra.mxu0 %v9929
      %9963 = vmatprep.subr.mxu0 0.0
      %9964 = vmatpush1.xpose.msra.mxu0 0.0
      %9965 = vmatprep.subr.mxu0 0.0
      %9966 = vmatpush1.xpose.msra.mxu0 0.0
      %9967 = vmatprep.subr.mxu0 0.0
      %9968 = vmatpush1.xpose.msra.mxu0 0.0
      %9969 = vmatprep.subr.mxu0 0.0
      %9970 = vmatpush1.xpose.msra.mxu0 0.0
      %9971 = vmatprep.subr.mxu0 0.0
      %9972 = vmatpush1.xpose.msra.mxu0 0.0
      %9973 = vmatprep.subr.mxu0 0.0
      %9974 = vmatpush1.xpose.msra.mxu0 0.0
      %9975 = vmatprep.subr.mxu0 0.0
      %9976 = vmatpush1.xpose.msra.mxu0 0.0
      %9977 = vmatprep.subr.mxu0 0.0
      %9978 = vmatpush1.xpose.msra.mxu0 0.0
      %9979 = vmatprep.subr.mxu0 0.0
      %9980 = vmatpush1.xpose.msra.mxu0 0.0
      %9981 = vmatprep.subr.mxu0 0.0
      %9982 = vmatpush1.xpose.msra.mxu0 0.0
      %9983 = vmatprep.subr.mxu0 0.0
      %9984 = vmatpush1.xpose.msra.mxu0 0.0
      %9985 = vmatprep.subr.mxu0 0.0
      %9986 = vmatpush1.xpose.msra.mxu0 0.0
      %9987 = vmatprep.subr.mxu0 0.0
      %9988 = vmatpush1.xpose.msra.mxu0 0.0
      %9989 = vmatprep.subr.mxu0 0.0
      %9990 = vmatpush1.xpose.msra.mxu0 0.0
      %9991 = vmatprep.subr.mxu0 0.0
      %9992 = vmatpush1.xpose.msra.mxu0 0.0
      %9993 = vmatprep.subr.mxu0 0.0
      %9994 = vmatpush1.xpose.msra.mxu0 0.0
      %9995 = vmatprep.mubr.f32.mxu0 0.0
      %9996 = vmatmul.mubr.f32.gmra.mrb[0].mxu0 %v9872
      %v9997 = vpop.f32.mrb[0].mxu0
      %v9998 = vadd.f32 0.0, %v9997
      %v9999 = vpop.f32.mrb[0].mxu0
      %10000 = vmatprep.mubr.f32.mxu0 0.0
      %10001 = vmatmul.mubr.f32.gmra.mrb[0].mxu0 %v9875
      %v10002 = vpop.f32.mrb[0].mxu0
      %v10003 = vadd.f32 0.0, %v10002
      %v10004 = vpop.f32.mrb[0].mxu0
      %10005 = vmatprep.mubr.f32.mxu0 0.0
      %10006 = vmatmul.mubr.f32.gmra.mrb[0].mxu0 %v9878
      %v10007 = vpop.f32.mrb[0].mxu0
      %v10008 = vadd.f32 0.0, %v10007
      %v10009 = vpop.f32.mrb[0].mxu0
      %10010 = vmatprep.mubr.f32.mxu0 0.0
      %10011 = vmatmul.mubr.f32.gmra.mrb[0].mxu0 %v9881
      %v10012 = vpop.f32.mrb[0].mxu0
      %v10013 = vadd.f32 0.0, %v10012
      %v10014 = vpop.f32.mrb[0].mxu0
      %10015 = vdwg.mxu0
      %v10016 = vadd.f32 %v9862, %v9998
      %v10017 = vadd.f32 %v9863, %v10003
      %v10018 = vadd.f32 %v9864, %v10008
      %v10019 = vadd.f32 %v9865, %v10013
      %v10020 = vld [vmem:[%s5] sm:$0xff]
      %v10021 = vld [vmem:[%s5 + $0x8] sm:$0xff]
      %v10022 = vld [vmem:[%s5 + $0x10] sm:$0xff]
      %v10023 = vld [vmem:[%s5 + $0x18] sm:$0xff]
      %10025 = vset.pattern.permute.xlu0 0
      %10026 = vperm.xlu0 %10025, %v10020
      %v10027 = vpop.permute.xlu0 %10026
      %10030 = vset.pattern.permute.xlu0 0
      %10031 = vperm.xlu0 %10030, %v10021
      %v10032 = vpop.permute.xlu0 %10031
      %10035 = vset.pattern.permute.xlu0 0
      %10036 = vperm.xlu0 %10035, %v10022
      %v10037 = vpop.permute.xlu0 %10036
      %10040 = vset.pattern.permute.xlu0 0
      %10041 = vperm.xlu0 %10040, %v10023
      %v10042 = vpop.permute.xlu0 %10041
      %v10044 = vadd.f32 %v10016, %v10027
      %v10045 = vadd.f32 %v10017, %v10032
      %v10046 = vadd.f32 %v10018, %v10037
      %v10047 = vadd.f32 %v10019, %v10042
      %10048 = vst [vmem:[%s311] sm:$0xff] %v10044
      %10049 = vst [vmem:[%s311 + $0x8] sm:$0xff] %v10045
      %10050 = vst [vmem:[%s311 + $0x10] sm:$0xff] %v10046
      %10051 = vst [vmem:[%s311 + $0x18] sm:$0xff] %v10047
      %p10052 = scmp.lt.s32.totalorder %s17, 1
      %s10053 = scalar_select %p10052, %s17, 1
      %s10054 = smul.addr %s10053, 4
      %s10055 = smul.addr %s10054, 8
      %s10056 = scalar_lea.vmem %s6, %s10055
      // Predicated region
      $region45: #{gcn3_forward.1} parent=43 // pred_check
        %p10057 = pneg %p181
      $region46: #{gcn3_forward.1} parent=43 // pred_check_branch
        %10059 = sbr.rel (%p10057) target = $region48
      $region47: #{gcn3_forward.1} parent=43 // pred_region
        _
      $region48: #{gcn3_forward.1} parent=43 // pred_fallthru
        _
    $region44: #{gcn3_forward.1} parent=5 // pred_fallthru
      _
    %p10060 = scmp.le.s32.totalorder 2, %s12
    // Predicated region
    $region49: #{gcn3_forward.1} parent=5 // pred_check
      %p10061 = pneg %p10060
    $region50: #{gcn3_forward.1} parent=5 // pred_check_branch
      %10063 = sbr.rel (%p10061) target = $region52
    $region51: #{gcn3_forward.1} parent=5 // pred_region
      %s10064 = ssub.s32 %s12, 2
      // Predicated region
      $region53: #{gcn3_forward.1} parent=51 // pred_check
        %p10065 = pneg %p187
      $region54: #{gcn3_forward.1} parent=51 // pred_check_branch
        %10067 = sbr.rel (%p10065) target = $region56
      $region55: #{gcn3_forward.1} parent=51 // pred_region
        %p10068 = scmp.lt.s32.totalorder %s18, 1
        %s10069 = scalar_select %p10068, %s18, 1
        %s10070 = smul.addr %s10069, 4
        %s10071 = smul.addr %s10070, 8
        %s10072 = scalar_lea.vmem %s6, %s10071
      $region56: #{gcn3_forward.1} parent=51 // pred_fallthru
        _
    $region52: #{gcn3_forward.1} parent=5 // pred_fallthru
      _
  $region6: #{gcn3_forward.1} parent=0 // loop_footer
    %s16 = sadd.s32 1, %s12
  $region7: #{gcn3_forward.1} parent=0 // loop_footer_branch
    %11 = sbr.rel target = $region3
  $region8: #{gcn3_forward.1} parent=0 // loop_exit
    _

</llo_original>
